<compile_context>
chip_gen: v7x
topology: tpu7x:2x2x1
jax: 0.10.0
libtpu: 0.0.40
codegen_flags: <defaults>
</compile_context>

<pallas_src>
import jax
import jax.numpy as jnp
from jax.experimental import pallas as pl
from jax.experimental.pallas import tpu as pltpu

EPS = 1e-5  # nn.BatchNorm3d default eps


def res_block3d_forward(x_ncdhw, w1, gamma1, beta1, w2, gamma2, beta2):
    """Forward pass of ResBlock3D (stride=1, downsample=None, bias=False, training-mode BN)."""
    N, C, D, H, W = x_ncdhw.shape
    assert w1.shape[0] == C, "downsample=None requires in_channels == out_channels"
    Hp, Wp = H + 2, W + 2
    HWp = Hp * Wp
    Dp = D + 2
    MARGIN = Wp + 1                      # max |tap offset| inside a plane
    M = N * D * H * W                    # number of valid positions for BN stats

    # ---------------- plain-JAX layout prep (cheap, no 27x expansion) ----------------
    # x -> zero-padded channel-plane layout (N, Dp, C, Hp*Wp), bf16 to halve HBM reads.
    xp = jnp.pad(x_ncdhw.astype(jnp.float32), ((0, 0), (0, 0), (1, 1), (1, 1), (1, 1)))
    x_t = jnp.transpose(xp, (0, 2, 1, 3, 4)).reshape(N, Dp, C, HWp).astype(jnp.bfloat16)

    # Conv3d weight (Cout,Cin,kd,kh,kw) -> (27, Cout, Cin), bf16 for the MXU.
    w1t = jnp.transpose(w1, (2, 3, 4, 0, 1)).reshape(27, C, C).astype(jnp.bfloat16)
    w2t = jnp.transpose(w2, (2, 3, 4, 0, 1)).reshape(27, C, C).astype(jnp.bfloat16)

    # 1/0 mask of valid (non-pad) positions inside a padded H/W plane.
    mask_hw = jnp.zeros((Hp, Wp), jnp.float32).at[1:H + 1, 1:W + 1].set(1.0).reshape(1, HWp)

    # ---------------- in-kernel conv helper (27 shifted matmuls) ---------------------
    def _conv_from_ext(ext_planes, w_ref):
        """ext_planes: 3 zero-extended (C, HWp+2*MARGIN) bf16 planes (padded D slices a=0,1,2)."""
        acc = None
        for kd in range(3):
            ext = ext_planes[kd]
            for kh in range(3):
                for kw in range(3):
                    start = MARGIN + (kh - 1) * Wp + (kw - 1)        # static lane slice
                    t = (kd * 3 + kh) * 3 + kw
                    xs = ext[:, start:start + HWp]                   # (C, HWp) bf16
                    c = jnp.dot(w_ref[t], xs, preferred_element_type=jnp.float32)
                    acc = c if acc is None else acc + c
        return acc                                                   # (C, HWp) f32

    def _partial_stats(y_masked):
        # per-channel partial sum / sumsq over valid positions of this plane
        return jnp.concatenate(
            [jnp.sum(y_masked, axis=-1, keepdims=True),
             jnp.sum(y_masked * y_masked, axis=-1, keepdims=True)], axis=-1)  # (C, 2)

    # ---------------- kernels ---------------------------------------------------------
    def conv1_kernel(x_m, x_c, x_p, w_ref, mask_ref, y_ref, st_ref):
        z = jnp.zeros((C, MARGIN), jnp.bfloat16)
        exts = [jnp.concatenate([z, r[0, 0], z], axis=-1) for r in (x_m, x_c, x_p)]
        y = _conv_from_ext(exts, w_ref)                              # conv1 output plane (f32)
        y_ref[0, 0] = y
        st_ref[0, 0] = _partial_stats(y * mask_ref[...])

    def conv2_kernel(y_m, y_c, y_p, w_ref, sc_ref, sh_ref, mask_ref, y2_ref, st_ref):
        # bn1 (folded scale/shift) + ReLU fused on the conv2 input path; h1 never hits HBM.
        d = pl.program_id(1)
        nd = pl.num_programs(1)
        mask = mask_ref[...]                                         # (1, HWp)
        sc = sc_ref[...]                                             # (C, 1)
        sh = sh_ref[...]
        z = jnp.zeros((C, MARGIN), jnp.bfloat16)

        def h_ext(ref, gate):
            h = jnp.maximum(ref[0, 0] * sc + sh, 0.0) * (mask * gate)
            return jnp.concatenate([z, h.astype(jnp.bfloat16), z], axis=-1)

        g_lo = (d > 0).astype(jnp.float32)            # D-boundary: d-1 slice is zero padding
        g_hi = (d < nd - 1).astype(jnp.float32)       # D-boundary: d+1 slice is zero padding
        exts = [h_ext(y_m, g_lo), h_ext(y_c, 1.0), h_ext(y_p, g_hi)]
        y2 = _conv_from_ext(exts, w_ref)
        y2_ref[0, 0] = y2
        st_ref[0, 0] = _partial_stats(y2 * mask)

    def bn_add_relu_kernel(y2_ref, xid_ref, sc_ref, sh_ref, out_ref):
        y = y2_ref[0, 0]                                             # (C, HWp) f32
        xid = xid_ref[0, 0].astype(jnp.float32)                      # identity (bf16 -> f32)
        out_ref[0, 0] = jnp.maximum(y * sc_ref[...] + sh_ref[...] + xid, 0.0)

    # ---------------- BlockSpecs / grid ------------------------------------------------
    plane_block = (1, 1, C, HWp)
    spec_plane = pl.BlockSpec(plane_block, lambda n, d: (n, d, 0, 0))
    spec_stats = pl.BlockSpec((1, 1, C, 2), lambda n, d: (n, d, 0, 0))
    spec_w = pl.BlockSpec((27, C, C), lambda n, d: (0, 0, 0))
    spec_mask = pl.BlockSpec((1, HWp), lambda n, d: (0, 0))
    spec_cvec = pl.BlockSpec((C, 1), lambda n, d: (0, 0))

    # padded-D x planes at kd = 0, 1, 2 (halo along D via three index maps, no 27x im2col)
    spec_x0 = pl.BlockSpec(plane_block, lambda n, d: (n, d, 0, 0))
    spec_x1 = pl.BlockSpec(plane_block, lambda n, d: (n, d + 1, 0, 0))
    spec_x2 = pl.BlockSpec(plane_block, lambda n, d: (n, d + 2, 0, 0))

    # unpadded-D y1 planes at d-1, d, d+1 (clamped; out-of-range slices are zero-gated in-kernel)
    spec_ym = pl.BlockSpec(plane_block, lambda n, d: (n, jnp.maximum(d - 1, 0), 0, 0))
    spec_yc = pl.BlockSpec(plane_block, lambda n, d: (n, d, 0, 0))
    spec_yp = pl.BlockSpec(plane_block, lambda n, d: (n, jnp.minimum(d + 1, D - 1), 0, 0))

    cparams = pltpu.CompilerParams(
        dimension_semantics=("parallel", "parallel"),   # v7x: split (N, D) grid over both TCs
        vmem_limit_bytes=32 * 1024 * 1024,              # tiles sized to fit v7x's 64 MiB VMEM
    )

    plane_out = jax.ShapeDtypeStruct((N, D, C, HWp), jnp.float32)
    stats_out = jax.ShapeDtypeStruct((N, D, C, 2), jnp.float32)

    def _affine_from_stats(stats, gamma, beta):
        s = jnp.sum(stats, axis=(0, 1))                              # (C, 2) global reduction
        mean = s[:, 0] / M
        var = s[:, 1] / M - mean * mean                              # biased (training-mode) var
        scale = gamma.astype(jnp.float32) * jax.lax.rsqrt(var + EPS)
        shift = beta.astype(jnp.float32) - mean * scale
        return scale.reshape(C, 1), shift.reshape(C, 1)

    # ---- pass 1: conv1 + BN1 partial stats ----
    y1, stats1 = pl.pallas_call(
        conv1_kernel,
        grid=(N, D),
        in_specs=[spec_x0, spec_x1, spec_x2, spec_w, spec_mask],
        out_specs=(spec_plane, spec_stats),
        out_shape=(plane_out, stats_out),
        compiler_params=cparams,
    )(x_t, x_t, x_t, w1t, mask_hw)

    scale1, shift1 = _affine_from_stats(stats1, gamma1, beta1)

    # ---- pass 2: (bn1+relu fused) conv2 + BN2 partial stats ----
    y2, stats2 = pl.pallas_call(
        conv2_kernel,
        grid=(N, D),
        in_specs=[spec_ym, spec_yc, spec_yp, spec_w, spec_cvec, spec_cvec, spec_mask],
        out_specs=(spec_plane, spec_stats),
        out_shape=(plane_out, stats_out),
        compiler_params=cparams,
    )(y1, y1, y1, w2t, scale1, shift1, mask_hw)

    scale2, shift2 = _affine_from_stats(stats2, gamma2, beta2)

    # ---- pass 3: bn2 + residual add + relu ----
    out_t = pl.pallas_call(
        bn_add_relu_kernel,
        grid=(N, D),
        in_specs=[spec_yc, spec_x1, spec_cvec, spec_cvec],
        out_specs=spec_plane,
        out_shape=plane_out,
        compiler_params=cparams,
    )(y2, x_t, scale2, shift2)

    # crop the H/W padding and go back to NCDHW
    out_p = out_t.reshape(N, D, C, Hp, Wp)[:, :, :, 1:H + 1, 1:W + 1]
    return jnp.transpose(out_p, (0, 2, 1, 3, 4))


# --------------------------------------------------------- pure-JAX reference (f32)

def _reference(x_ncdhw, w1, g1, b1, w2, g2, b2):
    def conv3d(x, wt):
        return jax.lax.conv_general_dilated(
            x, jnp.transpose(wt, (2, 3, 4, 1, 0)),
            window_strides=(1, 1, 1), padding=((1, 1), (1, 1), (1, 1)),
            dimension_numbers=('NDHWC', 'DHWIO', 'NDHWC'),
            precision=jax.lax.Precision.HIGHEST)

    def bn(y, g, b):
        mean = jnp.mean(y, axis=(0, 1, 2, 3), keepdims=True)
        var = jnp.mean(jnp.square(y - mean), axis=(0, 1, 2, 3), keepdims=True)
        return (y - mean) * jax.lax.rsqrt(var + EPS) * g + b

    x = jnp.transpose(x_ncdhw, (0, 2, 3, 4, 1))
    h = jnp.maximum(bn(conv3d(x, w1), g1, b1), 0.0)
    o = jnp.maximum(bn(conv3d(h, w2), g2, b2) + x, 0.0)
    return jnp.transpose(o, (0, 4, 1, 2, 3))


# ------------------------------------------------------------------- main ---

if __name__ == "__main__":
    key = jax.random.PRNGKey(0)
    N, C, D, H, W = 2, 4, 8, 16, 16   # in_channels == out_channels == 4
    k_x, k_w1, k_w2 = jax.random.split(key, 3)

    x = jax.random.normal(k_x, (N, C, D, H, W), jnp.float32)
    # Conv3d weight shape: (out_channels, in_channels, kD, kH, kW), bias=False
    w1 = 0.1 * jax.random.normal(k_w1, (C, C, 3, 3, 3), jnp.float32)
    w2 = 0.1 * jax.random.normal(k_w2, (C, C, 3, 3, 3), jnp.float32)
    # BatchNorm3d defaults: weight=1, bias=0 (training-mode batch statistics)
    gamma1 = jnp.ones((C,), jnp.float32)
    beta1 = jnp.zeros((C,), jnp.float32)
    gamma2 = jnp.ones((C,), jnp.float32)
    beta2 = jnp.zeros((C,), jnp.float32)

    fwd = jax.jit(res_block3d_forward)
    out = jax.block_until_ready(fwd(x, w1, gamma1, beta1, w2, gamma2, beta2))
    assert out.shape == (N, C, D, H, W) and out.dtype == jnp.float32

    ref = jax.block_until_ready(_reference(x, w1, gamma1, beta1, w2, gamma2, beta2))
    max_err = float(jnp.max(jnp.abs(out - ref)))
    # tolerance accounts for bf16 activations/weights on the MXU and bf16 identity path
    assert jnp.allclose(out, ref, atol=2e-2, rtol=2e-2), max_err

    print("KERNEL_OK")
</pallas_src>

<mosaic_0001>
module attributes {stable_mosaic.version = 11 : i64} {
  func.func @conv1_kernel(%arg0: i32, %arg1: i32, %arg2: memref<1x1x4x324xbf16, #tpu.memory_space<vmem>>, %arg3: memref<1x1x4x324xbf16, #tpu.memory_space<vmem>>, %arg4: memref<1x1x4x324xbf16, #tpu.memory_space<vmem>>, %arg5: memref<27x4x4xbf16, #tpu.memory_space<vmem>>, %arg6: memref<1x324xf32, #tpu.memory_space<vmem>>, %arg7: memref<1x1x4x324xf32, #tpu.memory_space<vmem>>, %arg8: memref<1x1x4x2xf32, #tpu.memory_space<vmem>>) attributes {dimension_semantics = [#tpu.dimension_semantics<parallel>, #tpu.dimension_semantics<parallel>], iteration_bounds = array<i64: 2, 8>, scalar_prefetch = 0 : i64, scratch_operands = 0 : i64, tpu.core_type = #tpu.core_type<tc>, window_params = [{transform_indices = @transform_0, window_bounds = array<i64: 1, 1, 4, 324>}, {transform_indices = @transform_1, window_bounds = array<i64: 1, 1, 4, 324>}, {transform_indices = @transform_2, window_bounds = array<i64: 1, 1, 4, 324>}, {pipeline_mode = #tpu.pipeline_mode<synchronous>, transform_indices = @transform_3, window_bounds = array<i64: 27, 4, 4>}, {pipeline_mode = #tpu.pipeline_mode<synchronous>, transform_indices = @transform_4, window_bounds = array<i64: 1, 324>}, {transform_indices = @transform_5, window_bounds = array<i64: 1, 1, 4, 324>}, {transform_indices = @transform_6, window_bounds = array<i64: 1, 1, 4, 2>}]} {
    %cst = arith.constant 0.000000e+00 : bf16
    %0 = vector.broadcast %cst : bf16 to vector<4x19xbf16>
    %c0 = arith.constant 0 : index
    %c0_0 = arith.constant 0 : index
    %c0_1 = arith.constant 0 : index
    %c0_2 = arith.constant 0 : index
    %1 = vector.load %arg2[%c0, %c0_0, %c0_1, %c0_2] : memref<1x1x4x324xbf16, #tpu.memory_space<vmem>>, vector<1x1x4x324xbf16>
    %2 = vector.shape_cast %1 : vector<1x1x4x324xbf16> to vector<4x324xbf16>
    %3 = tpu.concatenate %0, %2, %0 in 1 : vector<4x19xbf16>, vector<4x324xbf16>, vector<4x19xbf16> -> vector<4x362xbf16>
    %c0_3 = arith.constant 0 : index
    %c0_4 = arith.constant 0 : index
    %c0_5 = arith.constant 0 : index
    %c0_6 = arith.constant 0 : index
    %4 = vector.load %arg3[%c0_3, %c0_4, %c0_5, %c0_6] : memref<1x1x4x324xbf16, #tpu.memory_space<vmem>>, vector<1x1x4x324xbf16>
    %5 = vector.shape_cast %4 : vector<1x1x4x324xbf16> to vector<4x324xbf16>
    %6 = tpu.concatenate %0, %5, %0 in 1 : vector<4x19xbf16>, vector<4x324xbf16>, vector<4x19xbf16> -> vector<4x362xbf16>
    %c0_7 = arith.constant 0 : index
    %c0_8 = arith.constant 0 : index
    %c0_9 = arith.constant 0 : index
    %c0_10 = arith.constant 0 : index
    %7 = vector.load %arg4[%c0_7, %c0_8, %c0_9, %c0_10] : memref<1x1x4x324xbf16, #tpu.memory_space<vmem>>, vector<1x1x4x324xbf16>
    %8 = vector.shape_cast %7 : vector<1x1x4x324xbf16> to vector<4x324xbf16>
    %9 = tpu.concatenate %0, %8, %0 in 1 : vector<4x19xbf16>, vector<4x324xbf16>, vector<4x19xbf16> -> vector<4x362xbf16>
    %10 = vector.extract_strided_slice %3 {offsets = [0, 0], sizes = [4, 324], strides = [1, 1]} : vector<4x362xbf16> to vector<4x324xbf16>
    %c0_11 = arith.constant 0 : index
    %c0_12 = arith.constant 0 : index
    %c0_13 = arith.constant 0 : index
    %11 = vector.load %arg5[%c0_11, %c0_12, %c0_13] : memref<27x4x4xbf16, #tpu.memory_space<vmem>>, vector<1x4x4xbf16>
    %12 = vector.shape_cast %11 : vector<1x4x4xbf16> to vector<4x4xbf16>
    %cst_14 = arith.constant dense<0.000000e+00> : vector<4x324xf32>
    %13 = tpu.matmul %12, %10, %cst_14 {dimension_numbers = #tpu.dot_dimension_numbers<[1], [0], [0], [1], [0, 0, 1, 1], [], []>} : vector<4x4xbf16>, vector<4x324xbf16>, vector<4x324xf32> -> vector<4x324xf32>
    %14 = vector.extract_strided_slice %3 {offsets = [0, 1], sizes = [4, 324], strides = [1, 1]} : vector<4x362xbf16> to vector<4x324xbf16>
    %c1 = arith.constant 1 : index
    %c0_15 = arith.constant 0 : index
    %c0_16 = arith.constant 0 : index
    %15 = vector.load %arg5[%c1, %c0_15, %c0_16] : memref<27x4x4xbf16, #tpu.memory_space<vmem>>, vector<1x4x4xbf16>
    %16 = vector.shape_cast %15 : vector<1x4x4xbf16> to vector<4x4xbf16>
    %cst_17 = arith.constant dense<0.000000e+00> : vector<4x324xf32>
    %17 = tpu.matmul %16, %14, %cst_17 {dimension_numbers = #tpu.dot_dimension_numbers<[1], [0], [0], [1], [0, 0, 1, 1], [], []>} : vector<4x4xbf16>, vector<4x324xbf16>, vector<4x324xf32> -> vector<4x324xf32>
    %18 = arith.addf %13, %17 : vector<4x324xf32>
    %19 = vector.extract_strided_slice %3 {offsets = [0, 2], sizes = [4, 324], strides = [1, 1]} : vector<4x362xbf16> to vector<4x324xbf16>
    %c2 = arith.constant 2 : index
    %c0_18 = arith.constant 0 : index
    %c0_19 = arith.constant 0 : index
    %20 = vector.load %arg5[%c2, %c0_18, %c0_19] : memref<27x4x4xbf16, #tpu.memory_space<vmem>>, vector<1x4x4xbf16>
    %21 = vector.shape_cast %20 : vector<1x4x4xbf16> to vector<4x4xbf16>
    %cst_20 = arith.constant dense<0.000000e+00> : vector<4x324xf32>
    %22 = tpu.matmul %21, %19, %cst_20 {dimension_numbers = #tpu.dot_dimension_numbers<[1], [0], [0], [1], [0, 0, 1, 1], [], []>} : vector<4x4xbf16>, vector<4x324xbf16>, vector<4x324xf32> -> vector<4x324xf32>
    %23 = arith.addf %18, %22 : vector<4x324xf32>
    %24 = vector.extract_strided_slice %3 {offsets = [0, 18], sizes = [4, 324], strides = [1, 1]} : vector<4x362xbf16> to vector<4x324xbf16>
    %c3 = arith.constant 3 : index
    %c0_21 = arith.constant 0 : index
    %c0_22 = arith.constant 0 : index
    %25 = vector.load %arg5[%c3, %c0_21, %c0_22] : memref<27x4x4xbf16, #tpu.memory_space<vmem>>, vector<1x4x4xbf16>
    %26 = vector.shape_cast %25 : vector<1x4x4xbf16> to vector<4x4xbf16>
    %cst_23 = arith.constant dense<0.000000e+00> : vector<4x324xf32>
    %27 = tpu.matmul %26, %24, %cst_23 {dimension_numbers = #tpu.dot_dimension_numbers<[1], [0], [0], [1], [0, 0, 1, 1], [], []>} : vector<4x4xbf16>, vector<4x324xbf16>, vector<4x324xf32> -> vector<4x324xf32>
    %28 = arith.addf %23, %27 : vector<4x324xf32>
    %29 = vector.extract_strided_slice %3 {offsets = [0, 19], sizes = [4, 324], strides = [1, 1]} : vector<4x362xbf16> to vector<4x324xbf16>
    %c4 = arith.constant 4 : index
    %c0_24 = arith.constant 0 : index
    %c0_25 = arith.constant 0 : index
    %30 = vector.load %arg5[%c4, %c0_24, %c0_25] : memref<27x4x4xbf16, #tpu.memory_space<vmem>>, vector<1x4x4xbf16>
    %31 = vector.shape_cast %30 : vector<1x4x4xbf16> to vector<4x4xbf16>
    %cst_26 = arith.constant dense<0.000000e+00> : vector<4x324xf32>
    %32 = tpu.matmul %31, %29, %cst_26 {dimension_numbers = #tpu.dot_dimension_numbers<[1], [0], [0], [1], [0, 0, 1, 1], [], []>} : vector<4x4xbf16>, vector<4x324xbf16>, vector<4x324xf32> -> vector<4x324xf32>
    %33 = arith.addf %28, %32 : vector<4x324xf32>
    %34 = vector.extract_strided_slice %3 {offsets = [0, 20], sizes = [4, 324], strides = [1, 1]} : vector<4x362xbf16> to vector<4x324xbf16>
    %c5 = arith.constant 5 : index
    %c0_27 = arith.constant 0 : index
    %c0_28 = arith.constant 0 : index
    %35 = vector.load %arg5[%c5, %c0_27, %c0_28] : memref<27x4x4xbf16, #tpu.memory_space<vmem>>, vector<1x4x4xbf16>
    %36 = vector.shape_cast %35 : vector<1x4x4xbf16> to vector<4x4xbf16>
    %cst_29 = arith.constant dense<0.000000e+00> : vector<4x324xf32>
    %37 = tpu.matmul %36, %34, %cst_29 {dimension_numbers = #tpu.dot_dimension_numbers<[1], [0], [0], [1], [0, 0, 1, 1], [], []>} : vector<4x4xbf16>, vector<4x324xbf16>, vector<4x324xf32> -> vector<4x324xf32>
    %38 = arith.addf %33, %37 : vector<4x324xf32>
    %39 = vector.extract_strided_slice %3 {offsets = [0, 36], sizes = [4, 324], strides = [1, 1]} : vector<4x362xbf16> to vector<4x324xbf16>
    %c6 = arith.constant 6 : index
    %c0_30 = arith.constant 0 : index
    %c0_31 = arith.constant 0 : index
    %40 = vector.load %arg5[%c6, %c0_30, %c0_31] : memref<27x4x4xbf16, #tpu.memory_space<vmem>>, vector<1x4x4xbf16>
    %41 = vector.shape_cast %40 : vector<1x4x4xbf16> to vector<4x4xbf16>
    %cst_32 = arith.constant dense<0.000000e+00> : vector<4x324xf32>
    %42 = tpu.matmul %41, %39, %cst_32 {dimension_numbers = #tpu.dot_dimension_numbers<[1], [0], [0], [1], [0, 0, 1, 1], [], []>} : vector<4x4xbf16>, vector<4x324xbf16>, vector<4x324xf32> -> vector<4x324xf32>
    %43 = arith.addf %38, %42 : vector<4x324xf32>
    %44 = vector.extract_strided_slice %3 {offsets = [0, 37], sizes = [4, 324], strides = [1, 1]} : vector<4x362xbf16> to vector<4x324xbf16>
    %c7 = arith.constant 7 : index
    %c0_33 = arith.constant 0 : index
    %c0_34 = arith.constant 0 : index
    %45 = vector.load %arg5[%c7, %c0_33, %c0_34] : memref<27x4x4xbf16, #tpu.memory_space<vmem>>, vector<1x4x4xbf16>
    %46 = vector.shape_cast %45 : vector<1x4x4xbf16> to vector<4x4xbf16>
    %cst_35 = arith.constant dense<0.000000e+00> : vector<4x324xf32>
    %47 = tpu.matmul %46, %44, %cst_35 {dimension_numbers = #tpu.dot_dimension_numbers<[1], [0], [0], [1], [0, 0, 1, 1], [], []>} : vector<4x4xbf16>, vector<4x324xbf16>, vector<4x324xf32> -> vector<4x324xf32>
    %48 = arith.addf %43, %47 : vector<4x324xf32>
    %49 = vector.extract_strided_slice %3 {offsets = [0, 38], sizes = [4, 324], strides = [1, 1]} : vector<4x362xbf16> to vector<4x324xbf16>
    %c8 = arith.constant 8 : index
    %c0_36 = arith.constant 0 : index
    %c0_37 = arith.constant 0 : index
    %50 = vector.load %arg5[%c8, %c0_36, %c0_37] : memref<27x4x4xbf16, #tpu.memory_space<vmem>>, vector<1x4x4xbf16>
    %51 = vector.shape_cast %50 : vector<1x4x4xbf16> to vector<4x4xbf16>
    %cst_38 = arith.constant dense<0.000000e+00> : vector<4x324xf32>
    %52 = tpu.matmul %51, %49, %cst_38 {dimension_numbers = #tpu.dot_dimension_numbers<[1], [0], [0], [1], [0, 0, 1, 1], [], []>} : vector<4x4xbf16>, vector<4x324xbf16>, vector<4x324xf32> -> vector<4x324xf32>
    %53 = arith.addf %48, %52 : vector<4x324xf32>
    %54 = vector.extract_strided_slice %6 {offsets = [0, 0], sizes = [4, 324], strides = [1, 1]} : vector<4x362xbf16> to vector<4x324xbf16>
    %c9 = arith.constant 9 : index
    %c0_39 = arith.constant 0 : index
    %c0_40 = arith.constant 0 : index
    %55 = vector.load %arg5[%c9, %c0_39, %c0_40] : memref<27x4x4xbf16, #tpu.memory_space<vmem>>, vector<1x4x4xbf16>
    %56 = vector.shape_cast %55 : vector<1x4x4xbf16> to vector<4x4xbf16>
    %cst_41 = arith.constant dense<0.000000e+00> : vector<4x324xf32>
    %57 = tpu.matmul %56, %54, %cst_41 {dimension_numbers = #tpu.dot_dimension_numbers<[1], [0], [0], [1], [0, 0, 1, 1], [], []>} : vector<4x4xbf16>, vector<4x324xbf16>, vector<4x324xf32> -> vector<4x324xf32>
    %58 = arith.addf %53, %57 : vector<4x324xf32>
    %59 = vector.extract_strided_slice %6 {offsets = [0, 1], sizes = [4, 324], strides = [1, 1]} : vector<4x362xbf16> to vector<4x324xbf16>
    %c10 = arith.constant 10 : index
    %c0_42 = arith.constant 0 : index
    %c0_43 = arith.constant 0 : index
    %60 = vector.load %arg5[%c10, %c0_42, %c0_43] : memref<27x4x4xbf16, #tpu.memory_space<vmem>>, vector<1x4x4xbf16>
    %61 = vector.shape_cast %60 : vector<1x4x4xbf16> to vector<4x4xbf16>
    %cst_44 = arith.constant dense<0.000000e+00> : vector<4x324xf32>
    %62 = tpu.matmul %61, %59, %cst_44 {dimension_numbers = #tpu.dot_dimension_numbers<[1], [0], [0], [1], [0, 0, 1, 1], [], []>} : vector<4x4xbf16>, vector<4x324xbf16>, vector<4x324xf32> -> vector<4x324xf32>
    %63 = arith.addf %58, %62 : vector<4x324xf32>
    %64 = vector.extract_strided_slice %6 {offsets = [0, 2], sizes = [4, 324], strides = [1, 1]} : vector<4x362xbf16> to vector<4x324xbf16>
    %c11 = arith.constant 11 : index
    %c0_45 = arith.constant 0 : index
    %c0_46 = arith.constant 0 : index
    %65 = vector.load %arg5[%c11, %c0_45, %c0_46] : memref<27x4x4xbf16, #tpu.memory_space<vmem>>, vector<1x4x4xbf16>
    %66 = vector.shape_cast %65 : vector<1x4x4xbf16> to vector<4x4xbf16>
    %cst_47 = arith.constant dense<0.000000e+00> : vector<4x324xf32>
    %67 = tpu.matmul %66, %64, %cst_47 {dimension_numbers = #tpu.dot_dimension_numbers<[1], [0], [0], [1], [0, 0, 1, 1], [], []>} : vector<4x4xbf16>, vector<4x324xbf16>, vector<4x324xf32> -> vector<4x324xf32>
    %68 = arith.addf %63, %67 : vector<4x324xf32>
    %69 = vector.extract_strided_slice %6 {offsets = [0, 18], sizes = [4, 324], strides = [1, 1]} : vector<4x362xbf16> to vector<4x324xbf16>
    %c12 = arith.constant 12 : index
    %c0_48 = arith.constant 0 : index
    %c0_49 = arith.constant 0 : index
    %70 = vector.load %arg5[%c12, %c0_48, %c0_49] : memref<27x4x4xbf16, #tpu.memory_space<vmem>>, vector<1x4x4xbf16>
    %71 = vector.shape_cast %70 : vector<1x4x4xbf16> to vector<4x4xbf16>
    %cst_50 = arith.constant dense<0.000000e+00> : vector<4x324xf32>
    %72 = tpu.matmul %71, %69, %cst_50 {dimension_numbers = #tpu.dot_dimension_numbers<[1], [0], [0], [1], [0, 0, 1, 1], [], []>} : vector<4x4xbf16>, vector<4x324xbf16>, vector<4x324xf32> -> vector<4x324xf32>
    %73 = arith.addf %68, %72 : vector<4x324xf32>
    %74 = vector.extract_strided_slice %6 {offsets = [0, 19], sizes = [4, 324], strides = [1, 1]} : vector<4x362xbf16> to vector<4x324xbf16>
    %c13 = arith.constant 13 : index
    %c0_51 = arith.constant 0 : index
    %c0_52 = arith.constant 0 : index
    %75 = vector.load %arg5[%c13, %c0_51, %c0_52] : memref<27x4x4xbf16, #tpu.memory_space<vmem>>, vector<1x4x4xbf16>
    %76 = vector.shape_cast %75 : vector<1x4x4xbf16> to vector<4x4xbf16>
    %cst_53 = arith.constant dense<0.000000e+00> : vector<4x324xf32>
    %77 = tpu.matmul %76, %74, %cst_53 {dimension_numbers = #tpu.dot_dimension_numbers<[1], [0], [0], [1], [0, 0, 1, 1], [], []>} : vector<4x4xbf16>, vector<4x324xbf16>, vector<4x324xf32> -> vector<4x324xf32>
    %78 = arith.addf %73, %77 : vector<4x324xf32>
    %79 = vector.extract_strided_slice %6 {offsets = [0, 20], sizes = [4, 324], strides = [1, 1]} : vector<4x362xbf16> to vector<4x324xbf16>
    %c14 = arith.constant 14 : index
    %c0_54 = arith.constant 0 : index
    %c0_55 = arith.constant 0 : index
    %80 = vector.load %arg5[%c14, %c0_54, %c0_55] : memref<27x4x4xbf16, #tpu.memory_space<vmem>>, vector<1x4x4xbf16>
    %81 = vector.shape_cast %80 : vector<1x4x4xbf16> to vector<4x4xbf16>
    %cst_56 = arith.constant dense<0.000000e+00> : vector<4x324xf32>
    %82 = tpu.matmul %81, %79, %cst_56 {dimension_numbers = #tpu.dot_dimension_numbers<[1], [0], [0], [1], [0, 0, 1, 1], [], []>} : vector<4x4xbf16>, vector<4x324xbf16>, vector<4x324xf32> -> vector<4x324xf32>
    %83 = arith.addf %78, %82 : vector<4x324xf32>
    %84 = vector.extract_strided_slice %6 {offsets = [0, 36], sizes = [4, 324], strides = [1, 1]} : vector<4x362xbf16> to vector<4x324xbf16>
    %c15 = arith.constant 15 : index
    %c0_57 = arith.constant 0 : index
    %c0_58 = arith.constant 0 : index
    %85 = vector.load %arg5[%c15, %c0_57, %c0_58] : memref<27x4x4xbf16, #tpu.memory_space<vmem>>, vector<1x4x4xbf16>
    %86 = vector.shape_cast %85 : vector<1x4x4xbf16> to vector<4x4xbf16>
    %cst_59 = arith.constant dense<0.000000e+00> : vector<4x324xf32>
    %87 = tpu.matmul %86, %84, %cst_59 {dimension_numbers = #tpu.dot_dimension_numbers<[1], [0], [0], [1], [0, 0, 1, 1], [], []>} : vector<4x4xbf16>, vector<4x324xbf16>, vector<4x324xf32> -> vector<4x324xf32>
    %88 = arith.addf %83, %87 : vector<4x324xf32>
    %89 = vector.extract_strided_slice %6 {offsets = [0, 37], sizes = [4, 324], strides = [1, 1]} : vector<4x362xbf16> to vector<4x324xbf16>
    %c16 = arith.constant 16 : index
    %c0_60 = arith.constant 0 : index
    %c0_61 = arith.constant 0 : index
    %90 = vector.load %arg5[%c16, %c0_60, %c0_61] : memref<27x4x4xbf16, #tpu.memory_space<vmem>>, vector<1x4x4xbf16>
    %91 = vector.shape_cast %90 : vector<1x4x4xbf16> to vector<4x4xbf16>
    %cst_62 = arith.constant dense<0.000000e+00> : vector<4x324xf32>
    %92 = tpu.matmul %91, %89, %cst_62 {dimension_numbers = #tpu.dot_dimension_numbers<[1], [0], [0], [1], [0, 0, 1, 1], [], []>} : vector<4x4xbf16>, vector<4x324xbf16>, vector<4x324xf32> -> vector<4x324xf32>
    %93 = arith.addf %88, %92 : vector<4x324xf32>
    %94 = vector.extract_strided_slice %6 {offsets = [0, 38], sizes = [4, 324], strides = [1, 1]} : vector<4x362xbf16> to vector<4x324xbf16>
    %c17 = arith.constant 17 : index
    %c0_63 = arith.constant 0 : index
    %c0_64 = arith.constant 0 : index
    %95 = vector.load %arg5[%c17, %c0_63, %c0_64] : memref<27x4x4xbf16, #tpu.memory_space<vmem>>, vector<1x4x4xbf16>
    %96 = vector.shape_cast %95 : vector<1x4x4xbf16> to vector<4x4xbf16>
    %cst_65 = arith.constant dense<0.000000e+00> : vector<4x324xf32>
    %97 = tpu.matmul %96, %94, %cst_65 {dimension_numbers = #tpu.dot_dimension_numbers<[1], [0], [0], [1], [0, 0, 1, 1], [], []>} : vector<4x4xbf16>, vector<4x324xbf16>, vector<4x324xf32> -> vector<4x324xf32>
    %98 = arith.addf %93, %97 : vector<4x324xf32>
    %99 = vector.extract_strided_slice %9 {offsets = [0, 0], sizes = [4, 324], strides = [1, 1]} : vector<4x362xbf16> to vector<4x324xbf16>
    %c18 = arith.constant 18 : index
    %c0_66 = arith.constant 0 : index
    %c0_67 = arith.constant 0 : index
    %100 = vector.load %arg5[%c18, %c0_66, %c0_67] : memref<27x4x4xbf16, #tpu.memory_space<vmem>>, vector<1x4x4xbf16>
    %101 = vector.shape_cast %100 : vector<1x4x4xbf16> to vector<4x4xbf16>
    %cst_68 = arith.constant dense<0.000000e+00> : vector<4x324xf32>
    %102 = tpu.matmul %101, %99, %cst_68 {dimension_numbers = #tpu.dot_dimension_numbers<[1], [0], [0], [1], [0, 0, 1, 1], [], []>} : vector<4x4xbf16>, vector<4x324xbf16>, vector<4x324xf32> -> vector<4x324xf32>
    %103 = arith.addf %98, %102 : vector<4x324xf32>
    %104 = vector.extract_strided_slice %9 {offsets = [0, 1], sizes = [4, 324], strides = [1, 1]} : vector<4x362xbf16> to vector<4x324xbf16>
    %c19 = arith.constant 19 : index
    %c0_69 = arith.constant 0 : index
    %c0_70 = arith.constant 0 : index
    %105 = vector.load %arg5[%c19, %c0_69, %c0_70] : memref<27x4x4xbf16, #tpu.memory_space<vmem>>, vector<1x4x4xbf16>
    %106 = vector.shape_cast %105 : vector<1x4x4xbf16> to vector<4x4xbf16>
    %cst_71 = arith.constant dense<0.000000e+00> : vector<4x324xf32>
    %107 = tpu.matmul %106, %104, %cst_71 {dimension_numbers = #tpu.dot_dimension_numbers<[1], [0], [0], [1], [0, 0, 1, 1], [], []>} : vector<4x4xbf16>, vector<4x324xbf16>, vector<4x324xf32> -> vector<4x324xf32>
    %108 = arith.addf %103, %107 : vector<4x324xf32>
    %109 = vector.extract_strided_slice %9 {offsets = [0, 2], sizes = [4, 324], strides = [1, 1]} : vector<4x362xbf16> to vector<4x324xbf16>
    %c20 = arith.constant 20 : index
    %c0_72 = arith.constant 0 : index
    %c0_73 = arith.constant 0 : index
    %110 = vector.load %arg5[%c20, %c0_72, %c0_73] : memref<27x4x4xbf16, #tpu.memory_space<vmem>>, vector<1x4x4xbf16>
    %111 = vector.shape_cast %110 : vector<1x4x4xbf16> to vector<4x4xbf16>
    %cst_74 = arith.constant dense<0.000000e+00> : vector<4x324xf32>
    %112 = tpu.matmul %111, %109, %cst_74 {dimension_numbers = #tpu.dot_dimension_numbers<[1], [0], [0], [1], [0, 0, 1, 1], [], []>} : vector<4x4xbf16>, vector<4x324xbf16>, vector<4x324xf32> -> vector<4x324xf32>
    %113 = arith.addf %108, %112 : vector<4x324xf32>
    %114 = vector.extract_strided_slice %9 {offsets = [0, 18], sizes = [4, 324], strides = [1, 1]} : vector<4x362xbf16> to vector<4x324xbf16>
    %c21 = arith.constant 21 : index
    %c0_75 = arith.constant 0 : index
    %c0_76 = arith.constant 0 : index
    %115 = vector.load %arg5[%c21, %c0_75, %c0_76] : memref<27x4x4xbf16, #tpu.memory_space<vmem>>, vector<1x4x4xbf16>
    %116 = vector.shape_cast %115 : vector<1x4x4xbf16> to vector<4x4xbf16>
    %cst_77 = arith.constant dense<0.000000e+00> : vector<4x324xf32>
    %117 = tpu.matmul %116, %114, %cst_77 {dimension_numbers = #tpu.dot_dimension_numbers<[1], [0], [0], [1], [0, 0, 1, 1], [], []>} : vector<4x4xbf16>, vector<4x324xbf16>, vector<4x324xf32> -> vector<4x324xf32>
    %118 = arith.addf %113, %117 : vector<4x324xf32>
    %119 = vector.extract_strided_slice %9 {offsets = [0, 19], sizes = [4, 324], strides = [1, 1]} : vector<4x362xbf16> to vector<4x324xbf16>
    %c22 = arith.constant 22 : index
    %c0_78 = arith.constant 0 : index
    %c0_79 = arith.constant 0 : index
    %120 = vector.load %arg5[%c22, %c0_78, %c0_79] : memref<27x4x4xbf16, #tpu.memory_space<vmem>>, vector<1x4x4xbf16>
    %121 = vector.shape_cast %120 : vector<1x4x4xbf16> to vector<4x4xbf16>
    %cst_80 = arith.constant dense<0.000000e+00> : vector<4x324xf32>
    %122 = tpu.matmul %121, %119, %cst_80 {dimension_numbers = #tpu.dot_dimension_numbers<[1], [0], [0], [1], [0, 0, 1, 1], [], []>} : vector<4x4xbf16>, vector<4x324xbf16>, vector<4x324xf32> -> vector<4x324xf32>
    %123 = arith.addf %118, %122 : vector<4x324xf32>
    %124 = vector.extract_strided_slice %9 {offsets = [0, 20], sizes = [4, 324], strides = [1, 1]} : vector<4x362xbf16> to vector<4x324xbf16>
    %c23 = arith.constant 23 : index
    %c0_81 = arith.constant 0 : index
    %c0_82 = arith.constant 0 : index
    %125 = vector.load %arg5[%c23, %c0_81, %c0_82] : memref<27x4x4xbf16, #tpu.memory_space<vmem>>, vector<1x4x4xbf16>
    %126 = vector.shape_cast %125 : vector<1x4x4xbf16> to vector<4x4xbf16>
    %cst_83 = arith.constant dense<0.000000e+00> : vector<4x324xf32>
    %127 = tpu.matmul %126, %124, %cst_83 {dimension_numbers = #tpu.dot_dimension_numbers<[1], [0], [0], [1], [0, 0, 1, 1], [], []>} : vector<4x4xbf16>, vector<4x324xbf16>, vector<4x324xf32> -> vector<4x324xf32>
    %128 = arith.addf %123, %127 : vector<4x324xf32>
    %129 = vector.extract_strided_slice %9 {offsets = [0, 36], sizes = [4, 324], strides = [1, 1]} : vector<4x362xbf16> to vector<4x324xbf16>
    %c24 = arith.constant 24 : index
    %c0_84 = arith.constant 0 : index
    %c0_85 = arith.constant 0 : index
    %130 = vector.load %arg5[%c24, %c0_84, %c0_85] : memref<27x4x4xbf16, #tpu.memory_space<vmem>>, vector<1x4x4xbf16>
    %131 = vector.shape_cast %130 : vector<1x4x4xbf16> to vector<4x4xbf16>
    %cst_86 = arith.constant dense<0.000000e+00> : vector<4x324xf32>
    %132 = tpu.matmul %131, %129, %cst_86 {dimension_numbers = #tpu.dot_dimension_numbers<[1], [0], [0], [1], [0, 0, 1, 1], [], []>} : vector<4x4xbf16>, vector<4x324xbf16>, vector<4x324xf32> -> vector<4x324xf32>
    %133 = arith.addf %128, %132 : vector<4x324xf32>
    %134 = vector.extract_strided_slice %9 {offsets = [0, 37], sizes = [4, 324], strides = [1, 1]} : vector<4x362xbf16> to vector<4x324xbf16>
    %c25 = arith.constant 25 : index
    %c0_87 = arith.constant 0 : index
    %c0_88 = arith.constant 0 : index
    %135 = vector.load %arg5[%c25, %c0_87, %c0_88] : memref<27x4x4xbf16, #tpu.memory_space<vmem>>, vector<1x4x4xbf16>
    %136 = vector.shape_cast %135 : vector<1x4x4xbf16> to vector<4x4xbf16>
    %cst_89 = arith.constant dense<0.000000e+00> : vector<4x324xf32>
    %137 = tpu.matmul %136, %134, %cst_89 {dimension_numbers = #tpu.dot_dimension_numbers<[1], [0], [0], [1], [0, 0, 1, 1], [], []>} : vector<4x4xbf16>, vector<4x324xbf16>, vector<4x324xf32> -> vector<4x324xf32>
    %138 = arith.addf %133, %137 : vector<4x324xf32>
    %139 = vector.extract_strided_slice %9 {offsets = [0, 38], sizes = [4, 324], strides = [1, 1]} : vector<4x362xbf16> to vector<4x324xbf16>
    %c26 = arith.constant 26 : index
    %c0_90 = arith.constant 0 : index
    %c0_91 = arith.constant 0 : index
    %140 = vector.load %arg5[%c26, %c0_90, %c0_91] : memref<27x4x4xbf16, #tpu.memory_space<vmem>>, vector<1x4x4xbf16>
    %141 = vector.shape_cast %140 : vector<1x4x4xbf16> to vector<4x4xbf16>
    %cst_92 = arith.constant dense<0.000000e+00> : vector<4x324xf32>
    %142 = tpu.matmul %141, %139, %cst_92 {dimension_numbers = #tpu.dot_dimension_numbers<[1], [0], [0], [1], [0, 0, 1, 1], [], []>} : vector<4x4xbf16>, vector<4x324xbf16>, vector<4x324xf32> -> vector<4x324xf32>
    %143 = arith.addf %138, %142 : vector<4x324xf32>
    %c0_93 = arith.constant 0 : index
    %c0_94 = arith.constant 0 : index
    %c0_95 = arith.constant 0 : index
    %c0_96 = arith.constant 0 : index
    %144 = vector.load %arg7[%c0_93, %c0_94, %c0_95, %c0_96] : memref<1x1x4x324xf32, #tpu.memory_space<vmem>>, vector<1x1x4x324xf32>
    %145 = vector.shape_cast %144 : vector<1x1x4x324xf32> to vector<4x324xf32>
    %146 = vector.shape_cast %143 : vector<4x324xf32> to vector<1x1x4x324xf32>
    tpu.vector_store %arg7[%c0_93, %c0_94, %c0_95, %c0_96], %146 {strides = array<i32>} : memref<1x1x4x324xf32, #tpu.memory_space<vmem>>, vector<1x1x4x324xf32>,
    %c0_97 = arith.constant 0 : index
    %c0_98 = arith.constant 0 : index
    %147 = vector.load %arg6[%c0_97, %c0_98] : memref<1x324xf32, #tpu.memory_space<vmem>>, vector<1x324xf32>
    %148 = vector.broadcast %147 : vector<1x324xf32> to vector<4x324xf32>
    %149 = arith.mulf %143, %148 : vector<4x324xf32>
    %cst_99 = arith.constant dense<0.000000e+00> : vector<4xf32>
    %150 = vector.multi_reduction <add>, %149, %cst_99 [1] : vector<4x324xf32> to vector<4xf32>
    %151 = vector.shape_cast %150 : vector<4xf32> to vector<4x1xf32>
    %152 = arith.mulf %149, %149 : vector<4x324xf32>
    %cst_100 = arith.constant dense<0.000000e+00> : vector<4xf32>
    %153 = vector.multi_reduction <add>, %152, %cst_100 [1] : vector<4x324xf32> to vector<4xf32>
    %154 = vector.shape_cast %153 : vector<4xf32> to vector<4x1xf32>
    %155 = tpu.concatenate %151, %154 in 1 : vector<4x1xf32>, vector<4x1xf32> -> vector<4x2xf32>
    %c0_101 = arith.constant 0 : index
    %c0_102 = arith.constant 0 : index
    %c0_103 = arith.constant 0 : index
    %c0_104 = arith.constant 0 : index
    %156 = vector.load %arg8[%c0_101, %c0_102, %c0_103, %c0_104] : memref<1x1x4x2xf32, #tpu.memory_space<vmem>>, vector<1x1x4x2xf32>
    %157 = vector.shape_cast %156 : vector<1x1x4x2xf32> to vector<4x2xf32>
    %158 = vector.shape_cast %155 : vector<4x2xf32> to vector<1x1x4x2xf32>
    tpu.vector_store %arg8[%c0_101, %c0_102, %c0_103, %c0_104], %158 {strides = array<i32>} : memref<1x1x4x2xf32, #tpu.memory_space<vmem>>, vector<1x1x4x2xf32>,
    return
  }
  func.func @transform_0(%arg0: i32, %arg1: i32) -> (i32, i32, i32, i32) {
    %c0_i32 = arith.constant 0 : i32
    %c0_i32_0 = arith.constant 0 : i32
    %c0_i32_1 = arith.constant 0 : i32
    return %arg0, %arg1, %c0_i32, %c0_i32_0 : i32, i32, i32, i32
  }
  func.func @transform_1(%arg0: i32, %arg1: i32) -> (i32, i32, i32, i32) {
    %c1_i32 = arith.constant 1 : i32
    %0 = arith.addi %arg1, %c1_i32 : i32
    %c0_i32 = arith.constant 0 : i32
    %c0_i32_0 = arith.constant 0 : i32
    %c0_i32_1 = arith.constant 0 : i32
    return %arg0, %0, %c0_i32, %c0_i32_0 : i32, i32, i32, i32
  }
  func.func @transform_2(%arg0: i32, %arg1: i32) -> (i32, i32, i32, i32) {
    %c2_i32 = arith.constant 2 : i32
    %0 = arith.addi %arg1, %c2_i32 : i32
    %c0_i32 = arith.constant 0 : i32
    %c0_i32_0 = arith.constant 0 : i32
    %c0_i32_1 = arith.constant 0 : i32
    return %arg0, %0, %c0_i32, %c0_i32_0 : i32, i32, i32, i32
  }
  func.func @transform_3(%arg0: i32, %arg1: i32) -> (i32, i32, i32) {
    %c0_i32 = arith.constant 0 : i32
    %c0_i32_0 = arith.constant 0 : i32
    %c0_i32_1 = arith.constant 0 : i32
    %c0_i32_2 = arith.constant 0 : i32
    return %c0_i32, %c0_i32_0, %c0_i32_1 : i32, i32, i32
  }
  func.func @transform_4(%arg0: i32, %arg1: i32) -> (i32, i32) {
    %c0_i32 = arith.constant 0 : i32
    %c0_i32_0 = arith.constant 0 : i32
    %c0_i32_1 = arith.constant 0 : i32
    return %c0_i32, %c0_i32_0 : i32, i32
  }
  func.func @transform_5(%arg0: i32, %arg1: i32) -> (i32, i32, i32, i32) {
    %c0_i32 = arith.constant 0 : i32
    %c0_i32_0 = arith.constant 0 : i32
    %c0_i32_1 = arith.constant 0 : i32
    return %arg0, %arg1, %c0_i32, %c0_i32_0 : i32, i32, i32, i32
  }
  func.func @transform_6(%arg0: i32, %arg1: i32) -> (i32, i32, i32, i32) {
    %c0_i32 = arith.constant 0 : i32
    %c0_i32_0 = arith.constant 0 : i32
    %c0_i32_1 = arith.constant 0 : i32
    return %arg0, %arg1, %c0_i32, %c0_i32_0 : i32, i32, i32, i32
  }
}

module attributes {stable_mosaic.version = 11 : i64} {
  func.func @conv2_kernel(%arg0: i32, %arg1: i32, %arg2: memref<1x1x4x324xf32, #tpu.memory_space<vmem>>, %arg3: memref<1x1x4x324xf32, #tpu.memory_space<vmem>>, %arg4: memref<1x1x4x324xf32, #tpu.memory_space<vmem>>, %arg5: memref<27x4x4xbf16, #tpu.memory_space<vmem>>, %arg6: memref<4x1xf32, #tpu.memory_space<vmem>>, %arg7: memref<4x1xf32, #tpu.memory_space<vmem>>, %arg8: memref<1x324xf32, #tpu.memory_space<vmem>>, %arg9: memref<1x1x4x324xf32, #tpu.memory_space<vmem>>, %arg10: memref<1x1x4x2xf32, #tpu.memory_space<vmem>>) attributes {dimension_semantics = [#tpu.dimension_semantics<parallel>, #tpu.dimension_semantics<parallel>], iteration_bounds = array<i64: 2, 8>, scalar_prefetch = 0 : i64, scratch_operands = 0 : i64, tpu.core_type = #tpu.core_type<tc>, window_params = [{transform_indices = @transform_0, window_bounds = array<i64: 1, 1, 4, 324>}, {transform_indices = @transform_1, window_bounds = array<i64: 1, 1, 4, 324>}, {transform_indices = @transform_2, window_bounds = array<i64: 1, 1, 4, 324>}, {pipeline_mode = #tpu.pipeline_mode<synchronous>, transform_indices = @transform_3, window_bounds = array<i64: 27, 4, 4>}, {pipeline_mode = #tpu.pipeline_mode<synchronous>, transform_indices = @transform_4, window_bounds = array<i64: 4, 1>}, {pipeline_mode = #tpu.pipeline_mode<synchronous>, transform_indices = @transform_5, window_bounds = array<i64: 4, 1>}, {pipeline_mode = #tpu.pipeline_mode<synchronous>, transform_indices = @transform_6, window_bounds = array<i64: 1, 324>}, {transform_indices = @transform_7, window_bounds = array<i64: 1, 1, 4, 324>}, {transform_indices = @transform_8, window_bounds = array<i64: 1, 1, 4, 2>}]} {
    %c0 = arith.constant 0 : index
    %c0_0 = arith.constant 0 : index
    %0 = vector.load %arg8[%c0, %c0_0] : memref<1x324xf32, #tpu.memory_space<vmem>>, vector<1x324xf32>
    %c0_1 = arith.constant 0 : index
    %c0_2 = arith.constant 0 : index
    %1 = vector.load %arg6[%c0_1, %c0_2] : memref<4x1xf32, #tpu.memory_space<vmem>>, vector<4x1xf32>
    %c0_3 = arith.constant 0 : index
    %c0_4 = arith.constant 0 : index
    %2 = vector.load %arg7[%c0_3, %c0_4] : memref<4x1xf32, #tpu.memory_space<vmem>>, vector<4x1xf32>
    %cst = arith.constant 0.000000e+00 : bf16
    %3 = vector.broadcast %cst : bf16 to vector<4x19xbf16>
    %c0_i32 = arith.constant 0 : i32
    %4 = arith.cmpi sgt, %arg1, %c0_i32 : i32
    %5 = arith.extui %4 : i1 to i32
    %6 = arith.sitofp %5 : i32 to f32
    %c7_i32 = arith.constant 7 : i32
    %7 = arith.cmpi slt, %arg1, %c7_i32 : i32
    %8 = arith.extui %7 : i1 to i32
    %9 = arith.sitofp %8 : i32 to f32
    %c0_5 = arith.constant 0 : index
    %c0_6 = arith.constant 0 : index
    %c0_7 = arith.constant 0 : index
    %c0_8 = arith.constant 0 : index
    %10 = vector.load %arg2[%c0_5, %c0_6, %c0_7, %c0_8] : memref<1x1x4x324xf32, #tpu.memory_space<vmem>>, vector<1x1x4x324xf32>
    %11 = vector.shape_cast %10 : vector<1x1x4x324xf32> to vector<4x324xf32>
    %12 = vector.broadcast %1 : vector<4x1xf32> to vector<4x324xf32>
    %13 = arith.mulf %11, %12 : vector<4x324xf32>
    %14 = vector.broadcast %2 : vector<4x1xf32> to vector<4x324xf32>
    %15 = arith.addf %13, %14 : vector<4x324xf32>
    %cst_9 = arith.constant 0.000000e+00 : f32
    %16 = vector.broadcast %cst_9 : f32 to vector<4x324xf32>
    %17 = arith.maximumf %15, %16 : vector<4x324xf32>
    %18 = vector.broadcast %6 : f32 to vector<1x324xf32>
    %19 = arith.mulf %0, %18 : vector<1x324xf32>
    %20 = vector.broadcast %19 : vector<1x324xf32> to vector<4x324xf32>
    %21 = arith.mulf %17, %20 : vector<4x324xf32>
    %22 = arith.truncf %21 : vector<4x324xf32> to vector<4x324xbf16>
    %23 = tpu.concatenate %3, %22, %3 in 1 : vector<4x19xbf16>, vector<4x324xbf16>, vector<4x19xbf16> -> vector<4x362xbf16>
    %c0_10 = arith.constant 0 : index
    %c0_11 = arith.constant 0 : index
    %c0_12 = arith.constant 0 : index
    %c0_13 = arith.constant 0 : index
    %24 = vector.load %arg3[%c0_10, %c0_11, %c0_12, %c0_13] : memref<1x1x4x324xf32, #tpu.memory_space<vmem>>, vector<1x1x4x324xf32>
    %25 = vector.shape_cast %24 : vector<1x1x4x324xf32> to vector<4x324xf32>
    %26 = vector.broadcast %1 : vector<4x1xf32> to vector<4x324xf32>
    %27 = arith.mulf %25, %26 : vector<4x324xf32>
    %28 = vector.broadcast %2 : vector<4x1xf32> to vector<4x324xf32>
    %29 = arith.addf %27, %28 : vector<4x324xf32>
    %cst_14 = arith.constant 0.000000e+00 : f32
    %30 = vector.broadcast %cst_14 : f32 to vector<4x324xf32>
    %31 = arith.maximumf %29, %30 : vector<4x324xf32>
    %cst_15 = arith.constant 1.000000e+00 : f32
    %32 = vector.broadcast %cst_15 : f32 to vector<1x324xf32>
    %33 = arith.mulf %0, %32 : vector<1x324xf32>
    %34 = vector.broadcast %33 : vector<1x324xf32> to vector<4x324xf32>
    %35 = arith.mulf %31, %34 : vector<4x324xf32>
    %36 = arith.truncf %35 : vector<4x324xf32> to vector<4x324xbf16>
    %37 = tpu.concatenate %3, %36, %3 in 1 : vector<4x19xbf16>, vector<4x324xbf16>, vector<4x19xbf16> -> vector<4x362xbf16>
    %c0_16 = arith.constant 0 : index
    %c0_17 = arith.constant 0 : index
    %c0_18 = arith.constant 0 : index
    %c0_19 = arith.constant 0 : index
    %38 = vector.load %arg4[%c0_16, %c0_17, %c0_18, %c0_19] : memref<1x1x4x324xf32, #tpu.memory_space<vmem>>, vector<1x1x4x324xf32>
    %39 = vector.shape_cast %38 : vector<1x1x4x324xf32> to vector<4x324xf32>
    %40 = vector.broadcast %1 : vector<4x1xf32> to vector<4x324xf32>
    %41 = arith.mulf %39, %40 : vector<4x324xf32>
    %42 = vector.broadcast %2 : vector<4x1xf32> to vector<4x324xf32>
    %43 = arith.addf %41, %42 : vector<4x324xf32>
    %cst_20 = arith.constant 0.000000e+00 : f32
    %44 = vector.broadcast %cst_20 : f32 to vector<4x324xf32>
    %45 = arith.maximumf %43, %44 : vector<4x324xf32>
    %46 = vector.broadcast %9 : f32 to vector<1x324xf32>
    %47 = arith.mulf %0, %46 : vector<1x324xf32>
    %48 = vector.broadcast %47 : vector<1x324xf32> to vector<4x324xf32>
    %49 = arith.mulf %45, %48 : vector<4x324xf32>
    %50 = arith.truncf %49 : vector<4x324xf32> to vector<4x324xbf16>
    %51 = tpu.concatenate %3, %50, %3 in 1 : vector<4x19xbf16>, vector<4x324xbf16>, vector<4x19xbf16> -> vector<4x362xbf16>
    %52 = vector.extract_strided_slice %23 {offsets = [0, 0], sizes = [4, 324], strides = [1, 1]} : vector<4x362xbf16> to vector<4x324xbf16>
    %c0_21 = arith.constant 0 : index
    %c0_22 = arith.constant 0 : index
    %c0_23 = arith.constant 0 : index
    %53 = vector.load %arg5[%c0_21, %c0_22, %c0_23] : memref<27x4x4xbf16, #tpu.memory_space<vmem>>, vector<1x4x4xbf16>
    %54 = vector.shape_cast %53 : vector<1x4x4xbf16> to vector<4x4xbf16>
    %cst_24 = arith.constant dense<0.000000e+00> : vector<4x324xf32>
    %55 = tpu.matmul %54, %52, %cst_24 {dimension_numbers = #tpu.dot_dimension_numbers<[1], [0], [0], [1], [0, 0, 1, 1], [], []>} : vector<4x4xbf16>, vector<4x324xbf16>, vector<4x324xf32> -> vector<4x324xf32>
    %56 = vector.extract_strided_slice %23 {offsets = [0, 1], sizes = [4, 324], strides = [1, 1]} : vector<4x362xbf16> to vector<4x324xbf16>
    %c1 = arith.constant 1 : index
    %c0_25 = arith.constant 0 : index
    %c0_26 = arith.constant 0 : index
    %57 = vector.load %arg5[%c1, %c0_25, %c0_26] : memref<27x4x4xbf16, #tpu.memory_space<vmem>>, vector<1x4x4xbf16>
    %58 = vector.shape_cast %57 : vector<1x4x4xbf16> to vector<4x4xbf16>
    %cst_27 = arith.constant dense<0.000000e+00> : vector<4x324xf32>
    %59 = tpu.matmul %58, %56, %cst_27 {dimension_numbers = #tpu.dot_dimension_numbers<[1], [0], [0], [1], [0, 0, 1, 1], [], []>} : vector<4x4xbf16>, vector<4x324xbf16>, vector<4x324xf32> -> vector<4x324xf32>
    %60 = arith.addf %55, %59 : vector<4x324xf32>
    %61 = vector.extract_strided_slice %23 {offsets = [0, 2], sizes = [4, 324], strides = [1, 1]} : vector<4x362xbf16> to vector<4x324xbf16>
    %c2 = arith.constant 2 : index
    %c0_28 = arith.constant 0 : index
    %c0_29 = arith.constant 0 : index
    %62 = vector.load %arg5[%c2, %c0_28, %c0_29] : memref<27x4x4xbf16, #tpu.memory_space<vmem>>, vector<1x4x4xbf16>
    %63 = vector.shape_cast %62 : vector<1x4x4xbf16> to vector<4x4xbf16>
    %cst_30 = arith.constant dense<0.000000e+00> : vector<4x324xf32>
    %64 = tpu.matmul %63, %61, %cst_30 {dimension_numbers = #tpu.dot_dimension_numbers<[1], [0], [0], [1], [0, 0, 1, 1], [], []>} : vector<4x4xbf16>, vector<4x324xbf16>, vector<4x324xf32> -> vector<4x324xf32>
    %65 = arith.addf %60, %64 : vector<4x324xf32>
    %66 = vector.extract_strided_slice %23 {offsets = [0, 18], sizes = [4, 324], strides = [1, 1]} : vector<4x362xbf16> to vector<4x324xbf16>
    %c3 = arith.constant 3 : index
    %c0_31 = arith.constant 0 : index
    %c0_32 = arith.constant 0 : index
    %67 = vector.load %arg5[%c3, %c0_31, %c0_32] : memref<27x4x4xbf16, #tpu.memory_space<vmem>>, vector<1x4x4xbf16>
    %68 = vector.shape_cast %67 : vector<1x4x4xbf16> to vector<4x4xbf16>
    %cst_33 = arith.constant dense<0.000000e+00> : vector<4x324xf32>
    %69 = tpu.matmul %68, %66, %cst_33 {dimension_numbers = #tpu.dot_dimension_numbers<[1], [0], [0], [1], [0, 0, 1, 1], [], []>} : vector<4x4xbf16>, vector<4x324xbf16>, vector<4x324xf32> -> vector<4x324xf32>
    %70 = arith.addf %65, %69 : vector<4x324xf32>
    %71 = vector.extract_strided_slice %23 {offsets = [0, 19], sizes = [4, 324], strides = [1, 1]} : vector<4x362xbf16> to vector<4x324xbf16>
    %c4 = arith.constant 4 : index
    %c0_34 = arith.constant 0 : index
    %c0_35 = arith.constant 0 : index
    %72 = vector.load %arg5[%c4, %c0_34, %c0_35] : memref<27x4x4xbf16, #tpu.memory_space<vmem>>, vector<1x4x4xbf16>
    %73 = vector.shape_cast %72 : vector<1x4x4xbf16> to vector<4x4xbf16>
    %cst_36 = arith.constant dense<0.000000e+00> : vector<4x324xf32>
    %74 = tpu.matmul %73, %71, %cst_36 {dimension_numbers = #tpu.dot_dimension_numbers<[1], [0], [0], [1], [0, 0, 1, 1], [], []>} : vector<4x4xbf16>, vector<4x324xbf16>, vector<4x324xf32> -> vector<4x324xf32>
    %75 = arith.addf %70, %74 : vector<4x324xf32>
    %76 = vector.extract_strided_slice %23 {offsets = [0, 20], sizes = [4, 324], strides = [1, 1]} : vector<4x362xbf16> to vector<4x324xbf16>
    %c5 = arith.constant 5 : index
    %c0_37 = arith.constant 0 : index
    %c0_38 = arith.constant 0 : index
    %77 = vector.load %arg5[%c5, %c0_37, %c0_38] : memref<27x4x4xbf16, #tpu.memory_space<vmem>>, vector<1x4x4xbf16>
    %78 = vector.shape_cast %77 : vector<1x4x4xbf16> to vector<4x4xbf16>
    %cst_39 = arith.constant dense<0.000000e+00> : vector<4x324xf32>
    %79 = tpu.matmul %78, %76, %cst_39 {dimension_numbers = #tpu.dot_dimension_numbers<[1], [0], [0], [1], [0, 0, 1, 1], [], []>} : vector<4x4xbf16>, vector<4x324xbf16>, vector<4x324xf32> -> vector<4x324xf32>
    %80 = arith.addf %75, %79 : vector<4x324xf32>
    %81 = vector.extract_strided_slice %23 {offsets = [0, 36], sizes = [4, 324], strides = [1, 1]} : vector<4x362xbf16> to vector<4x324xbf16>
    %c6 = arith.constant 6 : index
    %c0_40 = arith.constant 0 : index
    %c0_41 = arith.constant 0 : index
    %82 = vector.load %arg5[%c6, %c0_40, %c0_41] : memref<27x4x4xbf16, #tpu.memory_space<vmem>>, vector<1x4x4xbf16>
    %83 = vector.shape_cast %82 : vector<1x4x4xbf16> to vector<4x4xbf16>
    %cst_42 = arith.constant dense<0.000000e+00> : vector<4x324xf32>
    %84 = tpu.matmul %83, %81, %cst_42 {dimension_numbers = #tpu.dot_dimension_numbers<[1], [0], [0], [1], [0, 0, 1, 1], [], []>} : vector<4x4xbf16>, vector<4x324xbf16>, vector<4x324xf32> -> vector<4x324xf32>
    %85 = arith.addf %80, %84 : vector<4x324xf32>
    %86 = vector.extract_strided_slice %23 {offsets = [0, 37], sizes = [4, 324], strides = [1, 1]} : vector<4x362xbf16> to vector<4x324xbf16>
    %c7 = arith.constant 7 : index
    %c0_43 = arith.constant 0 : index
    %c0_44 = arith.constant 0 : index
    %87 = vector.load %arg5[%c7, %c0_43, %c0_44] : memref<27x4x4xbf16, #tpu.memory_space<vmem>>, vector<1x4x4xbf16>
    %88 = vector.shape_cast %87 : vector<1x4x4xbf16> to vector<4x4xbf16>
    %cst_45 = arith.constant dense<0.000000e+00> : vector<4x324xf32>
    %89 = tpu.matmul %88, %86, %cst_45 {dimension_numbers = #tpu.dot_dimension_numbers<[1], [0], [0], [1], [0, 0, 1, 1], [], []>} : vector<4x4xbf16>, vector<4x324xbf16>, vector<4x324xf32> -> vector<4x324xf32>
    %90 = arith.addf %85, %89 : vector<4x324xf32>
    %91 = vector.extract_strided_slice %23 {offsets = [0, 38], sizes = [4, 324], strides = [1, 1]} : vector<4x362xbf16> to vector<4x324xbf16>
    %c8 = arith.constant 8 : index
    %c0_46 = arith.constant 0 : index
    %c0_47 = arith.constant 0 : index
    %92 = vector.load %arg5[%c8, %c0_46, %c0_47] : memref<27x4x4xbf16, #tpu.memory_space<vmem>>, vector<1x4x4xbf16>
    %93 = vector.shape_cast %92 : vector<1x4x4xbf16> to vector<4x4xbf16>
    %cst_48 = arith.constant dense<0.000000e+00> : vector<4x324xf32>
    %94 = tpu.matmul %93, %91, %cst_48 {dimension_numbers = #tpu.dot_dimension_numbers<[1], [0], [0], [1], [0, 0, 1, 1], [], []>} : vector<4x4xbf16>, vector<4x324xbf16>, vector<4x324xf32> -> vector<4x324xf32>
    %95 = arith.addf %90, %94 : vector<4x324xf32>
    %96 = vector.extract_strided_slice %37 {offsets = [0, 0], sizes = [4, 324], strides = [1, 1]} : vector<4x362xbf16> to vector<4x324xbf16>
    %c9 = arith.constant 9 : index
    %c0_49 = arith.constant 0 : index
    %c0_50 = arith.constant 0 : index
    %97 = vector.load %arg5[%c9, %c0_49, %c0_50] : memref<27x4x4xbf16, #tpu.memory_space<vmem>>, vector<1x4x4xbf16>
    %98 = vector.shape_cast %97 : vector<1x4x4xbf16> to vector<4x4xbf16>
    %cst_51 = arith.constant dense<0.000000e+00> : vector<4x324xf32>
    %99 = tpu.matmul %98, %96, %cst_51 {dimension_numbers = #tpu.dot_dimension_numbers<[1], [0], [0], [1], [0, 0, 1, 1], [], []>} : vector<4x4xbf16>, vector<4x324xbf16>, vector<4x324xf32> -> vector<4x324xf32>
    %100 = arith.addf %95, %99 : vector<4x324xf32>
    %101 = vector.extract_strided_slice %37 {offsets = [0, 1], sizes = [4, 324], strides = [1, 1]} : vector<4x362xbf16> to vector<4x324xbf16>
    %c10 = arith.constant 10 : index
    %c0_52 = arith.constant 0 : index
    %c0_53 = arith.constant 0 : index
    %102 = vector.load %arg5[%c10, %c0_52, %c0_53] : memref<27x4x4xbf16, #tpu.memory_space<vmem>>, vector<1x4x4xbf16>
    %103 = vector.shape_cast %102 : vector<1x4x4xbf16> to vector<4x4xbf16>
    %cst_54 = arith.constant dense<0.000000e+00> : vector<4x324xf32>
    %104 = tpu.matmul %103, %101, %cst_54 {dimension_numbers = #tpu.dot_dimension_numbers<[1], [0], [0], [1], [0, 0, 1, 1], [], []>} : vector<4x4xbf16>, vector<4x324xbf16>, vector<4x324xf32> -> vector<4x324xf32>
    %105 = arith.addf %100, %104 : vector<4x324xf32>
    %106 = vector.extract_strided_slice %37 {offsets = [0, 2], sizes = [4, 324], strides = [1, 1]} : vector<4x362xbf16> to vector<4x324xbf16>
    %c11 = arith.constant 11 : index
    %c0_55 = arith.constant 0 : index
    %c0_56 = arith.constant 0 : index
    %107 = vector.load %arg5[%c11, %c0_55, %c0_56] : memref<27x4x4xbf16, #tpu.memory_space<vmem>>, vector<1x4x4xbf16>
    %108 = vector.shape_cast %107 : vector<1x4x4xbf16> to vector<4x4xbf16>
    %cst_57 = arith.constant dense<0.000000e+00> : vector<4x324xf32>
    %109 = tpu.matmul %108, %106, %cst_57 {dimension_numbers = #tpu.dot_dimension_numbers<[1], [0], [0], [1], [0, 0, 1, 1], [], []>} : vector<4x4xbf16>, vector<4x324xbf16>, vector<4x324xf32> -> vector<4x324xf32>
    %110 = arith.addf %105, %109 : vector<4x324xf32>
    %111 = vector.extract_strided_slice %37 {offsets = [0, 18], sizes = [4, 324], strides = [1, 1]} : vector<4x362xbf16> to vector<4x324xbf16>
    %c12 = arith.constant 12 : index
    %c0_58 = arith.constant 0 : index
    %c0_59 = arith.constant 0 : index
    %112 = vector.load %arg5[%c12, %c0_58, %c0_59] : memref<27x4x4xbf16, #tpu.memory_space<vmem>>, vector<1x4x4xbf16>
    %113 = vector.shape_cast %112 : vector<1x4x4xbf16> to vector<4x4xbf16>
    %cst_60 = arith.constant dense<0.000000e+00> : vector<4x324xf32>
    %114 = tpu.matmul %113, %111, %cst_60 {dimension_numbers = #tpu.dot_dimension_numbers<[1], [0], [0], [1], [0, 0, 1, 1], [], []>} : vector<4x4xbf16>, vector<4x324xbf16>, vector<4x324xf32> -> vector<4x324xf32>
    %115 = arith.addf %110, %114 : vector<4x324xf32>
    %116 = vector.extract_strided_slice %37 {offsets = [0, 19], sizes = [4, 324], strides = [1, 1]} : vector<4x362xbf16> to vector<4x324xbf16>
    %c13 = arith.constant 13 : index
    %c0_61 = arith.constant 0 : index
    %c0_62 = arith.constant 0 : index
    %117 = vector.load %arg5[%c13, %c0_61, %c0_62] : memref<27x4x4xbf16, #tpu.memory_space<vmem>>, vector<1x4x4xbf16>
    %118 = vector.shape_cast %117 : vector<1x4x4xbf16> to vector<4x4xbf16>
    %cst_63 = arith.constant dense<0.000000e+00> : vector<4x324xf32>
    %119 = tpu.matmul %118, %116, %cst_63 {dimension_numbers = #tpu.dot_dimension_numbers<[1], [0], [0], [1], [0, 0, 1, 1], [], []>} : vector<4x4xbf16>, vector<4x324xbf16>, vector<4x324xf32> -> vector<4x324xf32>
    %120 = arith.addf %115, %119 : vector<4x324xf32>
    %121 = vector.extract_strided_slice %37 {offsets = [0, 20], sizes = [4, 324], strides = [1, 1]} : vector<4x362xbf16> to vector<4x324xbf16>
    %c14 = arith.constant 14 : index
    %c0_64 = arith.constant 0 : index
    %c0_65 = arith.constant 0 : index
    %122 = vector.load %arg5[%c14, %c0_64, %c0_65] : memref<27x4x4xbf16, #tpu.memory_space<vmem>>, vector<1x4x4xbf16>
    %123 = vector.shape_cast %122 : vector<1x4x4xbf16> to vector<4x4xbf16>
    %cst_66 = arith.constant dense<0.000000e+00> : vector<4x324xf32>
    %124 = tpu.matmul %123, %121, %cst_66 {dimension_numbers = #tpu.dot_dimension_numbers<[1], [0], [0], [1], [0, 0, 1, 1], [], []>} : vector<4x4xbf16>, vector<4x324xbf16>, vector<4x324xf32> -> vector<4x324xf32>
    %125 = arith.addf %120, %124 : vector<4x324xf32>
    %126 = vector.extract_strided_slice %37 {offsets = [0, 36], sizes = [4, 324], strides = [1, 1]} : vector<4x362xbf16> to vector<4x324xbf16>
    %c15 = arith.constant 15 : index
    %c0_67 = arith.constant 0 : index
    %c0_68 = arith.constant 0 : index
    %127 = vector.load %arg5[%c15, %c0_67, %c0_68] : memref<27x4x4xbf16, #tpu.memory_space<vmem>>, vector<1x4x4xbf16>
    %128 = vector.shape_cast %127 : vector<1x4x4xbf16> to vector<4x4xbf16>
    %cst_69 = arith.constant dense<0.000000e+00> : vector<4x324xf32>
    %129 = tpu.matmul %128, %126, %cst_69 {dimension_numbers = #tpu.dot_dimension_numbers<[1], [0], [0], [1], [0, 0, 1, 1], [], []>} : vector<4x4xbf16>, vector<4x324xbf16>, vector<4x324xf32> -> vector<4x324xf32>
    %130 = arith.addf %125, %129 : vector<4x324xf32>
    %131 = vector.extract_strided_slice %37 {offsets = [0, 37], sizes = [4, 324], strides = [1, 1]} : vector<4x362xbf16> to vector<4x324xbf16>
    %c16 = arith.constant 16 : index
    %c0_70 = arith.constant 0 : index
    %c0_71 = arith.constant 0 : index
    %132 = vector.load %arg5[%c16, %c0_70, %c0_71] : memref<27x4x4xbf16, #tpu.memory_space<vmem>>, vector<1x4x4xbf16>
    %133 = vector.shape_cast %132 : vector<1x4x4xbf16> to vector<4x4xbf16>
    %cst_72 = arith.constant dense<0.000000e+00> : vector<4x324xf32>
    %134 = tpu.matmul %133, %131, %cst_72 {dimension_numbers = #tpu.dot_dimension_numbers<[1], [0], [0], [1], [0, 0, 1, 1], [], []>} : vector<4x4xbf16>, vector<4x324xbf16>, vector<4x324xf32> -> vector<4x324xf32>
    %135 = arith.addf %130, %134 : vector<4x324xf32>
    %136 = vector.extract_strided_slice %37 {offsets = [0, 38], sizes = [4, 324], strides = [1, 1]} : vector<4x362xbf16> to vector<4x324xbf16>
    %c17 = arith.constant 17 : index
    %c0_73 = arith.constant 0 : index
    %c0_74 = arith.constant 0 : index
    %137 = vector.load %arg5[%c17, %c0_73, %c0_74] : memref<27x4x4xbf16, #tpu.memory_space<vmem>>, vector<1x4x4xbf16>
    %138 = vector.shape_cast %137 : vector<1x4x4xbf16> to vector<4x4xbf16>
    %cst_75 = arith.constant dense<0.000000e+00> : vector<4x324xf32>
    %139 = tpu.matmul %138, %136, %cst_75 {dimension_numbers = #tpu.dot_dimension_numbers<[1], [0], [0], [1], [0, 0, 1, 1], [], []>} : vector<4x4xbf16>, vector<4x324xbf16>, vector<4x324xf32> -> vector<4x324xf32>
    %140 = arith.addf %135, %139 : vector<4x324xf32>
    %141 = vector.extract_strided_slice %51 {offsets = [0, 0], sizes = [4, 324], strides = [1, 1]} : vector<4x362xbf16> to vector<4x324xbf16>
    %c18 = arith.constant 18 : index
    %c0_76 = arith.constant 0 : index
    %c0_77 = arith.constant 0 : index
    %142 = vector.load %arg5[%c18, %c0_76, %c0_77] : memref<27x4x4xbf16, #tpu.memory_space<vmem>>, vector<1x4x4xbf16>
    %143 = vector.shape_cast %142 : vector<1x4x4xbf16> to vector<4x4xbf16>
    %cst_78 = arith.constant dense<0.000000e+00> : vector<4x324xf32>
    %144 = tpu.matmul %143, %141, %cst_78 {dimension_numbers = #tpu.dot_dimension_numbers<[1], [0], [0], [1], [0, 0, 1, 1], [], []>} : vector<4x4xbf16>, vector<4x324xbf16>, vector<4x324xf32> -> vector<4x324xf32>
    %145 = arith.addf %140, %144 : vector<4x324xf32>
    %146 = vector.extract_strided_slice %51 {offsets = [0, 1], sizes = [4, 324], strides = [1, 1]} : vector<4x362xbf16> to vector<4x324xbf16>
    %c19 = arith.constant 19 : index
    %c0_79 = arith.constant 0 : index
    %c0_80 = arith.constant 0 : index
    %147 = vector.load %arg5[%c19, %c0_79, %c0_80] : memref<27x4x4xbf16, #tpu.memory_space<vmem>>, vector<1x4x4xbf16>
    %148 = vector.shape_cast %147 : vector<1x4x4xbf16> to vector<4x4xbf16>
    %cst_81 = arith.constant dense<0.000000e+00> : vector<4x324xf32>
    %149 = tpu.matmul %148, %146, %cst_81 {dimension_numbers = #tpu.dot_dimension_numbers<[1], [0], [0], [1], [0, 0, 1, 1], [], []>} : vector<4x4xbf16>, vector<4x324xbf16>, vector<4x324xf32> -> vector<4x324xf32>
    %150 = arith.addf %145, %149 : vector<4x324xf32>
    %151 = vector.extract_strided_slice %51 {offsets = [0, 2], sizes = [4, 324], strides = [1, 1]} : vector<4x362xbf16> to vector<4x324xbf16>
    %c20 = arith.constant 20 : index
    %c0_82 = arith.constant 0 : index
    %c0_83 = arith.constant 0 : index
    %152 = vector.load %arg5[%c20, %c0_82, %c0_83] : memref<27x4x4xbf16, #tpu.memory_space<vmem>>, vector<1x4x4xbf16>
    %153 = vector.shape_cast %152 : vector<1x4x4xbf16> to vector<4x4xbf16>
    %cst_84 = arith.constant dense<0.000000e+00> : vector<4x324xf32>
    %154 = tpu.matmul %153, %151, %cst_84 {dimension_numbers = #tpu.dot_dimension_numbers<[1], [0], [0], [1], [0, 0, 1, 1], [], []>} : vector<4x4xbf16>, vector<4x324xbf16>, vector<4x324xf32> -> vector<4x324xf32>
    %155 = arith.addf %150, %154 : vector<4x324xf32>
    %156 = vector.extract_strided_slice %51 {offsets = [0, 18], sizes = [4, 324], strides = [1, 1]} : vector<4x362xbf16> to vector<4x324xbf16>
    %c21 = arith.constant 21 : index
    %c0_85 = arith.constant 0 : index
    %c0_86 = arith.constant 0 : index
    %157 = vector.load %arg5[%c21, %c0_85, %c0_86] : memref<27x4x4xbf16, #tpu.memory_space<vmem>>, vector<1x4x4xbf16>
    %158 = vector.shape_cast %157 : vector<1x4x4xbf16> to vector<4x4xbf16>
    %cst_87 = arith.constant dense<0.000000e+00> : vector<4x324xf32>
    %159 = tpu.matmul %158, %156, %cst_87 {dimension_numbers = #tpu.dot_dimension_numbers<[1], [0], [0], [1], [0, 0, 1, 1], [], []>} : vector<4x4xbf16>, vector<4x324xbf16>, vector<4x324xf32> -> vector<4x324xf32>
    %160 = arith.addf %155, %159 : vector<4x324xf32>
    %161 = vector.extract_strided_slice %51 {offsets = [0, 19], sizes = [4, 324], strides = [1, 1]} : vector<4x362xbf16> to vector<4x324xbf16>
    %c22 = arith.constant 22 : index
    %c0_88 = arith.constant 0 : index
    %c0_89 = arith.constant 0 : index
    %162 = vector.load %arg5[%c22, %c0_88, %c0_89] : memref<27x4x4xbf16, #tpu.memory_space<vmem>>, vector<1x4x4xbf16>
    %163 = vector.shape_cast %162 : vector<1x4x4xbf16> to vector<4x4xbf16>
    %cst_90 = arith.constant dense<0.000000e+00> : vector<4x324xf32>
    %164 = tpu.matmul %163, %161, %cst_90 {dimension_numbers = #tpu.dot_dimension_numbers<[1], [0], [0], [1], [0, 0, 1, 1], [], []>} : vector<4x4xbf16>, vector<4x324xbf16>, vector<4x324xf32> -> vector<4x324xf32>
    %165 = arith.addf %160, %164 : vector<4x324xf32>
    %166 = vector.extract_strided_slice %51 {offsets = [0, 20], sizes = [4, 324], strides = [1, 1]} : vector<4x362xbf16> to vector<4x324xbf16>
    %c23 = arith.constant 23 : index
    %c0_91 = arith.constant 0 : index
    %c0_92 = arith.constant 0 : index
    %167 = vector.load %arg5[%c23, %c0_91, %c0_92] : memref<27x4x4xbf16, #tpu.memory_space<vmem>>, vector<1x4x4xbf16>
    %168 = vector.shape_cast %167 : vector<1x4x4xbf16> to vector<4x4xbf16>
    %cst_93 = arith.constant dense<0.000000e+00> : vector<4x324xf32>
    %169 = tpu.matmul %168, %166, %cst_93 {dimension_numbers = #tpu.dot_dimension_numbers<[1], [0], [0], [1], [0, 0, 1, 1], [], []>} : vector<4x4xbf16>, vector<4x324xbf16>, vector<4x324xf32> -> vector<4x324xf32>
    %170 = arith.addf %165, %169 : vector<4x324xf32>
    %171 = vector.extract_strided_slice %51 {offsets = [0, 36], sizes = [4, 324], strides = [1, 1]} : vector<4x362xbf16> to vector<4x324xbf16>
    %c24 = arith.constant 24 : index
    %c0_94 = arith.constant 0 : index
    %c0_95 = arith.constant 0 : index
    %172 = vector.load %arg5[%c24, %c0_94, %c0_95] : memref<27x4x4xbf16, #tpu.memory_space<vmem>>, vector<1x4x4xbf16>
    %173 = vector.shape_cast %172 : vector<1x4x4xbf16> to vector<4x4xbf16>
    %cst_96 = arith.constant dense<0.000000e+00> : vector<4x324xf32>
    %174 = tpu.matmul %173, %171, %cst_96 {dimension_numbers = #tpu.dot_dimension_numbers<[1], [0], [0], [1], [0, 0, 1, 1], [], []>} : vector<4x4xbf16>, vector<4x324xbf16>, vector<4x324xf32> -> vector<4x324xf32>
    %175 = arith.addf %170, %174 : vector<4x324xf32>
    %176 = vector.extract_strided_slice %51 {offsets = [0, 37], sizes = [4, 324], strides = [1, 1]} : vector<4x362xbf16> to vector<4x324xbf16>
    %c25 = arith.constant 25 : index
    %c0_97 = arith.constant 0 : index
    %c0_98 = arith.constant 0 : index
    %177 = vector.load %arg5[%c25, %c0_97, %c0_98] : memref<27x4x4xbf16, #tpu.memory_space<vmem>>, vector<1x4x4xbf16>
    %178 = vector.shape_cast %177 : vector<1x4x4xbf16> to vector<4x4xbf16>
    %cst_99 = arith.constant dense<0.000000e+00> : vector<4x324xf32>
    %179 = tpu.matmul %178, %176, %cst_99 {dimension_numbers = #tpu.dot_dimension_numbers<[1], [0], [0], [1], [0, 0, 1, 1], [], []>} : vector<4x4xbf16>, vector<4x324xbf16>, vector<4x324xf32> -> vector<4x324xf32>
    %180 = arith.addf %175, %179 : vector<4x324xf32>
    %181 = vector.extract_strided_slice %51 {offsets = [0, 38], sizes = [4, 324], strides = [1, 1]} : vector<4x362xbf16> to vector<4x324xbf16>
    %c26 = arith.constant 26 : index
    %c0_100 = arith.constant 0 : index
    %c0_101 = arith.constant 0 : index
    %182 = vector.load %arg5[%c26, %c0_100, %c0_101] : memref<27x4x4xbf16, #tpu.memory_space<vmem>>, vector<1x4x4xbf16>
    %183 = vector.shape_cast %182 : vector<1x4x4xbf16> to vector<4x4xbf16>
    %cst_102 = arith.constant dense<0.000000e+00> : vector<4x324xf32>
    %184 = tpu.matmul %183, %181, %cst_102 {dimension_numbers = #tpu.dot_dimension_numbers<[1], [0], [0], [1], [0, 0, 1, 1], [], []>} : vector<4x4xbf16>, vector<4x324xbf16>, vector<4x324xf32> -> vector<4x324xf32>
    %185 = arith.addf %180, %184 : vector<4x324xf32>
    %c0_103 = arith.constant 0 : index
    %c0_104 = arith.constant 0 : index
    %c0_105 = arith.constant 0 : index
    %c0_106 = arith.constant 0 : index
    %186 = vector.load %arg9[%c0_103, %c0_104, %c0_105, %c0_106] : memref<1x1x4x324xf32, #tpu.memory_space<vmem>>, vector<1x1x4x324xf32>
    %187 = vector.shape_cast %186 : vector<1x1x4x324xf32> to vector<4x324xf32>
    %188 = vector.shape_cast %185 : vector<4x324xf32> to vector<1x1x4x324xf32>
    tpu.vector_store %arg9[%c0_103, %c0_104, %c0_105, %c0_106], %188 {strides = array<i32>} : memref<1x1x4x324xf32, #tpu.memory_space<vmem>>, vector<1x1x4x324xf32>,
    %189 = vector.broadcast %0 : vector<1x324xf32> to vector<4x324xf32>
    %190 = arith.mulf %185, %189 : vector<4x324xf32>
    %cst_107 = arith.constant dense<0.000000e+00> : vector<4xf32>
    %191 = vector.multi_reduction <add>, %190, %cst_107 [1] : vector<4x324xf32> to vector<4xf32>
    %192 = vector.shape_cast %191 : vector<4xf32> to vector<4x1xf32>
    %193 = arith.mulf %190, %190 : vector<4x324xf32>
    %cst_108 = arith.constant dense<0.000000e+00> : vector<4xf32>
    %194 = vector.multi_reduction <add>, %193, %cst_108 [1] : vector<4x324xf32> to vector<4xf32>
    %195 = vector.shape_cast %194 : vector<4xf32> to vector<4x1xf32>
    %196 = tpu.concatenate %192, %195 in 1 : vector<4x1xf32>, vector<4x1xf32> -> vector<4x2xf32>
    %c0_109 = arith.constant 0 : index
    %c0_110 = arith.constant 0 : index
    %c0_111 = arith.constant 0 : index
    %c0_112 = arith.constant 0 : index
    %197 = vector.load %arg10[%c0_109, %c0_110, %c0_111, %c0_112] : memref<1x1x4x2xf32, #tpu.memory_space<vmem>>, vector<1x1x4x2xf32>
    %198 = vector.shape_cast %197 : vector<1x1x4x2xf32> to vector<4x2xf32>
    %199 = vector.shape_cast %196 : vector<4x2xf32> to vector<1x1x4x2xf32>
    tpu.vector_store %arg10[%c0_109, %c0_110, %c0_111, %c0_112], %199 {strides = array<i32>} : memref<1x1x4x2xf32, #tpu.memory_space<vmem>>, vector<1x1x4x2xf32>,
    return
  }
  func.func @transform_0(%arg0: i32, %arg1: i32) -> (i32, i32, i32, i32) {
    %c1_i32 = arith.constant 1 : i32
    %0 = arith.subi %arg1, %c1_i32 : i32
    %c0_i32 = arith.constant 0 : i32
    %1 = arith.maxsi %0, %c0_i32 : i32
    %c0_i32_0 = arith.constant 0 : i32
    %c0_i32_1 = arith.constant 0 : i32
    %c0_i32_2 = arith.constant 0 : i32
    return %arg0, %1, %c0_i32_0, %c0_i32_1 : i32, i32, i32, i32
  }
  func.func @transform_1(%arg0: i32, %arg1: i32) -> (i32, i32, i32, i32) {
    %c0_i32 = arith.constant 0 : i32
    %c0_i32_0 = arith.constant 0 : i32
    %c0_i32_1 = arith.constant 0 : i32
    return %arg0, %arg1, %c0_i32, %c0_i32_0 : i32, i32, i32, i32
  }
  func.func @transform_2(%arg0: i32, %arg1: i32) -> (i32, i32, i32, i32) {
    %c1_i32 = arith.constant 1 : i32
    %0 = arith.addi %arg1, %c1_i32 : i32
    %c7_i32 = arith.constant 7 : i32
    %1 = arith.minsi %0, %c7_i32 : i32
    %c0_i32 = arith.constant 0 : i32
    %c0_i32_0 = arith.constant 0 : i32
    %c0_i32_1 = arith.constant 0 : i32
    return %arg0, %1, %c0_i32, %c0_i32_0 : i32, i32, i32, i32
  }
  func.func @transform_3(%arg0: i32, %arg1: i32) -> (i32, i32, i32) {
    %c0_i32 = arith.constant 0 : i32
    %c0_i32_0 = arith.constant 0 : i32
    %c0_i32_1 = arith.constant 0 : i32
    %c0_i32_2 = arith.constant 0 : i32
    return %c0_i32, %c0_i32_0, %c0_i32_1 : i32, i32, i32
  }
  func.func @transform_4(%arg0: i32, %arg1: i32) -> (i32, i32) {
    %c0_i32 = arith.constant 0 : i32
    %c0_i32_0 = arith.constant 0 : i32
    %c0_i32_1 = arith.constant 0 : i32
    return %c0_i32, %c0_i32_0 : i32, i32
  }
  func.func @transform_5(%arg0: i32, %arg1: i32) -> (i32, i32) {
    %c0_i32 = arith.constant 0 : i32
    %c0_i32_0 = arith.constant 0 : i32
    %c0_i32_1 = arith.constant 0 : i32
    return %c0_i32, %c0_i32_0 : i32, i32
  }
  func.func @transform_6(%arg0: i32, %arg1: i32) -> (i32, i32) {
    %c0_i32 = arith.constant 0 : i32
    %c0_i32_0 = arith.constant 0 : i32
    %c0_i32_1 = arith.constant 0 : i32
    return %c0_i32, %c0_i32_0 : i32, i32
  }
  func.func @transform_7(%arg0: i32, %arg1: i32) -> (i32, i32, i32, i32) {
    %c0_i32 = arith.constant 0 : i32
    %c0_i32_0 = arith.constant 0 : i32
    %c0_i32_1 = arith.constant 0 : i32
    return %arg0, %arg1, %c0_i32, %c0_i32_0 : i32, i32, i32, i32
  }
  func.func @transform_8(%arg0: i32, %arg1: i32) -> (i32, i32, i32, i32) {
    %c0_i32 = arith.constant 0 : i32
    %c0_i32_0 = arith.constant 0 : i32
    %c0_i32_1 = arith.constant 0 : i32
    return %arg0, %arg1, %c0_i32, %c0_i32_0 : i32, i32, i32, i32
  }
}

module attributes {stable_mosaic.version = 11 : i64} {
  func.func @bn_add_relu_kernel(%arg0: i32, %arg1: i32, %arg2: memref<1x1x4x324xf32, #tpu.memory_space<vmem>>, %arg3: memref<1x1x4x324xbf16, #tpu.memory_space<vmem>>, %arg4: memref<4x1xf32, #tpu.memory_space<vmem>>, %arg5: memref<4x1xf32, #tpu.memory_space<vmem>>, %arg6: memref<1x1x4x324xf32, #tpu.memory_space<vmem>>) attributes {dimension_semantics = [#tpu.dimension_semantics<parallel>, #tpu.dimension_semantics<parallel>], iteration_bounds = array<i64: 2, 8>, scalar_prefetch = 0 : i64, scratch_operands = 0 : i64, tpu.core_type = #tpu.core_type<tc>, window_params = [{transform_indices = @transform_0, window_bounds = array<i64: 1, 1, 4, 324>}, {transform_indices = @transform_1, window_bounds = array<i64: 1, 1, 4, 324>}, {pipeline_mode = #tpu.pipeline_mode<synchronous>, transform_indices = @transform_2, window_bounds = array<i64: 4, 1>}, {pipeline_mode = #tpu.pipeline_mode<synchronous>, transform_indices = @transform_3, window_bounds = array<i64: 4, 1>}, {transform_indices = @transform_4, window_bounds = array<i64: 1, 1, 4, 324>}]} {
    %c0 = arith.constant 0 : index
    %c0_0 = arith.constant 0 : index
    %c0_1 = arith.constant 0 : index
    %c0_2 = arith.constant 0 : index
    %0 = vector.load %arg2[%c0, %c0_0, %c0_1, %c0_2] : memref<1x1x4x324xf32, #tpu.memory_space<vmem>>, vector<1x1x4x324xf32>
    %1 = vector.shape_cast %0 : vector<1x1x4x324xf32> to vector<4x324xf32>
    %c0_3 = arith.constant 0 : index
    %c0_4 = arith.constant 0 : index
    %c0_5 = arith.constant 0 : index
    %c0_6 = arith.constant 0 : index
    %2 = vector.load %arg3[%c0_3, %c0_4, %c0_5, %c0_6] : memref<1x1x4x324xbf16, #tpu.memory_space<vmem>>, vector<1x1x4x324xbf16>
    %3 = vector.shape_cast %2 : vector<1x1x4x324xbf16> to vector<4x324xbf16>
    %4 = arith.extf %3 : vector<4x324xbf16> to vector<4x324xf32>
    %c0_7 = arith.constant 0 : index
    %c0_8 = arith.constant 0 : index
    %5 = vector.load %arg4[%c0_7, %c0_8] : memref<4x1xf32, #tpu.memory_space<vmem>>, vector<4x1xf32>
    %6 = vector.broadcast %5 : vector<4x1xf32> to vector<4x324xf32>
    %7 = arith.mulf %1, %6 : vector<4x324xf32>
    %c0_9 = arith.constant 0 : index
    %c0_10 = arith.constant 0 : index
    %8 = vector.load %arg5[%c0_9, %c0_10] : memref<4x1xf32, #tpu.memory_space<vmem>>, vector<4x1xf32>
    %9 = vector.broadcast %8 : vector<4x1xf32> to vector<4x324xf32>
    %10 = arith.addf %7, %9 : vector<4x324xf32>
    %11 = arith.addf %10, %4 : vector<4x324xf32>
    %cst = arith.constant 0.000000e+00 : f32
    %12 = vector.broadcast %cst : f32 to vector<4x324xf32>
    %13 = arith.maximumf %11, %12 : vector<4x324xf32>
    %c0_11 = arith.constant 0 : index
    %c0_12 = arith.constant 0 : index
    %c0_13 = arith.constant 0 : index
    %c0_14 = arith.constant 0 : index
    %14 = vector.load %arg6[%c0_11, %c0_12, %c0_13, %c0_14] : memref<1x1x4x324xf32, #tpu.memory_space<vmem>>, vector<1x1x4x324xf32>
    %15 = vector.shape_cast %14 : vector<1x1x4x324xf32> to vector<4x324xf32>
    %16 = vector.shape_cast %13 : vector<4x324xf32> to vector<1x1x4x324xf32>
    tpu.vector_store %arg6[%c0_11, %c0_12, %c0_13, %c0_14], %16 {strides = array<i32>} : memref<1x1x4x324xf32, #tpu.memory_space<vmem>>, vector<1x1x4x324xf32>,
    return
  }
  func.func @transform_0(%arg0: i32, %arg1: i32) -> (i32, i32, i32, i32) {
    %c0_i32 = arith.constant 0 : i32
    %c0_i32_0 = arith.constant 0 : i32
    %c0_i32_1 = arith.constant 0 : i32
    return %arg0, %arg1, %c0_i32, %c0_i32_0 : i32, i32, i32, i32
  }
  func.func @transform_1(%arg0: i32, %arg1: i32) -> (i32, i32, i32, i32) {
    %c1_i32 = arith.constant 1 : i32
    %0 = arith.addi %arg1, %c1_i32 : i32
    %c0_i32 = arith.constant 0 : i32
    %c0_i32_0 = arith.constant 0 : i32
    %c0_i32_1 = arith.constant 0 : i32
    return %arg0, %0, %c0_i32, %c0_i32_0 : i32, i32, i32, i32
  }
  func.func @transform_2(%arg0: i32, %arg1: i32) -> (i32, i32) {
    %c0_i32 = arith.constant 0 : i32
    %c0_i32_0 = arith.constant 0 : i32
    %c0_i32_1 = arith.constant 0 : i32
    return %c0_i32, %c0_i32_0 : i32, i32
  }
  func.func @transform_3(%arg0: i32, %arg1: i32) -> (i32, i32) {
    %c0_i32 = arith.constant 0 : i32
    %c0_i32_0 = arith.constant 0 : i32
    %c0_i32_1 = arith.constant 0 : i32
    return %c0_i32, %c0_i32_0 : i32, i32
  }
  func.func @transform_4(%arg0: i32, %arg1: i32) -> (i32, i32, i32, i32) {
    %c0_i32 = arith.constant 0 : i32
    %c0_i32_0 = arith.constant 0 : i32
    %c0_i32_1 = arith.constant 0 : i32
    return %arg0, %arg1, %c0_i32, %c0_i32_0 : i32, i32, i32, i32
  }
}

</mosaic_0001>

<llo_original>
// kernel: res_block3d_forward.5
$region0: #{res_block3d_forward.5}
  #allocation0 [shape = 'u32[]', space=smem, size = 0x4, offset = 0x4, fixed_abs, tag = 'smem constant byte address 0x4 - core index']
  #allocation1 [shape = 'u32[144,128]{1,0:T(1,128)}', space=vmem, size = 0x12000, scoped, tag = 'internal scratch']
  %s0 = inlined_call_operand.vmem [shape: f32[2,8,4,324], index: 0, kind: input, shape index: {}]
  %s1 = inlined_call_operand.vmem [shape: bf16[2,10,4,324], index: 1, kind: input, shape index: {}]
  %s2 = inlined_call_operand.vmem [shape: f32[4,1], index: 2, kind: input, shape index: {}]
  %s3 = inlined_call_operand.vmem [shape: f32[4,1], index: 3, kind: input, shape index: {}]
  %s4 = inlined_call_operand.vmem [shape: f32[2,8,4,324], index: 4, kind: output, shape index: {}]
  %s5 = sld [smem:[#allocation0]]
  $region49: #{res_block3d_forward.5} parent=0
    _
  %s7 = ssub.s32 1, %s5
  %s8 = scalar_select 0, %s7, %s5
  loop: start=0, step=1, limit=18
  $region2: #{res_block3d_forward.5} parent=0 // loop_pre_header
    _
  $region3: #{res_block3d_forward.5} parent=0 // loop_header
    %s10 = sphi 0, %s14
    %p11 = scmp.ge.s32.totalorder %s10, 18
    %s17 = sphi 0, %s29
    %s18 = sphi 0, %s25
    %s19 = sphi 0, %s17
    %s20 = sphi 0, %s18
    %s21 = sphi 0, %s19
    %s22 = sphi 0, %s20
    %s34 = sphi 0, %s36
    %s37 = sphi 0, %s34
    %s38 = sphi 0, %s37
    %s54 = sphi 0, %s38
    %s64 = sphi 0, %s66
    %s67 = sphi 0, %s64
    %s68 = sphi 0, %s67
    %s84 = sphi 0, %s68
    %s88 = sphi 0, %s88
    %s90 = sphi 0, %s88
    %s91 = sphi 0, %s90
    %s105 = sphi 0, %s91
    %s109 = sphi 0, %s109
    %s111 = sphi 0, %s109
    %s112 = sphi 0, %s111
    %s126 = sphi 0, %s112
    %s134 = sphi 0, %s136
    %s137 = sphi 0, %s134
    %s138 = sphi 0, %s137
    %s154 = sphi 0, %s138
  $region4: #{res_block3d_forward.5} parent=0 // loop_header_branch
    %13 = sbr.rel (%p11) target = $region8
  $region5: #{res_block3d_forward.5} parent=0 // loop_body
    %s15 = ssub.s32 %s10, 1
    %s16 = ssub.s32 %s10, 2
    %s23 = sadd.s32 1, %s18
    %p24 = scmp.ge.s32.totalorder %s23, 8
    %s25 = scalar_select %p24, 0, %s23
    %s26 = sadd.s32 1, %s17
    %s27 = scalar_select %p24, %s26, %s17
    %p28 = scmp.ge.s32.totalorder %s27, 2
    %s29 = scalar_select %p28, 0, %s27
    %s30 = ssub.s32 %s17, %s29
    %s31 = ssub.s32 %s18, %s25
    %s32 = sor.u32 %s30, %s31
    %p33 = scmp.eq.s32.totalorder %s32, 0
    %s35 = sadd.s32 %s34, 1
    %s36 = scalar_select %p33, %s34, %s35
    %p39 = pneg %p33
    %p40 = scmp.eq.s32.totalorder %s10, 15
    %p41 = por %p39, %p40
    %p42 = scmp.ne.s32.totalorder %s34, %s37
    %p43 = scmp.eq.s32.totalorder %s10, 0
    %p44 = por %p42, %p43
    %p45 = scmp.ne.s32.totalorder %s34, %s37
    %p46 = scmp.eq.s32.totalorder %s15, 15
    %p47 = por %p45, %p46
    %p48 = scmp.ne.s32.totalorder %s37, %s38
    %p49 = scmp.eq.s32.totalorder %s15, 0
    %p50 = por %p48, %p49
    %p51 = scmp.ne.s32.totalorder %s37, %s38
    %p52 = scmp.eq.s32.totalorder %s16, 15
    %p53 = por %p51, %p52
    %p55 = scmp.ne.s32.totalorder %s38, %s54
    %p56 = scmp.eq.s32.totalorder %s16, 0
    %p57 = por %p55, %p56
    %s58 = sadd.s32 %s18, 1
    %s59 = sadd.s32 %s25, 1
    %s60 = ssub.s32 %s17, %s29
    %s61 = ssub.s32 %s58, %s59
    %s62 = sor.u32 %s60, %s61
    %p63 = scmp.eq.s32.totalorder %s62, 0
    %s65 = sadd.s32 %s64, 1
    %s66 = scalar_select %p63, %s64, %s65
    %p69 = pneg %p63
    %p70 = scmp.eq.s32.totalorder %s10, 15
    %p71 = por %p69, %p70
    %p72 = scmp.ne.s32.totalorder %s64, %s67
    %p73 = scmp.eq.s32.totalorder %s10, 0
    %p74 = por %p72, %p73
    %p75 = scmp.ne.s32.totalorder %s64, %s67
    %p76 = scmp.eq.s32.totalorder %s15, 15
    %p77 = por %p75, %p76
    %p78 = scmp.ne.s32.totalorder %s67, %s68
    %p79 = scmp.eq.s32.totalorder %s15, 0
    %p80 = por %p78, %p79
    %p81 = scmp.ne.s32.totalorder %s67, %s68
    %p82 = scmp.eq.s32.totalorder %s16, 15
    %p83 = por %p81, %p82
    %p85 = scmp.ne.s32.totalorder %s68, %s84
    %p86 = scmp.eq.s32.totalorder %s16, 0
    %p87 = por %p85, %p86
    %s89 = sadd.s32 %s88, 1
    %p92 = scmp.eq.s32.totalorder %s10, 15
    %p93 = scmp.ne.s32.totalorder %s88, %s90
    %p94 = scmp.eq.s32.totalorder %s10, 0
    %p95 = por %p93, %p94
    %p96 = scmp.ne.s32.totalorder %s88, %s90
    %p97 = scmp.eq.s32.totalorder %s15, 15
    %p98 = por %p96, %p97
    %p99 = scmp.ne.s32.totalorder %s90, %s91
    %p100 = scmp.eq.s32.totalorder %s15, 0
    %p101 = por %p99, %p100
    %p102 = scmp.ne.s32.totalorder %s90, %s91
    %p103 = scmp.eq.s32.totalorder %s16, 15
    %p104 = por %p102, %p103
    %p106 = scmp.ne.s32.totalorder %s91, %s105
    %p107 = scmp.eq.s32.totalorder %s16, 0
    %p108 = por %p106, %p107
    %s110 = sadd.s32 %s109, 1
    %p113 = scmp.eq.s32.totalorder %s10, 15
    %p114 = scmp.ne.s32.totalorder %s109, %s111
    %p115 = scmp.eq.s32.totalorder %s10, 0
    %p116 = por %p114, %p115
    %p117 = scmp.ne.s32.totalorder %s109, %s111
    %p118 = scmp.eq.s32.totalorder %s15, 15
    %p119 = por %p117, %p118
    %p120 = scmp.ne.s32.totalorder %s111, %s112
    %p121 = scmp.eq.s32.totalorder %s15, 0
    %p122 = por %p120, %p121
    %p123 = scmp.ne.s32.totalorder %s111, %s112
    %p124 = scmp.eq.s32.totalorder %s16, 15
    %p125 = por %p123, %p124
    %p127 = scmp.ne.s32.totalorder %s112, %s126
    %p128 = scmp.eq.s32.totalorder %s16, 0
    %p129 = por %p127, %p128
    %s130 = ssub.s32 %s17, %s29
    %s131 = ssub.s32 %s18, %s25
    %s132 = sor.u32 %s130, %s131
    %p133 = scmp.eq.s32.totalorder %s132, 0
    %s135 = sadd.s32 %s134, 1
    %s136 = scalar_select %p133, %s134, %s135
    %p139 = pneg %p133
    %p140 = scmp.eq.s32.totalorder %s10, 15
    %p141 = por %p139, %p140
    %p142 = scmp.ne.s32.totalorder %s134, %s137
    %p143 = scmp.eq.s32.totalorder %s10, 0
    %p144 = por %p142, %p143
    %p145 = scmp.ne.s32.totalorder %s134, %s137
    %p146 = scmp.eq.s32.totalorder %s15, 15
    %p147 = por %p145, %p146
    %p148 = scmp.ne.s32.totalorder %s137, %s138
    %p149 = scmp.eq.s32.totalorder %s15, 0
    %p150 = por %p148, %p149
    %p151 = scmp.ne.s32.totalorder %s137, %s138
    %p152 = scmp.eq.s32.totalorder %s16, 15
    %p153 = por %p151, %p152
    %p155 = scmp.ne.s32.totalorder %s138, %s154
    %p156 = scmp.eq.s32.totalorder %s16, 0
    %p157 = por %p155, %p156
    %p158 = scmp.le.s32.totalorder 1, %s10
    %p159 = scmp.lt.s32.totalorder %s10, 17
    %p160 = pnand %p158, %p159
    %p161 = pneg %p160
    // Predicated region
    $region9: #{res_block3d_forward.5} parent=5 // pred_check
      _
    $region10: #{res_block3d_forward.5} parent=5 // pred_check_branch
      %163 = sbr.rel (%p160) target = $region12
    $region11: #{res_block3d_forward.5} parent=5 // pred_region
      %s164 = ssub.s32 %s10, 1
      // Predicated region
      $region13: #{res_block3d_forward.5} parent=11 // pred_check
        %p165 = pneg %p101
      $region14: #{res_block3d_forward.5} parent=11 // pred_check_branch
        %167 = sbr.rel (%p165) target = $region16
      $region15: #{res_block3d_forward.5} parent=11 // pred_region
        _
      $region16: #{res_block3d_forward.5} parent=11 // pred_fallthru
        _
      // Predicated region
      $region17: #{res_block3d_forward.5} parent=11 // pred_check
        %p168 = pneg %p122
      $region18: #{res_block3d_forward.5} parent=11 // pred_check_branch
        %170 = sbr.rel (%p168) target = $region20
      $region19: #{res_block3d_forward.5} parent=11 // pred_region
        _
      $region20: #{res_block3d_forward.5} parent=11 // pred_fallthru
        _
    $region12: #{res_block3d_forward.5} parent=5 // pred_fallthru
      _
    %p171 = scmp.lt.s32.totalorder %s10, 16
    // Predicated region
    $region21: #{res_block3d_forward.5} parent=5 // pred_check
      %p172 = pneg %p171
    $region22: #{res_block3d_forward.5} parent=5 // pred_check_branch
      %174 = sbr.rel (%p172) target = $region24
    $region23: #{res_block3d_forward.5} parent=5 // pred_region
      // Predicated region
      $region25: #{res_block3d_forward.5} parent=23 // pred_check
        %p175 = pneg %p44
      $region26: #{res_block3d_forward.5} parent=23 // pred_check_branch
        %177 = sbr.rel (%p175) target = $region28
      $region27: #{res_block3d_forward.5} parent=23 // pred_region
        %p178 = scmp.lt.s32.totalorder %s17, 1
        %s179 = scalar_select %p178, %s17, 1
        %p180 = scmp.lt.s32.totalorder %s18, 7
        %s181 = scalar_select %p180, %s18, 7
        %s182 = smul.addr %s181, 3
        %s183 = smul.addr %s179, 24
        %s184 = sadd.s32 %s182, %s183
        %s185 = smul.addr %s184, 4
        %s186 = scalar_lea.vmem %s0, %s185
      $region28: #{res_block3d_forward.5} parent=23 // pred_fallthru
        _
      // Predicated region
      $region29: #{res_block3d_forward.5} parent=23 // pred_check
        %p187 = pneg %p74
      $region30: #{res_block3d_forward.5} parent=23 // pred_check_branch
        %189 = sbr.rel (%p187) target = $region32
      $region31: #{res_block3d_forward.5} parent=23 // pred_region
        %s190 = sadd.s32 %s18, 1
        %p191 = scmp.lt.s32.totalorder %s17, 1
        %s192 = scalar_select %p191, %s17, 1
        %p193 = scmp.lt.s32.totalorder %s190, 9
        %s194 = scalar_select %p193, %s190, 9
        %s195 = smul.addr %s194, 3
        %s196 = smul.addr %s192, 30
        %s197 = sadd.s32 %s195, %s196
        %s198 = smul.addr %s197, 2
        %s199 = scalar_lea.vmem %s1, %s198
        %s200 = sadd.s32 %s18, 1
      $region32: #{res_block3d_forward.5} parent=23 // pred_fallthru
        _
    $region24: #{res_block3d_forward.5} parent=5 // pred_fallthru
      _
    %p201 = scmp.le.s32.totalorder 1, %s10
    %p202 = scmp.lt.s32.totalorder %s10, 17
    %p203 = pnand %p201, %p202
    %p204 = pneg %p203
    // Predicated region
    $region33: #{res_block3d_forward.5} parent=5 // pred_check
      _
    $region34: #{res_block3d_forward.5} parent=5 // pred_check_branch
      %206 = sbr.rel (%p203) target = $region36
    $region35: #{res_block3d_forward.5} parent=5 // pred_region
      %s207 = ssub.s32 %s10, 1
      %p208 = scmp.lt.s32.totalorder %s19, 1
      %s209 = scalar_select %p208, %s19, 1
      %p210 = scmp.lt.s32.totalorder %s20, 7
      %s211 = scalar_select %p210, %s20, 7
      %s212 = smul.addr %s211, 3
      %s213 = smul.addr %s209, 24
      %s214 = sadd.s32 %s212, %s213
      %s215 = smul.addr %s214, 4
      %s216 = scalar_lea.vmem %s0, %s215
      %p217 = pneg %p50
      %p218 = pneg %p47
      %s219 = sadd.s32 %s20, 1
      %p220 = scmp.lt.s32.totalorder %s19, 1
      %s221 = scalar_select %p220, %s19, 1
      %p222 = scmp.lt.s32.totalorder %s219, 9
      %s223 = scalar_select %p222, %s219, 9
      %s224 = smul.addr %s223, 3
      %s225 = smul.addr %s221, 30
      %s226 = sadd.s32 %s224, %s225
      %s227 = smul.addr %s226, 2
      %s228 = scalar_lea.vmem %s1, %s227
      %p229 = pneg %p80
      %p230 = pneg %p77
      %p231 = pneg %p101
      %p232 = pneg %p98
      %p233 = pneg %p122
      %p234 = pneg %p119
      %p235 = pneg %p150
      %p236 = pneg %p147
      %p237 = scmp.lt.s32.totalorder %s19, 1
      %s238 = scalar_select %p237, %s19, 1
      %p239 = scmp.lt.s32.totalorder %s20, 7
      %s240 = scalar_select %p239, %s20, 7
      %s241 = smul.addr %s240, 3
      %s242 = smul.addr %s238, 24
      %s243 = sadd.s32 %s241, %s242
      %s244 = smul.addr %s243, 4
      %s245 = scalar_lea.vmem %s4, %s244
      %p246 = scmp.lt.s32.totalorder %s19, 1
      %s247 = scalar_select %p246, %s19, 1
      %p248 = scmp.lt.s32.totalorder %s20, 7
      %s249 = scalar_select %p248, %s20, 7
      %s250 = smul.addr %s249, 3
      %s251 = smul.addr %s247, 24
      %s252 = sadd.s32 %s250, %s251
      %s253 = smul.addr %s252, 4
      %s254 = scalar_lea.vmem %s0, %s253
      %s255 = sadd.s32 %s20, 1
      %p256 = scmp.lt.s32.totalorder %s19, 1
      %s257 = scalar_select %p256, %s19, 1
      %p258 = scmp.lt.s32.totalorder %s255, 9
      %s259 = scalar_select %p258, %s255, 9
      %s260 = smul.addr %s259, 3
      %s261 = smul.addr %s257, 30
      %s262 = sadd.s32 %s260, %s261
      %s263 = smul.addr %s262, 2
      %s264 = scalar_lea.vmem %s1, %s263
      %s265 = sadd.s32 %s20, 1
      %p266 = scmp.lt.s32.totalorder %s19, 1
      %s267 = scalar_select %p266, %s19, 1
      %p268 = scmp.lt.s32.totalorder %s20, 7
      %s269 = scalar_select %p268, %s20, 7
      %s270 = smul.addr %s269, 3
      %s271 = smul.addr %s267, 24
      %s272 = sadd.s32 %s270, %s271
      %s273 = smul.addr %s272, 4
      %s274 = scalar_lea.vmem %s4, %s273
      %v275 = vld [vmem:[%s254] sm:$0xff]
      %v276 = vld [vmem:[%s254 + $0x8] sm:$0xf]
      %v277 = vld [vmem:[%s264] sm:$0x3f]
      %v278 = vunpack.c.l.bf16 %v277
      %v279 = vunpack.c.h.bf16 %v277
      %v280 = vld [vmem:[%s2] sm:$0xf]
      %282 = vset.pattern.permute.xlu0 0
      %283 = vperm.xlu0 %282, %v280
      %v284 = vpop.permute.xlu0 %283
      %v286 = vunpack.c.l.s4 839922192
      %v287 = vunpack.c.0.s8 %v286
      %v288 = vlaneseq
      %v289 = vshrl.u32 %v288, 7
      %v290 = vsub.s32 %v287, %v289
      %v291 = vrot.slane %v284, %v290
      %v293 = vmul.f32 %v275, %v291
      %v294 = vmul.f32 %v276, %v291
      %v295 = vld [vmem:[%s3] sm:$0xf]
      %297 = vset.pattern.permute.xlu0 0
      %298 = vperm.xlu0 %297, %v295
      %v299 = vpop.permute.xlu0 %298
      %v301 = vunpack.c.l.s4 839922192
      %v302 = vunpack.c.0.s8 %v301
      %v303 = vlaneseq
      %v304 = vshrl.u32 %v303, 7
      %v305 = vsub.s32 %v302, %v304
      %v306 = vrot.slane %v299, %v305
      %v308 = vadd.f32 %v293, %v306
      %v309 = vadd.f32 %v294, %v306
      %v310 = vadd.f32 %v308, %v278
      %v311 = vadd.f32 %v309, %v279
      %v312 = vmax.f32 %v310, 0.0
      %v313 = vmax.f32 %v311, 0.0
      %314 = vst [vmem:[%s274] sm:$0xff] %v312
      %vm315 = vcmask 551936
      %316 = vst.msk [vmem:[%s274 + $0x8] sm:$0xf] %vm315, %v313
      %p317 = scmp.lt.s32.totalorder %s19, 1
      %s318 = scalar_select %p317, %s19, 1
      %p319 = scmp.lt.s32.totalorder %s20, 7
      %s320 = scalar_select %p319, %s20, 7
      %s321 = smul.addr %s320, 3
      %s322 = smul.addr %s318, 24
      %s323 = sadd.s32 %s321, %s322
      %s324 = smul.addr %s323, 4
      %s325 = scalar_lea.vmem %s4, %s324
      // Predicated region
      $region37: #{res_block3d_forward.5} parent=35 // pred_check
        %p326 = pneg %p147
      $region38: #{res_block3d_forward.5} parent=35 // pred_check_branch
        %328 = sbr.rel (%p326) target = $region40
      $region39: #{res_block3d_forward.5} parent=35 // pred_region
        _
      $region40: #{res_block3d_forward.5} parent=35 // pred_fallthru
        _
    $region36: #{res_block3d_forward.5} parent=5 // pred_fallthru
      _
    %p329 = scmp.le.s32.totalorder 2, %s10
    // Predicated region
    $region41: #{res_block3d_forward.5} parent=5 // pred_check
      %p330 = pneg %p329
    $region42: #{res_block3d_forward.5} parent=5 // pred_check_branch
      %332 = sbr.rel (%p330) target = $region44
    $region43: #{res_block3d_forward.5} parent=5 // pred_region
      %s333 = ssub.s32 %s10, 2
      // Predicated region
      $region45: #{res_block3d_forward.5} parent=43 // pred_check
        %p334 = pneg %p153
      $region46: #{res_block3d_forward.5} parent=43 // pred_check_branch
        %336 = sbr.rel (%p334) target = $region48
      $region47: #{res_block3d_forward.5} parent=43 // pred_region
        %p337 = scmp.lt.s32.totalorder %s21, 1
        %s338 = scalar_select %p337, %s21, 1
        %p339 = scmp.lt.s32.totalorder %s22, 7
        %s340 = scalar_select %p339, %s22, 7
        %s341 = smul.addr %s340, 3
        %s342 = smul.addr %s338, 24
        %s343 = sadd.s32 %s341, %s342
        %s344 = smul.addr %s343, 4
        %s345 = scalar_lea.vmem %s4, %s344
      $region48: #{res_block3d_forward.5} parent=43 // pred_fallthru
        _
    $region44: #{res_block3d_forward.5} parent=5 // pred_fallthru
      _
  $region6: #{res_block3d_forward.5} parent=0 // loop_footer
    %s14 = sadd.s32 1, %s10
  $region7: #{res_block3d_forward.5} parent=0 // loop_footer_branch
    %9 = sbr.rel target = $region3
  $region8: #{res_block3d_forward.5} parent=0 // loop_exit
    _

// kernel: res_block3d_forward.3
$region0: #{res_block3d_forward.3}
  #allocation0 [shape = 'u32[]', space=smem, size = 0x4, offset = 0x4, fixed_abs, tag = 'smem constant byte address 0x4 - core index']
  #allocation1 [shape = 'u32[144,128]{1,0:T(1,128)}', space=vmem, size = 0x12000, scoped, tag = 'internal scratch']
  %s0 = inlined_call_operand.vmem [shape: bf16[2,10,4,324], index: 0, kind: input, shape index: {}, may-alias: {0,1,2}]
  %s1 = inlined_call_operand.vmem [shape: bf16[2,10,4,324], index: 1, kind: input, shape index: {}, may-alias: {0,1,2}]
  %s2 = inlined_call_operand.vmem [shape: bf16[2,10,4,324], index: 2, kind: input, shape index: {}, may-alias: {0,1,2}]
  %s3 = inlined_call_operand.vmem [shape: bf16[27,4,4], index: 3, kind: input, shape index: {}]
  %s4 = inlined_call_operand.vmem [shape: f32[1,324], index: 4, kind: input, shape index: {}]
  %s5 = inlined_call_operand.vmem [shape: f32[2,8,4,324], index: 5, kind: output, shape index: {0}]
  %s6 = inlined_call_operand.vmem [shape: f32[2,8,4,2], index: 6, kind: output, shape index: {1}]
  %7 = xla_tuple %s5, %s6
  %s8 = sld [smem:[#allocation0]]
  $region61: #{res_block3d_forward.3} parent=0
    _
  %s10 = ssub.s32 1, %s8
  %s11 = scalar_select 0, %s10, %s8
  loop: start=0, step=1, limit=18
  $region2: #{res_block3d_forward.3} parent=0 // loop_pre_header
    _
  $region3: #{res_block3d_forward.3} parent=0 // loop_header
    %s13 = sphi 0, %s17
    %p14 = scmp.ge.s32.totalorder %s13, 18
    %s20 = sphi 0, %s32
    %s21 = sphi 0, %s28
    %s22 = sphi 0, %s20
    %s23 = sphi 0, %s21
    %s24 = sphi 0, %s22
    %s25 = sphi 0, %s23
    %s37 = sphi 0, %s39
    %s40 = sphi 0, %s37
    %s41 = sphi 0, %s40
    %s57 = sphi 0, %s41
    %s67 = sphi 0, %s69
    %s70 = sphi 0, %s67
    %s71 = sphi 0, %s70
    %s87 = sphi 0, %s71
    %s97 = sphi 0, %s99
    %s100 = sphi 0, %s97
    %s101 = sphi 0, %s100
    %s117 = sphi 0, %s101
    %s121 = sphi 0, %s121
    %s123 = sphi 0, %s121
    %s124 = sphi 0, %s123
    %s138 = sphi 0, %s124
    %s142 = sphi 0, %s142
    %s144 = sphi 0, %s142
    %s145 = sphi 0, %s144
    %s159 = sphi 0, %s145
    %s167 = sphi 0, %s169
    %s170 = sphi 0, %s167
    %s171 = sphi 0, %s170
    %s187 = sphi 0, %s171
    %s195 = sphi 0, %s197
    %s198 = sphi 0, %s195
    %s199 = sphi 0, %s198
    %s215 = sphi 0, %s199
  $region4: #{res_block3d_forward.3} parent=0 // loop_header_branch
    %16 = sbr.rel (%p14) target = $region8
  $region5: #{res_block3d_forward.3} parent=0 // loop_body
    %s18 = ssub.s32 %s13, 1
    %s19 = ssub.s32 %s13, 2
    %s26 = sadd.s32 1, %s21
    %p27 = scmp.ge.s32.totalorder %s26, 8
    %s28 = scalar_select %p27, 0, %s26
    %s29 = sadd.s32 1, %s20
    %s30 = scalar_select %p27, %s29, %s20
    %p31 = scmp.ge.s32.totalorder %s30, 2
    %s32 = scalar_select %p31, 0, %s30
    %s33 = ssub.s32 %s20, %s32
    %s34 = ssub.s32 %s21, %s28
    %s35 = sor.u32 %s33, %s34
    %p36 = scmp.eq.s32.totalorder %s35, 0
    %s38 = sadd.s32 %s37, 1
    %s39 = scalar_select %p36, %s37, %s38
    %p42 = pneg %p36
    %p43 = scmp.eq.s32.totalorder %s13, 15
    %p44 = por %p42, %p43
    %p45 = scmp.ne.s32.totalorder %s37, %s40
    %p46 = scmp.eq.s32.totalorder %s13, 0
    %p47 = por %p45, %p46
    %p48 = scmp.ne.s32.totalorder %s37, %s40
    %p49 = scmp.eq.s32.totalorder %s18, 15
    %p50 = por %p48, %p49
    %p51 = scmp.ne.s32.totalorder %s40, %s41
    %p52 = scmp.eq.s32.totalorder %s18, 0
    %p53 = por %p51, %p52
    %p54 = scmp.ne.s32.totalorder %s40, %s41
    %p55 = scmp.eq.s32.totalorder %s19, 15
    %p56 = por %p54, %p55
    %p58 = scmp.ne.s32.totalorder %s41, %s57
    %p59 = scmp.eq.s32.totalorder %s19, 0
    %p60 = por %p58, %p59
    %s61 = sadd.s32 %s21, 1
    %s62 = sadd.s32 %s28, 1
    %s63 = ssub.s32 %s20, %s32
    %s64 = ssub.s32 %s61, %s62
    %s65 = sor.u32 %s63, %s64
    %p66 = scmp.eq.s32.totalorder %s65, 0
    %s68 = sadd.s32 %s67, 1
    %s69 = scalar_select %p66, %s67, %s68
    %p72 = pneg %p66
    %p73 = scmp.eq.s32.totalorder %s13, 15
    %p74 = por %p72, %p73
    %p75 = scmp.ne.s32.totalorder %s67, %s70
    %p76 = scmp.eq.s32.totalorder %s13, 0
    %p77 = por %p75, %p76
    %p78 = scmp.ne.s32.totalorder %s67, %s70
    %p79 = scmp.eq.s32.totalorder %s18, 15
    %p80 = por %p78, %p79
    %p81 = scmp.ne.s32.totalorder %s70, %s71
    %p82 = scmp.eq.s32.totalorder %s18, 0
    %p83 = por %p81, %p82
    %p84 = scmp.ne.s32.totalorder %s70, %s71
    %p85 = scmp.eq.s32.totalorder %s19, 15
    %p86 = por %p84, %p85
    %p88 = scmp.ne.s32.totalorder %s71, %s87
    %p89 = scmp.eq.s32.totalorder %s19, 0
    %p90 = por %p88, %p89
    %s91 = sadd.s32 %s21, 2
    %s92 = sadd.s32 %s28, 2
    %s93 = ssub.s32 %s20, %s32
    %s94 = ssub.s32 %s91, %s92
    %s95 = sor.u32 %s93, %s94
    %p96 = scmp.eq.s32.totalorder %s95, 0
    %s98 = sadd.s32 %s97, 1
    %s99 = scalar_select %p96, %s97, %s98
    %p102 = pneg %p96
    %p103 = scmp.eq.s32.totalorder %s13, 15
    %p104 = por %p102, %p103
    %p105 = scmp.ne.s32.totalorder %s97, %s100
    %p106 = scmp.eq.s32.totalorder %s13, 0
    %p107 = por %p105, %p106
    %p108 = scmp.ne.s32.totalorder %s97, %s100
    %p109 = scmp.eq.s32.totalorder %s18, 15
    %p110 = por %p108, %p109
    %p111 = scmp.ne.s32.totalorder %s100, %s101
    %p112 = scmp.eq.s32.totalorder %s18, 0
    %p113 = por %p111, %p112
    %p114 = scmp.ne.s32.totalorder %s100, %s101
    %p115 = scmp.eq.s32.totalorder %s19, 15
    %p116 = por %p114, %p115
    %p118 = scmp.ne.s32.totalorder %s101, %s117
    %p119 = scmp.eq.s32.totalorder %s19, 0
    %p120 = por %p118, %p119
    %s122 = sadd.s32 %s121, 1
    %p125 = scmp.eq.s32.totalorder %s13, 15
    %p126 = scmp.ne.s32.totalorder %s121, %s123
    %p127 = scmp.eq.s32.totalorder %s13, 0
    %p128 = por %p126, %p127
    %p129 = scmp.ne.s32.totalorder %s121, %s123
    %p130 = scmp.eq.s32.totalorder %s18, 15
    %p131 = por %p129, %p130
    %p132 = scmp.ne.s32.totalorder %s123, %s124
    %p133 = scmp.eq.s32.totalorder %s18, 0
    %p134 = por %p132, %p133
    %p135 = scmp.ne.s32.totalorder %s123, %s124
    %p136 = scmp.eq.s32.totalorder %s19, 15
    %p137 = por %p135, %p136
    %p139 = scmp.ne.s32.totalorder %s124, %s138
    %p140 = scmp.eq.s32.totalorder %s19, 0
    %p141 = por %p139, %p140
    %s143 = sadd.s32 %s142, 1
    %p146 = scmp.eq.s32.totalorder %s13, 15
    %p147 = scmp.ne.s32.totalorder %s142, %s144
    %p148 = scmp.eq.s32.totalorder %s13, 0
    %p149 = por %p147, %p148
    %p150 = scmp.ne.s32.totalorder %s142, %s144
    %p151 = scmp.eq.s32.totalorder %s18, 15
    %p152 = por %p150, %p151
    %p153 = scmp.ne.s32.totalorder %s144, %s145
    %p154 = scmp.eq.s32.totalorder %s18, 0
    %p155 = por %p153, %p154
    %p156 = scmp.ne.s32.totalorder %s144, %s145
    %p157 = scmp.eq.s32.totalorder %s19, 15
    %p158 = por %p156, %p157
    %p160 = scmp.ne.s32.totalorder %s145, %s159
    %p161 = scmp.eq.s32.totalorder %s19, 0
    %p162 = por %p160, %p161
    %s163 = ssub.s32 %s20, %s32
    %s164 = ssub.s32 %s21, %s28
    %s165 = sor.u32 %s163, %s164
    %p166 = scmp.eq.s32.totalorder %s165, 0
    %s168 = sadd.s32 %s167, 1
    %s169 = scalar_select %p166, %s167, %s168
    %p172 = pneg %p166
    %p173 = scmp.eq.s32.totalorder %s13, 15
    %p174 = por %p172, %p173
    %p175 = scmp.ne.s32.totalorder %s167, %s170
    %p176 = scmp.eq.s32.totalorder %s13, 0
    %p177 = por %p175, %p176
    %p178 = scmp.ne.s32.totalorder %s167, %s170
    %p179 = scmp.eq.s32.totalorder %s18, 15
    %p180 = por %p178, %p179
    %p181 = scmp.ne.s32.totalorder %s170, %s171
    %p182 = scmp.eq.s32.totalorder %s18, 0
    %p183 = por %p181, %p182
    %p184 = scmp.ne.s32.totalorder %s170, %s171
    %p185 = scmp.eq.s32.totalorder %s19, 15
    %p186 = por %p184, %p185
    %p188 = scmp.ne.s32.totalorder %s171, %s187
    %p189 = scmp.eq.s32.totalorder %s19, 0
    %p190 = por %p188, %p189
    %s191 = ssub.s32 %s20, %s32
    %s192 = ssub.s32 %s21, %s28
    %s193 = sor.u32 %s191, %s192
    %p194 = scmp.eq.s32.totalorder %s193, 0
    %s196 = sadd.s32 %s195, 1
    %s197 = scalar_select %p194, %s195, %s196
    %p200 = pneg %p194
    %p201 = scmp.eq.s32.totalorder %s13, 15
    %p202 = por %p200, %p201
    %p203 = scmp.ne.s32.totalorder %s195, %s198
    %p204 = scmp.eq.s32.totalorder %s13, 0
    %p205 = por %p203, %p204
    %p206 = scmp.ne.s32.totalorder %s195, %s198
    %p207 = scmp.eq.s32.totalorder %s18, 15
    %p208 = por %p206, %p207
    %p209 = scmp.ne.s32.totalorder %s198, %s199
    %p210 = scmp.eq.s32.totalorder %s18, 0
    %p211 = por %p209, %p210
    %p212 = scmp.ne.s32.totalorder %s198, %s199
    %p213 = scmp.eq.s32.totalorder %s19, 15
    %p214 = por %p212, %p213
    %p216 = scmp.ne.s32.totalorder %s199, %s215
    %p217 = scmp.eq.s32.totalorder %s19, 0
    %p218 = por %p216, %p217
    %p219 = scmp.le.s32.totalorder 1, %s13
    %p220 = scmp.lt.s32.totalorder %s13, 17
    %p221 = pnand %p219, %p220
    %p222 = pneg %p221
    // Predicated region
    $region9: #{res_block3d_forward.3} parent=5 // pred_check
      _
    $region10: #{res_block3d_forward.3} parent=5 // pred_check_branch
      %224 = sbr.rel (%p221) target = $region12
    $region11: #{res_block3d_forward.3} parent=5 // pred_region
      %s225 = ssub.s32 %s13, 1
      // Predicated region
      $region13: #{res_block3d_forward.3} parent=11 // pred_check
        %p226 = pneg %p134
      $region14: #{res_block3d_forward.3} parent=11 // pred_check_branch
        %228 = sbr.rel (%p226) target = $region16
      $region15: #{res_block3d_forward.3} parent=11 // pred_region
        _
      $region16: #{res_block3d_forward.3} parent=11 // pred_fallthru
        _
      // Predicated region
      $region17: #{res_block3d_forward.3} parent=11 // pred_check
        %p229 = pneg %p155
      $region18: #{res_block3d_forward.3} parent=11 // pred_check_branch
        %231 = sbr.rel (%p229) target = $region20
      $region19: #{res_block3d_forward.3} parent=11 // pred_region
        _
      $region20: #{res_block3d_forward.3} parent=11 // pred_fallthru
        _
    $region12: #{res_block3d_forward.3} parent=5 // pred_fallthru
      _
    %p232 = scmp.lt.s32.totalorder %s13, 16
    // Predicated region
    $region21: #{res_block3d_forward.3} parent=5 // pred_check
      %p233 = pneg %p232
    $region22: #{res_block3d_forward.3} parent=5 // pred_check_branch
      %235 = sbr.rel (%p233) target = $region24
    $region23: #{res_block3d_forward.3} parent=5 // pred_region
      // Predicated region
      $region25: #{res_block3d_forward.3} parent=23 // pred_check
        %p236 = pneg %p47
      $region26: #{res_block3d_forward.3} parent=23 // pred_check_branch
        %238 = sbr.rel (%p236) target = $region28
      $region27: #{res_block3d_forward.3} parent=23 // pred_region
        %p239 = scmp.lt.s32.totalorder %s20, 1
        %s240 = scalar_select %p239, %s20, 1
        %p241 = scmp.lt.s32.totalorder %s21, 9
        %s242 = scalar_select %p241, %s21, 9
        %s243 = smul.addr %s242, 3
        %s244 = smul.addr %s240, 30
        %s245 = sadd.s32 %s243, %s244
        %s246 = smul.addr %s245, 2
        %s247 = scalar_lea.vmem %s0, %s246
      $region28: #{res_block3d_forward.3} parent=23 // pred_fallthru
        _
      // Predicated region
      $region29: #{res_block3d_forward.3} parent=23 // pred_check
        %p248 = pneg %p77
      $region30: #{res_block3d_forward.3} parent=23 // pred_check_branch
        %250 = sbr.rel (%p248) target = $region32
      $region31: #{res_block3d_forward.3} parent=23 // pred_region
        %s251 = sadd.s32 %s21, 1
        %p252 = scmp.lt.s32.totalorder %s20, 1
        %s253 = scalar_select %p252, %s20, 1
        %p254 = scmp.lt.s32.totalorder %s251, 9
        %s255 = scalar_select %p254, %s251, 9
        %s256 = smul.addr %s255, 3
        %s257 = smul.addr %s253, 30
        %s258 = sadd.s32 %s256, %s257
        %s259 = smul.addr %s258, 2
        %s260 = scalar_lea.vmem %s1, %s259
        %s261 = sadd.s32 %s21, 1
      $region32: #{res_block3d_forward.3} parent=23 // pred_fallthru
        _
      // Predicated region
      $region33: #{res_block3d_forward.3} parent=23 // pred_check
        %p262 = pneg %p107
      $region34: #{res_block3d_forward.3} parent=23 // pred_check_branch
        %264 = sbr.rel (%p262) target = $region36
      $region35: #{res_block3d_forward.3} parent=23 // pred_region
        %s265 = sadd.s32 %s21, 2
        %p266 = scmp.lt.s32.totalorder %s20, 1
        %s267 = scalar_select %p266, %s20, 1
        %p268 = scmp.lt.s32.totalorder %s265, 9
        %s269 = scalar_select %p268, %s265, 9
        %s270 = smul.addr %s269, 3
        %s271 = smul.addr %s267, 30
        %s272 = sadd.s32 %s270, %s271
        %s273 = smul.addr %s272, 2
        %s274 = scalar_lea.vmem %s2, %s273
        %s275 = sadd.s32 %s21, 2
      $region36: #{res_block3d_forward.3} parent=23 // pred_fallthru
        _
    $region24: #{res_block3d_forward.3} parent=5 // pred_fallthru
      _
    %p276 = scmp.le.s32.totalorder 1, %s13
    %p277 = scmp.lt.s32.totalorder %s13, 17
    %p278 = pnand %p276, %p277
    %p279 = pneg %p278
    // Predicated region
    $region37: #{res_block3d_forward.3} parent=5 // pred_check
      _
    $region38: #{res_block3d_forward.3} parent=5 // pred_check_branch
      %281 = sbr.rel (%p278) target = $region40
    $region39: #{res_block3d_forward.3} parent=5 // pred_region
      %s282 = ssub.s32 %s13, 1
      %p283 = scmp.lt.s32.totalorder %s22, 1
      %s284 = scalar_select %p283, %s22, 1
      %p285 = scmp.lt.s32.totalorder %s23, 9
      %s286 = scalar_select %p285, %s23, 9
      %s287 = smul.addr %s286, 3
      %s288 = smul.addr %s284, 30
      %s289 = sadd.s32 %s287, %s288
      %s290 = smul.addr %s289, 2
      %s291 = scalar_lea.vmem %s0, %s290
      %p292 = pneg %p53
      %p293 = pneg %p50
      %s294 = sadd.s32 %s23, 1
      %p295 = scmp.lt.s32.totalorder %s22, 1
      %s296 = scalar_select %p295, %s22, 1
      %p297 = scmp.lt.s32.totalorder %s294, 9
      %s298 = scalar_select %p297, %s294, 9
      %s299 = smul.addr %s298, 3
      %s300 = smul.addr %s296, 30
      %s301 = sadd.s32 %s299, %s300
      %s302 = smul.addr %s301, 2
      %s303 = scalar_lea.vmem %s1, %s302
      %p304 = pneg %p83
      %p305 = pneg %p80
      %s306 = sadd.s32 %s23, 2
      %p307 = scmp.lt.s32.totalorder %s22, 1
      %s308 = scalar_select %p307, %s22, 1
      %p309 = scmp.lt.s32.totalorder %s306, 9
      %s310 = scalar_select %p309, %s306, 9
      %s311 = smul.addr %s310, 3
      %s312 = smul.addr %s308, 30
      %s313 = sadd.s32 %s311, %s312
      %s314 = smul.addr %s313, 2
      %s315 = scalar_lea.vmem %s2, %s314
      %p316 = pneg %p113
      %p317 = pneg %p110
      %p318 = pneg %p134
      %p319 = pneg %p131
      %p320 = pneg %p155
      %p321 = pneg %p152
      %p322 = pneg %p183
      %p323 = pneg %p180
      %p324 = scmp.lt.s32.totalorder %s22, 1
      %s325 = scalar_select %p324, %s22, 1
      %p326 = scmp.lt.s32.totalorder %s23, 7
      %s327 = scalar_select %p326, %s23, 7
      %s328 = smul.addr %s327, 3
      %s329 = smul.addr %s325, 24
      %s330 = sadd.s32 %s328, %s329
      %s331 = smul.addr %s330, 4
      %s332 = scalar_lea.vmem %s5, %s331
      %p333 = pneg %p211
      %p334 = pneg %p208
      %p335 = scmp.lt.s32.totalorder %s22, 1
      %s336 = scalar_select %p335, %s22, 1
      %p337 = scmp.lt.s32.totalorder %s23, 7
      %s338 = scalar_select %p337, %s23, 7
      %s339 = smul.addr %s336, 8
      %s340 = sadd.s32 %s338, %s339
      %s341 = smul.addr %s340, 4
      %s342 = scalar_lea.vmem %s6, %s341
      %p343 = scmp.lt.s32.totalorder %s22, 1
      %s344 = scalar_select %p343, %s22, 1
      %p345 = scmp.lt.s32.totalorder %s23, 9
      %s346 = scalar_select %p345, %s23, 9
      %s347 = smul.addr %s346, 3
      %s348 = smul.addr %s344, 30
      %s349 = sadd.s32 %s347, %s348
      %s350 = smul.addr %s349, 2
      %s351 = scalar_lea.vmem %s0, %s350
      %s352 = sadd.s32 %s23, 1
      %p353 = scmp.lt.s32.totalorder %s22, 1
      %s354 = scalar_select %p353, %s22, 1
      %p355 = scmp.lt.s32.totalorder %s352, 9
      %s356 = scalar_select %p355, %s352, 9
      %s357 = smul.addr %s356, 3
      %s358 = smul.addr %s354, 30
      %s359 = sadd.s32 %s357, %s358
      %s360 = smul.addr %s359, 2
      %s361 = scalar_lea.vmem %s1, %s360
      %s362 = sadd.s32 %s23, 1
      %s363 = sadd.s32 %s23, 2
      %p364 = scmp.lt.s32.totalorder %s22, 1
      %s365 = scalar_select %p364, %s22, 1
      %p366 = scmp.lt.s32.totalorder %s363, 9
      %s367 = scalar_select %p366, %s363, 9
      %s368 = smul.addr %s367, 3
      %s369 = smul.addr %s365, 30
      %s370 = sadd.s32 %s368, %s369
      %s371 = smul.addr %s370, 2
      %s372 = scalar_lea.vmem %s2, %s371
      %s373 = sadd.s32 %s23, 2
      %p374 = scmp.lt.s32.totalorder %s22, 1
      %s375 = scalar_select %p374, %s22, 1
      %p376 = scmp.lt.s32.totalorder %s23, 7
      %s377 = scalar_select %p376, %s23, 7
      %s378 = smul.addr %s377, 3
      %s379 = smul.addr %s375, 24
      %s380 = sadd.s32 %s378, %s379
      %s381 = smul.addr %s380, 4
      %s382 = scalar_lea.vmem %s5, %s381
      %p383 = scmp.lt.s32.totalorder %s22, 1
      %s384 = scalar_select %p383, %s22, 1
      %p385 = scmp.lt.s32.totalorder %s23, 7
      %s386 = scalar_select %p385, %s23, 7
      %s387 = smul.addr %s384, 8
      %s388 = sadd.s32 %s386, %s387
      %s389 = smul.addr %s388, 4
      %s390 = scalar_lea.vmem %s6, %s389
      %v392 = vld [vmem:[%s351] sm:$0x3f]
      %v394 = vcombine.high %v392, %v392
      %v396 = vunpack.c.l.s4 1983009808
      %v397 = vunpack.c.0.s8 %v396
      %v398 = vlaneseq
      %v399 = vshrl.u32 %v398, 7
      %v400 = vsub.s32 %v397, %v399
      %v401 = vrot.slane %v392, %v400
      %v403 = vunpack.c.l.s4 1983009808
      %v404 = vunpack.c.0.s8 %v403
      %v405 = vlaneseq
      %v406 = vshrl.u32 %v405, 7
      %v407 = vsub.s32 %v404, %v406
      %v408 = vrot.slane %v394, %v407
      %v409 = vcombine.high %v401, %v401
      %410 = vrot.lane.b32.xlu0 %v401, 19
      %v411 = vpop.permute.xlu0 %410
      %412 = vrot.lane.b32.xlu0 %v409, 19
      %v413 = vpop.permute.xlu0 %412
      %414 = vrot.lane.b32.xlu0 %v408, 19
      %v415 = vpop.permute.xlu0 %414
      %vm416 = vcmask 154624
      %v417 = vsel %vm416, %v411, %v413
      %v418 = vsel %vm416, %v413, %v415
      %vm419 = vcmask 154624
      %v422 = vsel %vm419, 0, %v411
      %vm423 = vcmask 711680
      %v425 = vsel %vm423, %v418, 0
      %v426 = vld [vmem:[%s361] sm:$0x3f]
      %v428 = vcombine.high %v426, %v426
      %v430 = vunpack.c.l.s4 1983009808
      %v431 = vunpack.c.0.s8 %v430
      %v432 = vlaneseq
      %v433 = vshrl.u32 %v432, 7
      %v434 = vsub.s32 %v431, %v433
      %v435 = vrot.slane %v426, %v434
      %v437 = vunpack.c.l.s4 1983009808
      %v438 = vunpack.c.0.s8 %v437
      %v439 = vlaneseq
      %v440 = vshrl.u32 %v439, 7
      %v441 = vsub.s32 %v438, %v440
      %v442 = vrot.slane %v428, %v441
      %v443 = vcombine.high %v435, %v435
      %444 = vrot.lane.b32.xlu0 %v435, 19
      %v445 = vpop.permute.xlu0 %444
      %446 = vrot.lane.b32.xlu0 %v443, 19
      %v447 = vpop.permute.xlu0 %446
      %448 = vrot.lane.b32.xlu0 %v442, 19
      %v449 = vpop.permute.xlu0 %448
      %v450 = vsel %vm416, %v445, %v447
      %v451 = vsel %vm416, %v447, %v449
      %v453 = vsel %vm419, 0, %v445
      %v455 = vsel %vm423, %v451, 0
      %v456 = vld [vmem:[%s372] sm:$0x3f]
      %v458 = vcombine.high %v456, %v456
      %v460 = vunpack.c.l.s4 1983009808
      %v461 = vunpack.c.0.s8 %v460
      %v462 = vlaneseq
      %v463 = vshrl.u32 %v462, 7
      %v464 = vsub.s32 %v461, %v463
      %v465 = vrot.slane %v456, %v464
      %v467 = vunpack.c.l.s4 1983009808
      %v468 = vunpack.c.0.s8 %v467
      %v469 = vlaneseq
      %v470 = vshrl.u32 %v469, 7
      %v471 = vsub.s32 %v468, %v470
      %v472 = vrot.slane %v458, %v471
      %v473 = vcombine.high %v465, %v465
      %474 = vrot.lane.b32.xlu0 %v465, 19
      %v475 = vpop.permute.xlu0 %474
      %476 = vrot.lane.b32.xlu0 %v473, 19
      %v477 = vpop.permute.xlu0 %476
      %478 = vrot.lane.b32.xlu0 %v472, 19
      %v479 = vpop.permute.xlu0 %478
      %v480 = vsel %vm416, %v475, %v477
      %v481 = vsel %vm416, %v477, %v479
      %v483 = vsel %vm419, 0, %v475
      %v485 = vsel %vm423, %v481, 0
      %v486 = vld [vmem:[%s3] sm:$0x3]
      %s487 = scalar_lea.vmem %s3, 2
      %v488 = vld [vmem:[%s487] sm:$0x3]
      %491 = vrot.lane.b32.xlu0 %v422, 127
      %v492 = vpop.permute.xlu0 %491
      %493 = vrot.lane.b32.xlu0 %v417, 127
      %v494 = vpop.permute.xlu0 %493
      %495 = vrot.lane.b32.xlu0 %v425, 127
      %v496 = vpop.permute.xlu0 %495
      %vm497 = vcmask 1039360
      %v498 = vsel %vm497, %v492, %v494
      %v499 = vsel %vm497, %v494, %v496
      %vm500 = vcmask 31744
      %v502 = vsel %vm500, %v488, 0
      %vm504 = vcmask 1041408
      %v506 = vsel %vm504, %v498, 0
      %v509 = vsel %vm504, %v499, 0
      %v512 = vsel %vm504, %v496, 0
      %514 = vmatprep.subr.bf16.mxu0 %v509
      %515 = vmatpush1.bf16.msra.mxu0 %v506
      %516 = vmatprep.subr.bf16.mxu0 0
      %517 = vmatpush1.bf16.msra.mxu0 0
      %518 = vmatprep.subr.bf16.mxu0 0
      %519 = vmatpush1.bf16.msra.mxu0 0
      %520 = vmatprep.subr.bf16.mxu0 0
      %521 = vmatpush1.bf16.msra.mxu0 0
      %522 = vmatprep.subr.bf16.mxu0 0
      %523 = vmatpush1.bf16.msra.mxu0 0
      %524 = vmatprep.subr.bf16.mxu0 0
      %525 = vmatpush1.bf16.msra.mxu0 0
      %526 = vmatprep.subr.bf16.mxu0 0
      %527 = vmatpush1.bf16.msra.mxu0 0
      %528 = vmatprep.subr.bf16.mxu0 0
      %529 = vmatpush1.bf16.msra.mxu0 0
      %530 = vmatprep.subr.bf16.mxu0 0
      %531 = vmatpush1.bf16.msra.mxu0 0
      %532 = vmatprep.subr.bf16.mxu0 0
      %533 = vmatpush1.bf16.msra.mxu0 0
      %534 = vmatprep.subr.bf16.mxu0 0
      %535 = vmatpush1.bf16.msra.mxu0 0
      %536 = vmatprep.subr.bf16.mxu0 0
      %537 = vmatpush1.bf16.msra.mxu0 0
      %538 = vmatprep.subr.bf16.mxu0 0
      %539 = vmatpush1.bf16.msra.mxu0 0
      %540 = vmatprep.subr.bf16.mxu0 0
      %541 = vmatpush1.bf16.msra.mxu0 0
      %542 = vmatprep.subr.bf16.mxu0 0
      %543 = vmatpush1.bf16.msra.mxu0 0
      %544 = vmatprep.subr.bf16.mxu0 0
      %545 = vmatpush1.bf16.msra.mxu0 0
      %546 = vmatprep.mubr.bf16.mxu0 0
      %547 = vmatmul.mubr.bf16.gmra.mrb[0].mxu0 %v502
      %v548 = vpop.f32.mrb[0].mxu0
      %v549 = vadd.f32 0.0, %v548
      %v550 = vpop.f32.mrb[0].mxu0
      %v551 = vadd.f32 0.0, %v550
      %v552 = vpop.f32.mrb[0].mxu0
      %v553 = vpop.f32.mrb[0].mxu0
      %554 = vdwg.mxu0
      %555 = vmatprep.subr.bf16.mxu0 0
      %556 = vmatpush1.bf16.msra.mxu0 %v512
      %557 = vmatprep.subr.bf16.mxu0 0
      %558 = vmatpush1.bf16.msra.mxu0 0
      %559 = vmatprep.subr.bf16.mxu0 0
      %560 = vmatpush1.bf16.msra.mxu0 0
      %561 = vmatprep.subr.bf16.mxu0 0
      %562 = vmatpush1.bf16.msra.mxu0 0
      %563 = vmatprep.subr.bf16.mxu0 0
      %564 = vmatpush1.bf16.msra.mxu0 0
      %565 = vmatprep.subr.bf16.mxu0 0
      %566 = vmatpush1.bf16.msra.mxu0 0
      %567 = vmatprep.subr.bf16.mxu0 0
      %568 = vmatpush1.bf16.msra.mxu0 0
      %569 = vmatprep.subr.bf16.mxu0 0
      %570 = vmatpush1.bf16.msra.mxu0 0
      %571 = vmatprep.subr.bf16.mxu0 0
      %572 = vmatpush1.bf16.msra.mxu0 0
      %573 = vmatprep.subr.bf16.mxu0 0
      %574 = vmatpush1.bf16.msra.mxu0 0
      %575 = vmatprep.subr.bf16.mxu0 0
      %576 = vmatpush1.bf16.msra.mxu0 0
      %577 = vmatprep.subr.bf16.mxu0 0
      %578 = vmatpush1.bf16.msra.mxu0 0
      %579 = vmatprep.subr.bf16.mxu0 0
      %580 = vmatpush1.bf16.msra.mxu0 0
      %581 = vmatprep.subr.bf16.mxu0 0
      %582 = vmatpush1.bf16.msra.mxu0 0
      %583 = vmatprep.subr.bf16.mxu0 0
      %584 = vmatpush1.bf16.msra.mxu0 0
      %585 = vmatprep.subr.bf16.mxu0 0
      %586 = vmatpush1.bf16.msra.mxu0 0
      %587 = vmatprep.mubr.bf16.mxu0 0
      %588 = vmatmul.mubr.bf16.gmra.mrb[0].mxu0 %v502
      %v589 = vpop.f32.mrb[0].mxu0
      %v590 = vadd.f32 0.0, %v589
      %v591 = vpop.f32.mrb[0].mxu0
      %v592 = vpop.f32.mrb[0].mxu0
      %v593 = vpop.f32.mrb[0].mxu0
      %594 = vdwg.mxu0
      %v596 = vsel %vm500, %v486, 0
      %v598 = vsel %vm504, %v422, 0
      %v601 = vsel %vm504, %v417, 0
      %v603 = vsel %vm504, %v425, 0
      %605 = vmatprep.subr.bf16.mxu0 %v601
      %606 = vmatpush1.bf16.msra.mxu0 %v598
      %607 = vmatprep.subr.bf16.mxu0 0
      %608 = vmatpush1.bf16.msra.mxu0 0
      %609 = vmatprep.subr.bf16.mxu0 0
      %610 = vmatpush1.bf16.msra.mxu0 0
      %611 = vmatprep.subr.bf16.mxu0 0
      %612 = vmatpush1.bf16.msra.mxu0 0
      %613 = vmatprep.subr.bf16.mxu0 0
      %614 = vmatpush1.bf16.msra.mxu0 0
      %615 = vmatprep.subr.bf16.mxu0 0
      %616 = vmatpush1.bf16.msra.mxu0 0
      %617 = vmatprep.subr.bf16.mxu0 0
      %618 = vmatpush1.bf16.msra.mxu0 0
      %619 = vmatprep.subr.bf16.mxu0 0
      %620 = vmatpush1.bf16.msra.mxu0 0
      %621 = vmatprep.subr.bf16.mxu0 0
      %622 = vmatpush1.bf16.msra.mxu0 0
      %623 = vmatprep.subr.bf16.mxu0 0
      %624 = vmatpush1.bf16.msra.mxu0 0
      %625 = vmatprep.subr.bf16.mxu0 0
      %626 = vmatpush1.bf16.msra.mxu0 0
      %627 = vmatprep.subr.bf16.mxu0 0
      %628 = vmatpush1.bf16.msra.mxu0 0
      %629 = vmatprep.subr.bf16.mxu0 0
      %630 = vmatpush1.bf16.msra.mxu0 0
      %631 = vmatprep.subr.bf16.mxu0 0
      %632 = vmatpush1.bf16.msra.mxu0 0
      %633 = vmatprep.subr.bf16.mxu0 0
      %634 = vmatpush1.bf16.msra.mxu0 0
      %635 = vmatprep.subr.bf16.mxu0 0
      %636 = vmatpush1.bf16.msra.mxu0 0
      %637 = vmatprep.mubr.bf16.mxu0 0
      %638 = vmatmul.mubr.bf16.gmra.mrb[0].mxu0 %v596
      %v639 = vpop.f32.mrb[0].mxu0
      %v640 = vadd.f32 %v549, %v639
      %v641 = vpop.f32.mrb[0].mxu0
      %v642 = vadd.f32 %v551, %v641
      %v643 = vpop.f32.mrb[0].mxu0
      %v644 = vpop.f32.mrb[0].mxu0
      %645 = vdwg.mxu0
      %646 = vmatprep.subr.bf16.mxu0 0
      %647 = vmatpush1.bf16.msra.mxu0 %v603
      %648 = vmatprep.subr.bf16.mxu0 0
      %649 = vmatpush1.bf16.msra.mxu0 0
      %650 = vmatprep.subr.bf16.mxu0 0
      %651 = vmatpush1.bf16.msra.mxu0 0
      %652 = vmatprep.subr.bf16.mxu0 0
      %653 = vmatpush1.bf16.msra.mxu0 0
      %654 = vmatprep.subr.bf16.mxu0 0
      %655 = vmatpush1.bf16.msra.mxu0 0
      %656 = vmatprep.subr.bf16.mxu0 0
      %657 = vmatpush1.bf16.msra.mxu0 0
      %658 = vmatprep.subr.bf16.mxu0 0
      %659 = vmatpush1.bf16.msra.mxu0 0
      %660 = vmatprep.subr.bf16.mxu0 0
      %661 = vmatpush1.bf16.msra.mxu0 0
      %662 = vmatprep.subr.bf16.mxu0 0
      %663 = vmatpush1.bf16.msra.mxu0 0
      %664 = vmatprep.subr.bf16.mxu0 0
      %665 = vmatpush1.bf16.msra.mxu0 0
      %666 = vmatprep.subr.bf16.mxu0 0
      %667 = vmatpush1.bf16.msra.mxu0 0
      %668 = vmatprep.subr.bf16.mxu0 0
      %669 = vmatpush1.bf16.msra.mxu0 0
      %670 = vmatprep.subr.bf16.mxu0 0
      %671 = vmatpush1.bf16.msra.mxu0 0
      %672 = vmatprep.subr.bf16.mxu0 0
      %673 = vmatpush1.bf16.msra.mxu0 0
      %674 = vmatprep.subr.bf16.mxu0 0
      %675 = vmatpush1.bf16.msra.mxu0 0
      %676 = vmatprep.subr.bf16.mxu0 0
      %677 = vmatpush1.bf16.msra.mxu0 0
      %678 = vmatprep.mubr.bf16.mxu0 0
      %679 = vmatmul.mubr.bf16.gmra.mrb[0].mxu0 %v596
      %v680 = vpop.f32.mrb[0].mxu0
      %v681 = vadd.f32 %v590, %v680
      %v682 = vpop.f32.mrb[0].mxu0
      %v683 = vpop.f32.mrb[0].mxu0
      %v684 = vpop.f32.mrb[0].mxu0
      %685 = vdwg.mxu0
      %s686 = scalar_lea.vmem %s3, 4
      %v687 = vld [vmem:[%s686] sm:$0x3]
      %688 = vrot.lane.b32.xlu0 %v422, 126
      %v689 = vpop.permute.xlu0 %688
      %690 = vrot.lane.b32.xlu0 %v417, 126
      %v691 = vpop.permute.xlu0 %690
      %692 = vrot.lane.b32.xlu0 %v425, 126
      %v693 = vpop.permute.xlu0 %692
      %vm694 = vcmask 1031168
      %v695 = vsel %vm694, %v689, %v691
      %v696 = vsel %vm694, %v691, %v693
      %v698 = vsel %vm500, %v687, 0
      %v701 = vsel %vm504, %v695, 0
      %v704 = vsel %vm504, %v696, 0
      %v707 = vsel %vm504, %v693, 0
      %709 = vmatprep.subr.bf16.mxu0 %v704
      %710 = vmatpush1.bf16.msra.mxu0 %v701
      %711 = vmatprep.subr.bf16.mxu0 0
      %712 = vmatpush1.bf16.msra.mxu0 0
      %713 = vmatprep.subr.bf16.mxu0 0
      %714 = vmatpush1.bf16.msra.mxu0 0
      %715 = vmatprep.subr.bf16.mxu0 0
      %716 = vmatpush1.bf16.msra.mxu0 0
      %717 = vmatprep.subr.bf16.mxu0 0
      %718 = vmatpush1.bf16.msra.mxu0 0
      %719 = vmatprep.subr.bf16.mxu0 0
      %720 = vmatpush1.bf16.msra.mxu0 0
      %721 = vmatprep.subr.bf16.mxu0 0
      %722 = vmatpush1.bf16.msra.mxu0 0
      %723 = vmatprep.subr.bf16.mxu0 0
      %724 = vmatpush1.bf16.msra.mxu0 0
      %725 = vmatprep.subr.bf16.mxu0 0
      %726 = vmatpush1.bf16.msra.mxu0 0
      %727 = vmatprep.subr.bf16.mxu0 0
      %728 = vmatpush1.bf16.msra.mxu0 0
      %729 = vmatprep.subr.bf16.mxu0 0
      %730 = vmatpush1.bf16.msra.mxu0 0
      %731 = vmatprep.subr.bf16.mxu0 0
      %732 = vmatpush1.bf16.msra.mxu0 0
      %733 = vmatprep.subr.bf16.mxu0 0
      %734 = vmatpush1.bf16.msra.mxu0 0
      %735 = vmatprep.subr.bf16.mxu0 0
      %736 = vmatpush1.bf16.msra.mxu0 0
      %737 = vmatprep.subr.bf16.mxu0 0
      %738 = vmatpush1.bf16.msra.mxu0 0
      %739 = vmatprep.subr.bf16.mxu0 0
      %740 = vmatpush1.bf16.msra.mxu0 0
      %741 = vmatprep.mubr.bf16.mxu0 0
      %742 = vmatmul.mubr.bf16.gmra.mrb[0].mxu0 %v698
      %v743 = vpop.f32.mrb[0].mxu0
      %v744 = vadd.f32 0.0, %v743
      %v745 = vpop.f32.mrb[0].mxu0
      %v746 = vadd.f32 0.0, %v745
      %v747 = vpop.f32.mrb[0].mxu0
      %v748 = vpop.f32.mrb[0].mxu0
      %749 = vdwg.mxu0
      %750 = vmatprep.subr.bf16.mxu0 0
      %751 = vmatpush1.bf16.msra.mxu0 %v707
      %752 = vmatprep.subr.bf16.mxu0 0
      %753 = vmatpush1.bf16.msra.mxu0 0
      %754 = vmatprep.subr.bf16.mxu0 0
      %755 = vmatpush1.bf16.msra.mxu0 0
      %756 = vmatprep.subr.bf16.mxu0 0
      %757 = vmatpush1.bf16.msra.mxu0 0
      %758 = vmatprep.subr.bf16.mxu0 0
      %759 = vmatpush1.bf16.msra.mxu0 0
      %760 = vmatprep.subr.bf16.mxu0 0
      %761 = vmatpush1.bf16.msra.mxu0 0
      %762 = vmatprep.subr.bf16.mxu0 0
      %763 = vmatpush1.bf16.msra.mxu0 0
      %764 = vmatprep.subr.bf16.mxu0 0
      %765 = vmatpush1.bf16.msra.mxu0 0
      %766 = vmatprep.subr.bf16.mxu0 0
      %767 = vmatpush1.bf16.msra.mxu0 0
      %768 = vmatprep.subr.bf16.mxu0 0
      %769 = vmatpush1.bf16.msra.mxu0 0
      %770 = vmatprep.subr.bf16.mxu0 0
      %771 = vmatpush1.bf16.msra.mxu0 0
      %772 = vmatprep.subr.bf16.mxu0 0
      %773 = vmatpush1.bf16.msra.mxu0 0
      %774 = vmatprep.subr.bf16.mxu0 0
      %775 = vmatpush1.bf16.msra.mxu0 0
      %776 = vmatprep.subr.bf16.mxu0 0
      %777 = vmatpush1.bf16.msra.mxu0 0
      %778 = vmatprep.subr.bf16.mxu0 0
      %779 = vmatpush1.bf16.msra.mxu0 0
      %780 = vmatprep.subr.bf16.mxu0 0
      %781 = vmatpush1.bf16.msra.mxu0 0
      %782 = vmatprep.mubr.bf16.mxu0 0
      %783 = vmatmul.mubr.bf16.gmra.mrb[0].mxu0 %v698
      %v784 = vpop.f32.mrb[0].mxu0
      %v785 = vadd.f32 0.0, %v784
      %v786 = vpop.f32.mrb[0].mxu0
      %v787 = vpop.f32.mrb[0].mxu0
      %v788 = vpop.f32.mrb[0].mxu0
      %789 = vdwg.mxu0
      %v790 = vadd.f32 %v640, %v744
      %v791 = vadd.f32 %v642, %v746
      %v792 = vadd.f32 %v681, %v785
      %s793 = scalar_lea.vmem %s3, 6
      %v794 = vld [vmem:[%s793] sm:$0x3]
      %795 = vrot.lane.b32.xlu0 %v422, 110
      %v796 = vpop.permute.xlu0 %795
      %797 = vrot.lane.b32.xlu0 %v417, 110
      %v798 = vpop.permute.xlu0 %797
      %799 = vrot.lane.b32.xlu0 %v425, 110
      %v800 = vpop.permute.xlu0 %799
      %vm801 = vcmask 900096
      %v802 = vsel %vm801, %v796, %v798
      %v803 = vsel %vm801, %v798, %v800
      %v805 = vsel %vm500, %v794, 0
      %v808 = vsel %vm504, %v802, 0
      %v811 = vsel %vm504, %v803, 0
      %v814 = vsel %vm504, %v800, 0
      %816 = vmatprep.subr.bf16.mxu0 %v811
      %817 = vmatpush1.bf16.msra.mxu0 %v808
      %818 = vmatprep.subr.bf16.mxu0 0
      %819 = vmatpush1.bf16.msra.mxu0 0
      %820 = vmatprep.subr.bf16.mxu0 0
      %821 = vmatpush1.bf16.msra.mxu0 0
      %822 = vmatprep.subr.bf16.mxu0 0
      %823 = vmatpush1.bf16.msra.mxu0 0
      %824 = vmatprep.subr.bf16.mxu0 0
      %825 = vmatpush1.bf16.msra.mxu0 0
      %826 = vmatprep.subr.bf16.mxu0 0
      %827 = vmatpush1.bf16.msra.mxu0 0
      %828 = vmatprep.subr.bf16.mxu0 0
      %829 = vmatpush1.bf16.msra.mxu0 0
      %830 = vmatprep.subr.bf16.mxu0 0
      %831 = vmatpush1.bf16.msra.mxu0 0
      %832 = vmatprep.subr.bf16.mxu0 0
      %833 = vmatpush1.bf16.msra.mxu0 0
      %834 = vmatprep.subr.bf16.mxu0 0
      %835 = vmatpush1.bf16.msra.mxu0 0
      %836 = vmatprep.subr.bf16.mxu0 0
      %837 = vmatpush1.bf16.msra.mxu0 0
      %838 = vmatprep.subr.bf16.mxu0 0
      %839 = vmatpush1.bf16.msra.mxu0 0
      %840 = vmatprep.subr.bf16.mxu0 0
      %841 = vmatpush1.bf16.msra.mxu0 0
      %842 = vmatprep.subr.bf16.mxu0 0
      %843 = vmatpush1.bf16.msra.mxu0 0
      %844 = vmatprep.subr.bf16.mxu0 0
      %845 = vmatpush1.bf16.msra.mxu0 0
      %846 = vmatprep.subr.bf16.mxu0 0
      %847 = vmatpush1.bf16.msra.mxu0 0
      %848 = vmatprep.mubr.bf16.mxu0 0
      %849 = vmatmul.mubr.bf16.gmra.mrb[0].mxu0 %v805
      %v850 = vpop.f32.mrb[0].mxu0
      %v851 = vadd.f32 0.0, %v850
      %v852 = vpop.f32.mrb[0].mxu0
      %v853 = vadd.f32 0.0, %v852
      %v854 = vpop.f32.mrb[0].mxu0
      %v855 = vpop.f32.mrb[0].mxu0
      %856 = vdwg.mxu0
      %857 = vmatprep.subr.bf16.mxu0 0
      %858 = vmatpush1.bf16.msra.mxu0 %v814
      %859 = vmatprep.subr.bf16.mxu0 0
      %860 = vmatpush1.bf16.msra.mxu0 0
      %861 = vmatprep.subr.bf16.mxu0 0
      %862 = vmatpush1.bf16.msra.mxu0 0
      %863 = vmatprep.subr.bf16.mxu0 0
      %864 = vmatpush1.bf16.msra.mxu0 0
      %865 = vmatprep.subr.bf16.mxu0 0
      %866 = vmatpush1.bf16.msra.mxu0 0
      %867 = vmatprep.subr.bf16.mxu0 0
      %868 = vmatpush1.bf16.msra.mxu0 0
      %869 = vmatprep.subr.bf16.mxu0 0
      %870 = vmatpush1.bf16.msra.mxu0 0
      %871 = vmatprep.subr.bf16.mxu0 0
      %872 = vmatpush1.bf16.msra.mxu0 0
      %873 = vmatprep.subr.bf16.mxu0 0
      %874 = vmatpush1.bf16.msra.mxu0 0
      %875 = vmatprep.subr.bf16.mxu0 0
      %876 = vmatpush1.bf16.msra.mxu0 0
      %877 = vmatprep.subr.bf16.mxu0 0
      %878 = vmatpush1.bf16.msra.mxu0 0
      %879 = vmatprep.subr.bf16.mxu0 0
      %880 = vmatpush1.bf16.msra.mxu0 0
      %881 = vmatprep.subr.bf16.mxu0 0
      %882 = vmatpush1.bf16.msra.mxu0 0
      %883 = vmatprep.subr.bf16.mxu0 0
      %884 = vmatpush1.bf16.msra.mxu0 0
      %885 = vmatprep.subr.bf16.mxu0 0
      %886 = vmatpush1.bf16.msra.mxu0 0
      %887 = vmatprep.subr.bf16.mxu0 0
      %888 = vmatpush1.bf16.msra.mxu0 0
      %889 = vmatprep.mubr.bf16.mxu0 0
      %890 = vmatmul.mubr.bf16.gmra.mrb[0].mxu0 %v805
      %v891 = vpop.f32.mrb[0].mxu0
      %v892 = vadd.f32 0.0, %v891
      %v893 = vpop.f32.mrb[0].mxu0
      %v894 = vpop.f32.mrb[0].mxu0
      %v895 = vpop.f32.mrb[0].mxu0
      %896 = vdwg.mxu0
      %v897 = vadd.f32 %v790, %v851
      %v898 = vadd.f32 %v791, %v853
      %v899 = vadd.f32 %v792, %v892
      %s900 = scalar_lea.vmem %s3, 8
      %v901 = vld [vmem:[%s900] sm:$0x3]
      %902 = vrot.lane.b32.xlu0 %v422, 109
      %v903 = vpop.permute.xlu0 %902
      %904 = vrot.lane.b32.xlu0 %v417, 109
      %v905 = vpop.permute.xlu0 %904
      %906 = vrot.lane.b32.xlu0 %v425, 109
      %v907 = vpop.permute.xlu0 %906
      %vm908 = vcmask 891904
      %v909 = vsel %vm908, %v903, %v905
      %v910 = vsel %vm908, %v905, %v907
      %v912 = vsel %vm500, %v901, 0
      %v915 = vsel %vm504, %v909, 0
      %v918 = vsel %vm504, %v910, 0
      %v921 = vsel %vm504, %v907, 0
      %923 = vmatprep.subr.bf16.mxu0 %v918
      %924 = vmatpush1.bf16.msra.mxu0 %v915
      %925 = vmatprep.subr.bf16.mxu0 0
      %926 = vmatpush1.bf16.msra.mxu0 0
      %927 = vmatprep.subr.bf16.mxu0 0
      %928 = vmatpush1.bf16.msra.mxu0 0
      %929 = vmatprep.subr.bf16.mxu0 0
      %930 = vmatpush1.bf16.msra.mxu0 0
      %931 = vmatprep.subr.bf16.mxu0 0
      %932 = vmatpush1.bf16.msra.mxu0 0
      %933 = vmatprep.subr.bf16.mxu0 0
      %934 = vmatpush1.bf16.msra.mxu0 0
      %935 = vmatprep.subr.bf16.mxu0 0
      %936 = vmatpush1.bf16.msra.mxu0 0
      %937 = vmatprep.subr.bf16.mxu0 0
      %938 = vmatpush1.bf16.msra.mxu0 0
      %939 = vmatprep.subr.bf16.mxu0 0
      %940 = vmatpush1.bf16.msra.mxu0 0
      %941 = vmatprep.subr.bf16.mxu0 0
      %942 = vmatpush1.bf16.msra.mxu0 0
      %943 = vmatprep.subr.bf16.mxu0 0
      %944 = vmatpush1.bf16.msra.mxu0 0
      %945 = vmatprep.subr.bf16.mxu0 0
      %946 = vmatpush1.bf16.msra.mxu0 0
      %947 = vmatprep.subr.bf16.mxu0 0
      %948 = vmatpush1.bf16.msra.mxu0 0
      %949 = vmatprep.subr.bf16.mxu0 0
      %950 = vmatpush1.bf16.msra.mxu0 0
      %951 = vmatprep.subr.bf16.mxu0 0
      %952 = vmatpush1.bf16.msra.mxu0 0
      %953 = vmatprep.subr.bf16.mxu0 0
      %954 = vmatpush1.bf16.msra.mxu0 0
      %955 = vmatprep.mubr.bf16.mxu0 0
      %956 = vmatmul.mubr.bf16.gmra.mrb[0].mxu0 %v912
      %v957 = vpop.f32.mrb[0].mxu0
      %v958 = vadd.f32 0.0, %v957
      %v959 = vpop.f32.mrb[0].mxu0
      %v960 = vadd.f32 0.0, %v959
      %v961 = vpop.f32.mrb[0].mxu0
      %v962 = vpop.f32.mrb[0].mxu0
      %963 = vdwg.mxu0
      %964 = vmatprep.subr.bf16.mxu0 0
      %965 = vmatpush1.bf16.msra.mxu0 %v921
      %966 = vmatprep.subr.bf16.mxu0 0
      %967 = vmatpush1.bf16.msra.mxu0 0
      %968 = vmatprep.subr.bf16.mxu0 0
      %969 = vmatpush1.bf16.msra.mxu0 0
      %970 = vmatprep.subr.bf16.mxu0 0
      %971 = vmatpush1.bf16.msra.mxu0 0
      %972 = vmatprep.subr.bf16.mxu0 0
      %973 = vmatpush1.bf16.msra.mxu0 0
      %974 = vmatprep.subr.bf16.mxu0 0
      %975 = vmatpush1.bf16.msra.mxu0 0
      %976 = vmatprep.subr.bf16.mxu0 0
      %977 = vmatpush1.bf16.msra.mxu0 0
      %978 = vmatprep.subr.bf16.mxu0 0
      %979 = vmatpush1.bf16.msra.mxu0 0
      %980 = vmatprep.subr.bf16.mxu0 0
      %981 = vmatpush1.bf16.msra.mxu0 0
      %982 = vmatprep.subr.bf16.mxu0 0
      %983 = vmatpush1.bf16.msra.mxu0 0
      %984 = vmatprep.subr.bf16.mxu0 0
      %985 = vmatpush1.bf16.msra.mxu0 0
      %986 = vmatprep.subr.bf16.mxu0 0
      %987 = vmatpush1.bf16.msra.mxu0 0
      %988 = vmatprep.subr.bf16.mxu0 0
      %989 = vmatpush1.bf16.msra.mxu0 0
      %990 = vmatprep.subr.bf16.mxu0 0
      %991 = vmatpush1.bf16.msra.mxu0 0
      %992 = vmatprep.subr.bf16.mxu0 0
      %993 = vmatpush1.bf16.msra.mxu0 0
      %994 = vmatprep.subr.bf16.mxu0 0
      %995 = vmatpush1.bf16.msra.mxu0 0
      %996 = vmatprep.mubr.bf16.mxu0 0
      %997 = vmatmul.mubr.bf16.gmra.mrb[0].mxu0 %v912
      %v998 = vpop.f32.mrb[0].mxu0
      %v999 = vadd.f32 0.0, %v998
      %v1000 = vpop.f32.mrb[0].mxu0
      %v1001 = vpop.f32.mrb[0].mxu0
      %v1002 = vpop.f32.mrb[0].mxu0
      %1003 = vdwg.mxu0
      %v1004 = vadd.f32 %v897, %v958
      %v1005 = vadd.f32 %v898, %v960
      %v1006 = vadd.f32 %v899, %v999
      %s1007 = scalar_lea.vmem %s3, 10
      %v1008 = vld [vmem:[%s1007] sm:$0x3]
      %1009 = vrot.lane.b32.xlu0 %v422, 108
      %v1010 = vpop.permute.xlu0 %1009
      %1011 = vrot.lane.b32.xlu0 %v417, 108
      %v1012 = vpop.permute.xlu0 %1011
      %1013 = vrot.lane.b32.xlu0 %v425, 108
      %v1014 = vpop.permute.xlu0 %1013
      %vm1015 = vcmask 883712
      %v1016 = vsel %vm1015, %v1010, %v1012
      %v1017 = vsel %vm1015, %v1012, %v1014
      %v1019 = vsel %vm500, %v1008, 0
      %v1022 = vsel %vm504, %v1016, 0
      %v1025 = vsel %vm504, %v1017, 0
      %v1028 = vsel %vm504, %v1014, 0
      %1030 = vmatprep.subr.bf16.mxu0 %v1025
      %1031 = vmatpush1.bf16.msra.mxu0 %v1022
      %1032 = vmatprep.subr.bf16.mxu0 0
      %1033 = vmatpush1.bf16.msra.mxu0 0
      %1034 = vmatprep.subr.bf16.mxu0 0
      %1035 = vmatpush1.bf16.msra.mxu0 0
      %1036 = vmatprep.subr.bf16.mxu0 0
      %1037 = vmatpush1.bf16.msra.mxu0 0
      %1038 = vmatprep.subr.bf16.mxu0 0
      %1039 = vmatpush1.bf16.msra.mxu0 0
      %1040 = vmatprep.subr.bf16.mxu0 0
      %1041 = vmatpush1.bf16.msra.mxu0 0
      %1042 = vmatprep.subr.bf16.mxu0 0
      %1043 = vmatpush1.bf16.msra.mxu0 0
      %1044 = vmatprep.subr.bf16.mxu0 0
      %1045 = vmatpush1.bf16.msra.mxu0 0
      %1046 = vmatprep.subr.bf16.mxu0 0
      %1047 = vmatpush1.bf16.msra.mxu0 0
      %1048 = vmatprep.subr.bf16.mxu0 0
      %1049 = vmatpush1.bf16.msra.mxu0 0
      %1050 = vmatprep.subr.bf16.mxu0 0
      %1051 = vmatpush1.bf16.msra.mxu0 0
      %1052 = vmatprep.subr.bf16.mxu0 0
      %1053 = vmatpush1.bf16.msra.mxu0 0
      %1054 = vmatprep.subr.bf16.mxu0 0
      %1055 = vmatpush1.bf16.msra.mxu0 0
      %1056 = vmatprep.subr.bf16.mxu0 0
      %1057 = vmatpush1.bf16.msra.mxu0 0
      %1058 = vmatprep.subr.bf16.mxu0 0
      %1059 = vmatpush1.bf16.msra.mxu0 0
      %1060 = vmatprep.subr.bf16.mxu0 0
      %1061 = vmatpush1.bf16.msra.mxu0 0
      %1062 = vmatprep.mubr.bf16.mxu0 0
      %1063 = vmatmul.mubr.bf16.gmra.mrb[0].mxu0 %v1019
      %v1064 = vpop.f32.mrb[0].mxu0
      %v1065 = vadd.f32 0.0, %v1064
      %v1066 = vpop.f32.mrb[0].mxu0
      %v1067 = vadd.f32 0.0, %v1066
      %v1068 = vpop.f32.mrb[0].mxu0
      %v1069 = vpop.f32.mrb[0].mxu0
      %1070 = vdwg.mxu0
      %1071 = vmatprep.subr.bf16.mxu0 0
      %1072 = vmatpush1.bf16.msra.mxu0 %v1028
      %1073 = vmatprep.subr.bf16.mxu0 0
      %1074 = vmatpush1.bf16.msra.mxu0 0
      %1075 = vmatprep.subr.bf16.mxu0 0
      %1076 = vmatpush1.bf16.msra.mxu0 0
      %1077 = vmatprep.subr.bf16.mxu0 0
      %1078 = vmatpush1.bf16.msra.mxu0 0
      %1079 = vmatprep.subr.bf16.mxu0 0
      %1080 = vmatpush1.bf16.msra.mxu0 0
      %1081 = vmatprep.subr.bf16.mxu0 0
      %1082 = vmatpush1.bf16.msra.mxu0 0
      %1083 = vmatprep.subr.bf16.mxu0 0
      %1084 = vmatpush1.bf16.msra.mxu0 0
      %1085 = vmatprep.subr.bf16.mxu0 0
      %1086 = vmatpush1.bf16.msra.mxu0 0
      %1087 = vmatprep.subr.bf16.mxu0 0
      %1088 = vmatpush1.bf16.msra.mxu0 0
      %1089 = vmatprep.subr.bf16.mxu0 0
      %1090 = vmatpush1.bf16.msra.mxu0 0
      %1091 = vmatprep.subr.bf16.mxu0 0
      %1092 = vmatpush1.bf16.msra.mxu0 0
      %1093 = vmatprep.subr.bf16.mxu0 0
      %1094 = vmatpush1.bf16.msra.mxu0 0
      %1095 = vmatprep.subr.bf16.mxu0 0
      %1096 = vmatpush1.bf16.msra.mxu0 0
      %1097 = vmatprep.subr.bf16.mxu0 0
      %1098 = vmatpush1.bf16.msra.mxu0 0
      %1099 = vmatprep.subr.bf16.mxu0 0
      %1100 = vmatpush1.bf16.msra.mxu0 0
      %1101 = vmatprep.subr.bf16.mxu0 0
      %1102 = vmatpush1.bf16.msra.mxu0 0
      %1103 = vmatprep.mubr.bf16.mxu0 0
      %1104 = vmatmul.mubr.bf16.gmra.mrb[0].mxu0 %v1019
      %v1105 = vpop.f32.mrb[0].mxu0
      %v1106 = vadd.f32 0.0, %v1105
      %v1107 = vpop.f32.mrb[0].mxu0
      %v1108 = vpop.f32.mrb[0].mxu0
      %v1109 = vpop.f32.mrb[0].mxu0
      %1110 = vdwg.mxu0
      %v1111 = vadd.f32 %v1004, %v1065
      %v1112 = vadd.f32 %v1005, %v1067
      %v1113 = vadd.f32 %v1006, %v1106
      %s1114 = scalar_lea.vmem %s3, 12
      %v1115 = vld [vmem:[%s1114] sm:$0x3]
      %1116 = vrot.lane.b32.xlu0 %v422, 92
      %v1117 = vpop.permute.xlu0 %1116
      %1118 = vrot.lane.b32.xlu0 %v417, 92
      %v1119 = vpop.permute.xlu0 %1118
      %1120 = vrot.lane.b32.xlu0 %v425, 92
      %v1121 = vpop.permute.xlu0 %1120
      %vm1122 = vcmask 752640
      %v1123 = vsel %vm1122, %v1117, %v1119
      %v1124 = vsel %vm1122, %v1119, %v1121
      %v1126 = vsel %vm500, %v1115, 0
      %v1129 = vsel %vm504, %v1123, 0
      %v1132 = vsel %vm504, %v1124, 0
      %v1135 = vsel %vm504, %v1121, 0
      %1137 = vmatprep.subr.bf16.mxu0 %v1132
      %1138 = vmatpush1.bf16.msra.mxu0 %v1129
      %1139 = vmatprep.subr.bf16.mxu0 0
      %1140 = vmatpush1.bf16.msra.mxu0 0
      %1141 = vmatprep.subr.bf16.mxu0 0
      %1142 = vmatpush1.bf16.msra.mxu0 0
      %1143 = vmatprep.subr.bf16.mxu0 0
      %1144 = vmatpush1.bf16.msra.mxu0 0
      %1145 = vmatprep.subr.bf16.mxu0 0
      %1146 = vmatpush1.bf16.msra.mxu0 0
      %1147 = vmatprep.subr.bf16.mxu0 0
      %1148 = vmatpush1.bf16.msra.mxu0 0
      %1149 = vmatprep.subr.bf16.mxu0 0
      %1150 = vmatpush1.bf16.msra.mxu0 0
      %1151 = vmatprep.subr.bf16.mxu0 0
      %1152 = vmatpush1.bf16.msra.mxu0 0
      %1153 = vmatprep.subr.bf16.mxu0 0
      %1154 = vmatpush1.bf16.msra.mxu0 0
      %1155 = vmatprep.subr.bf16.mxu0 0
      %1156 = vmatpush1.bf16.msra.mxu0 0
      %1157 = vmatprep.subr.bf16.mxu0 0
      %1158 = vmatpush1.bf16.msra.mxu0 0
      %1159 = vmatprep.subr.bf16.mxu0 0
      %1160 = vmatpush1.bf16.msra.mxu0 0
      %1161 = vmatprep.subr.bf16.mxu0 0
      %1162 = vmatpush1.bf16.msra.mxu0 0
      %1163 = vmatprep.subr.bf16.mxu0 0
      %1164 = vmatpush1.bf16.msra.mxu0 0
      %1165 = vmatprep.subr.bf16.mxu0 0
      %1166 = vmatpush1.bf16.msra.mxu0 0
      %1167 = vmatprep.subr.bf16.mxu0 0
      %1168 = vmatpush1.bf16.msra.mxu0 0
      %1169 = vmatprep.mubr.bf16.mxu0 0
      %1170 = vmatmul.mubr.bf16.gmra.mrb[0].mxu0 %v1126
      %v1171 = vpop.f32.mrb[0].mxu0
      %v1172 = vadd.f32 0.0, %v1171
      %v1173 = vpop.f32.mrb[0].mxu0
      %v1174 = vadd.f32 0.0, %v1173
      %v1175 = vpop.f32.mrb[0].mxu0
      %v1176 = vpop.f32.mrb[0].mxu0
      %1177 = vdwg.mxu0
      %1178 = vmatprep.subr.bf16.mxu0 0
      %1179 = vmatpush1.bf16.msra.mxu0 %v1135
      %1180 = vmatprep.subr.bf16.mxu0 0
      %1181 = vmatpush1.bf16.msra.mxu0 0
      %1182 = vmatprep.subr.bf16.mxu0 0
      %1183 = vmatpush1.bf16.msra.mxu0 0
      %1184 = vmatprep.subr.bf16.mxu0 0
      %1185 = vmatpush1.bf16.msra.mxu0 0
      %1186 = vmatprep.subr.bf16.mxu0 0
      %1187 = vmatpush1.bf16.msra.mxu0 0
      %1188 = vmatprep.subr.bf16.mxu0 0
      %1189 = vmatpush1.bf16.msra.mxu0 0
      %1190 = vmatprep.subr.bf16.mxu0 0
      %1191 = vmatpush1.bf16.msra.mxu0 0
      %1192 = vmatprep.subr.bf16.mxu0 0
      %1193 = vmatpush1.bf16.msra.mxu0 0
      %1194 = vmatprep.subr.bf16.mxu0 0
      %1195 = vmatpush1.bf16.msra.mxu0 0
      %1196 = vmatprep.subr.bf16.mxu0 0
      %1197 = vmatpush1.bf16.msra.mxu0 0
      %1198 = vmatprep.subr.bf16.mxu0 0
      %1199 = vmatpush1.bf16.msra.mxu0 0
      %1200 = vmatprep.subr.bf16.mxu0 0
      %1201 = vmatpush1.bf16.msra.mxu0 0
      %1202 = vmatprep.subr.bf16.mxu0 0
      %1203 = vmatpush1.bf16.msra.mxu0 0
      %1204 = vmatprep.subr.bf16.mxu0 0
      %1205 = vmatpush1.bf16.msra.mxu0 0
      %1206 = vmatprep.subr.bf16.mxu0 0
      %1207 = vmatpush1.bf16.msra.mxu0 0
      %1208 = vmatprep.subr.bf16.mxu0 0
      %1209 = vmatpush1.bf16.msra.mxu0 0
      %1210 = vmatprep.mubr.bf16.mxu0 0
      %1211 = vmatmul.mubr.bf16.gmra.mrb[0].mxu0 %v1126
      %v1212 = vpop.f32.mrb[0].mxu0
      %v1213 = vadd.f32 0.0, %v1212
      %v1214 = vpop.f32.mrb[0].mxu0
      %v1215 = vpop.f32.mrb[0].mxu0
      %v1216 = vpop.f32.mrb[0].mxu0
      %1217 = vdwg.mxu0
      %v1218 = vadd.f32 %v1111, %v1172
      %v1219 = vadd.f32 %v1112, %v1174
      %v1220 = vadd.f32 %v1113, %v1213
      %s1221 = scalar_lea.vmem %s3, 14
      %v1222 = vld [vmem:[%s1221] sm:$0x3]
      %1223 = vrot.lane.b32.xlu0 %v422, 91
      %v1224 = vpop.permute.xlu0 %1223
      %1225 = vrot.lane.b32.xlu0 %v417, 91
      %v1226 = vpop.permute.xlu0 %1225
      %1227 = vrot.lane.b32.xlu0 %v425, 91
      %v1228 = vpop.permute.xlu0 %1227
      %vm1229 = vcmask 744448
      %v1230 = vsel %vm1229, %v1224, %v1226
      %v1231 = vsel %vm1229, %v1226, %v1228
      %v1233 = vsel %vm500, %v1222, 0
      %v1236 = vsel %vm504, %v1230, 0
      %v1239 = vsel %vm504, %v1231, 0
      %v1242 = vsel %vm504, %v1228, 0
      %1244 = vmatprep.subr.bf16.mxu0 %v1239
      %1245 = vmatpush1.bf16.msra.mxu0 %v1236
      %1246 = vmatprep.subr.bf16.mxu0 0
      %1247 = vmatpush1.bf16.msra.mxu0 0
      %1248 = vmatprep.subr.bf16.mxu0 0
      %1249 = vmatpush1.bf16.msra.mxu0 0
      %1250 = vmatprep.subr.bf16.mxu0 0
      %1251 = vmatpush1.bf16.msra.mxu0 0
      %1252 = vmatprep.subr.bf16.mxu0 0
      %1253 = vmatpush1.bf16.msra.mxu0 0
      %1254 = vmatprep.subr.bf16.mxu0 0
      %1255 = vmatpush1.bf16.msra.mxu0 0
      %1256 = vmatprep.subr.bf16.mxu0 0
      %1257 = vmatpush1.bf16.msra.mxu0 0
      %1258 = vmatprep.subr.bf16.mxu0 0
      %1259 = vmatpush1.bf16.msra.mxu0 0
      %1260 = vmatprep.subr.bf16.mxu0 0
      %1261 = vmatpush1.bf16.msra.mxu0 0
      %1262 = vmatprep.subr.bf16.mxu0 0
      %1263 = vmatpush1.bf16.msra.mxu0 0
      %1264 = vmatprep.subr.bf16.mxu0 0
      %1265 = vmatpush1.bf16.msra.mxu0 0
      %1266 = vmatprep.subr.bf16.mxu0 0
      %1267 = vmatpush1.bf16.msra.mxu0 0
      %1268 = vmatprep.subr.bf16.mxu0 0
      %1269 = vmatpush1.bf16.msra.mxu0 0
      %1270 = vmatprep.subr.bf16.mxu0 0
      %1271 = vmatpush1.bf16.msra.mxu0 0
      %1272 = vmatprep.subr.bf16.mxu0 0
      %1273 = vmatpush1.bf16.msra.mxu0 0
      %1274 = vmatprep.subr.bf16.mxu0 0
      %1275 = vmatpush1.bf16.msra.mxu0 0
      %1276 = vmatprep.mubr.bf16.mxu0 0
      %1277 = vmatmul.mubr.bf16.gmra.mrb[0].mxu0 %v1233
      %v1278 = vpop.f32.mrb[0].mxu0
      %v1279 = vadd.f32 0.0, %v1278
      %v1280 = vpop.f32.mrb[0].mxu0
      %v1281 = vadd.f32 0.0, %v1280
      %v1282 = vpop.f32.mrb[0].mxu0
      %v1283 = vpop.f32.mrb[0].mxu0
      %1284 = vdwg.mxu0
      %1285 = vmatprep.subr.bf16.mxu0 0
      %1286 = vmatpush1.bf16.msra.mxu0 %v1242
      %1287 = vmatprep.subr.bf16.mxu0 0
      %1288 = vmatpush1.bf16.msra.mxu0 0
      %1289 = vmatprep.subr.bf16.mxu0 0
      %1290 = vmatpush1.bf16.msra.mxu0 0
      %1291 = vmatprep.subr.bf16.mxu0 0
      %1292 = vmatpush1.bf16.msra.mxu0 0
      %1293 = vmatprep.subr.bf16.mxu0 0
      %1294 = vmatpush1.bf16.msra.mxu0 0
      %1295 = vmatprep.subr.bf16.mxu0 0
      %1296 = vmatpush1.bf16.msra.mxu0 0
      %1297 = vmatprep.subr.bf16.mxu0 0
      %1298 = vmatpush1.bf16.msra.mxu0 0
      %1299 = vmatprep.subr.bf16.mxu0 0
      %1300 = vmatpush1.bf16.msra.mxu0 0
      %1301 = vmatprep.subr.bf16.mxu0 0
      %1302 = vmatpush1.bf16.msra.mxu0 0
      %1303 = vmatprep.subr.bf16.mxu0 0
      %1304 = vmatpush1.bf16.msra.mxu0 0
      %1305 = vmatprep.subr.bf16.mxu0 0
      %1306 = vmatpush1.bf16.msra.mxu0 0
      %1307 = vmatprep.subr.bf16.mxu0 0
      %1308 = vmatpush1.bf16.msra.mxu0 0
      %1309 = vmatprep.subr.bf16.mxu0 0
      %1310 = vmatpush1.bf16.msra.mxu0 0
      %1311 = vmatprep.subr.bf16.mxu0 0
      %1312 = vmatpush1.bf16.msra.mxu0 0
      %1313 = vmatprep.subr.bf16.mxu0 0
      %1314 = vmatpush1.bf16.msra.mxu0 0
      %1315 = vmatprep.subr.bf16.mxu0 0
      %1316 = vmatpush1.bf16.msra.mxu0 0
      %1317 = vmatprep.mubr.bf16.mxu0 0
      %1318 = vmatmul.mubr.bf16.gmra.mrb[0].mxu0 %v1233
      %v1319 = vpop.f32.mrb[0].mxu0
      %v1320 = vadd.f32 0.0, %v1319
      %v1321 = vpop.f32.mrb[0].mxu0
      %v1322 = vpop.f32.mrb[0].mxu0
      %v1323 = vpop.f32.mrb[0].mxu0
      %1324 = vdwg.mxu0
      %v1325 = vadd.f32 %v1218, %v1279
      %v1326 = vadd.f32 %v1219, %v1281
      %v1327 = vadd.f32 %v1220, %v1320
      %s1328 = scalar_lea.vmem %s3, 16
      %v1329 = vld [vmem:[%s1328] sm:$0x3]
      %1330 = vrot.lane.b32.xlu0 %v422, 90
      %v1331 = vpop.permute.xlu0 %1330
      %1332 = vrot.lane.b32.xlu0 %v417, 90
      %v1333 = vpop.permute.xlu0 %1332
      %1334 = vrot.lane.b32.xlu0 %v425, 90
      %v1335 = vpop.permute.xlu0 %1334
      %vm1336 = vcmask 736256
      %v1337 = vsel %vm1336, %v1331, %v1333
      %v1338 = vsel %vm1336, %v1333, %v1335
      %v1340 = vsel %vm500, %v1329, 0
      %v1343 = vsel %vm504, %v1337, 0
      %v1346 = vsel %vm504, %v1338, 0
      %v1349 = vsel %vm504, %v1335, 0
      %1351 = vmatprep.subr.bf16.mxu0 %v1346
      %1352 = vmatpush1.bf16.msra.mxu0 %v1343
      %1353 = vmatprep.subr.bf16.mxu0 0
      %1354 = vmatpush1.bf16.msra.mxu0 0
      %1355 = vmatprep.subr.bf16.mxu0 0
      %1356 = vmatpush1.bf16.msra.mxu0 0
      %1357 = vmatprep.subr.bf16.mxu0 0
      %1358 = vmatpush1.bf16.msra.mxu0 0
      %1359 = vmatprep.subr.bf16.mxu0 0
      %1360 = vmatpush1.bf16.msra.mxu0 0
      %1361 = vmatprep.subr.bf16.mxu0 0
      %1362 = vmatpush1.bf16.msra.mxu0 0
      %1363 = vmatprep.subr.bf16.mxu0 0
      %1364 = vmatpush1.bf16.msra.mxu0 0
      %1365 = vmatprep.subr.bf16.mxu0 0
      %1366 = vmatpush1.bf16.msra.mxu0 0
      %1367 = vmatprep.subr.bf16.mxu0 0
      %1368 = vmatpush1.bf16.msra.mxu0 0
      %1369 = vmatprep.subr.bf16.mxu0 0
      %1370 = vmatpush1.bf16.msra.mxu0 0
      %1371 = vmatprep.subr.bf16.mxu0 0
      %1372 = vmatpush1.bf16.msra.mxu0 0
      %1373 = vmatprep.subr.bf16.mxu0 0
      %1374 = vmatpush1.bf16.msra.mxu0 0
      %1375 = vmatprep.subr.bf16.mxu0 0
      %1376 = vmatpush1.bf16.msra.mxu0 0
      %1377 = vmatprep.subr.bf16.mxu0 0
      %1378 = vmatpush1.bf16.msra.mxu0 0
      %1379 = vmatprep.subr.bf16.mxu0 0
      %1380 = vmatpush1.bf16.msra.mxu0 0
      %1381 = vmatprep.subr.bf16.mxu0 0
      %1382 = vmatpush1.bf16.msra.mxu0 0
      %1383 = vmatprep.mubr.bf16.mxu0 0
      %1384 = vmatmul.mubr.bf16.gmra.mrb[0].mxu0 %v1340
      %v1385 = vpop.f32.mrb[0].mxu0
      %v1386 = vadd.f32 0.0, %v1385
      %v1387 = vpop.f32.mrb[0].mxu0
      %v1388 = vadd.f32 0.0, %v1387
      %v1389 = vpop.f32.mrb[0].mxu0
      %v1390 = vpop.f32.mrb[0].mxu0
      %1391 = vdwg.mxu0
      %1392 = vmatprep.subr.bf16.mxu0 0
      %1393 = vmatpush1.bf16.msra.mxu0 %v1349
      %1394 = vmatprep.subr.bf16.mxu0 0
      %1395 = vmatpush1.bf16.msra.mxu0 0
      %1396 = vmatprep.subr.bf16.mxu0 0
      %1397 = vmatpush1.bf16.msra.mxu0 0
      %1398 = vmatprep.subr.bf16.mxu0 0
      %1399 = vmatpush1.bf16.msra.mxu0 0
      %1400 = vmatprep.subr.bf16.mxu0 0
      %1401 = vmatpush1.bf16.msra.mxu0 0
      %1402 = vmatprep.subr.bf16.mxu0 0
      %1403 = vmatpush1.bf16.msra.mxu0 0
      %1404 = vmatprep.subr.bf16.mxu0 0
      %1405 = vmatpush1.bf16.msra.mxu0 0
      %1406 = vmatprep.subr.bf16.mxu0 0
      %1407 = vmatpush1.bf16.msra.mxu0 0
      %1408 = vmatprep.subr.bf16.mxu0 0
      %1409 = vmatpush1.bf16.msra.mxu0 0
      %1410 = vmatprep.subr.bf16.mxu0 0
      %1411 = vmatpush1.bf16.msra.mxu0 0
      %1412 = vmatprep.subr.bf16.mxu0 0
      %1413 = vmatpush1.bf16.msra.mxu0 0
      %1414 = vmatprep.subr.bf16.mxu0 0
      %1415 = vmatpush1.bf16.msra.mxu0 0
      %1416 = vmatprep.subr.bf16.mxu0 0
      %1417 = vmatpush1.bf16.msra.mxu0 0
      %1418 = vmatprep.subr.bf16.mxu0 0
      %1419 = vmatpush1.bf16.msra.mxu0 0
      %1420 = vmatprep.subr.bf16.mxu0 0
      %1421 = vmatpush1.bf16.msra.mxu0 0
      %1422 = vmatprep.subr.bf16.mxu0 0
      %1423 = vmatpush1.bf16.msra.mxu0 0
      %1424 = vmatprep.mubr.bf16.mxu0 0
      %1425 = vmatmul.mubr.bf16.gmra.mrb[0].mxu0 %v1340
      %v1426 = vpop.f32.mrb[0].mxu0
      %v1427 = vadd.f32 0.0, %v1426
      %v1428 = vpop.f32.mrb[0].mxu0
      %v1429 = vpop.f32.mrb[0].mxu0
      %v1430 = vpop.f32.mrb[0].mxu0
      %1431 = vdwg.mxu0
      %v1432 = vadd.f32 %v1325, %v1386
      %v1433 = vadd.f32 %v1326, %v1388
      %v1434 = vadd.f32 %v1327, %v1427
      %s1435 = scalar_lea.vmem %s3, 18
      %v1436 = vld [vmem:[%s1435] sm:$0x3]
      %v1438 = vsel %vm500, %v1436, 0
      %v1440 = vsel %vm504, %v453, 0
      %v1443 = vsel %vm504, %v450, 0
      %v1445 = vsel %vm504, %v455, 0
      %1447 = vmatprep.subr.bf16.mxu0 %v1443
      %1448 = vmatpush1.bf16.msra.mxu0 %v1440
      %1449 = vmatprep.subr.bf16.mxu0 0
      %1450 = vmatpush1.bf16.msra.mxu0 0
      %1451 = vmatprep.subr.bf16.mxu0 0
      %1452 = vmatpush1.bf16.msra.mxu0 0
      %1453 = vmatprep.subr.bf16.mxu0 0
      %1454 = vmatpush1.bf16.msra.mxu0 0
      %1455 = vmatprep.subr.bf16.mxu0 0
      %1456 = vmatpush1.bf16.msra.mxu0 0
      %1457 = vmatprep.subr.bf16.mxu0 0
      %1458 = vmatpush1.bf16.msra.mxu0 0
      %1459 = vmatprep.subr.bf16.mxu0 0
      %1460 = vmatpush1.bf16.msra.mxu0 0
      %1461 = vmatprep.subr.bf16.mxu0 0
      %1462 = vmatpush1.bf16.msra.mxu0 0
      %1463 = vmatprep.subr.bf16.mxu0 0
      %1464 = vmatpush1.bf16.msra.mxu0 0
      %1465 = vmatprep.subr.bf16.mxu0 0
      %1466 = vmatpush1.bf16.msra.mxu0 0
      %1467 = vmatprep.subr.bf16.mxu0 0
      %1468 = vmatpush1.bf16.msra.mxu0 0
      %1469 = vmatprep.subr.bf16.mxu0 0
      %1470 = vmatpush1.bf16.msra.mxu0 0
      %1471 = vmatprep.subr.bf16.mxu0 0
      %1472 = vmatpush1.bf16.msra.mxu0 0
      %1473 = vmatprep.subr.bf16.mxu0 0
      %1474 = vmatpush1.bf16.msra.mxu0 0
      %1475 = vmatprep.subr.bf16.mxu0 0
      %1476 = vmatpush1.bf16.msra.mxu0 0
      %1477 = vmatprep.subr.bf16.mxu0 0
      %1478 = vmatpush1.bf16.msra.mxu0 0
      %1479 = vmatprep.mubr.bf16.mxu0 0
      %1480 = vmatmul.mubr.bf16.gmra.mrb[0].mxu0 %v1438
      %v1481 = vpop.f32.mrb[0].mxu0
      %v1482 = vadd.f32 0.0, %v1481
      %v1483 = vpop.f32.mrb[0].mxu0
      %v1484 = vadd.f32 0.0, %v1483
      %v1485 = vpop.f32.mrb[0].mxu0
      %v1486 = vpop.f32.mrb[0].mxu0
      %1487 = vdwg.mxu0
      %1488 = vmatprep.subr.bf16.mxu0 0
      %1489 = vmatpush1.bf16.msra.mxu0 %v1445
      %1490 = vmatprep.subr.bf16.mxu0 0
      %1491 = vmatpush1.bf16.msra.mxu0 0
      %1492 = vmatprep.subr.bf16.mxu0 0
      %1493 = vmatpush1.bf16.msra.mxu0 0
      %1494 = vmatprep.subr.bf16.mxu0 0
      %1495 = vmatpush1.bf16.msra.mxu0 0
      %1496 = vmatprep.subr.bf16.mxu0 0
      %1497 = vmatpush1.bf16.msra.mxu0 0
      %1498 = vmatprep.subr.bf16.mxu0 0
      %1499 = vmatpush1.bf16.msra.mxu0 0
      %1500 = vmatprep.subr.bf16.mxu0 0
      %1501 = vmatpush1.bf16.msra.mxu0 0
      %1502 = vmatprep.subr.bf16.mxu0 0
      %1503 = vmatpush1.bf16.msra.mxu0 0
      %1504 = vmatprep.subr.bf16.mxu0 0
      %1505 = vmatpush1.bf16.msra.mxu0 0
      %1506 = vmatprep.subr.bf16.mxu0 0
      %1507 = vmatpush1.bf16.msra.mxu0 0
      %1508 = vmatprep.subr.bf16.mxu0 0
      %1509 = vmatpush1.bf16.msra.mxu0 0
      %1510 = vmatprep.subr.bf16.mxu0 0
      %1511 = vmatpush1.bf16.msra.mxu0 0
      %1512 = vmatprep.subr.bf16.mxu0 0
      %1513 = vmatpush1.bf16.msra.mxu0 0
      %1514 = vmatprep.subr.bf16.mxu0 0
      %1515 = vmatpush1.bf16.msra.mxu0 0
      %1516 = vmatprep.subr.bf16.mxu0 0
      %1517 = vmatpush1.bf16.msra.mxu0 0
      %1518 = vmatprep.subr.bf16.mxu0 0
      %1519 = vmatpush1.bf16.msra.mxu0 0
      %1520 = vmatprep.mubr.bf16.mxu0 0
      %1521 = vmatmul.mubr.bf16.gmra.mrb[0].mxu0 %v1438
      %v1522 = vpop.f32.mrb[0].mxu0
      %v1523 = vadd.f32 0.0, %v1522
      %v1524 = vpop.f32.mrb[0].mxu0
      %v1525 = vpop.f32.mrb[0].mxu0
      %v1526 = vpop.f32.mrb[0].mxu0
      %1527 = vdwg.mxu0
      %v1528 = vadd.f32 %v1432, %v1482
      %v1529 = vadd.f32 %v1433, %v1484
      %v1530 = vadd.f32 %v1434, %v1523
      %s1531 = scalar_lea.vmem %s3, 20
      %v1532 = vld [vmem:[%s1531] sm:$0x3]
      %1535 = vrot.lane.b32.xlu0 %v453, 127
      %v1536 = vpop.permute.xlu0 %1535
      %1537 = vrot.lane.b32.xlu0 %v450, 127
      %v1538 = vpop.permute.xlu0 %1537
      %1539 = vrot.lane.b32.xlu0 %v455, 127
      %v1540 = vpop.permute.xlu0 %1539
      %v1541 = vsel %vm497, %v1536, %v1538
      %v1542 = vsel %vm497, %v1538, %v1540
      %v1544 = vsel %vm500, %v1532, 0
      %v1547 = vsel %vm504, %v1541, 0
      %v1550 = vsel %vm504, %v1542, 0
      %v1553 = vsel %vm504, %v1540, 0
      %1555 = vmatprep.subr.bf16.mxu0 %v1550
      %1556 = vmatpush1.bf16.msra.mxu0 %v1547
      %1557 = vmatprep.subr.bf16.mxu0 0
      %1558 = vmatpush1.bf16.msra.mxu0 0
      %1559 = vmatprep.subr.bf16.mxu0 0
      %1560 = vmatpush1.bf16.msra.mxu0 0
      %1561 = vmatprep.subr.bf16.mxu0 0
      %1562 = vmatpush1.bf16.msra.mxu0 0
      %1563 = vmatprep.subr.bf16.mxu0 0
      %1564 = vmatpush1.bf16.msra.mxu0 0
      %1565 = vmatprep.subr.bf16.mxu0 0
      %1566 = vmatpush1.bf16.msra.mxu0 0
      %1567 = vmatprep.subr.bf16.mxu0 0
      %1568 = vmatpush1.bf16.msra.mxu0 0
      %1569 = vmatprep.subr.bf16.mxu0 0
      %1570 = vmatpush1.bf16.msra.mxu0 0
      %1571 = vmatprep.subr.bf16.mxu0 0
      %1572 = vmatpush1.bf16.msra.mxu0 0
      %1573 = vmatprep.subr.bf16.mxu0 0
      %1574 = vmatpush1.bf16.msra.mxu0 0
      %1575 = vmatprep.subr.bf16.mxu0 0
      %1576 = vmatpush1.bf16.msra.mxu0 0
      %1577 = vmatprep.subr.bf16.mxu0 0
      %1578 = vmatpush1.bf16.msra.mxu0 0
      %1579 = vmatprep.subr.bf16.mxu0 0
      %1580 = vmatpush1.bf16.msra.mxu0 0
      %1581 = vmatprep.subr.bf16.mxu0 0
      %1582 = vmatpush1.bf16.msra.mxu0 0
      %1583 = vmatprep.subr.bf16.mxu0 0
      %1584 = vmatpush1.bf16.msra.mxu0 0
      %1585 = vmatprep.subr.bf16.mxu0 0
      %1586 = vmatpush1.bf16.msra.mxu0 0
      %1587 = vmatprep.mubr.bf16.mxu0 0
      %1588 = vmatmul.mubr.bf16.gmra.mrb[0].mxu0 %v1544
      %v1589 = vpop.f32.mrb[0].mxu0
      %v1590 = vadd.f32 0.0, %v1589
      %v1591 = vpop.f32.mrb[0].mxu0
      %v1592 = vadd.f32 0.0, %v1591
      %v1593 = vpop.f32.mrb[0].mxu0
      %v1594 = vpop.f32.mrb[0].mxu0
      %1595 = vdwg.mxu0
      %1596 = vmatprep.subr.bf16.mxu0 0
      %1597 = vmatpush1.bf16.msra.mxu0 %v1553
      %1598 = vmatprep.subr.bf16.mxu0 0
      %1599 = vmatpush1.bf16.msra.mxu0 0
      %1600 = vmatprep.subr.bf16.mxu0 0
      %1601 = vmatpush1.bf16.msra.mxu0 0
      %1602 = vmatprep.subr.bf16.mxu0 0
      %1603 = vmatpush1.bf16.msra.mxu0 0
      %1604 = vmatprep.subr.bf16.mxu0 0
      %1605 = vmatpush1.bf16.msra.mxu0 0
      %1606 = vmatprep.subr.bf16.mxu0 0
      %1607 = vmatpush1.bf16.msra.mxu0 0
      %1608 = vmatprep.subr.bf16.mxu0 0
      %1609 = vmatpush1.bf16.msra.mxu0 0
      %1610 = vmatprep.subr.bf16.mxu0 0
      %1611 = vmatpush1.bf16.msra.mxu0 0
      %1612 = vmatprep.subr.bf16.mxu0 0
      %1613 = vmatpush1.bf16.msra.mxu0 0
      %1614 = vmatprep.subr.bf16.mxu0 0
      %1615 = vmatpush1.bf16.msra.mxu0 0
      %1616 = vmatprep.subr.bf16.mxu0 0
      %1617 = vmatpush1.bf16.msra.mxu0 0
      %1618 = vmatprep.subr.bf16.mxu0 0
      %1619 = vmatpush1.bf16.msra.mxu0 0
      %1620 = vmatprep.subr.bf16.mxu0 0
      %1621 = vmatpush1.bf16.msra.mxu0 0
      %1622 = vmatprep.subr.bf16.mxu0 0
      %1623 = vmatpush1.bf16.msra.mxu0 0
      %1624 = vmatprep.subr.bf16.mxu0 0
      %1625 = vmatpush1.bf16.msra.mxu0 0
      %1626 = vmatprep.subr.bf16.mxu0 0
      %1627 = vmatpush1.bf16.msra.mxu0 0
      %1628 = vmatprep.mubr.bf16.mxu0 0
      %1629 = vmatmul.mubr.bf16.gmra.mrb[0].mxu0 %v1544
      %v1630 = vpop.f32.mrb[0].mxu0
      %v1631 = vadd.f32 0.0, %v1630
      %v1632 = vpop.f32.mrb[0].mxu0
      %v1633 = vpop.f32.mrb[0].mxu0
      %v1634 = vpop.f32.mrb[0].mxu0
      %1635 = vdwg.mxu0
      %v1636 = vadd.f32 %v1528, %v1590
      %v1637 = vadd.f32 %v1529, %v1592
      %v1638 = vadd.f32 %v1530, %v1631
      %s1639 = scalar_lea.vmem %s3, 22
      %v1640 = vld [vmem:[%s1639] sm:$0x3]
      %1641 = vrot.lane.b32.xlu0 %v453, 126
      %v1642 = vpop.permute.xlu0 %1641
      %1643 = vrot.lane.b32.xlu0 %v450, 126
      %v1644 = vpop.permute.xlu0 %1643
      %1645 = vrot.lane.b32.xlu0 %v455, 126
      %v1646 = vpop.permute.xlu0 %1645
      %v1647 = vsel %vm694, %v1642, %v1644
      %v1648 = vsel %vm694, %v1644, %v1646
      %v1650 = vsel %vm500, %v1640, 0
      %v1653 = vsel %vm504, %v1647, 0
      %v1656 = vsel %vm504, %v1648, 0
      %v1659 = vsel %vm504, %v1646, 0
      %1661 = vmatprep.subr.bf16.mxu0 %v1656
      %1662 = vmatpush1.bf16.msra.mxu0 %v1653
      %1663 = vmatprep.subr.bf16.mxu0 0
      %1664 = vmatpush1.bf16.msra.mxu0 0
      %1665 = vmatprep.subr.bf16.mxu0 0
      %1666 = vmatpush1.bf16.msra.mxu0 0
      %1667 = vmatprep.subr.bf16.mxu0 0
      %1668 = vmatpush1.bf16.msra.mxu0 0
      %1669 = vmatprep.subr.bf16.mxu0 0
      %1670 = vmatpush1.bf16.msra.mxu0 0
      %1671 = vmatprep.subr.bf16.mxu0 0
      %1672 = vmatpush1.bf16.msra.mxu0 0
      %1673 = vmatprep.subr.bf16.mxu0 0
      %1674 = vmatpush1.bf16.msra.mxu0 0
      %1675 = vmatprep.subr.bf16.mxu0 0
      %1676 = vmatpush1.bf16.msra.mxu0 0
      %1677 = vmatprep.subr.bf16.mxu0 0
      %1678 = vmatpush1.bf16.msra.mxu0 0
      %1679 = vmatprep.subr.bf16.mxu0 0
      %1680 = vmatpush1.bf16.msra.mxu0 0
      %1681 = vmatprep.subr.bf16.mxu0 0
      %1682 = vmatpush1.bf16.msra.mxu0 0
      %1683 = vmatprep.subr.bf16.mxu0 0
      %1684 = vmatpush1.bf16.msra.mxu0 0
      %1685 = vmatprep.subr.bf16.mxu0 0
      %1686 = vmatpush1.bf16.msra.mxu0 0
      %1687 = vmatprep.subr.bf16.mxu0 0
      %1688 = vmatpush1.bf16.msra.mxu0 0
      %1689 = vmatprep.subr.bf16.mxu0 0
      %1690 = vmatpush1.bf16.msra.mxu0 0
      %1691 = vmatprep.subr.bf16.mxu0 0
      %1692 = vmatpush1.bf16.msra.mxu0 0
      %1693 = vmatprep.mubr.bf16.mxu0 0
      %1694 = vmatmul.mubr.bf16.gmra.mrb[0].mxu0 %v1650
      %v1695 = vpop.f32.mrb[0].mxu0
      %v1696 = vadd.f32 0.0, %v1695
      %v1697 = vpop.f32.mrb[0].mxu0
      %v1698 = vadd.f32 0.0, %v1697
      %v1699 = vpop.f32.mrb[0].mxu0
      %v1700 = vpop.f32.mrb[0].mxu0
      %1701 = vdwg.mxu0
      %1702 = vmatprep.subr.bf16.mxu0 0
      %1703 = vmatpush1.bf16.msra.mxu0 %v1659
      %1704 = vmatprep.subr.bf16.mxu0 0
      %1705 = vmatpush1.bf16.msra.mxu0 0
      %1706 = vmatprep.subr.bf16.mxu0 0
      %1707 = vmatpush1.bf16.msra.mxu0 0
      %1708 = vmatprep.subr.bf16.mxu0 0
      %1709 = vmatpush1.bf16.msra.mxu0 0
      %1710 = vmatprep.subr.bf16.mxu0 0
      %1711 = vmatpush1.bf16.msra.mxu0 0
      %1712 = vmatprep.subr.bf16.mxu0 0
      %1713 = vmatpush1.bf16.msra.mxu0 0
      %1714 = vmatprep.subr.bf16.mxu0 0
      %1715 = vmatpush1.bf16.msra.mxu0 0
      %1716 = vmatprep.subr.bf16.mxu0 0
      %1717 = vmatpush1.bf16.msra.mxu0 0
      %1718 = vmatprep.subr.bf16.mxu0 0
      %1719 = vmatpush1.bf16.msra.mxu0 0
      %1720 = vmatprep.subr.bf16.mxu0 0
      %1721 = vmatpush1.bf16.msra.mxu0 0
      %1722 = vmatprep.subr.bf16.mxu0 0
      %1723 = vmatpush1.bf16.msra.mxu0 0
      %1724 = vmatprep.subr.bf16.mxu0 0
      %1725 = vmatpush1.bf16.msra.mxu0 0
      %1726 = vmatprep.subr.bf16.mxu0 0
      %1727 = vmatpush1.bf16.msra.mxu0 0
      %1728 = vmatprep.subr.bf16.mxu0 0
      %1729 = vmatpush1.bf16.msra.mxu0 0
      %1730 = vmatprep.subr.bf16.mxu0 0
      %1731 = vmatpush1.bf16.msra.mxu0 0
      %1732 = vmatprep.subr.bf16.mxu0 0
      %1733 = vmatpush1.bf16.msra.mxu0 0
      %1734 = vmatprep.mubr.bf16.mxu0 0
      %1735 = vmatmul.mubr.bf16.gmra.mrb[0].mxu0 %v1650
      %v1736 = vpop.f32.mrb[0].mxu0
      %v1737 = vadd.f32 0.0, %v1736
      %v1738 = vpop.f32.mrb[0].mxu0
      %v1739 = vpop.f32.mrb[0].mxu0
      %v1740 = vpop.f32.mrb[0].mxu0
      %1741 = vdwg.mxu0
      %v1742 = vadd.f32 %v1636, %v1696
      %v1743 = vadd.f32 %v1637, %v1698
      %v1744 = vadd.f32 %v1638, %v1737
      %s1745 = scalar_lea.vmem %s3, 24
      %v1746 = vld [vmem:[%s1745] sm:$0x3]
      %1747 = vrot.lane.b32.xlu0 %v453, 110
      %v1748 = vpop.permute.xlu0 %1747
      %1749 = vrot.lane.b32.xlu0 %v450, 110
      %v1750 = vpop.permute.xlu0 %1749
      %1751 = vrot.lane.b32.xlu0 %v455, 110
      %v1752 = vpop.permute.xlu0 %1751
      %v1753 = vsel %vm801, %v1748, %v1750
      %v1754 = vsel %vm801, %v1750, %v1752
      %v1756 = vsel %vm500, %v1746, 0
      %v1759 = vsel %vm504, %v1753, 0
      %v1762 = vsel %vm504, %v1754, 0
      %v1765 = vsel %vm504, %v1752, 0
      %1767 = vmatprep.subr.bf16.mxu0 %v1762
      %1768 = vmatpush1.bf16.msra.mxu0 %v1759
      %1769 = vmatprep.subr.bf16.mxu0 0
      %1770 = vmatpush1.bf16.msra.mxu0 0
      %1771 = vmatprep.subr.bf16.mxu0 0
      %1772 = vmatpush1.bf16.msra.mxu0 0
      %1773 = vmatprep.subr.bf16.mxu0 0
      %1774 = vmatpush1.bf16.msra.mxu0 0
      %1775 = vmatprep.subr.bf16.mxu0 0
      %1776 = vmatpush1.bf16.msra.mxu0 0
      %1777 = vmatprep.subr.bf16.mxu0 0
      %1778 = vmatpush1.bf16.msra.mxu0 0
      %1779 = vmatprep.subr.bf16.mxu0 0
      %1780 = vmatpush1.bf16.msra.mxu0 0
      %1781 = vmatprep.subr.bf16.mxu0 0
      %1782 = vmatpush1.bf16.msra.mxu0 0
      %1783 = vmatprep.subr.bf16.mxu0 0
      %1784 = vmatpush1.bf16.msra.mxu0 0
      %1785 = vmatprep.subr.bf16.mxu0 0
      %1786 = vmatpush1.bf16.msra.mxu0 0
      %1787 = vmatprep.subr.bf16.mxu0 0
      %1788 = vmatpush1.bf16.msra.mxu0 0
      %1789 = vmatprep.subr.bf16.mxu0 0
      %1790 = vmatpush1.bf16.msra.mxu0 0
      %1791 = vmatprep.subr.bf16.mxu0 0
      %1792 = vmatpush1.bf16.msra.mxu0 0
      %1793 = vmatprep.subr.bf16.mxu0 0
      %1794 = vmatpush1.bf16.msra.mxu0 0
      %1795 = vmatprep.subr.bf16.mxu0 0
      %1796 = vmatpush1.bf16.msra.mxu0 0
      %1797 = vmatprep.subr.bf16.mxu0 0
      %1798 = vmatpush1.bf16.msra.mxu0 0
      %1799 = vmatprep.mubr.bf16.mxu0 0
      %1800 = vmatmul.mubr.bf16.gmra.mrb[0].mxu0 %v1756
      %v1801 = vpop.f32.mrb[0].mxu0
      %v1802 = vadd.f32 0.0, %v1801
      %v1803 = vpop.f32.mrb[0].mxu0
      %v1804 = vadd.f32 0.0, %v1803
      %v1805 = vpop.f32.mrb[0].mxu0
      %v1806 = vpop.f32.mrb[0].mxu0
      %1807 = vdwg.mxu0
      %1808 = vmatprep.subr.bf16.mxu0 0
      %1809 = vmatpush1.bf16.msra.mxu0 %v1765
      %1810 = vmatprep.subr.bf16.mxu0 0
      %1811 = vmatpush1.bf16.msra.mxu0 0
      %1812 = vmatprep.subr.bf16.mxu0 0
      %1813 = vmatpush1.bf16.msra.mxu0 0
      %1814 = vmatprep.subr.bf16.mxu0 0
      %1815 = vmatpush1.bf16.msra.mxu0 0
      %1816 = vmatprep.subr.bf16.mxu0 0
      %1817 = vmatpush1.bf16.msra.mxu0 0
      %1818 = vmatprep.subr.bf16.mxu0 0
      %1819 = vmatpush1.bf16.msra.mxu0 0
      %1820 = vmatprep.subr.bf16.mxu0 0
      %1821 = vmatpush1.bf16.msra.mxu0 0
      %1822 = vmatprep.subr.bf16.mxu0 0
      %1823 = vmatpush1.bf16.msra.mxu0 0
      %1824 = vmatprep.subr.bf16.mxu0 0
      %1825 = vmatpush1.bf16.msra.mxu0 0
      %1826 = vmatprep.subr.bf16.mxu0 0
      %1827 = vmatpush1.bf16.msra.mxu0 0
      %1828 = vmatprep.subr.bf16.mxu0 0
      %1829 = vmatpush1.bf16.msra.mxu0 0
      %1830 = vmatprep.subr.bf16.mxu0 0
      %1831 = vmatpush1.bf16.msra.mxu0 0
      %1832 = vmatprep.subr.bf16.mxu0 0
      %1833 = vmatpush1.bf16.msra.mxu0 0
      %1834 = vmatprep.subr.bf16.mxu0 0
      %1835 = vmatpush1.bf16.msra.mxu0 0
      %1836 = vmatprep.subr.bf16.mxu0 0
      %1837 = vmatpush1.bf16.msra.mxu0 0
      %1838 = vmatprep.subr.bf16.mxu0 0
      %1839 = vmatpush1.bf16.msra.mxu0 0
      %1840 = vmatprep.mubr.bf16.mxu0 0
      %1841 = vmatmul.mubr.bf16.gmra.mrb[0].mxu0 %v1756
      %v1842 = vpop.f32.mrb[0].mxu0
      %v1843 = vadd.f32 0.0, %v1842
      %v1844 = vpop.f32.mrb[0].mxu0
      %v1845 = vpop.f32.mrb[0].mxu0
      %v1846 = vpop.f32.mrb[0].mxu0
      %1847 = vdwg.mxu0
      %v1848 = vadd.f32 %v1742, %v1802
      %v1849 = vadd.f32 %v1743, %v1804
      %v1850 = vadd.f32 %v1744, %v1843
      %s1851 = scalar_lea.vmem %s3, 26
      %v1852 = vld [vmem:[%s1851] sm:$0x3]
      %1853 = vrot.lane.b32.xlu0 %v453, 109
      %v1854 = vpop.permute.xlu0 %1853
      %1855 = vrot.lane.b32.xlu0 %v450, 109
      %v1856 = vpop.permute.xlu0 %1855
      %1857 = vrot.lane.b32.xlu0 %v455, 109
      %v1858 = vpop.permute.xlu0 %1857
      %v1859 = vsel %vm908, %v1854, %v1856
      %v1860 = vsel %vm908, %v1856, %v1858
      %v1862 = vsel %vm500, %v1852, 0
      %v1865 = vsel %vm504, %v1859, 0
      %v1868 = vsel %vm504, %v1860, 0
      %v1871 = vsel %vm504, %v1858, 0
      %1873 = vmatprep.subr.bf16.mxu0 %v1868
      %1874 = vmatpush1.bf16.msra.mxu0 %v1865
      %1875 = vmatprep.subr.bf16.mxu0 0
      %1876 = vmatpush1.bf16.msra.mxu0 0
      %1877 = vmatprep.subr.bf16.mxu0 0
      %1878 = vmatpush1.bf16.msra.mxu0 0
      %1879 = vmatprep.subr.bf16.mxu0 0
      %1880 = vmatpush1.bf16.msra.mxu0 0
      %1881 = vmatprep.subr.bf16.mxu0 0
      %1882 = vmatpush1.bf16.msra.mxu0 0
      %1883 = vmatprep.subr.bf16.mxu0 0
      %1884 = vmatpush1.bf16.msra.mxu0 0
      %1885 = vmatprep.subr.bf16.mxu0 0
      %1886 = vmatpush1.bf16.msra.mxu0 0
      %1887 = vmatprep.subr.bf16.mxu0 0
      %1888 = vmatpush1.bf16.msra.mxu0 0
      %1889 = vmatprep.subr.bf16.mxu0 0
      %1890 = vmatpush1.bf16.msra.mxu0 0
      %1891 = vmatprep.subr.bf16.mxu0 0
      %1892 = vmatpush1.bf16.msra.mxu0 0
      %1893 = vmatprep.subr.bf16.mxu0 0
      %1894 = vmatpush1.bf16.msra.mxu0 0
      %1895 = vmatprep.subr.bf16.mxu0 0
      %1896 = vmatpush1.bf16.msra.mxu0 0
      %1897 = vmatprep.subr.bf16.mxu0 0
      %1898 = vmatpush1.bf16.msra.mxu0 0
      %1899 = vmatprep.subr.bf16.mxu0 0
      %1900 = vmatpush1.bf16.msra.mxu0 0
      %1901 = vmatprep.subr.bf16.mxu0 0
      %1902 = vmatpush1.bf16.msra.mxu0 0
      %1903 = vmatprep.subr.bf16.mxu0 0
      %1904 = vmatpush1.bf16.msra.mxu0 0
      %1905 = vmatprep.mubr.bf16.mxu0 0
      %1906 = vmatmul.mubr.bf16.gmra.mrb[0].mxu0 %v1862
      %v1907 = vpop.f32.mrb[0].mxu0
      %v1908 = vadd.f32 0.0, %v1907
      %v1909 = vpop.f32.mrb[0].mxu0
      %v1910 = vadd.f32 0.0, %v1909
      %v1911 = vpop.f32.mrb[0].mxu0
      %v1912 = vpop.f32.mrb[0].mxu0
      %1913 = vdwg.mxu0
      %1914 = vmatprep.subr.bf16.mxu0 0
      %1915 = vmatpush1.bf16.msra.mxu0 %v1871
      %1916 = vmatprep.subr.bf16.mxu0 0
      %1917 = vmatpush1.bf16.msra.mxu0 0
      %1918 = vmatprep.subr.bf16.mxu0 0
      %1919 = vmatpush1.bf16.msra.mxu0 0
      %1920 = vmatprep.subr.bf16.mxu0 0
      %1921 = vmatpush1.bf16.msra.mxu0 0
      %1922 = vmatprep.subr.bf16.mxu0 0
      %1923 = vmatpush1.bf16.msra.mxu0 0
      %1924 = vmatprep.subr.bf16.mxu0 0
      %1925 = vmatpush1.bf16.msra.mxu0 0
      %1926 = vmatprep.subr.bf16.mxu0 0
      %1927 = vmatpush1.bf16.msra.mxu0 0
      %1928 = vmatprep.subr.bf16.mxu0 0
      %1929 = vmatpush1.bf16.msra.mxu0 0
      %1930 = vmatprep.subr.bf16.mxu0 0
      %1931 = vmatpush1.bf16.msra.mxu0 0
      %1932 = vmatprep.subr.bf16.mxu0 0
      %1933 = vmatpush1.bf16.msra.mxu0 0
      %1934 = vmatprep.subr.bf16.mxu0 0
      %1935 = vmatpush1.bf16.msra.mxu0 0
      %1936 = vmatprep.subr.bf16.mxu0 0
      %1937 = vmatpush1.bf16.msra.mxu0 0
      %1938 = vmatprep.subr.bf16.mxu0 0
      %1939 = vmatpush1.bf16.msra.mxu0 0
      %1940 = vmatprep.subr.bf16.mxu0 0
      %1941 = vmatpush1.bf16.msra.mxu0 0
      %1942 = vmatprep.subr.bf16.mxu0 0
      %1943 = vmatpush1.bf16.msra.mxu0 0
      %1944 = vmatprep.subr.bf16.mxu0 0
      %1945 = vmatpush1.bf16.msra.mxu0 0
      %1946 = vmatprep.mubr.bf16.mxu0 0
      %1947 = vmatmul.mubr.bf16.gmra.mrb[0].mxu0 %v1862
      %v1948 = vpop.f32.mrb[0].mxu0
      %v1949 = vadd.f32 0.0, %v1948
      %v1950 = vpop.f32.mrb[0].mxu0
      %v1951 = vpop.f32.mrb[0].mxu0
      %v1952 = vpop.f32.mrb[0].mxu0
      %1953 = vdwg.mxu0
      %v1954 = vadd.f32 %v1848, %v1908
      %v1955 = vadd.f32 %v1849, %v1910
      %v1956 = vadd.f32 %v1850, %v1949
      %s1957 = scalar_lea.vmem %s3, 28
      %v1958 = vld [vmem:[%s1957] sm:$0x3]
      %1959 = vrot.lane.b32.xlu0 %v453, 108
      %v1960 = vpop.permute.xlu0 %1959
      %1961 = vrot.lane.b32.xlu0 %v450, 108
      %v1962 = vpop.permute.xlu0 %1961
      %1963 = vrot.lane.b32.xlu0 %v455, 108
      %v1964 = vpop.permute.xlu0 %1963
      %v1965 = vsel %vm1015, %v1960, %v1962
      %v1966 = vsel %vm1015, %v1962, %v1964
      %v1968 = vsel %vm500, %v1958, 0
      %v1971 = vsel %vm504, %v1965, 0
      %v1974 = vsel %vm504, %v1966, 0
      %v1977 = vsel %vm504, %v1964, 0
      %1979 = vmatprep.subr.bf16.mxu0 %v1974
      %1980 = vmatpush1.bf16.msra.mxu0 %v1971
      %1981 = vmatprep.subr.bf16.mxu0 0
      %1982 = vmatpush1.bf16.msra.mxu0 0
      %1983 = vmatprep.subr.bf16.mxu0 0
      %1984 = vmatpush1.bf16.msra.mxu0 0
      %1985 = vmatprep.subr.bf16.mxu0 0
      %1986 = vmatpush1.bf16.msra.mxu0 0
      %1987 = vmatprep.subr.bf16.mxu0 0
      %1988 = vmatpush1.bf16.msra.mxu0 0
      %1989 = vmatprep.subr.bf16.mxu0 0
      %1990 = vmatpush1.bf16.msra.mxu0 0
      %1991 = vmatprep.subr.bf16.mxu0 0
      %1992 = vmatpush1.bf16.msra.mxu0 0
      %1993 = vmatprep.subr.bf16.mxu0 0
      %1994 = vmatpush1.bf16.msra.mxu0 0
      %1995 = vmatprep.subr.bf16.mxu0 0
      %1996 = vmatpush1.bf16.msra.mxu0 0
      %1997 = vmatprep.subr.bf16.mxu0 0
      %1998 = vmatpush1.bf16.msra.mxu0 0
      %1999 = vmatprep.subr.bf16.mxu0 0
      %2000 = vmatpush1.bf16.msra.mxu0 0
      %2001 = vmatprep.subr.bf16.mxu0 0
      %2002 = vmatpush1.bf16.msra.mxu0 0
      %2003 = vmatprep.subr.bf16.mxu0 0
      %2004 = vmatpush1.bf16.msra.mxu0 0
      %2005 = vmatprep.subr.bf16.mxu0 0
      %2006 = vmatpush1.bf16.msra.mxu0 0
      %2007 = vmatprep.subr.bf16.mxu0 0
      %2008 = vmatpush1.bf16.msra.mxu0 0
      %2009 = vmatprep.subr.bf16.mxu0 0
      %2010 = vmatpush1.bf16.msra.mxu0 0
      %2011 = vmatprep.mubr.bf16.mxu0 0
      %2012 = vmatmul.mubr.bf16.gmra.mrb[0].mxu0 %v1968
      %v2013 = vpop.f32.mrb[0].mxu0
      %v2014 = vadd.f32 0.0, %v2013
      %v2015 = vpop.f32.mrb[0].mxu0
      %v2016 = vadd.f32 0.0, %v2015
      %v2017 = vpop.f32.mrb[0].mxu0
      %v2018 = vpop.f32.mrb[0].mxu0
      %2019 = vdwg.mxu0
      %2020 = vmatprep.subr.bf16.mxu0 0
      %2021 = vmatpush1.bf16.msra.mxu0 %v1977
      %2022 = vmatprep.subr.bf16.mxu0 0
      %2023 = vmatpush1.bf16.msra.mxu0 0
      %2024 = vmatprep.subr.bf16.mxu0 0
      %2025 = vmatpush1.bf16.msra.mxu0 0
      %2026 = vmatprep.subr.bf16.mxu0 0
      %2027 = vmatpush1.bf16.msra.mxu0 0
      %2028 = vmatprep.subr.bf16.mxu0 0
      %2029 = vmatpush1.bf16.msra.mxu0 0
      %2030 = vmatprep.subr.bf16.mxu0 0
      %2031 = vmatpush1.bf16.msra.mxu0 0
      %2032 = vmatprep.subr.bf16.mxu0 0
      %2033 = vmatpush1.bf16.msra.mxu0 0
      %2034 = vmatprep.subr.bf16.mxu0 0
      %2035 = vmatpush1.bf16.msra.mxu0 0
      %2036 = vmatprep.subr.bf16.mxu0 0
      %2037 = vmatpush1.bf16.msra.mxu0 0
      %2038 = vmatprep.subr.bf16.mxu0 0
      %2039 = vmatpush1.bf16.msra.mxu0 0
      %2040 = vmatprep.subr.bf16.mxu0 0
      %2041 = vmatpush1.bf16.msra.mxu0 0
      %2042 = vmatprep.subr.bf16.mxu0 0
      %2043 = vmatpush1.bf16.msra.mxu0 0
      %2044 = vmatprep.subr.bf16.mxu0 0
      %2045 = vmatpush1.bf16.msra.mxu0 0
      %2046 = vmatprep.subr.bf16.mxu0 0
      %2047 = vmatpush1.bf16.msra.mxu0 0
      %2048 = vmatprep.subr.bf16.mxu0 0
      %2049 = vmatpush1.bf16.msra.mxu0 0
      %2050 = vmatprep.subr.bf16.mxu0 0
      %2051 = vmatpush1.bf16.msra.mxu0 0
      %2052 = vmatprep.mubr.bf16.mxu0 0
      %2053 = vmatmul.mubr.bf16.gmra.mrb[0].mxu0 %v1968
      %v2054 = vpop.f32.mrb[0].mxu0
      %v2055 = vadd.f32 0.0, %v2054
      %v2056 = vpop.f32.mrb[0].mxu0
      %v2057 = vpop.f32.mrb[0].mxu0
      %v2058 = vpop.f32.mrb[0].mxu0
      %2059 = vdwg.mxu0
      %v2060 = vadd.f32 %v1954, %v2014
      %v2061 = vadd.f32 %v1955, %v2016
      %v2062 = vadd.f32 %v1956, %v2055
      %s2063 = scalar_lea.vmem %s3, 30
      %v2064 = vld [vmem:[%s2063] sm:$0x3]
      %2065 = vrot.lane.b32.xlu0 %v453, 92
      %v2066 = vpop.permute.xlu0 %2065
      %2067 = vrot.lane.b32.xlu0 %v450, 92
      %v2068 = vpop.permute.xlu0 %2067
      %2069 = vrot.lane.b32.xlu0 %v455, 92
      %v2070 = vpop.permute.xlu0 %2069
      %v2071 = vsel %vm1122, %v2066, %v2068
      %v2072 = vsel %vm1122, %v2068, %v2070
      %v2074 = vsel %vm500, %v2064, 0
      %v2077 = vsel %vm504, %v2071, 0
      %v2080 = vsel %vm504, %v2072, 0
      %v2083 = vsel %vm504, %v2070, 0
      %2085 = vmatprep.subr.bf16.mxu0 %v2080
      %2086 = vmatpush1.bf16.msra.mxu0 %v2077
      %2087 = vmatprep.subr.bf16.mxu0 0
      %2088 = vmatpush1.bf16.msra.mxu0 0
      %2089 = vmatprep.subr.bf16.mxu0 0
      %2090 = vmatpush1.bf16.msra.mxu0 0
      %2091 = vmatprep.subr.bf16.mxu0 0
      %2092 = vmatpush1.bf16.msra.mxu0 0
      %2093 = vmatprep.subr.bf16.mxu0 0
      %2094 = vmatpush1.bf16.msra.mxu0 0
      %2095 = vmatprep.subr.bf16.mxu0 0
      %2096 = vmatpush1.bf16.msra.mxu0 0
      %2097 = vmatprep.subr.bf16.mxu0 0
      %2098 = vmatpush1.bf16.msra.mxu0 0
      %2099 = vmatprep.subr.bf16.mxu0 0
      %2100 = vmatpush1.bf16.msra.mxu0 0
      %2101 = vmatprep.subr.bf16.mxu0 0
      %2102 = vmatpush1.bf16.msra.mxu0 0
      %2103 = vmatprep.subr.bf16.mxu0 0
      %2104 = vmatpush1.bf16.msra.mxu0 0
      %2105 = vmatprep.subr.bf16.mxu0 0
      %2106 = vmatpush1.bf16.msra.mxu0 0
      %2107 = vmatprep.subr.bf16.mxu0 0
      %2108 = vmatpush1.bf16.msra.mxu0 0
      %2109 = vmatprep.subr.bf16.mxu0 0
      %2110 = vmatpush1.bf16.msra.mxu0 0
      %2111 = vmatprep.subr.bf16.mxu0 0
      %2112 = vmatpush1.bf16.msra.mxu0 0
      %2113 = vmatprep.subr.bf16.mxu0 0
      %2114 = vmatpush1.bf16.msra.mxu0 0
      %2115 = vmatprep.subr.bf16.mxu0 0
      %2116 = vmatpush1.bf16.msra.mxu0 0
      %2117 = vmatprep.mubr.bf16.mxu0 0
      %2118 = vmatmul.mubr.bf16.gmra.mrb[0].mxu0 %v2074
      %v2119 = vpop.f32.mrb[0].mxu0
      %v2120 = vadd.f32 0.0, %v2119
      %v2121 = vpop.f32.mrb[0].mxu0
      %v2122 = vadd.f32 0.0, %v2121
      %v2123 = vpop.f32.mrb[0].mxu0
      %v2124 = vpop.f32.mrb[0].mxu0
      %2125 = vdwg.mxu0
      %2126 = vmatprep.subr.bf16.mxu0 0
      %2127 = vmatpush1.bf16.msra.mxu0 %v2083
      %2128 = vmatprep.subr.bf16.mxu0 0
      %2129 = vmatpush1.bf16.msra.mxu0 0
      %2130 = vmatprep.subr.bf16.mxu0 0
      %2131 = vmatpush1.bf16.msra.mxu0 0
      %2132 = vmatprep.subr.bf16.mxu0 0
      %2133 = vmatpush1.bf16.msra.mxu0 0
      %2134 = vmatprep.subr.bf16.mxu0 0
      %2135 = vmatpush1.bf16.msra.mxu0 0
      %2136 = vmatprep.subr.bf16.mxu0 0
      %2137 = vmatpush1.bf16.msra.mxu0 0
      %2138 = vmatprep.subr.bf16.mxu0 0
      %2139 = vmatpush1.bf16.msra.mxu0 0
      %2140 = vmatprep.subr.bf16.mxu0 0
      %2141 = vmatpush1.bf16.msra.mxu0 0
      %2142 = vmatprep.subr.bf16.mxu0 0
      %2143 = vmatpush1.bf16.msra.mxu0 0
      %2144 = vmatprep.subr.bf16.mxu0 0
      %2145 = vmatpush1.bf16.msra.mxu0 0
      %2146 = vmatprep.subr.bf16.mxu0 0
      %2147 = vmatpush1.bf16.msra.mxu0 0
      %2148 = vmatprep.subr.bf16.mxu0 0
      %2149 = vmatpush1.bf16.msra.mxu0 0
      %2150 = vmatprep.subr.bf16.mxu0 0
      %2151 = vmatpush1.bf16.msra.mxu0 0
      %2152 = vmatprep.subr.bf16.mxu0 0
      %2153 = vmatpush1.bf16.msra.mxu0 0
      %2154 = vmatprep.subr.bf16.mxu0 0
      %2155 = vmatpush1.bf16.msra.mxu0 0
      %2156 = vmatprep.subr.bf16.mxu0 0
      %2157 = vmatpush1.bf16.msra.mxu0 0
      %2158 = vmatprep.mubr.bf16.mxu0 0
      %2159 = vmatmul.mubr.bf16.gmra.mrb[0].mxu0 %v2074
      %v2160 = vpop.f32.mrb[0].mxu0
      %v2161 = vadd.f32 0.0, %v2160
      %v2162 = vpop.f32.mrb[0].mxu0
      %v2163 = vpop.f32.mrb[0].mxu0
      %v2164 = vpop.f32.mrb[0].mxu0
      %2165 = vdwg.mxu0
      %v2166 = vadd.f32 %v2060, %v2120
      %v2167 = vadd.f32 %v2061, %v2122
      %v2168 = vadd.f32 %v2062, %v2161
      %s2169 = scalar_lea.vmem %s3, 32
      %v2170 = vld [vmem:[%s2169] sm:$0x3]
      %2171 = vrot.lane.b32.xlu0 %v453, 91
      %v2172 = vpop.permute.xlu0 %2171
      %2173 = vrot.lane.b32.xlu0 %v450, 91
      %v2174 = vpop.permute.xlu0 %2173
      %2175 = vrot.lane.b32.xlu0 %v455, 91
      %v2176 = vpop.permute.xlu0 %2175
      %v2177 = vsel %vm1229, %v2172, %v2174
      %v2178 = vsel %vm1229, %v2174, %v2176
      %v2180 = vsel %vm500, %v2170, 0
      %v2183 = vsel %vm504, %v2177, 0
      %v2186 = vsel %vm504, %v2178, 0
      %v2189 = vsel %vm504, %v2176, 0
      %2191 = vmatprep.subr.bf16.mxu0 %v2186
      %2192 = vmatpush1.bf16.msra.mxu0 %v2183
      %2193 = vmatprep.subr.bf16.mxu0 0
      %2194 = vmatpush1.bf16.msra.mxu0 0
      %2195 = vmatprep.subr.bf16.mxu0 0
      %2196 = vmatpush1.bf16.msra.mxu0 0
      %2197 = vmatprep.subr.bf16.mxu0 0
      %2198 = vmatpush1.bf16.msra.mxu0 0
      %2199 = vmatprep.subr.bf16.mxu0 0
      %2200 = vmatpush1.bf16.msra.mxu0 0
      %2201 = vmatprep.subr.bf16.mxu0 0
      %2202 = vmatpush1.bf16.msra.mxu0 0
      %2203 = vmatprep.subr.bf16.mxu0 0
      %2204 = vmatpush1.bf16.msra.mxu0 0
      %2205 = vmatprep.subr.bf16.mxu0 0
      %2206 = vmatpush1.bf16.msra.mxu0 0
      %2207 = vmatprep.subr.bf16.mxu0 0
      %2208 = vmatpush1.bf16.msra.mxu0 0
      %2209 = vmatprep.subr.bf16.mxu0 0
      %2210 = vmatpush1.bf16.msra.mxu0 0
      %2211 = vmatprep.subr.bf16.mxu0 0
      %2212 = vmatpush1.bf16.msra.mxu0 0
      %2213 = vmatprep.subr.bf16.mxu0 0
      %2214 = vmatpush1.bf16.msra.mxu0 0
      %2215 = vmatprep.subr.bf16.mxu0 0
      %2216 = vmatpush1.bf16.msra.mxu0 0
      %2217 = vmatprep.subr.bf16.mxu0 0
      %2218 = vmatpush1.bf16.msra.mxu0 0
      %2219 = vmatprep.subr.bf16.mxu0 0
      %2220 = vmatpush1.bf16.msra.mxu0 0
      %2221 = vmatprep.subr.bf16.mxu0 0
      %2222 = vmatpush1.bf16.msra.mxu0 0
      %2223 = vmatprep.mubr.bf16.mxu0 0
      %2224 = vmatmul.mubr.bf16.gmra.mrb[0].mxu0 %v2180
      %v2225 = vpop.f32.mrb[0].mxu0
      %v2226 = vadd.f32 0.0, %v2225
      %v2227 = vpop.f32.mrb[0].mxu0
      %v2228 = vadd.f32 0.0, %v2227
      %v2229 = vpop.f32.mrb[0].mxu0
      %v2230 = vpop.f32.mrb[0].mxu0
      %2231 = vdwg.mxu0
      %2232 = vmatprep.subr.bf16.mxu0 0
      %2233 = vmatpush1.bf16.msra.mxu0 %v2189
      %2234 = vmatprep.subr.bf16.mxu0 0
      %2235 = vmatpush1.bf16.msra.mxu0 0
      %2236 = vmatprep.subr.bf16.mxu0 0
      %2237 = vmatpush1.bf16.msra.mxu0 0
      %2238 = vmatprep.subr.bf16.mxu0 0
      %2239 = vmatpush1.bf16.msra.mxu0 0
      %2240 = vmatprep.subr.bf16.mxu0 0
      %2241 = vmatpush1.bf16.msra.mxu0 0
      %2242 = vmatprep.subr.bf16.mxu0 0
      %2243 = vmatpush1.bf16.msra.mxu0 0
      %2244 = vmatprep.subr.bf16.mxu0 0
      %2245 = vmatpush1.bf16.msra.mxu0 0
      %2246 = vmatprep.subr.bf16.mxu0 0
      %2247 = vmatpush1.bf16.msra.mxu0 0
      %2248 = vmatprep.subr.bf16.mxu0 0
      %2249 = vmatpush1.bf16.msra.mxu0 0
      %2250 = vmatprep.subr.bf16.mxu0 0
      %2251 = vmatpush1.bf16.msra.mxu0 0
      %2252 = vmatprep.subr.bf16.mxu0 0
      %2253 = vmatpush1.bf16.msra.mxu0 0
      %2254 = vmatprep.subr.bf16.mxu0 0
      %2255 = vmatpush1.bf16.msra.mxu0 0
      %2256 = vmatprep.subr.bf16.mxu0 0
      %2257 = vmatpush1.bf16.msra.mxu0 0
      %2258 = vmatprep.subr.bf16.mxu0 0
      %2259 = vmatpush1.bf16.msra.mxu0 0
      %2260 = vmatprep.subr.bf16.mxu0 0
      %2261 = vmatpush1.bf16.msra.mxu0 0
      %2262 = vmatprep.subr.bf16.mxu0 0
      %2263 = vmatpush1.bf16.msra.mxu0 0
      %2264 = vmatprep.mubr.bf16.mxu0 0
      %2265 = vmatmul.mubr.bf16.gmra.mrb[0].mxu0 %v2180
      %v2266 = vpop.f32.mrb[0].mxu0
      %v2267 = vadd.f32 0.0, %v2266
      %v2268 = vpop.f32.mrb[0].mxu0
      %v2269 = vpop.f32.mrb[0].mxu0
      %v2270 = vpop.f32.mrb[0].mxu0
      %2271 = vdwg.mxu0
      %v2272 = vadd.f32 %v2166, %v2226
      %v2273 = vadd.f32 %v2167, %v2228
      %v2274 = vadd.f32 %v2168, %v2267
      %s2275 = scalar_lea.vmem %s3, 34
      %v2276 = vld [vmem:[%s2275] sm:$0x3]
      %2277 = vrot.lane.b32.xlu0 %v453, 90
      %v2278 = vpop.permute.xlu0 %2277
      %2279 = vrot.lane.b32.xlu0 %v450, 90
      %v2280 = vpop.permute.xlu0 %2279
      %2281 = vrot.lane.b32.xlu0 %v455, 90
      %v2282 = vpop.permute.xlu0 %2281
      %v2283 = vsel %vm1336, %v2278, %v2280
      %v2284 = vsel %vm1336, %v2280, %v2282
      %v2286 = vsel %vm500, %v2276, 0
      %v2289 = vsel %vm504, %v2283, 0
      %v2292 = vsel %vm504, %v2284, 0
      %v2295 = vsel %vm504, %v2282, 0
      %2297 = vmatprep.subr.bf16.mxu0 %v2292
      %2298 = vmatpush1.bf16.msra.mxu0 %v2289
      %2299 = vmatprep.subr.bf16.mxu0 0
      %2300 = vmatpush1.bf16.msra.mxu0 0
      %2301 = vmatprep.subr.bf16.mxu0 0
      %2302 = vmatpush1.bf16.msra.mxu0 0
      %2303 = vmatprep.subr.bf16.mxu0 0
      %2304 = vmatpush1.bf16.msra.mxu0 0
      %2305 = vmatprep.subr.bf16.mxu0 0
      %2306 = vmatpush1.bf16.msra.mxu0 0
      %2307 = vmatprep.subr.bf16.mxu0 0
      %2308 = vmatpush1.bf16.msra.mxu0 0
      %2309 = vmatprep.subr.bf16.mxu0 0
      %2310 = vmatpush1.bf16.msra.mxu0 0
      %2311 = vmatprep.subr.bf16.mxu0 0
      %2312 = vmatpush1.bf16.msra.mxu0 0
      %2313 = vmatprep.subr.bf16.mxu0 0
      %2314 = vmatpush1.bf16.msra.mxu0 0
      %2315 = vmatprep.subr.bf16.mxu0 0
      %2316 = vmatpush1.bf16.msra.mxu0 0
      %2317 = vmatprep.subr.bf16.mxu0 0
      %2318 = vmatpush1.bf16.msra.mxu0 0
      %2319 = vmatprep.subr.bf16.mxu0 0
      %2320 = vmatpush1.bf16.msra.mxu0 0
      %2321 = vmatprep.subr.bf16.mxu0 0
      %2322 = vmatpush1.bf16.msra.mxu0 0
      %2323 = vmatprep.subr.bf16.mxu0 0
      %2324 = vmatpush1.bf16.msra.mxu0 0
      %2325 = vmatprep.subr.bf16.mxu0 0
      %2326 = vmatpush1.bf16.msra.mxu0 0
      %2327 = vmatprep.subr.bf16.mxu0 0
      %2328 = vmatpush1.bf16.msra.mxu0 0
      %2329 = vmatprep.mubr.bf16.mxu0 0
      %2330 = vmatmul.mubr.bf16.gmra.mrb[0].mxu0 %v2286
      %v2331 = vpop.f32.mrb[0].mxu0
      %v2332 = vadd.f32 0.0, %v2331
      %v2333 = vpop.f32.mrb[0].mxu0
      %v2334 = vadd.f32 0.0, %v2333
      %v2335 = vpop.f32.mrb[0].mxu0
      %v2336 = vpop.f32.mrb[0].mxu0
      %2337 = vdwg.mxu0
      %2338 = vmatprep.subr.bf16.mxu0 0
      %2339 = vmatpush1.bf16.msra.mxu0 %v2295
      %2340 = vmatprep.subr.bf16.mxu0 0
      %2341 = vmatpush1.bf16.msra.mxu0 0
      %2342 = vmatprep.subr.bf16.mxu0 0
      %2343 = vmatpush1.bf16.msra.mxu0 0
      %2344 = vmatprep.subr.bf16.mxu0 0
      %2345 = vmatpush1.bf16.msra.mxu0 0
      %2346 = vmatprep.subr.bf16.mxu0 0
      %2347 = vmatpush1.bf16.msra.mxu0 0
      %2348 = vmatprep.subr.bf16.mxu0 0
      %2349 = vmatpush1.bf16.msra.mxu0 0
      %2350 = vmatprep.subr.bf16.mxu0 0
      %2351 = vmatpush1.bf16.msra.mxu0 0
      %2352 = vmatprep.subr.bf16.mxu0 0
      %2353 = vmatpush1.bf16.msra.mxu0 0
      %2354 = vmatprep.subr.bf16.mxu0 0
      %2355 = vmatpush1.bf16.msra.mxu0 0
      %2356 = vmatprep.subr.bf16.mxu0 0
      %2357 = vmatpush1.bf16.msra.mxu0 0
      %2358 = vmatprep.subr.bf16.mxu0 0
      %2359 = vmatpush1.bf16.msra.mxu0 0
      %2360 = vmatprep.subr.bf16.mxu0 0
      %2361 = vmatpush1.bf16.msra.mxu0 0
      %2362 = vmatprep.subr.bf16.mxu0 0
      %2363 = vmatpush1.bf16.msra.mxu0 0
      %2364 = vmatprep.subr.bf16.mxu0 0
      %2365 = vmatpush1.bf16.msra.mxu0 0
      %2366 = vmatprep.subr.bf16.mxu0 0
      %2367 = vmatpush1.bf16.msra.mxu0 0
      %2368 = vmatprep.subr.bf16.mxu0 0
      %2369 = vmatpush1.bf16.msra.mxu0 0
      %2370 = vmatprep.mubr.bf16.mxu0 0
      %2371 = vmatmul.mubr.bf16.gmra.mrb[0].mxu0 %v2286
      %v2372 = vpop.f32.mrb[0].mxu0
      %v2373 = vadd.f32 0.0, %v2372
      %v2374 = vpop.f32.mrb[0].mxu0
      %v2375 = vpop.f32.mrb[0].mxu0
      %v2376 = vpop.f32.mrb[0].mxu0
      %2377 = vdwg.mxu0
      %v2378 = vadd.f32 %v2272, %v2332
      %v2379 = vadd.f32 %v2273, %v2334
      %v2380 = vadd.f32 %v2274, %v2373
      %s2381 = scalar_lea.vmem %s3, 36
      %v2382 = vld [vmem:[%s2381] sm:$0x3]
      %v2384 = vsel %vm500, %v2382, 0
      %v2386 = vsel %vm504, %v483, 0
      %v2389 = vsel %vm504, %v480, 0
      %v2391 = vsel %vm504, %v485, 0
      %2393 = vmatprep.subr.bf16.mxu0 %v2389
      %2394 = vmatpush1.bf16.msra.mxu0 %v2386
      %2395 = vmatprep.subr.bf16.mxu0 0
      %2396 = vmatpush1.bf16.msra.mxu0 0
      %2397 = vmatprep.subr.bf16.mxu0 0
      %2398 = vmatpush1.bf16.msra.mxu0 0
      %2399 = vmatprep.subr.bf16.mxu0 0
      %2400 = vmatpush1.bf16.msra.mxu0 0
      %2401 = vmatprep.subr.bf16.mxu0 0
      %2402 = vmatpush1.bf16.msra.mxu0 0
      %2403 = vmatprep.subr.bf16.mxu0 0
      %2404 = vmatpush1.bf16.msra.mxu0 0
      %2405 = vmatprep.subr.bf16.mxu0 0
      %2406 = vmatpush1.bf16.msra.mxu0 0
      %2407 = vmatprep.subr.bf16.mxu0 0
      %2408 = vmatpush1.bf16.msra.mxu0 0
      %2409 = vmatprep.subr.bf16.mxu0 0
      %2410 = vmatpush1.bf16.msra.mxu0 0
      %2411 = vmatprep.subr.bf16.mxu0 0
      %2412 = vmatpush1.bf16.msra.mxu0 0
      %2413 = vmatprep.subr.bf16.mxu0 0
      %2414 = vmatpush1.bf16.msra.mxu0 0
      %2415 = vmatprep.subr.bf16.mxu0 0
      %2416 = vmatpush1.bf16.msra.mxu0 0
      %2417 = vmatprep.subr.bf16.mxu0 0
      %2418 = vmatpush1.bf16.msra.mxu0 0
      %2419 = vmatprep.subr.bf16.mxu0 0
      %2420 = vmatpush1.bf16.msra.mxu0 0
      %2421 = vmatprep.subr.bf16.mxu0 0
      %2422 = vmatpush1.bf16.msra.mxu0 0
      %2423 = vmatprep.subr.bf16.mxu0 0
      %2424 = vmatpush1.bf16.msra.mxu0 0
      %2425 = vmatprep.mubr.bf16.mxu0 0
      %2426 = vmatmul.mubr.bf16.gmra.mrb[0].mxu0 %v2384
      %v2427 = vpop.f32.mrb[0].mxu0
      %v2428 = vadd.f32 0.0, %v2427
      %v2429 = vpop.f32.mrb[0].mxu0
      %v2430 = vadd.f32 0.0, %v2429
      %v2431 = vpop.f32.mrb[0].mxu0
      %v2432 = vpop.f32.mrb[0].mxu0
      %2433 = vdwg.mxu0
      %2434 = vmatprep.subr.bf16.mxu0 0
      %2435 = vmatpush1.bf16.msra.mxu0 %v2391
      %2436 = vmatprep.subr.bf16.mxu0 0
      %2437 = vmatpush1.bf16.msra.mxu0 0
      %2438 = vmatprep.subr.bf16.mxu0 0
      %2439 = vmatpush1.bf16.msra.mxu0 0
      %2440 = vmatprep.subr.bf16.mxu0 0
      %2441 = vmatpush1.bf16.msra.mxu0 0
      %2442 = vmatprep.subr.bf16.mxu0 0
      %2443 = vmatpush1.bf16.msra.mxu0 0
      %2444 = vmatprep.subr.bf16.mxu0 0
      %2445 = vmatpush1.bf16.msra.mxu0 0
      %2446 = vmatprep.subr.bf16.mxu0 0
      %2447 = vmatpush1.bf16.msra.mxu0 0
      %2448 = vmatprep.subr.bf16.mxu0 0
      %2449 = vmatpush1.bf16.msra.mxu0 0
      %2450 = vmatprep.subr.bf16.mxu0 0
      %2451 = vmatpush1.bf16.msra.mxu0 0
      %2452 = vmatprep.subr.bf16.mxu0 0
      %2453 = vmatpush1.bf16.msra.mxu0 0
      %2454 = vmatprep.subr.bf16.mxu0 0
      %2455 = vmatpush1.bf16.msra.mxu0 0
      %2456 = vmatprep.subr.bf16.mxu0 0
      %2457 = vmatpush1.bf16.msra.mxu0 0
      %2458 = vmatprep.subr.bf16.mxu0 0
      %2459 = vmatpush1.bf16.msra.mxu0 0
      %2460 = vmatprep.subr.bf16.mxu0 0
      %2461 = vmatpush1.bf16.msra.mxu0 0
      %2462 = vmatprep.subr.bf16.mxu0 0
      %2463 = vmatpush1.bf16.msra.mxu0 0
      %2464 = vmatprep.subr.bf16.mxu0 0
      %2465 = vmatpush1.bf16.msra.mxu0 0
      %2466 = vmatprep.mubr.bf16.mxu0 0
      %2467 = vmatmul.mubr.bf16.gmra.mrb[0].mxu0 %v2384
      %v2468 = vpop.f32.mrb[0].mxu0
      %v2469 = vadd.f32 0.0, %v2468
      %v2470 = vpop.f32.mrb[0].mxu0
      %v2471 = vpop.f32.mrb[0].mxu0
      %v2472 = vpop.f32.mrb[0].mxu0
      %2473 = vdwg.mxu0
      %v2474 = vadd.f32 %v2378, %v2428
      %v2475 = vadd.f32 %v2379, %v2430
      %v2476 = vadd.f32 %v2380, %v2469
      %s2477 = scalar_lea.vmem %s3, 38
      %v2478 = vld [vmem:[%s2477] sm:$0x3]
      %2481 = vrot.lane.b32.xlu0 %v483, 127
      %v2482 = vpop.permute.xlu0 %2481
      %2483 = vrot.lane.b32.xlu0 %v480, 127
      %v2484 = vpop.permute.xlu0 %2483
      %2485 = vrot.lane.b32.xlu0 %v485, 127
      %v2486 = vpop.permute.xlu0 %2485
      %v2487 = vsel %vm497, %v2482, %v2484
      %v2488 = vsel %vm497, %v2484, %v2486
      %v2490 = vsel %vm500, %v2478, 0
      %v2493 = vsel %vm504, %v2487, 0
      %v2496 = vsel %vm504, %v2488, 0
      %v2499 = vsel %vm504, %v2486, 0
      %2501 = vmatprep.subr.bf16.mxu0 %v2496
      %2502 = vmatpush1.bf16.msra.mxu0 %v2493
      %2503 = vmatprep.subr.bf16.mxu0 0
      %2504 = vmatpush1.bf16.msra.mxu0 0
      %2505 = vmatprep.subr.bf16.mxu0 0
      %2506 = vmatpush1.bf16.msra.mxu0 0
      %2507 = vmatprep.subr.bf16.mxu0 0
      %2508 = vmatpush1.bf16.msra.mxu0 0
      %2509 = vmatprep.subr.bf16.mxu0 0
      %2510 = vmatpush1.bf16.msra.mxu0 0
      %2511 = vmatprep.subr.bf16.mxu0 0
      %2512 = vmatpush1.bf16.msra.mxu0 0
      %2513 = vmatprep.subr.bf16.mxu0 0
      %2514 = vmatpush1.bf16.msra.mxu0 0
      %2515 = vmatprep.subr.bf16.mxu0 0
      %2516 = vmatpush1.bf16.msra.mxu0 0
      %2517 = vmatprep.subr.bf16.mxu0 0
      %2518 = vmatpush1.bf16.msra.mxu0 0
      %2519 = vmatprep.subr.bf16.mxu0 0
      %2520 = vmatpush1.bf16.msra.mxu0 0
      %2521 = vmatprep.subr.bf16.mxu0 0
      %2522 = vmatpush1.bf16.msra.mxu0 0
      %2523 = vmatprep.subr.bf16.mxu0 0
      %2524 = vmatpush1.bf16.msra.mxu0 0
      %2525 = vmatprep.subr.bf16.mxu0 0
      %2526 = vmatpush1.bf16.msra.mxu0 0
      %2527 = vmatprep.subr.bf16.mxu0 0
      %2528 = vmatpush1.bf16.msra.mxu0 0
      %2529 = vmatprep.subr.bf16.mxu0 0
      %2530 = vmatpush1.bf16.msra.mxu0 0
      %2531 = vmatprep.subr.bf16.mxu0 0
      %2532 = vmatpush1.bf16.msra.mxu0 0
      %2533 = vmatprep.mubr.bf16.mxu0 0
      %2534 = vmatmul.mubr.bf16.gmra.mrb[0].mxu0 %v2490
      %v2535 = vpop.f32.mrb[0].mxu0
      %v2536 = vadd.f32 0.0, %v2535
      %v2537 = vpop.f32.mrb[0].mxu0
      %v2538 = vadd.f32 0.0, %v2537
      %v2539 = vpop.f32.mrb[0].mxu0
      %v2540 = vpop.f32.mrb[0].mxu0
      %2541 = vdwg.mxu0
      %2542 = vmatprep.subr.bf16.mxu0 0
      %2543 = vmatpush1.bf16.msra.mxu0 %v2499
      %2544 = vmatprep.subr.bf16.mxu0 0
      %2545 = vmatpush1.bf16.msra.mxu0 0
      %2546 = vmatprep.subr.bf16.mxu0 0
      %2547 = vmatpush1.bf16.msra.mxu0 0
      %2548 = vmatprep.subr.bf16.mxu0 0
      %2549 = vmatpush1.bf16.msra.mxu0 0
      %2550 = vmatprep.subr.bf16.mxu0 0
      %2551 = vmatpush1.bf16.msra.mxu0 0
      %2552 = vmatprep.subr.bf16.mxu0 0
      %2553 = vmatpush1.bf16.msra.mxu0 0
      %2554 = vmatprep.subr.bf16.mxu0 0
      %2555 = vmatpush1.bf16.msra.mxu0 0
      %2556 = vmatprep.subr.bf16.mxu0 0
      %2557 = vmatpush1.bf16.msra.mxu0 0
      %2558 = vmatprep.subr.bf16.mxu0 0
      %2559 = vmatpush1.bf16.msra.mxu0 0
      %2560 = vmatprep.subr.bf16.mxu0 0
      %2561 = vmatpush1.bf16.msra.mxu0 0
      %2562 = vmatprep.subr.bf16.mxu0 0
      %2563 = vmatpush1.bf16.msra.mxu0 0
      %2564 = vmatprep.subr.bf16.mxu0 0
      %2565 = vmatpush1.bf16.msra.mxu0 0
      %2566 = vmatprep.subr.bf16.mxu0 0
      %2567 = vmatpush1.bf16.msra.mxu0 0
      %2568 = vmatprep.subr.bf16.mxu0 0
      %2569 = vmatpush1.bf16.msra.mxu0 0
      %2570 = vmatprep.subr.bf16.mxu0 0
      %2571 = vmatpush1.bf16.msra.mxu0 0
      %2572 = vmatprep.subr.bf16.mxu0 0
      %2573 = vmatpush1.bf16.msra.mxu0 0
      %2574 = vmatprep.mubr.bf16.mxu0 0
      %2575 = vmatmul.mubr.bf16.gmra.mrb[0].mxu0 %v2490
      %v2576 = vpop.f32.mrb[0].mxu0
      %v2577 = vadd.f32 0.0, %v2576
      %v2578 = vpop.f32.mrb[0].mxu0
      %v2579 = vpop.f32.mrb[0].mxu0
      %v2580 = vpop.f32.mrb[0].mxu0
      %2581 = vdwg.mxu0
      %v2582 = vadd.f32 %v2474, %v2536
      %v2583 = vadd.f32 %v2475, %v2538
      %v2584 = vadd.f32 %v2476, %v2577
      %s2585 = scalar_lea.vmem %s3, 40
      %v2586 = vld [vmem:[%s2585] sm:$0x3]
      %2587 = vrot.lane.b32.xlu0 %v483, 126
      %v2588 = vpop.permute.xlu0 %2587
      %2589 = vrot.lane.b32.xlu0 %v480, 126
      %v2590 = vpop.permute.xlu0 %2589
      %2591 = vrot.lane.b32.xlu0 %v485, 126
      %v2592 = vpop.permute.xlu0 %2591
      %v2593 = vsel %vm694, %v2588, %v2590
      %v2594 = vsel %vm694, %v2590, %v2592
      %v2596 = vsel %vm500, %v2586, 0
      %v2599 = vsel %vm504, %v2593, 0
      %v2602 = vsel %vm504, %v2594, 0
      %v2605 = vsel %vm504, %v2592, 0
      %2607 = vmatprep.subr.bf16.mxu0 %v2602
      %2608 = vmatpush1.bf16.msra.mxu0 %v2599
      %2609 = vmatprep.subr.bf16.mxu0 0
      %2610 = vmatpush1.bf16.msra.mxu0 0
      %2611 = vmatprep.subr.bf16.mxu0 0
      %2612 = vmatpush1.bf16.msra.mxu0 0
      %2613 = vmatprep.subr.bf16.mxu0 0
      %2614 = vmatpush1.bf16.msra.mxu0 0
      %2615 = vmatprep.subr.bf16.mxu0 0
      %2616 = vmatpush1.bf16.msra.mxu0 0
      %2617 = vmatprep.subr.bf16.mxu0 0
      %2618 = vmatpush1.bf16.msra.mxu0 0
      %2619 = vmatprep.subr.bf16.mxu0 0
      %2620 = vmatpush1.bf16.msra.mxu0 0
      %2621 = vmatprep.subr.bf16.mxu0 0
      %2622 = vmatpush1.bf16.msra.mxu0 0
      %2623 = vmatprep.subr.bf16.mxu0 0
      %2624 = vmatpush1.bf16.msra.mxu0 0
      %2625 = vmatprep.subr.bf16.mxu0 0
      %2626 = vmatpush1.bf16.msra.mxu0 0
      %2627 = vmatprep.subr.bf16.mxu0 0
      %2628 = vmatpush1.bf16.msra.mxu0 0
      %2629 = vmatprep.subr.bf16.mxu0 0
      %2630 = vmatpush1.bf16.msra.mxu0 0
      %2631 = vmatprep.subr.bf16.mxu0 0
      %2632 = vmatpush1.bf16.msra.mxu0 0
      %2633 = vmatprep.subr.bf16.mxu0 0
      %2634 = vmatpush1.bf16.msra.mxu0 0
      %2635 = vmatprep.subr.bf16.mxu0 0
      %2636 = vmatpush1.bf16.msra.mxu0 0
      %2637 = vmatprep.subr.bf16.mxu0 0
      %2638 = vmatpush1.bf16.msra.mxu0 0
      %2639 = vmatprep.mubr.bf16.mxu0 0
      %2640 = vmatmul.mubr.bf16.gmra.mrb[0].mxu0 %v2596
      %v2641 = vpop.f32.mrb[0].mxu0
      %v2642 = vadd.f32 0.0, %v2641
      %v2643 = vpop.f32.mrb[0].mxu0
      %v2644 = vadd.f32 0.0, %v2643
      %v2645 = vpop.f32.mrb[0].mxu0
      %v2646 = vpop.f32.mrb[0].mxu0
      %2647 = vdwg.mxu0
      %2648 = vmatprep.subr.bf16.mxu0 0
      %2649 = vmatpush1.bf16.msra.mxu0 %v2605
      %2650 = vmatprep.subr.bf16.mxu0 0
      %2651 = vmatpush1.bf16.msra.mxu0 0
      %2652 = vmatprep.subr.bf16.mxu0 0
      %2653 = vmatpush1.bf16.msra.mxu0 0
      %2654 = vmatprep.subr.bf16.mxu0 0
      %2655 = vmatpush1.bf16.msra.mxu0 0
      %2656 = vmatprep.subr.bf16.mxu0 0
      %2657 = vmatpush1.bf16.msra.mxu0 0
      %2658 = vmatprep.subr.bf16.mxu0 0
      %2659 = vmatpush1.bf16.msra.mxu0 0
      %2660 = vmatprep.subr.bf16.mxu0 0
      %2661 = vmatpush1.bf16.msra.mxu0 0
      %2662 = vmatprep.subr.bf16.mxu0 0
      %2663 = vmatpush1.bf16.msra.mxu0 0
      %2664 = vmatprep.subr.bf16.mxu0 0
      %2665 = vmatpush1.bf16.msra.mxu0 0
      %2666 = vmatprep.subr.bf16.mxu0 0
      %2667 = vmatpush1.bf16.msra.mxu0 0
      %2668 = vmatprep.subr.bf16.mxu0 0
      %2669 = vmatpush1.bf16.msra.mxu0 0
      %2670 = vmatprep.subr.bf16.mxu0 0
      %2671 = vmatpush1.bf16.msra.mxu0 0
      %2672 = vmatprep.subr.bf16.mxu0 0
      %2673 = vmatpush1.bf16.msra.mxu0 0
      %2674 = vmatprep.subr.bf16.mxu0 0
      %2675 = vmatpush1.bf16.msra.mxu0 0
      %2676 = vmatprep.subr.bf16.mxu0 0
      %2677 = vmatpush1.bf16.msra.mxu0 0
      %2678 = vmatprep.subr.bf16.mxu0 0
      %2679 = vmatpush1.bf16.msra.mxu0 0
      %2680 = vmatprep.mubr.bf16.mxu0 0
      %2681 = vmatmul.mubr.bf16.gmra.mrb[0].mxu0 %v2596
      %v2682 = vpop.f32.mrb[0].mxu0
      %v2683 = vadd.f32 0.0, %v2682
      %v2684 = vpop.f32.mrb[0].mxu0
      %v2685 = vpop.f32.mrb[0].mxu0
      %v2686 = vpop.f32.mrb[0].mxu0
      %2687 = vdwg.mxu0
      %v2688 = vadd.f32 %v2582, %v2642
      %v2689 = vadd.f32 %v2583, %v2644
      %v2690 = vadd.f32 %v2584, %v2683
      %s2691 = scalar_lea.vmem %s3, 42
      %v2692 = vld [vmem:[%s2691] sm:$0x3]
      %2693 = vrot.lane.b32.xlu0 %v483, 110
      %v2694 = vpop.permute.xlu0 %2693
      %2695 = vrot.lane.b32.xlu0 %v480, 110
      %v2696 = vpop.permute.xlu0 %2695
      %2697 = vrot.lane.b32.xlu0 %v485, 110
      %v2698 = vpop.permute.xlu0 %2697
      %v2699 = vsel %vm801, %v2694, %v2696
      %v2700 = vsel %vm801, %v2696, %v2698
      %v2702 = vsel %vm500, %v2692, 0
      %v2705 = vsel %vm504, %v2699, 0
      %v2708 = vsel %vm504, %v2700, 0
      %v2711 = vsel %vm504, %v2698, 0
      %2713 = vmatprep.subr.bf16.mxu0 %v2708
      %2714 = vmatpush1.bf16.msra.mxu0 %v2705
      %2715 = vmatprep.subr.bf16.mxu0 0
      %2716 = vmatpush1.bf16.msra.mxu0 0
      %2717 = vmatprep.subr.bf16.mxu0 0
      %2718 = vmatpush1.bf16.msra.mxu0 0
      %2719 = vmatprep.subr.bf16.mxu0 0
      %2720 = vmatpush1.bf16.msra.mxu0 0
      %2721 = vmatprep.subr.bf16.mxu0 0
      %2722 = vmatpush1.bf16.msra.mxu0 0
      %2723 = vmatprep.subr.bf16.mxu0 0
      %2724 = vmatpush1.bf16.msra.mxu0 0
      %2725 = vmatprep.subr.bf16.mxu0 0
      %2726 = vmatpush1.bf16.msra.mxu0 0
      %2727 = vmatprep.subr.bf16.mxu0 0
      %2728 = vmatpush1.bf16.msra.mxu0 0
      %2729 = vmatprep.subr.bf16.mxu0 0
      %2730 = vmatpush1.bf16.msra.mxu0 0
      %2731 = vmatprep.subr.bf16.mxu0 0
      %2732 = vmatpush1.bf16.msra.mxu0 0
      %2733 = vmatprep.subr.bf16.mxu0 0
      %2734 = vmatpush1.bf16.msra.mxu0 0
      %2735 = vmatprep.subr.bf16.mxu0 0
      %2736 = vmatpush1.bf16.msra.mxu0 0
      %2737 = vmatprep.subr.bf16.mxu0 0
      %2738 = vmatpush1.bf16.msra.mxu0 0
      %2739 = vmatprep.subr.bf16.mxu0 0
      %2740 = vmatpush1.bf16.msra.mxu0 0
      %2741 = vmatprep.subr.bf16.mxu0 0
      %2742 = vmatpush1.bf16.msra.mxu0 0
      %2743 = vmatprep.subr.bf16.mxu0 0
      %2744 = vmatpush1.bf16.msra.mxu0 0
      %2745 = vmatprep.mubr.bf16.mxu0 0
      %2746 = vmatmul.mubr.bf16.gmra.mrb[0].mxu0 %v2702
      %v2747 = vpop.f32.mrb[0].mxu0
      %v2748 = vadd.f32 0.0, %v2747
      %v2749 = vpop.f32.mrb[0].mxu0
      %v2750 = vadd.f32 0.0, %v2749
      %v2751 = vpop.f32.mrb[0].mxu0
      %v2752 = vpop.f32.mrb[0].mxu0
      %2753 = vdwg.mxu0
      %2754 = vmatprep.subr.bf16.mxu0 0
      %2755 = vmatpush1.bf16.msra.mxu0 %v2711
      %2756 = vmatprep.subr.bf16.mxu0 0
      %2757 = vmatpush1.bf16.msra.mxu0 0
      %2758 = vmatprep.subr.bf16.mxu0 0
      %2759 = vmatpush1.bf16.msra.mxu0 0
      %2760 = vmatprep.subr.bf16.mxu0 0
      %2761 = vmatpush1.bf16.msra.mxu0 0
      %2762 = vmatprep.subr.bf16.mxu0 0
      %2763 = vmatpush1.bf16.msra.mxu0 0
      %2764 = vmatprep.subr.bf16.mxu0 0
      %2765 = vmatpush1.bf16.msra.mxu0 0
      %2766 = vmatprep.subr.bf16.mxu0 0
      %2767 = vmatpush1.bf16.msra.mxu0 0
      %2768 = vmatprep.subr.bf16.mxu0 0
      %2769 = vmatpush1.bf16.msra.mxu0 0
      %2770 = vmatprep.subr.bf16.mxu0 0
      %2771 = vmatpush1.bf16.msra.mxu0 0
      %2772 = vmatprep.subr.bf16.mxu0 0
      %2773 = vmatpush1.bf16.msra.mxu0 0
      %2774 = vmatprep.subr.bf16.mxu0 0
      %2775 = vmatpush1.bf16.msra.mxu0 0
      %2776 = vmatprep.subr.bf16.mxu0 0
      %2777 = vmatpush1.bf16.msra.mxu0 0
      %2778 = vmatprep.subr.bf16.mxu0 0
      %2779 = vmatpush1.bf16.msra.mxu0 0
      %2780 = vmatprep.subr.bf16.mxu0 0
      %2781 = vmatpush1.bf16.msra.mxu0 0
      %2782 = vmatprep.subr.bf16.mxu0 0
      %2783 = vmatpush1.bf16.msra.mxu0 0
      %2784 = vmatprep.subr.bf16.mxu0 0
      %2785 = vmatpush1.bf16.msra.mxu0 0
      %2786 = vmatprep.mubr.bf16.mxu0 0
      %2787 = vmatmul.mubr.bf16.gmra.mrb[0].mxu0 %v2702
      %v2788 = vpop.f32.mrb[0].mxu0
      %v2789 = vadd.f32 0.0, %v2788
      %v2790 = vpop.f32.mrb[0].mxu0
      %v2791 = vpop.f32.mrb[0].mxu0
      %v2792 = vpop.f32.mrb[0].mxu0
      %2793 = vdwg.mxu0
      %v2794 = vadd.f32 %v2688, %v2748
      %v2795 = vadd.f32 %v2689, %v2750
      %v2796 = vadd.f32 %v2690, %v2789
      %s2797 = scalar_lea.vmem %s3, 44
      %v2798 = vld [vmem:[%s2797] sm:$0x3]
      %2799 = vrot.lane.b32.xlu0 %v483, 109
      %v2800 = vpop.permute.xlu0 %2799
      %2801 = vrot.lane.b32.xlu0 %v480, 109
      %v2802 = vpop.permute.xlu0 %2801
      %2803 = vrot.lane.b32.xlu0 %v485, 109
      %v2804 = vpop.permute.xlu0 %2803
      %v2805 = vsel %vm908, %v2800, %v2802
      %v2806 = vsel %vm908, %v2802, %v2804
      %v2808 = vsel %vm500, %v2798, 0
      %v2811 = vsel %vm504, %v2805, 0
      %v2814 = vsel %vm504, %v2806, 0
      %v2817 = vsel %vm504, %v2804, 0
      %2819 = vmatprep.subr.bf16.mxu0 %v2814
      %2820 = vmatpush1.bf16.msra.mxu0 %v2811
      %2821 = vmatprep.subr.bf16.mxu0 0
      %2822 = vmatpush1.bf16.msra.mxu0 0
      %2823 = vmatprep.subr.bf16.mxu0 0
      %2824 = vmatpush1.bf16.msra.mxu0 0
      %2825 = vmatprep.subr.bf16.mxu0 0
      %2826 = vmatpush1.bf16.msra.mxu0 0
      %2827 = vmatprep.subr.bf16.mxu0 0
      %2828 = vmatpush1.bf16.msra.mxu0 0
      %2829 = vmatprep.subr.bf16.mxu0 0
      %2830 = vmatpush1.bf16.msra.mxu0 0
      %2831 = vmatprep.subr.bf16.mxu0 0
      %2832 = vmatpush1.bf16.msra.mxu0 0
      %2833 = vmatprep.subr.bf16.mxu0 0
      %2834 = vmatpush1.bf16.msra.mxu0 0
      %2835 = vmatprep.subr.bf16.mxu0 0
      %2836 = vmatpush1.bf16.msra.mxu0 0
      %2837 = vmatprep.subr.bf16.mxu0 0
      %2838 = vmatpush1.bf16.msra.mxu0 0
      %2839 = vmatprep.subr.bf16.mxu0 0
      %2840 = vmatpush1.bf16.msra.mxu0 0
      %2841 = vmatprep.subr.bf16.mxu0 0
      %2842 = vmatpush1.bf16.msra.mxu0 0
      %2843 = vmatprep.subr.bf16.mxu0 0
      %2844 = vmatpush1.bf16.msra.mxu0 0
      %2845 = vmatprep.subr.bf16.mxu0 0
      %2846 = vmatpush1.bf16.msra.mxu0 0
      %2847 = vmatprep.subr.bf16.mxu0 0
      %2848 = vmatpush1.bf16.msra.mxu0 0
      %2849 = vmatprep.subr.bf16.mxu0 0
      %2850 = vmatpush1.bf16.msra.mxu0 0
      %2851 = vmatprep.mubr.bf16.mxu0 0
      %2852 = vmatmul.mubr.bf16.gmra.mrb[0].mxu0 %v2808
      %v2853 = vpop.f32.mrb[0].mxu0
      %v2854 = vadd.f32 0.0, %v2853
      %v2855 = vpop.f32.mrb[0].mxu0
      %v2856 = vadd.f32 0.0, %v2855
      %v2857 = vpop.f32.mrb[0].mxu0
      %v2858 = vpop.f32.mrb[0].mxu0
      %2859 = vdwg.mxu0
      %2860 = vmatprep.subr.bf16.mxu0 0
      %2861 = vmatpush1.bf16.msra.mxu0 %v2817
      %2862 = vmatprep.subr.bf16.mxu0 0
      %2863 = vmatpush1.bf16.msra.mxu0 0
      %2864 = vmatprep.subr.bf16.mxu0 0
      %2865 = vmatpush1.bf16.msra.mxu0 0
      %2866 = vmatprep.subr.bf16.mxu0 0
      %2867 = vmatpush1.bf16.msra.mxu0 0
      %2868 = vmatprep.subr.bf16.mxu0 0
      %2869 = vmatpush1.bf16.msra.mxu0 0
      %2870 = vmatprep.subr.bf16.mxu0 0
      %2871 = vmatpush1.bf16.msra.mxu0 0
      %2872 = vmatprep.subr.bf16.mxu0 0
      %2873 = vmatpush1.bf16.msra.mxu0 0
      %2874 = vmatprep.subr.bf16.mxu0 0
      %2875 = vmatpush1.bf16.msra.mxu0 0
      %2876 = vmatprep.subr.bf16.mxu0 0
      %2877 = vmatpush1.bf16.msra.mxu0 0
      %2878 = vmatprep.subr.bf16.mxu0 0
      %2879 = vmatpush1.bf16.msra.mxu0 0
      %2880 = vmatprep.subr.bf16.mxu0 0
      %2881 = vmatpush1.bf16.msra.mxu0 0
      %2882 = vmatprep.subr.bf16.mxu0 0
      %2883 = vmatpush1.bf16.msra.mxu0 0
      %2884 = vmatprep.subr.bf16.mxu0 0
      %2885 = vmatpush1.bf16.msra.mxu0 0
      %2886 = vmatprep.subr.bf16.mxu0 0
      %2887 = vmatpush1.bf16.msra.mxu0 0
      %2888 = vmatprep.subr.bf16.mxu0 0
      %2889 = vmatpush1.bf16.msra.mxu0 0
      %2890 = vmatprep.subr.bf16.mxu0 0
      %2891 = vmatpush1.bf16.msra.mxu0 0
      %2892 = vmatprep.mubr.bf16.mxu0 0
      %2893 = vmatmul.mubr.bf16.gmra.mrb[0].mxu0 %v2808
      %v2894 = vpop.f32.mrb[0].mxu0
      %v2895 = vadd.f32 0.0, %v2894
      %v2896 = vpop.f32.mrb[0].mxu0
      %v2897 = vpop.f32.mrb[0].mxu0
      %v2898 = vpop.f32.mrb[0].mxu0
      %2899 = vdwg.mxu0
      %v2900 = vadd.f32 %v2794, %v2854
      %v2901 = vadd.f32 %v2795, %v2856
      %v2902 = vadd.f32 %v2796, %v2895
      %s2903 = scalar_lea.vmem %s3, 46
      %v2904 = vld [vmem:[%s2903] sm:$0x3]
      %2905 = vrot.lane.b32.xlu0 %v483, 108
      %v2906 = vpop.permute.xlu0 %2905
      %2907 = vrot.lane.b32.xlu0 %v480, 108
      %v2908 = vpop.permute.xlu0 %2907
      %2909 = vrot.lane.b32.xlu0 %v485, 108
      %v2910 = vpop.permute.xlu0 %2909
      %v2911 = vsel %vm1015, %v2906, %v2908
      %v2912 = vsel %vm1015, %v2908, %v2910
      %v2914 = vsel %vm500, %v2904, 0
      %v2917 = vsel %vm504, %v2911, 0
      %v2920 = vsel %vm504, %v2912, 0
      %v2923 = vsel %vm504, %v2910, 0
      %2925 = vmatprep.subr.bf16.mxu0 %v2920
      %2926 = vmatpush1.bf16.msra.mxu0 %v2917
      %2927 = vmatprep.subr.bf16.mxu0 0
      %2928 = vmatpush1.bf16.msra.mxu0 0
      %2929 = vmatprep.subr.bf16.mxu0 0
      %2930 = vmatpush1.bf16.msra.mxu0 0
      %2931 = vmatprep.subr.bf16.mxu0 0
      %2932 = vmatpush1.bf16.msra.mxu0 0
      %2933 = vmatprep.subr.bf16.mxu0 0
      %2934 = vmatpush1.bf16.msra.mxu0 0
      %2935 = vmatprep.subr.bf16.mxu0 0
      %2936 = vmatpush1.bf16.msra.mxu0 0
      %2937 = vmatprep.subr.bf16.mxu0 0
      %2938 = vmatpush1.bf16.msra.mxu0 0
      %2939 = vmatprep.subr.bf16.mxu0 0
      %2940 = vmatpush1.bf16.msra.mxu0 0
      %2941 = vmatprep.subr.bf16.mxu0 0
      %2942 = vmatpush1.bf16.msra.mxu0 0
      %2943 = vmatprep.subr.bf16.mxu0 0
      %2944 = vmatpush1.bf16.msra.mxu0 0
      %2945 = vmatprep.subr.bf16.mxu0 0
      %2946 = vmatpush1.bf16.msra.mxu0 0
      %2947 = vmatprep.subr.bf16.mxu0 0
      %2948 = vmatpush1.bf16.msra.mxu0 0
      %2949 = vmatprep.subr.bf16.mxu0 0
      %2950 = vmatpush1.bf16.msra.mxu0 0
      %2951 = vmatprep.subr.bf16.mxu0 0
      %2952 = vmatpush1.bf16.msra.mxu0 0
      %2953 = vmatprep.subr.bf16.mxu0 0
      %2954 = vmatpush1.bf16.msra.mxu0 0
      %2955 = vmatprep.subr.bf16.mxu0 0
      %2956 = vmatpush1.bf16.msra.mxu0 0
      %2957 = vmatprep.mubr.bf16.mxu0 0
      %2958 = vmatmul.mubr.bf16.gmra.mrb[0].mxu0 %v2914
      %v2959 = vpop.f32.mrb[0].mxu0
      %v2960 = vadd.f32 0.0, %v2959
      %v2961 = vpop.f32.mrb[0].mxu0
      %v2962 = vadd.f32 0.0, %v2961
      %v2963 = vpop.f32.mrb[0].mxu0
      %v2964 = vpop.f32.mrb[0].mxu0
      %2965 = vdwg.mxu0
      %2966 = vmatprep.subr.bf16.mxu0 0
      %2967 = vmatpush1.bf16.msra.mxu0 %v2923
      %2968 = vmatprep.subr.bf16.mxu0 0
      %2969 = vmatpush1.bf16.msra.mxu0 0
      %2970 = vmatprep.subr.bf16.mxu0 0
      %2971 = vmatpush1.bf16.msra.mxu0 0
      %2972 = vmatprep.subr.bf16.mxu0 0
      %2973 = vmatpush1.bf16.msra.mxu0 0
      %2974 = vmatprep.subr.bf16.mxu0 0
      %2975 = vmatpush1.bf16.msra.mxu0 0
      %2976 = vmatprep.subr.bf16.mxu0 0
      %2977 = vmatpush1.bf16.msra.mxu0 0
      %2978 = vmatprep.subr.bf16.mxu0 0
      %2979 = vmatpush1.bf16.msra.mxu0 0
      %2980 = vmatprep.subr.bf16.mxu0 0
      %2981 = vmatpush1.bf16.msra.mxu0 0
      %2982 = vmatprep.subr.bf16.mxu0 0
      %2983 = vmatpush1.bf16.msra.mxu0 0
      %2984 = vmatprep.subr.bf16.mxu0 0
      %2985 = vmatpush1.bf16.msra.mxu0 0
      %2986 = vmatprep.subr.bf16.mxu0 0
      %2987 = vmatpush1.bf16.msra.mxu0 0
      %2988 = vmatprep.subr.bf16.mxu0 0
      %2989 = vmatpush1.bf16.msra.mxu0 0
      %2990 = vmatprep.subr.bf16.mxu0 0
      %2991 = vmatpush1.bf16.msra.mxu0 0
      %2992 = vmatprep.subr.bf16.mxu0 0
      %2993 = vmatpush1.bf16.msra.mxu0 0
      %2994 = vmatprep.subr.bf16.mxu0 0
      %2995 = vmatpush1.bf16.msra.mxu0 0
      %2996 = vmatprep.subr.bf16.mxu0 0
      %2997 = vmatpush1.bf16.msra.mxu0 0
      %2998 = vmatprep.mubr.bf16.mxu0 0
      %2999 = vmatmul.mubr.bf16.gmra.mrb[0].mxu0 %v2914
      %v3000 = vpop.f32.mrb[0].mxu0
      %v3001 = vadd.f32 0.0, %v3000
      %v3002 = vpop.f32.mrb[0].mxu0
      %v3003 = vpop.f32.mrb[0].mxu0
      %v3004 = vpop.f32.mrb[0].mxu0
      %3005 = vdwg.mxu0
      %v3006 = vadd.f32 %v2900, %v2960
      %v3007 = vadd.f32 %v2901, %v2962
      %v3008 = vadd.f32 %v2902, %v3001
      %s3009 = scalar_lea.vmem %s3, 48
      %v3010 = vld [vmem:[%s3009] sm:$0x3]
      %3011 = vrot.lane.b32.xlu0 %v483, 92
      %v3012 = vpop.permute.xlu0 %3011
      %3013 = vrot.lane.b32.xlu0 %v480, 92
      %v3014 = vpop.permute.xlu0 %3013
      %3015 = vrot.lane.b32.xlu0 %v485, 92
      %v3016 = vpop.permute.xlu0 %3015
      %v3017 = vsel %vm1122, %v3012, %v3014
      %v3018 = vsel %vm1122, %v3014, %v3016
      %v3020 = vsel %vm500, %v3010, 0
      %v3023 = vsel %vm504, %v3017, 0
      %v3026 = vsel %vm504, %v3018, 0
      %v3029 = vsel %vm504, %v3016, 0
      %3031 = vmatprep.subr.bf16.mxu0 %v3026
      %3032 = vmatpush1.bf16.msra.mxu0 %v3023
      %3033 = vmatprep.subr.bf16.mxu0 0
      %3034 = vmatpush1.bf16.msra.mxu0 0
      %3035 = vmatprep.subr.bf16.mxu0 0
      %3036 = vmatpush1.bf16.msra.mxu0 0
      %3037 = vmatprep.subr.bf16.mxu0 0
      %3038 = vmatpush1.bf16.msra.mxu0 0
      %3039 = vmatprep.subr.bf16.mxu0 0
      %3040 = vmatpush1.bf16.msra.mxu0 0
      %3041 = vmatprep.subr.bf16.mxu0 0
      %3042 = vmatpush1.bf16.msra.mxu0 0
      %3043 = vmatprep.subr.bf16.mxu0 0
      %3044 = vmatpush1.bf16.msra.mxu0 0
      %3045 = vmatprep.subr.bf16.mxu0 0
      %3046 = vmatpush1.bf16.msra.mxu0 0
      %3047 = vmatprep.subr.bf16.mxu0 0
      %3048 = vmatpush1.bf16.msra.mxu0 0
      %3049 = vmatprep.subr.bf16.mxu0 0
      %3050 = vmatpush1.bf16.msra.mxu0 0
      %3051 = vmatprep.subr.bf16.mxu0 0
      %3052 = vmatpush1.bf16.msra.mxu0 0
      %3053 = vmatprep.subr.bf16.mxu0 0
      %3054 = vmatpush1.bf16.msra.mxu0 0
      %3055 = vmatprep.subr.bf16.mxu0 0
      %3056 = vmatpush1.bf16.msra.mxu0 0
      %3057 = vmatprep.subr.bf16.mxu0 0
      %3058 = vmatpush1.bf16.msra.mxu0 0
      %3059 = vmatprep.subr.bf16.mxu0 0
      %3060 = vmatpush1.bf16.msra.mxu0 0
      %3061 = vmatprep.subr.bf16.mxu0 0
      %3062 = vmatpush1.bf16.msra.mxu0 0
      %3063 = vmatprep.mubr.bf16.mxu0 0
      %3064 = vmatmul.mubr.bf16.gmra.mrb[0].mxu0 %v3020
      %v3065 = vpop.f32.mrb[0].mxu0
      %v3066 = vadd.f32 0.0, %v3065
      %v3067 = vpop.f32.mrb[0].mxu0
      %v3068 = vadd.f32 0.0, %v3067
      %v3069 = vpop.f32.mrb[0].mxu0
      %v3070 = vpop.f32.mrb[0].mxu0
      %3071 = vdwg.mxu0
      %3072 = vmatprep.subr.bf16.mxu0 0
      %3073 = vmatpush1.bf16.msra.mxu0 %v3029
      %3074 = vmatprep.subr.bf16.mxu0 0
      %3075 = vmatpush1.bf16.msra.mxu0 0
      %3076 = vmatprep.subr.bf16.mxu0 0
      %3077 = vmatpush1.bf16.msra.mxu0 0
      %3078 = vmatprep.subr.bf16.mxu0 0
      %3079 = vmatpush1.bf16.msra.mxu0 0
      %3080 = vmatprep.subr.bf16.mxu0 0
      %3081 = vmatpush1.bf16.msra.mxu0 0
      %3082 = vmatprep.subr.bf16.mxu0 0
      %3083 = vmatpush1.bf16.msra.mxu0 0
      %3084 = vmatprep.subr.bf16.mxu0 0
      %3085 = vmatpush1.bf16.msra.mxu0 0
      %3086 = vmatprep.subr.bf16.mxu0 0
      %3087 = vmatpush1.bf16.msra.mxu0 0
      %3088 = vmatprep.subr.bf16.mxu0 0
      %3089 = vmatpush1.bf16.msra.mxu0 0
      %3090 = vmatprep.subr.bf16.mxu0 0
      %3091 = vmatpush1.bf16.msra.mxu0 0
      %3092 = vmatprep.subr.bf16.mxu0 0
      %3093 = vmatpush1.bf16.msra.mxu0 0
      %3094 = vmatprep.subr.bf16.mxu0 0
      %3095 = vmatpush1.bf16.msra.mxu0 0
      %3096 = vmatprep.subr.bf16.mxu0 0
      %3097 = vmatpush1.bf16.msra.mxu0 0
      %3098 = vmatprep.subr.bf16.mxu0 0
      %3099 = vmatpush1.bf16.msra.mxu0 0
      %3100 = vmatprep.subr.bf16.mxu0 0
      %3101 = vmatpush1.bf16.msra.mxu0 0
      %3102 = vmatprep.subr.bf16.mxu0 0
      %3103 = vmatpush1.bf16.msra.mxu0 0
      %3104 = vmatprep.mubr.bf16.mxu0 0
      %3105 = vmatmul.mubr.bf16.gmra.mrb[0].mxu0 %v3020
      %v3106 = vpop.f32.mrb[0].mxu0
      %v3107 = vadd.f32 0.0, %v3106
      %v3108 = vpop.f32.mrb[0].mxu0
      %v3109 = vpop.f32.mrb[0].mxu0
      %v3110 = vpop.f32.mrb[0].mxu0
      %3111 = vdwg.mxu0
      %v3112 = vadd.f32 %v3006, %v3066
      %v3113 = vadd.f32 %v3007, %v3068
      %v3114 = vadd.f32 %v3008, %v3107
      %s3115 = scalar_lea.vmem %s3, 50
      %v3116 = vld [vmem:[%s3115] sm:$0x3]
      %3117 = vrot.lane.b32.xlu0 %v483, 91
      %v3118 = vpop.permute.xlu0 %3117
      %3119 = vrot.lane.b32.xlu0 %v480, 91
      %v3120 = vpop.permute.xlu0 %3119
      %3121 = vrot.lane.b32.xlu0 %v485, 91
      %v3122 = vpop.permute.xlu0 %3121
      %v3123 = vsel %vm1229, %v3118, %v3120
      %v3124 = vsel %vm1229, %v3120, %v3122
      %v3126 = vsel %vm500, %v3116, 0
      %v3129 = vsel %vm504, %v3123, 0
      %v3132 = vsel %vm504, %v3124, 0
      %v3135 = vsel %vm504, %v3122, 0
      %3137 = vmatprep.subr.bf16.mxu0 %v3132
      %3138 = vmatpush1.bf16.msra.mxu0 %v3129
      %3139 = vmatprep.subr.bf16.mxu0 0
      %3140 = vmatpush1.bf16.msra.mxu0 0
      %3141 = vmatprep.subr.bf16.mxu0 0
      %3142 = vmatpush1.bf16.msra.mxu0 0
      %3143 = vmatprep.subr.bf16.mxu0 0
      %3144 = vmatpush1.bf16.msra.mxu0 0
      %3145 = vmatprep.subr.bf16.mxu0 0
      %3146 = vmatpush1.bf16.msra.mxu0 0
      %3147 = vmatprep.subr.bf16.mxu0 0
      %3148 = vmatpush1.bf16.msra.mxu0 0
      %3149 = vmatprep.subr.bf16.mxu0 0
      %3150 = vmatpush1.bf16.msra.mxu0 0
      %3151 = vmatprep.subr.bf16.mxu0 0
      %3152 = vmatpush1.bf16.msra.mxu0 0
      %3153 = vmatprep.subr.bf16.mxu0 0
      %3154 = vmatpush1.bf16.msra.mxu0 0
      %3155 = vmatprep.subr.bf16.mxu0 0
      %3156 = vmatpush1.bf16.msra.mxu0 0
      %3157 = vmatprep.subr.bf16.mxu0 0
      %3158 = vmatpush1.bf16.msra.mxu0 0
      %3159 = vmatprep.subr.bf16.mxu0 0
      %3160 = vmatpush1.bf16.msra.mxu0 0
      %3161 = vmatprep.subr.bf16.mxu0 0
      %3162 = vmatpush1.bf16.msra.mxu0 0
      %3163 = vmatprep.subr.bf16.mxu0 0
      %3164 = vmatpush1.bf16.msra.mxu0 0
      %3165 = vmatprep.subr.bf16.mxu0 0
      %3166 = vmatpush1.bf16.msra.mxu0 0
      %3167 = vmatprep.subr.bf16.mxu0 0
      %3168 = vmatpush1.bf16.msra.mxu0 0
      %3169 = vmatprep.mubr.bf16.mxu0 0
      %3170 = vmatmul.mubr.bf16.gmra.mrb[0].mxu0 %v3126
      %v3171 = vpop.f32.mrb[0].mxu0
      %v3172 = vadd.f32 0.0, %v3171
      %v3173 = vpop.f32.mrb[0].mxu0
      %v3174 = vadd.f32 0.0, %v3173
      %v3175 = vpop.f32.mrb[0].mxu0
      %v3176 = vpop.f32.mrb[0].mxu0
      %3177 = vdwg.mxu0
      %3178 = vmatprep.subr.bf16.mxu0 0
      %3179 = vmatpush1.bf16.msra.mxu0 %v3135
      %3180 = vmatprep.subr.bf16.mxu0 0
      %3181 = vmatpush1.bf16.msra.mxu0 0
      %3182 = vmatprep.subr.bf16.mxu0 0
      %3183 = vmatpush1.bf16.msra.mxu0 0
      %3184 = vmatprep.subr.bf16.mxu0 0
      %3185 = vmatpush1.bf16.msra.mxu0 0
      %3186 = vmatprep.subr.bf16.mxu0 0
      %3187 = vmatpush1.bf16.msra.mxu0 0
      %3188 = vmatprep.subr.bf16.mxu0 0
      %3189 = vmatpush1.bf16.msra.mxu0 0
      %3190 = vmatprep.subr.bf16.mxu0 0
      %3191 = vmatpush1.bf16.msra.mxu0 0
      %3192 = vmatprep.subr.bf16.mxu0 0
      %3193 = vmatpush1.bf16.msra.mxu0 0
      %3194 = vmatprep.subr.bf16.mxu0 0
      %3195 = vmatpush1.bf16.msra.mxu0 0
      %3196 = vmatprep.subr.bf16.mxu0 0
      %3197 = vmatpush1.bf16.msra.mxu0 0
      %3198 = vmatprep.subr.bf16.mxu0 0
      %3199 = vmatpush1.bf16.msra.mxu0 0
      %3200 = vmatprep.subr.bf16.mxu0 0
      %3201 = vmatpush1.bf16.msra.mxu0 0
      %3202 = vmatprep.subr.bf16.mxu0 0
      %3203 = vmatpush1.bf16.msra.mxu0 0
      %3204 = vmatprep.subr.bf16.mxu0 0
      %3205 = vmatpush1.bf16.msra.mxu0 0
      %3206 = vmatprep.subr.bf16.mxu0 0
      %3207 = vmatpush1.bf16.msra.mxu0 0
      %3208 = vmatprep.subr.bf16.mxu0 0
      %3209 = vmatpush1.bf16.msra.mxu0 0
      %3210 = vmatprep.mubr.bf16.mxu0 0
      %3211 = vmatmul.mubr.bf16.gmra.mrb[0].mxu0 %v3126
      %v3212 = vpop.f32.mrb[0].mxu0
      %v3213 = vadd.f32 0.0, %v3212
      %v3214 = vpop.f32.mrb[0].mxu0
      %v3215 = vpop.f32.mrb[0].mxu0
      %v3216 = vpop.f32.mrb[0].mxu0
      %3217 = vdwg.mxu0
      %v3218 = vadd.f32 %v3112, %v3172
      %v3219 = vadd.f32 %v3113, %v3174
      %v3220 = vadd.f32 %v3114, %v3213
      %s3221 = scalar_lea.vmem %s3, 52
      %v3222 = vld [vmem:[%s3221] sm:$0x3]
      %3223 = vrot.lane.b32.xlu0 %v483, 90
      %v3224 = vpop.permute.xlu0 %3223
      %3225 = vrot.lane.b32.xlu0 %v480, 90
      %v3226 = vpop.permute.xlu0 %3225
      %3227 = vrot.lane.b32.xlu0 %v485, 90
      %v3228 = vpop.permute.xlu0 %3227
      %v3229 = vsel %vm1336, %v3224, %v3226
      %v3230 = vsel %vm1336, %v3226, %v3228
      %v3232 = vsel %vm500, %v3222, 0
      %v3235 = vsel %vm504, %v3229, 0
      %v3238 = vsel %vm504, %v3230, 0
      %v3241 = vsel %vm504, %v3228, 0
      %3243 = vmatprep.subr.bf16.mxu0 %v3238
      %3244 = vmatpush1.bf16.msra.mxu0 %v3235
      %3245 = vmatprep.subr.bf16.mxu0 0
      %3246 = vmatpush1.bf16.msra.mxu0 0
      %3247 = vmatprep.subr.bf16.mxu0 0
      %3248 = vmatpush1.bf16.msra.mxu0 0
      %3249 = vmatprep.subr.bf16.mxu0 0
      %3250 = vmatpush1.bf16.msra.mxu0 0
      %3251 = vmatprep.subr.bf16.mxu0 0
      %3252 = vmatpush1.bf16.msra.mxu0 0
      %3253 = vmatprep.subr.bf16.mxu0 0
      %3254 = vmatpush1.bf16.msra.mxu0 0
      %3255 = vmatprep.subr.bf16.mxu0 0
      %3256 = vmatpush1.bf16.msra.mxu0 0
      %3257 = vmatprep.subr.bf16.mxu0 0
      %3258 = vmatpush1.bf16.msra.mxu0 0
      %3259 = vmatprep.subr.bf16.mxu0 0
      %3260 = vmatpush1.bf16.msra.mxu0 0
      %3261 = vmatprep.subr.bf16.mxu0 0
      %3262 = vmatpush1.bf16.msra.mxu0 0
      %3263 = vmatprep.subr.bf16.mxu0 0
      %3264 = vmatpush1.bf16.msra.mxu0 0
      %3265 = vmatprep.subr.bf16.mxu0 0
      %3266 = vmatpush1.bf16.msra.mxu0 0
      %3267 = vmatprep.subr.bf16.mxu0 0
      %3268 = vmatpush1.bf16.msra.mxu0 0
      %3269 = vmatprep.subr.bf16.mxu0 0
      %3270 = vmatpush1.bf16.msra.mxu0 0
      %3271 = vmatprep.subr.bf16.mxu0 0
      %3272 = vmatpush1.bf16.msra.mxu0 0
      %3273 = vmatprep.subr.bf16.mxu0 0
      %3274 = vmatpush1.bf16.msra.mxu0 0
      %3275 = vmatprep.mubr.bf16.mxu0 0
      %3276 = vmatmul.mubr.bf16.gmra.mrb[0].mxu0 %v3232
      %v3277 = vpop.f32.mrb[0].mxu0
      %v3278 = vadd.f32 0.0, %v3277
      %v3279 = vpop.f32.mrb[0].mxu0
      %v3280 = vadd.f32 0.0, %v3279
      %v3281 = vpop.f32.mrb[0].mxu0
      %v3282 = vpop.f32.mrb[0].mxu0
      %3283 = vdwg.mxu0
      %3284 = vmatprep.subr.bf16.mxu0 0
      %3285 = vmatpush1.bf16.msra.mxu0 %v3241
      %3286 = vmatprep.subr.bf16.mxu0 0
      %3287 = vmatpush1.bf16.msra.mxu0 0
      %3288 = vmatprep.subr.bf16.mxu0 0
      %3289 = vmatpush1.bf16.msra.mxu0 0
      %3290 = vmatprep.subr.bf16.mxu0 0
      %3291 = vmatpush1.bf16.msra.mxu0 0
      %3292 = vmatprep.subr.bf16.mxu0 0
      %3293 = vmatpush1.bf16.msra.mxu0 0
      %3294 = vmatprep.subr.bf16.mxu0 0
      %3295 = vmatpush1.bf16.msra.mxu0 0
      %3296 = vmatprep.subr.bf16.mxu0 0
      %3297 = vmatpush1.bf16.msra.mxu0 0
      %3298 = vmatprep.subr.bf16.mxu0 0
      %3299 = vmatpush1.bf16.msra.mxu0 0
      %3300 = vmatprep.subr.bf16.mxu0 0
      %3301 = vmatpush1.bf16.msra.mxu0 0
      %3302 = vmatprep.subr.bf16.mxu0 0
      %3303 = vmatpush1.bf16.msra.mxu0 0
      %3304 = vmatprep.subr.bf16.mxu0 0
      %3305 = vmatpush1.bf16.msra.mxu0 0
      %3306 = vmatprep.subr.bf16.mxu0 0
      %3307 = vmatpush1.bf16.msra.mxu0 0
      %3308 = vmatprep.subr.bf16.mxu0 0
      %3309 = vmatpush1.bf16.msra.mxu0 0
      %3310 = vmatprep.subr.bf16.mxu0 0
      %3311 = vmatpush1.bf16.msra.mxu0 0
      %3312 = vmatprep.subr.bf16.mxu0 0
      %3313 = vmatpush1.bf16.msra.mxu0 0
      %3314 = vmatprep.subr.bf16.mxu0 0
      %3315 = vmatpush1.bf16.msra.mxu0 0
      %3316 = vmatprep.mubr.bf16.mxu0 0
      %3317 = vmatmul.mubr.bf16.gmra.mrb[0].mxu0 %v3232
      %v3318 = vpop.f32.mrb[0].mxu0
      %v3319 = vadd.f32 0.0, %v3318
      %v3320 = vpop.f32.mrb[0].mxu0
      %v3321 = vpop.f32.mrb[0].mxu0
      %v3322 = vpop.f32.mrb[0].mxu0
      %3323 = vdwg.mxu0
      %v3324 = vadd.f32 %v3218, %v3278
      %v3325 = vadd.f32 %v3219, %v3280
      %v3326 = vadd.f32 %v3220, %v3319
      %v3329 = vcombine.low %v3324, %v3325
      %3331 = vst [vmem:[%s382] sm:$0xff] %v3329
      %vm3332 = vcmask 551936
      %3333 = vst.msk [vmem:[%s382 + $0x8] sm:$0xf] %vm3332, %v3326
      %v3334 = vld [vmem:[%s4] sm:$0x7]
      %v3336 = vlaneseq
      %v3337 = vshrl.u32 %v3336, 7
      %v3338 = vsub.s32 0, %v3337
      %v3339 = vrot.slane %v3334, %v3338
      %v3340 = vlaneseq
      %v3341 = vshrl.u32 %v3340, 7
      %v3342 = vsub.s32 1, %v3341
      %v3343 = vrot.slane %v3334, %v3342
      %v3344 = vlaneseq
      %v3345 = vshrl.u32 %v3344, 7
      %v3346 = vsub.s32 2, %v3345
      %v3347 = vrot.slane %v3334, %v3346
      %v3351 = vmul.f32 %v3324, %v3339
      %v3352 = vmul.f32 %v3325, %v3343
      %v3353 = vmul.f32 %v3326, %v3347
      %vm3354 = vcmask 1043456
      %v3355 = vsel %vm3354, %v3351, 0.0
      %v3356 = vsel %vm3354, %v3352, 0.0
      %v3357 = vadd.f32 %v3355, %v3356
      %v3358 = vsel %vm3332, %v3353, 0.0
      %v3359 = vadd.f32 %v3357, %v3358
      %3360 = vadd.xlane.f32.xlu0 %v3359
      %v3361 = vpop.xlane.xlu0 %3360
      %v3362 = vmul.f32 %v3351, %v3351
      %v3363 = vmul.f32 %v3352, %v3352
      %v3364 = vmul.f32 %v3353, %v3353
      %v3365 = vsel %vm3354, %v3362, 0.0
      %v3366 = vsel %vm3354, %v3363, 0.0
      %v3367 = vadd.f32 %v3365, %v3366
      %v3368 = vsel %vm3332, %v3364, 0.0
      %v3369 = vadd.f32 %v3367, %v3368
      %3370 = vadd.xlane.f32.xlu0 %v3369
      %v3371 = vpop.xlane.xlu0 %3370
      %vm3372 = vcmask 7168
      %v3373 = vsel %vm3372, %v3361, %v3371
      %vm3374 = vcmask 11264
      %3375 = vst.msk [vmem:[%s390] sm:$0xf] %vm3374, %v3373
      %p3376 = scmp.lt.s32.totalorder %s22, 1
      %s3377 = scalar_select %p3376, %s22, 1
      %p3378 = scmp.lt.s32.totalorder %s23, 7
      %s3379 = scalar_select %p3378, %s23, 7
      %s3380 = smul.addr %s3379, 3
      %s3381 = smul.addr %s3377, 24
      %s3382 = sadd.s32 %s3380, %s3381
      %s3383 = smul.addr %s3382, 4
      %s3384 = scalar_lea.vmem %s5, %s3383
      %p3385 = scmp.lt.s32.totalorder %s22, 1
      %s3386 = scalar_select %p3385, %s22, 1
      %p3387 = scmp.lt.s32.totalorder %s23, 7
      %s3388 = scalar_select %p3387, %s23, 7
      %s3389 = smul.addr %s3386, 8
      %s3390 = sadd.s32 %s3388, %s3389
      %s3391 = smul.addr %s3390, 4
      %s3392 = scalar_lea.vmem %s6, %s3391
      // Predicated region
      $region41: #{res_block3d_forward.3} parent=39 // pred_check
        %p3393 = pneg %p180
      $region42: #{res_block3d_forward.3} parent=39 // pred_check_branch
        %3395 = sbr.rel (%p3393) target = $region44
      $region43: #{res_block3d_forward.3} parent=39 // pred_region
        _
      $region44: #{res_block3d_forward.3} parent=39 // pred_fallthru
        _
      // Predicated region
      $region45: #{res_block3d_forward.3} parent=39 // pred_check
        %p3396 = pneg %p208
      $region46: #{res_block3d_forward.3} parent=39 // pred_check_branch
        %3398 = sbr.rel (%p3396) target = $region48
      $region47: #{res_block3d_forward.3} parent=39 // pred_region
        _
      $region48: #{res_block3d_forward.3} parent=39 // pred_fallthru
        _
    $region40: #{res_block3d_forward.3} parent=5 // pred_fallthru
      _
    %p3399 = scmp.le.s32.totalorder 2, %s13
    // Predicated region
    $region49: #{res_block3d_forward.3} parent=5 // pred_check
      %p3400 = pneg %p3399
    $region50: #{res_block3d_forward.3} parent=5 // pred_check_branch
      %3402 = sbr.rel (%p3400) target = $region52
    $region51: #{res_block3d_forward.3} parent=5 // pred_region
      %s3403 = ssub.s32 %s13, 2
      // Predicated region
      $region53: #{res_block3d_forward.3} parent=51 // pred_check
        %p3404 = pneg %p186
      $region54: #{res_block3d_forward.3} parent=51 // pred_check_branch
        %3406 = sbr.rel (%p3404) target = $region56
      $region55: #{res_block3d_forward.3} parent=51 // pred_region
        %p3407 = scmp.lt.s32.totalorder %s24, 1
        %s3408 = scalar_select %p3407, %s24, 1
        %p3409 = scmp.lt.s32.totalorder %s25, 7
        %s3410 = scalar_select %p3409, %s25, 7
        %s3411 = smul.addr %s3410, 3
        %s3412 = smul.addr %s3408, 24
        %s3413 = sadd.s32 %s3411, %s3412
        %s3414 = smul.addr %s3413, 4
        %s3415 = scalar_lea.vmem %s5, %s3414
      $region56: #{res_block3d_forward.3} parent=51 // pred_fallthru
        _
      // Predicated region
      $region57: #{res_block3d_forward.3} parent=51 // pred_check
        %p3416 = pneg %p214
      $region58: #{res_block3d_forward.3} parent=51 // pred_check_branch
        %3418 = sbr.rel (%p3416) target = $region60
      $region59: #{res_block3d_forward.3} parent=51 // pred_region
        %p3419 = scmp.lt.s32.totalorder %s24, 1
        %s3420 = scalar_select %p3419, %s24, 1
        %p3421 = scmp.lt.s32.totalorder %s25, 7
        %s3422 = scalar_select %p3421, %s25, 7
        %s3423 = smul.addr %s3420, 8
        %s3424 = sadd.s32 %s3422, %s3423
        %s3425 = smul.addr %s3424, 4
        %s3426 = scalar_lea.vmem %s6, %s3425
      $region60: #{res_block3d_forward.3} parent=51 // pred_fallthru
        _
    $region52: #{res_block3d_forward.3} parent=5 // pred_fallthru
      _
  $region6: #{res_block3d_forward.3} parent=0 // loop_footer
    %s17 = sadd.s32 1, %s13
  $region7: #{res_block3d_forward.3} parent=0 // loop_footer_branch
    %12 = sbr.rel target = $region3
  $region8: #{res_block3d_forward.3} parent=0 // loop_exit
    _

// kernel: res_block3d_forward.4
$region0: #{res_block3d_forward.4}
  #allocation0 [shape = 'u32[]', space=smem, size = 0x4, offset = 0x4, fixed_abs, tag = 'smem constant byte address 0x4 - core index']
  #allocation1 [shape = 'u32[144,128]{1,0:T(1,128)}', space=vmem, size = 0x12000, scoped, tag = 'internal scratch']
  %s0 = inlined_call_operand.vmem [shape: f32[2,8,4,324], index: 0, kind: input, shape index: {}, may-alias: {0,1,2}]
  %s1 = inlined_call_operand.vmem [shape: f32[2,8,4,324], index: 1, kind: input, shape index: {}, may-alias: {0,1,2}]
  %s2 = inlined_call_operand.vmem [shape: f32[2,8,4,324], index: 2, kind: input, shape index: {}, may-alias: {0,1,2}]
  %s3 = inlined_call_operand.vmem [shape: bf16[27,4,4], index: 3, kind: input, shape index: {}]
  %s4 = inlined_call_operand.vmem [shape: f32[4,1], index: 4, kind: input, shape index: {}]
  %s5 = inlined_call_operand.vmem [shape: f32[4,1], index: 5, kind: input, shape index: {}]
  %s6 = inlined_call_operand.vmem [shape: f32[1,324], index: 6, kind: input, shape index: {}]
  %s7 = inlined_call_operand.vmem [shape: f32[2,8,4,324], index: 7, kind: output, shape index: {0}]
  %s8 = inlined_call_operand.vmem [shape: f32[2,8,4,2], index: 8, kind: output, shape index: {1}]
  %9 = xla_tuple %s7, %s8
  %s10 = sld [smem:[#allocation0]]
  $region69: #{res_block3d_forward.4} parent=0
    _
  %s12 = ssub.s32 1, %s10
  %s13 = scalar_select 0, %s12, %s10
  loop: start=0, step=1, limit=18
  $region2: #{res_block3d_forward.4} parent=0 // loop_pre_header
    _
  $region3: #{res_block3d_forward.4} parent=0 // loop_header
    %s15 = sphi 0, %s19
    %p16 = scmp.ge.s32.totalorder %s15, 18
    %s22 = sphi 0, %s34
    %s23 = sphi 0, %s30
    %s24 = sphi 0, %s22
    %s25 = sphi 0, %s23
    %s26 = sphi 0, %s24
    %s27 = sphi 0, %s25
    %s45 = sphi 0, %s47
    %s48 = sphi 0, %s45
    %s49 = sphi 0, %s48
    %s65 = sphi 0, %s49
    %s73 = sphi 0, %s75
    %s76 = sphi 0, %s73
    %s77 = sphi 0, %s76
    %s93 = sphi 0, %s77
    %s107 = sphi 0, %s109
    %s110 = sphi 0, %s107
    %s111 = sphi 0, %s110
    %s127 = sphi 0, %s111
    %s131 = sphi 0, %s131
    %s133 = sphi 0, %s131
    %s134 = sphi 0, %s133
    %s148 = sphi 0, %s134
    %s152 = sphi 0, %s152
    %s154 = sphi 0, %s152
    %s155 = sphi 0, %s154
    %s169 = sphi 0, %s155
    %s173 = sphi 0, %s173
    %s175 = sphi 0, %s173
    %s176 = sphi 0, %s175
    %s190 = sphi 0, %s176
    %s194 = sphi 0, %s194
    %s196 = sphi 0, %s194
    %s197 = sphi 0, %s196
    %s211 = sphi 0, %s197
    %s219 = sphi 0, %s221
    %s222 = sphi 0, %s219
    %s223 = sphi 0, %s222
    %s239 = sphi 0, %s223
    %s247 = sphi 0, %s249
    %s250 = sphi 0, %s247
    %s251 = sphi 0, %s250
    %s267 = sphi 0, %s251
  $region4: #{res_block3d_forward.4} parent=0 // loop_header_branch
    %18 = sbr.rel (%p16) target = $region8
  $region5: #{res_block3d_forward.4} parent=0 // loop_body
    %s20 = ssub.s32 %s15, 1
    %s21 = ssub.s32 %s15, 2
    %s28 = sadd.s32 1, %s23
    %p29 = scmp.ge.s32.totalorder %s28, 8
    %s30 = scalar_select %p29, 0, %s28
    %s31 = sadd.s32 1, %s22
    %s32 = scalar_select %p29, %s31, %s22
    %p33 = scmp.ge.s32.totalorder %s32, 2
    %s34 = scalar_select %p33, 0, %s32
    %s35 = ssub.s32 %s23, 1
    %p36 = scmp.gt.s32.totalorder %s35, 0
    %s37 = scalar_select %p36, %s35, 0
    %s38 = ssub.s32 %s30, 1
    %p39 = scmp.gt.s32.totalorder %s38, 0
    %s40 = scalar_select %p39, %s38, 0
    %s41 = ssub.s32 %s22, %s34
    %s42 = ssub.s32 %s37, %s40
    %s43 = sor.u32 %s41, %s42
    %p44 = scmp.eq.s32.totalorder %s43, 0
    %s46 = sadd.s32 %s45, 1
    %s47 = scalar_select %p44, %s45, %s46
    %p50 = pneg %p44
    %p51 = scmp.eq.s32.totalorder %s15, 15
    %p52 = por %p50, %p51
    %p53 = scmp.ne.s32.totalorder %s45, %s48
    %p54 = scmp.eq.s32.totalorder %s15, 0
    %p55 = por %p53, %p54
    %p56 = scmp.ne.s32.totalorder %s45, %s48
    %p57 = scmp.eq.s32.totalorder %s20, 15
    %p58 = por %p56, %p57
    %p59 = scmp.ne.s32.totalorder %s48, %s49
    %p60 = scmp.eq.s32.totalorder %s20, 0
    %p61 = por %p59, %p60
    %p62 = scmp.ne.s32.totalorder %s48, %s49
    %p63 = scmp.eq.s32.totalorder %s21, 15
    %p64 = por %p62, %p63
    %p66 = scmp.ne.s32.totalorder %s49, %s65
    %p67 = scmp.eq.s32.totalorder %s21, 0
    %p68 = por %p66, %p67
    %s69 = ssub.s32 %s22, %s34
    %s70 = ssub.s32 %s23, %s30
    %s71 = sor.u32 %s69, %s70
    %p72 = scmp.eq.s32.totalorder %s71, 0
    %s74 = sadd.s32 %s73, 1
    %s75 = scalar_select %p72, %s73, %s74
    %p78 = pneg %p72
    %p79 = scmp.eq.s32.totalorder %s15, 15
    %p80 = por %p78, %p79
    %p81 = scmp.ne.s32.totalorder %s73, %s76
    %p82 = scmp.eq.s32.totalorder %s15, 0
    %p83 = por %p81, %p82
    %p84 = scmp.ne.s32.totalorder %s73, %s76
    %p85 = scmp.eq.s32.totalorder %s20, 15
    %p86 = por %p84, %p85
    %p87 = scmp.ne.s32.totalorder %s76, %s77
    %p88 = scmp.eq.s32.totalorder %s20, 0
    %p89 = por %p87, %p88
    %p90 = scmp.ne.s32.totalorder %s76, %s77
    %p91 = scmp.eq.s32.totalorder %s21, 15
    %p92 = por %p90, %p91
    %p94 = scmp.ne.s32.totalorder %s77, %s93
    %p95 = scmp.eq.s32.totalorder %s21, 0
    %p96 = por %p94, %p95
    %s97 = sadd.s32 %s23, 1
    %p98 = scmp.lt.s32.totalorder %s97, 7
    %s99 = scalar_select %p98, %s97, 7
    %s100 = sadd.s32 %s30, 1
    %p101 = scmp.lt.s32.totalorder %s100, 7
    %s102 = scalar_select %p101, %s100, 7
    %s103 = ssub.s32 %s22, %s34
    %s104 = ssub.s32 %s99, %s102
    %s105 = sor.u32 %s103, %s104
    %p106 = scmp.eq.s32.totalorder %s105, 0
    %s108 = sadd.s32 %s107, 1
    %s109 = scalar_select %p106, %s107, %s108
    %p112 = pneg %p106
    %p113 = scmp.eq.s32.totalorder %s15, 15
    %p114 = por %p112, %p113
    %p115 = scmp.ne.s32.totalorder %s107, %s110
    %p116 = scmp.eq.s32.totalorder %s15, 0
    %p117 = por %p115, %p116
    %p118 = scmp.ne.s32.totalorder %s107, %s110
    %p119 = scmp.eq.s32.totalorder %s20, 15
    %p120 = por %p118, %p119
    %p121 = scmp.ne.s32.totalorder %s110, %s111
    %p122 = scmp.eq.s32.totalorder %s20, 0
    %p123 = por %p121, %p122
    %p124 = scmp.ne.s32.totalorder %s110, %s111
    %p125 = scmp.eq.s32.totalorder %s21, 15
    %p126 = por %p124, %p125
    %p128 = scmp.ne.s32.totalorder %s111, %s127
    %p129 = scmp.eq.s32.totalorder %s21, 0
    %p130 = por %p128, %p129
    %s132 = sadd.s32 %s131, 1
    %p135 = scmp.eq.s32.totalorder %s15, 15
    %p136 = scmp.ne.s32.totalorder %s131, %s133
    %p137 = scmp.eq.s32.totalorder %s15, 0
    %p138 = por %p136, %p137
    %p139 = scmp.ne.s32.totalorder %s131, %s133
    %p140 = scmp.eq.s32.totalorder %s20, 15
    %p141 = por %p139, %p140
    %p142 = scmp.ne.s32.totalorder %s133, %s134
    %p143 = scmp.eq.s32.totalorder %s20, 0
    %p144 = por %p142, %p143
    %p145 = scmp.ne.s32.totalorder %s133, %s134
    %p146 = scmp.eq.s32.totalorder %s21, 15
    %p147 = por %p145, %p146
    %p149 = scmp.ne.s32.totalorder %s134, %s148
    %p150 = scmp.eq.s32.totalorder %s21, 0
    %p151 = por %p149, %p150
    %s153 = sadd.s32 %s152, 1
    %p156 = scmp.eq.s32.totalorder %s15, 15
    %p157 = scmp.ne.s32.totalorder %s152, %s154
    %p158 = scmp.eq.s32.totalorder %s15, 0
    %p159 = por %p157, %p158
    %p160 = scmp.ne.s32.totalorder %s152, %s154
    %p161 = scmp.eq.s32.totalorder %s20, 15
    %p162 = por %p160, %p161
    %p163 = scmp.ne.s32.totalorder %s154, %s155
    %p164 = scmp.eq.s32.totalorder %s20, 0
    %p165 = por %p163, %p164
    %p166 = scmp.ne.s32.totalorder %s154, %s155
    %p167 = scmp.eq.s32.totalorder %s21, 15
    %p168 = por %p166, %p167
    %p170 = scmp.ne.s32.totalorder %s155, %s169
    %p171 = scmp.eq.s32.totalorder %s21, 0
    %p172 = por %p170, %p171
    %s174 = sadd.s32 %s173, 1
    %p177 = scmp.eq.s32.totalorder %s15, 15
    %p178 = scmp.ne.s32.totalorder %s173, %s175
    %p179 = scmp.eq.s32.totalorder %s15, 0
    %p180 = por %p178, %p179
    %p181 = scmp.ne.s32.totalorder %s173, %s175
    %p182 = scmp.eq.s32.totalorder %s20, 15
    %p183 = por %p181, %p182
    %p184 = scmp.ne.s32.totalorder %s175, %s176
    %p185 = scmp.eq.s32.totalorder %s20, 0
    %p186 = por %p184, %p185
    %p187 = scmp.ne.s32.totalorder %s175, %s176
    %p188 = scmp.eq.s32.totalorder %s21, 15
    %p189 = por %p187, %p188
    %p191 = scmp.ne.s32.totalorder %s176, %s190
    %p192 = scmp.eq.s32.totalorder %s21, 0
    %p193 = por %p191, %p192
    %s195 = sadd.s32 %s194, 1
    %p198 = scmp.eq.s32.totalorder %s15, 15
    %p199 = scmp.ne.s32.totalorder %s194, %s196
    %p200 = scmp.eq.s32.totalorder %s15, 0
    %p201 = por %p199, %p200
    %p202 = scmp.ne.s32.totalorder %s194, %s196
    %p203 = scmp.eq.s32.totalorder %s20, 15
    %p204 = por %p202, %p203
    %p205 = scmp.ne.s32.totalorder %s196, %s197
    %p206 = scmp.eq.s32.totalorder %s20, 0
    %p207 = por %p205, %p206
    %p208 = scmp.ne.s32.totalorder %s196, %s197
    %p209 = scmp.eq.s32.totalorder %s21, 15
    %p210 = por %p208, %p209
    %p212 = scmp.ne.s32.totalorder %s197, %s211
    %p213 = scmp.eq.s32.totalorder %s21, 0
    %p214 = por %p212, %p213
    %s215 = ssub.s32 %s22, %s34
    %s216 = ssub.s32 %s23, %s30
    %s217 = sor.u32 %s215, %s216
    %p218 = scmp.eq.s32.totalorder %s217, 0
    %s220 = sadd.s32 %s219, 1
    %s221 = scalar_select %p218, %s219, %s220
    %p224 = pneg %p218
    %p225 = scmp.eq.s32.totalorder %s15, 15
    %p226 = por %p224, %p225
    %p227 = scmp.ne.s32.totalorder %s219, %s222
    %p228 = scmp.eq.s32.totalorder %s15, 0
    %p229 = por %p227, %p228
    %p230 = scmp.ne.s32.totalorder %s219, %s222
    %p231 = scmp.eq.s32.totalorder %s20, 15
    %p232 = por %p230, %p231
    %p233 = scmp.ne.s32.totalorder %s222, %s223
    %p234 = scmp.eq.s32.totalorder %s20, 0
    %p235 = por %p233, %p234
    %p236 = scmp.ne.s32.totalorder %s222, %s223
    %p237 = scmp.eq.s32.totalorder %s21, 15
    %p238 = por %p236, %p237
    %p240 = scmp.ne.s32.totalorder %s223, %s239
    %p241 = scmp.eq.s32.totalorder %s21, 0
    %p242 = por %p240, %p241
    %s243 = ssub.s32 %s22, %s34
    %s244 = ssub.s32 %s23, %s30
    %s245 = sor.u32 %s243, %s244
    %p246 = scmp.eq.s32.totalorder %s245, 0
    %s248 = sadd.s32 %s247, 1
    %s249 = scalar_select %p246, %s247, %s248
    %p252 = pneg %p246
    %p253 = scmp.eq.s32.totalorder %s15, 15
    %p254 = por %p252, %p253
    %p255 = scmp.ne.s32.totalorder %s247, %s250
    %p256 = scmp.eq.s32.totalorder %s15, 0
    %p257 = por %p255, %p256
    %p258 = scmp.ne.s32.totalorder %s247, %s250
    %p259 = scmp.eq.s32.totalorder %s20, 15
    %p260 = por %p258, %p259
    %p261 = scmp.ne.s32.totalorder %s250, %s251
    %p262 = scmp.eq.s32.totalorder %s20, 0
    %p263 = por %p261, %p262
    %p264 = scmp.ne.s32.totalorder %s250, %s251
    %p265 = scmp.eq.s32.totalorder %s21, 15
    %p266 = por %p264, %p265
    %p268 = scmp.ne.s32.totalorder %s251, %s267
    %p269 = scmp.eq.s32.totalorder %s21, 0
    %p270 = por %p268, %p269
    %p271 = scmp.le.s32.totalorder 1, %s15
    %p272 = scmp.lt.s32.totalorder %s15, 17
    %p273 = pnand %p271, %p272
    %p274 = pneg %p273
    // Predicated region
    $region9: #{res_block3d_forward.4} parent=5 // pred_check
      _
    $region10: #{res_block3d_forward.4} parent=5 // pred_check_branch
      %276 = sbr.rel (%p273) target = $region12
    $region11: #{res_block3d_forward.4} parent=5 // pred_region
      %s277 = ssub.s32 %s15, 1
      // Predicated region
      $region13: #{res_block3d_forward.4} parent=11 // pred_check
        %p278 = pneg %p144
      $region14: #{res_block3d_forward.4} parent=11 // pred_check_branch
        %280 = sbr.rel (%p278) target = $region16
      $region15: #{res_block3d_forward.4} parent=11 // pred_region
        _
      $region16: #{res_block3d_forward.4} parent=11 // pred_fallthru
        _
      // Predicated region
      $region17: #{res_block3d_forward.4} parent=11 // pred_check
        %p281 = pneg %p165
      $region18: #{res_block3d_forward.4} parent=11 // pred_check_branch
        %283 = sbr.rel (%p281) target = $region20
      $region19: #{res_block3d_forward.4} parent=11 // pred_region
        _
      $region20: #{res_block3d_forward.4} parent=11 // pred_fallthru
        _
      // Predicated region
      $region21: #{res_block3d_forward.4} parent=11 // pred_check
        %p284 = pneg %p186
      $region22: #{res_block3d_forward.4} parent=11 // pred_check_branch
        %286 = sbr.rel (%p284) target = $region24
      $region23: #{res_block3d_forward.4} parent=11 // pred_region
        _
      $region24: #{res_block3d_forward.4} parent=11 // pred_fallthru
        _
      // Predicated region
      $region25: #{res_block3d_forward.4} parent=11 // pred_check
        %p287 = pneg %p207
      $region26: #{res_block3d_forward.4} parent=11 // pred_check_branch
        %289 = sbr.rel (%p287) target = $region28
      $region27: #{res_block3d_forward.4} parent=11 // pred_region
        _
      $region28: #{res_block3d_forward.4} parent=11 // pred_fallthru
        _
    $region12: #{res_block3d_forward.4} parent=5 // pred_fallthru
      _
    %p290 = scmp.lt.s32.totalorder %s15, 16
    // Predicated region
    $region29: #{res_block3d_forward.4} parent=5 // pred_check
      %p291 = pneg %p290
    $region30: #{res_block3d_forward.4} parent=5 // pred_check_branch
      %293 = sbr.rel (%p291) target = $region32
    $region31: #{res_block3d_forward.4} parent=5 // pred_region
      // Predicated region
      $region33: #{res_block3d_forward.4} parent=31 // pred_check
        %p294 = pneg %p55
      $region34: #{res_block3d_forward.4} parent=31 // pred_check_branch
        %296 = sbr.rel (%p294) target = $region36
      $region35: #{res_block3d_forward.4} parent=31 // pred_region
        %s297 = ssub.s32 %s23, 1
        %p298 = scmp.gt.s32.totalorder %s297, 0
        %s299 = scalar_select %p298, %s297, 0
        %p300 = scmp.lt.s32.totalorder %s22, 1
        %s301 = scalar_select %p300, %s22, 1
        %p302 = scmp.lt.s32.totalorder %s299, 7
        %s303 = scalar_select %p302, %s299, 7
        %s304 = smul.addr %s303, 3
        %s305 = smul.addr %s301, 24
        %s306 = sadd.s32 %s304, %s305
        %s307 = smul.addr %s306, 4
        %s308 = scalar_lea.vmem %s0, %s307
        %s309 = ssub.s32 %s23, 1
        %p310 = scmp.gt.s32.totalorder %s309, 0
        %s311 = scalar_select %p310, %s309, 0
      $region36: #{res_block3d_forward.4} parent=31 // pred_fallthru
        _
      // Predicated region
      $region37: #{res_block3d_forward.4} parent=31 // pred_check
        %p312 = pneg %p83
      $region38: #{res_block3d_forward.4} parent=31 // pred_check_branch
        %314 = sbr.rel (%p312) target = $region40
      $region39: #{res_block3d_forward.4} parent=31 // pred_region
        %p315 = scmp.lt.s32.totalorder %s22, 1
        %s316 = scalar_select %p315, %s22, 1
        %p317 = scmp.lt.s32.totalorder %s23, 7
        %s318 = scalar_select %p317, %s23, 7
        %s319 = smul.addr %s318, 3
        %s320 = smul.addr %s316, 24
        %s321 = sadd.s32 %s319, %s320
        %s322 = smul.addr %s321, 4
        %s323 = scalar_lea.vmem %s1, %s322
      $region40: #{res_block3d_forward.4} parent=31 // pred_fallthru
        _
      // Predicated region
      $region41: #{res_block3d_forward.4} parent=31 // pred_check
        %p324 = pneg %p117
      $region42: #{res_block3d_forward.4} parent=31 // pred_check_branch
        %326 = sbr.rel (%p324) target = $region44
      $region43: #{res_block3d_forward.4} parent=31 // pred_region
        %s327 = sadd.s32 %s23, 1
        %p328 = scmp.lt.s32.totalorder %s327, 7
        %s329 = scalar_select %p328, %s327, 7
        %p330 = scmp.lt.s32.totalorder %s22, 1
        %s331 = scalar_select %p330, %s22, 1
        %p332 = scmp.lt.s32.totalorder %s329, 7
        %s333 = scalar_select %p332, %s329, 7
        %s334 = smul.addr %s333, 3
        %s335 = smul.addr %s331, 24
        %s336 = sadd.s32 %s334, %s335
        %s337 = smul.addr %s336, 4
        %s338 = scalar_lea.vmem %s2, %s337
        %s339 = sadd.s32 %s23, 1
        %p340 = scmp.lt.s32.totalorder %s339, 7
        %s341 = scalar_select %p340, %s339, 7
      $region44: #{res_block3d_forward.4} parent=31 // pred_fallthru
        _
    $region32: #{res_block3d_forward.4} parent=5 // pred_fallthru
      _
    %p342 = scmp.le.s32.totalorder 1, %s15
    %p343 = scmp.lt.s32.totalorder %s15, 17
    %p344 = pnand %p342, %p343
    %p345 = pneg %p344
    // Predicated region
    $region45: #{res_block3d_forward.4} parent=5 // pred_check
      _
    $region46: #{res_block3d_forward.4} parent=5 // pred_check_branch
      %347 = sbr.rel (%p344) target = $region48
    $region47: #{res_block3d_forward.4} parent=5 // pred_region
      %s348 = ssub.s32 %s15, 1
      %s349 = ssub.s32 %s25, 1
      %p350 = scmp.gt.s32.totalorder %s349, 0
      %s351 = scalar_select %p350, %s349, 0
      %p352 = scmp.lt.s32.totalorder %s24, 1
      %s353 = scalar_select %p352, %s24, 1
      %p354 = scmp.lt.s32.totalorder %s351, 7
      %s355 = scalar_select %p354, %s351, 7
      %s356 = smul.addr %s355, 3
      %s357 = smul.addr %s353, 24
      %s358 = sadd.s32 %s356, %s357
      %s359 = smul.addr %s358, 4
      %s360 = scalar_lea.vmem %s0, %s359
      %p361 = pneg %p61
      %p362 = pneg %p58
      %p363 = scmp.lt.s32.totalorder %s24, 1
      %s364 = scalar_select %p363, %s24, 1
      %p365 = scmp.lt.s32.totalorder %s25, 7
      %s366 = scalar_select %p365, %s25, 7
      %s367 = smul.addr %s366, 3
      %s368 = smul.addr %s364, 24
      %s369 = sadd.s32 %s367, %s368
      %s370 = smul.addr %s369, 4
      %s371 = scalar_lea.vmem %s1, %s370
      %p372 = pneg %p89
      %p373 = pneg %p86
      %s374 = sadd.s32 %s25, 1
      %p375 = scmp.lt.s32.totalorder %s374, 7
      %s376 = scalar_select %p375, %s374, 7
      %p377 = scmp.lt.s32.totalorder %s24, 1
      %s378 = scalar_select %p377, %s24, 1
      %p379 = scmp.lt.s32.totalorder %s376, 7
      %s380 = scalar_select %p379, %s376, 7
      %s381 = smul.addr %s380, 3
      %s382 = smul.addr %s378, 24
      %s383 = sadd.s32 %s381, %s382
      %s384 = smul.addr %s383, 4
      %s385 = scalar_lea.vmem %s2, %s384
      %p386 = pneg %p123
      %p387 = pneg %p120
      %p388 = pneg %p144
      %p389 = pneg %p141
      %p390 = pneg %p165
      %p391 = pneg %p162
      %p392 = pneg %p186
      %p393 = pneg %p183
      %p394 = pneg %p207
      %p395 = pneg %p204
      %p396 = pneg %p235
      %p397 = pneg %p232
      %p398 = scmp.lt.s32.totalorder %s24, 1
      %s399 = scalar_select %p398, %s24, 1
      %p400 = scmp.lt.s32.totalorder %s25, 7
      %s401 = scalar_select %p400, %s25, 7
      %s402 = smul.addr %s401, 3
      %s403 = smul.addr %s399, 24
      %s404 = sadd.s32 %s402, %s403
      %s405 = smul.addr %s404, 4
      %s406 = scalar_lea.vmem %s7, %s405
      %p407 = pneg %p263
      %p408 = pneg %p260
      %p409 = scmp.lt.s32.totalorder %s24, 1
      %s410 = scalar_select %p409, %s24, 1
      %p411 = scmp.lt.s32.totalorder %s25, 7
      %s412 = scalar_select %p411, %s25, 7
      %s413 = smul.addr %s410, 8
      %s414 = sadd.s32 %s412, %s413
      %s415 = smul.addr %s414, 4
      %s416 = scalar_lea.vmem %s8, %s415
      %s417 = ssub.s32 %s25, 1
      %p418 = scmp.gt.s32.totalorder %s417, 0
      %s419 = scalar_select %p418, %s417, 0
      %p420 = scmp.lt.s32.totalorder %s24, 1
      %s421 = scalar_select %p420, %s24, 1
      %p422 = scmp.lt.s32.totalorder %s419, 7
      %s423 = scalar_select %p422, %s419, 7
      %s424 = smul.addr %s423, 3
      %s425 = smul.addr %s421, 24
      %s426 = sadd.s32 %s424, %s425
      %s427 = smul.addr %s426, 4
      %s428 = scalar_lea.vmem %s0, %s427
      %s429 = ssub.s32 %s25, 1
      %p430 = scmp.gt.s32.totalorder %s429, 0
      %s431 = scalar_select %p430, %s429, 0
      %p432 = scmp.lt.s32.totalorder %s24, 1
      %s433 = scalar_select %p432, %s24, 1
      %p434 = scmp.lt.s32.totalorder %s25, 7
      %s435 = scalar_select %p434, %s25, 7
      %s436 = smul.addr %s435, 3
      %s437 = smul.addr %s433, 24
      %s438 = sadd.s32 %s436, %s437
      %s439 = smul.addr %s438, 4
      %s440 = scalar_lea.vmem %s1, %s439
      %s441 = sadd.s32 %s25, 1
      %p442 = scmp.lt.s32.totalorder %s441, 7
      %s443 = scalar_select %p442, %s441, 7
      %p444 = scmp.lt.s32.totalorder %s24, 1
      %s445 = scalar_select %p444, %s24, 1
      %p446 = scmp.lt.s32.totalorder %s443, 7
      %s447 = scalar_select %p446, %s443, 7
      %s448 = smul.addr %s447, 3
      %s449 = smul.addr %s445, 24
      %s450 = sadd.s32 %s448, %s449
      %s451 = smul.addr %s450, 4
      %s452 = scalar_lea.vmem %s2, %s451
      %s453 = sadd.s32 %s25, 1
      %p454 = scmp.lt.s32.totalorder %s453, 7
      %s455 = scalar_select %p454, %s453, 7
      %p456 = scmp.lt.s32.totalorder %s24, 1
      %s457 = scalar_select %p456, %s24, 1
      %p458 = scmp.lt.s32.totalorder %s25, 7
      %s459 = scalar_select %p458, %s25, 7
      %s460 = smul.addr %s459, 3
      %s461 = smul.addr %s457, 24
      %s462 = sadd.s32 %s460, %s461
      %s463 = smul.addr %s462, 4
      %s464 = scalar_lea.vmem %s7, %s463
      %p465 = scmp.lt.s32.totalorder %s24, 1
      %s466 = scalar_select %p465, %s24, 1
      %p467 = scmp.lt.s32.totalorder %s25, 7
      %s468 = scalar_select %p467, %s25, 7
      %s469 = smul.addr %s466, 8
      %s470 = sadd.s32 %s468, %s469
      %s471 = smul.addr %s470, 4
      %s472 = scalar_lea.vmem %s8, %s471
      %v474 = vld [vmem:[%s6] sm:$0x7]
      %v475 = vld [vmem:[%s4] sm:$0xf]
      %v476 = vld [vmem:[%s5] sm:$0xf]
      %p477 = scmp.gt.s32.totalorder %s25, 0
      %s478 = scalar_select %p477, 1, 0
      %s479 = scvt.s32.f32 %s478
      %p480 = scmp.lt.s32.totalorder %s25, 7
      %s481 = scalar_select %p480, 1, 0
      %s482 = scvt.s32.f32 %s481
      %v483 = vld [vmem:[%s428] sm:$0xff]
      %v484 = vld [vmem:[%s428 + $0x8] sm:$0xf]
      %486 = vset.pattern.permute.xlu0 0
      %487 = vperm.xlu0 %486, %v475
      %v488 = vpop.permute.xlu0 %487
      %v490 = vunpack.c.l.s4 839922192
      %v491 = vunpack.c.0.s8 %v490
      %v492 = vlaneseq
      %v493 = vshrl.u32 %v492, 7
      %v494 = vsub.s32 %v491, %v493
      %v495 = vrot.slane %v488, %v494
      %v497 = vmul.f32 %v483, %v495
      %v498 = vmul.f32 %v484, %v495
      %500 = vset.pattern.permute.xlu0 0
      %501 = vperm.xlu0 %500, %v476
      %v502 = vpop.permute.xlu0 %501
      %v504 = vunpack.c.l.s4 839922192
      %v505 = vunpack.c.0.s8 %v504
      %v506 = vlaneseq
      %v507 = vshrl.u32 %v506, 7
      %v508 = vsub.s32 %v505, %v507
      %v509 = vrot.slane %v502, %v508
      %v511 = vadd.f32 %v497, %v509
      %v512 = vadd.f32 %v498, %v509
      %v513 = vmax.f32 %v511, 0.0
      %v514 = vmax.f32 %v512, 0.0
      %v515 = vstv %s479
      %v516 = vmul.f32 %v474, %v515
      %v518 = vlaneseq
      %v519 = vshrl.u32 %v518, 7
      %v520 = vsub.s32 0, %v519
      %v521 = vrot.slane %v516, %v520
      %v522 = vlaneseq
      %v523 = vshrl.u32 %v522, 7
      %v524 = vsub.s32 1, %v523
      %v525 = vrot.slane %v516, %v524
      %v526 = vlaneseq
      %v527 = vshrl.u32 %v526, 7
      %v528 = vsub.s32 2, %v527
      %v529 = vrot.slane %v516, %v528
      %v531 = vcombine.low %v521, %v525
      %v533 = vmul.f32 %v513, %v531
      %v534 = vmul.f32 %v514, %v529
      %v536 = vcombine.high %v533, %v533
      %v538 = vpack.c.bf16 %v533, %v533
      %v539 = vpack.c.bf16 %v536, %v536
      %v540 = vpack.c.bf16 %v534, %v534
      %544 = vrot.lane.b32.xlu0 %v538, 19
      %v545 = vpop.permute.xlu0 %544
      %546 = vrot.lane.b32.xlu0 %v539, 19
      %v547 = vpop.permute.xlu0 %546
      %548 = vrot.lane.b32.xlu0 %v540, 19
      %v549 = vpop.permute.xlu0 %548
      %vm550 = vcmask 154624
      %v551 = vsel %vm550, %v545, %v547
      %v552 = vsel %vm550, %v547, %v549
      %vm553 = vcmask 154624
      %v556 = vsel %vm553, 0, %v545
      %vm557 = vcmask 711680
      %v559 = vsel %vm557, %v552, 0
      %v560 = vld [vmem:[%s440] sm:$0xff]
      %v561 = vld [vmem:[%s440 + $0x8] sm:$0xf]
      %v562 = vmul.f32 %v560, %v495
      %v563 = vmul.f32 %v561, %v495
      %v564 = vadd.f32 %v562, %v509
      %v565 = vadd.f32 %v563, %v509
      %v566 = vmax.f32 %v564, 0.0
      %v567 = vmax.f32 %v565, 0.0
      %v569 = vlaneseq
      %v570 = vshrl.u32 %v569, 7
      %v571 = vsub.s32 0, %v570
      %v572 = vrot.slane %v474, %v571
      %v573 = vlaneseq
      %v574 = vshrl.u32 %v573, 7
      %v575 = vsub.s32 1, %v574
      %v576 = vrot.slane %v474, %v575
      %v577 = vlaneseq
      %v578 = vshrl.u32 %v577, 7
      %v579 = vsub.s32 2, %v578
      %v580 = vrot.slane %v474, %v579
      %v584 = vcombine.low %v572, %v576
      %v586 = vmul.f32 %v566, %v584
      %v587 = vmul.f32 %v567, %v580
      %v589 = vcombine.high %v586, %v586
      %v591 = vpack.c.bf16 %v586, %v586
      %v592 = vpack.c.bf16 %v589, %v589
      %v593 = vpack.c.bf16 %v587, %v587
      %597 = vrot.lane.b32.xlu0 %v591, 19
      %v598 = vpop.permute.xlu0 %597
      %599 = vrot.lane.b32.xlu0 %v592, 19
      %v600 = vpop.permute.xlu0 %599
      %601 = vrot.lane.b32.xlu0 %v593, 19
      %v602 = vpop.permute.xlu0 %601
      %v603 = vsel %vm550, %v598, %v600
      %v604 = vsel %vm550, %v600, %v602
      %v606 = vsel %vm553, 0, %v598
      %v608 = vsel %vm557, %v604, 0
      %v609 = vld [vmem:[%s452] sm:$0xff]
      %v610 = vld [vmem:[%s452 + $0x8] sm:$0xf]
      %v611 = vmul.f32 %v609, %v495
      %v612 = vmul.f32 %v610, %v495
      %v613 = vadd.f32 %v611, %v509
      %v614 = vadd.f32 %v612, %v509
      %v615 = vmax.f32 %v613, 0.0
      %v616 = vmax.f32 %v614, 0.0
      %v617 = vstv %s482
      %v618 = vmul.f32 %v474, %v617
      %v620 = vlaneseq
      %v621 = vshrl.u32 %v620, 7
      %v622 = vsub.s32 0, %v621
      %v623 = vrot.slane %v618, %v622
      %v624 = vlaneseq
      %v625 = vshrl.u32 %v624, 7
      %v626 = vsub.s32 1, %v625
      %v627 = vrot.slane %v618, %v626
      %v628 = vlaneseq
      %v629 = vshrl.u32 %v628, 7
      %v630 = vsub.s32 2, %v629
      %v631 = vrot.slane %v618, %v630
      %v633 = vcombine.low %v623, %v627
      %v635 = vmul.f32 %v615, %v633
      %v636 = vmul.f32 %v616, %v631
      %v638 = vcombine.high %v635, %v635
      %v640 = vpack.c.bf16 %v635, %v635
      %v641 = vpack.c.bf16 %v638, %v638
      %v642 = vpack.c.bf16 %v636, %v636
      %646 = vrot.lane.b32.xlu0 %v640, 19
      %v647 = vpop.permute.xlu0 %646
      %648 = vrot.lane.b32.xlu0 %v641, 19
      %v649 = vpop.permute.xlu0 %648
      %650 = vrot.lane.b32.xlu0 %v642, 19
      %v651 = vpop.permute.xlu0 %650
      %v652 = vsel %vm550, %v647, %v649
      %v653 = vsel %vm550, %v649, %v651
      %v655 = vsel %vm553, 0, %v647
      %v657 = vsel %vm557, %v653, 0
      %v658 = vld [vmem:[%s3] sm:$0x3]
      %s659 = scalar_lea.vmem %s3, 2
      %v660 = vld [vmem:[%s659] sm:$0x3]
      %663 = vrot.lane.b32.xlu0 %v556, 127
      %v664 = vpop.permute.xlu0 %663
      %665 = vrot.lane.b32.xlu0 %v551, 127
      %v666 = vpop.permute.xlu0 %665
      %667 = vrot.lane.b32.xlu0 %v559, 127
      %v668 = vpop.permute.xlu0 %667
      %vm669 = vcmask 1039360
      %v670 = vsel %vm669, %v664, %v666
      %v671 = vsel %vm669, %v666, %v668
      %vm672 = vcmask 31744
      %v674 = vsel %vm672, %v660, 0
      %vm676 = vcmask 1041408
      %v678 = vsel %vm676, %v670, 0
      %v681 = vsel %vm676, %v671, 0
      %v684 = vsel %vm676, %v668, 0
      %686 = vmatprep.subr.bf16.mxu0 %v681
      %687 = vmatpush1.bf16.msra.mxu0 %v678
      %688 = vmatprep.subr.bf16.mxu0 0
      %689 = vmatpush1.bf16.msra.mxu0 0
      %690 = vmatprep.subr.bf16.mxu0 0
      %691 = vmatpush1.bf16.msra.mxu0 0
      %692 = vmatprep.subr.bf16.mxu0 0
      %693 = vmatpush1.bf16.msra.mxu0 0
      %694 = vmatprep.subr.bf16.mxu0 0
      %695 = vmatpush1.bf16.msra.mxu0 0
      %696 = vmatprep.subr.bf16.mxu0 0
      %697 = vmatpush1.bf16.msra.mxu0 0
      %698 = vmatprep.subr.bf16.mxu0 0
      %699 = vmatpush1.bf16.msra.mxu0 0
      %700 = vmatprep.subr.bf16.mxu0 0
      %701 = vmatpush1.bf16.msra.mxu0 0
      %702 = vmatprep.subr.bf16.mxu0 0
      %703 = vmatpush1.bf16.msra.mxu0 0
      %704 = vmatprep.subr.bf16.mxu0 0
      %705 = vmatpush1.bf16.msra.mxu0 0
      %706 = vmatprep.subr.bf16.mxu0 0
      %707 = vmatpush1.bf16.msra.mxu0 0
      %708 = vmatprep.subr.bf16.mxu0 0
      %709 = vmatpush1.bf16.msra.mxu0 0
      %710 = vmatprep.subr.bf16.mxu0 0
      %711 = vmatpush1.bf16.msra.mxu0 0
      %712 = vmatprep.subr.bf16.mxu0 0
      %713 = vmatpush1.bf16.msra.mxu0 0
      %714 = vmatprep.subr.bf16.mxu0 0
      %715 = vmatpush1.bf16.msra.mxu0 0
      %716 = vmatprep.subr.bf16.mxu0 0
      %717 = vmatpush1.bf16.msra.mxu0 0
      %718 = vmatprep.mubr.bf16.mxu0 0
      %719 = vmatmul.mubr.bf16.gmra.mrb[0].mxu0 %v674
      %v720 = vpop.f32.mrb[0].mxu0
      %v721 = vadd.f32 0.0, %v720
      %v722 = vpop.f32.mrb[0].mxu0
      %v723 = vadd.f32 0.0, %v722
      %v724 = vpop.f32.mrb[0].mxu0
      %v725 = vpop.f32.mrb[0].mxu0
      %726 = vdwg.mxu0
      %727 = vmatprep.subr.bf16.mxu0 0
      %728 = vmatpush1.bf16.msra.mxu0 %v684
      %729 = vmatprep.subr.bf16.mxu0 0
      %730 = vmatpush1.bf16.msra.mxu0 0
      %731 = vmatprep.subr.bf16.mxu0 0
      %732 = vmatpush1.bf16.msra.mxu0 0
      %733 = vmatprep.subr.bf16.mxu0 0
      %734 = vmatpush1.bf16.msra.mxu0 0
      %735 = vmatprep.subr.bf16.mxu0 0
      %736 = vmatpush1.bf16.msra.mxu0 0
      %737 = vmatprep.subr.bf16.mxu0 0
      %738 = vmatpush1.bf16.msra.mxu0 0
      %739 = vmatprep.subr.bf16.mxu0 0
      %740 = vmatpush1.bf16.msra.mxu0 0
      %741 = vmatprep.subr.bf16.mxu0 0
      %742 = vmatpush1.bf16.msra.mxu0 0
      %743 = vmatprep.subr.bf16.mxu0 0
      %744 = vmatpush1.bf16.msra.mxu0 0
      %745 = vmatprep.subr.bf16.mxu0 0
      %746 = vmatpush1.bf16.msra.mxu0 0
      %747 = vmatprep.subr.bf16.mxu0 0
      %748 = vmatpush1.bf16.msra.mxu0 0
      %749 = vmatprep.subr.bf16.mxu0 0
      %750 = vmatpush1.bf16.msra.mxu0 0
      %751 = vmatprep.subr.bf16.mxu0 0
      %752 = vmatpush1.bf16.msra.mxu0 0
      %753 = vmatprep.subr.bf16.mxu0 0
      %754 = vmatpush1.bf16.msra.mxu0 0
      %755 = vmatprep.subr.bf16.mxu0 0
      %756 = vmatpush1.bf16.msra.mxu0 0
      %757 = vmatprep.subr.bf16.mxu0 0
      %758 = vmatpush1.bf16.msra.mxu0 0
      %759 = vmatprep.mubr.bf16.mxu0 0
      %760 = vmatmul.mubr.bf16.gmra.mrb[0].mxu0 %v674
      %v761 = vpop.f32.mrb[0].mxu0
      %v762 = vadd.f32 0.0, %v761
      %v763 = vpop.f32.mrb[0].mxu0
      %v764 = vpop.f32.mrb[0].mxu0
      %v765 = vpop.f32.mrb[0].mxu0
      %766 = vdwg.mxu0
      %v768 = vsel %vm672, %v658, 0
      %v770 = vsel %vm676, %v556, 0
      %v773 = vsel %vm676, %v551, 0
      %v775 = vsel %vm676, %v559, 0
      %777 = vmatprep.subr.bf16.mxu0 %v773
      %778 = vmatpush1.bf16.msra.mxu0 %v770
      %779 = vmatprep.subr.bf16.mxu0 0
      %780 = vmatpush1.bf16.msra.mxu0 0
      %781 = vmatprep.subr.bf16.mxu0 0
      %782 = vmatpush1.bf16.msra.mxu0 0
      %783 = vmatprep.subr.bf16.mxu0 0
      %784 = vmatpush1.bf16.msra.mxu0 0
      %785 = vmatprep.subr.bf16.mxu0 0
      %786 = vmatpush1.bf16.msra.mxu0 0
      %787 = vmatprep.subr.bf16.mxu0 0
      %788 = vmatpush1.bf16.msra.mxu0 0
      %789 = vmatprep.subr.bf16.mxu0 0
      %790 = vmatpush1.bf16.msra.mxu0 0
      %791 = vmatprep.subr.bf16.mxu0 0
      %792 = vmatpush1.bf16.msra.mxu0 0
      %793 = vmatprep.subr.bf16.mxu0 0
      %794 = vmatpush1.bf16.msra.mxu0 0
      %795 = vmatprep.subr.bf16.mxu0 0
      %796 = vmatpush1.bf16.msra.mxu0 0
      %797 = vmatprep.subr.bf16.mxu0 0
      %798 = vmatpush1.bf16.msra.mxu0 0
      %799 = vmatprep.subr.bf16.mxu0 0
      %800 = vmatpush1.bf16.msra.mxu0 0
      %801 = vmatprep.subr.bf16.mxu0 0
      %802 = vmatpush1.bf16.msra.mxu0 0
      %803 = vmatprep.subr.bf16.mxu0 0
      %804 = vmatpush1.bf16.msra.mxu0 0
      %805 = vmatprep.subr.bf16.mxu0 0
      %806 = vmatpush1.bf16.msra.mxu0 0
      %807 = vmatprep.subr.bf16.mxu0 0
      %808 = vmatpush1.bf16.msra.mxu0 0
      %809 = vmatprep.mubr.bf16.mxu0 0
      %810 = vmatmul.mubr.bf16.gmra.mrb[0].mxu0 %v768
      %v811 = vpop.f32.mrb[0].mxu0
      %v812 = vadd.f32 %v721, %v811
      %v813 = vpop.f32.mrb[0].mxu0
      %v814 = vadd.f32 %v723, %v813
      %v815 = vpop.f32.mrb[0].mxu0
      %v816 = vpop.f32.mrb[0].mxu0
      %817 = vdwg.mxu0
      %818 = vmatprep.subr.bf16.mxu0 0
      %819 = vmatpush1.bf16.msra.mxu0 %v775
      %820 = vmatprep.subr.bf16.mxu0 0
      %821 = vmatpush1.bf16.msra.mxu0 0
      %822 = vmatprep.subr.bf16.mxu0 0
      %823 = vmatpush1.bf16.msra.mxu0 0
      %824 = vmatprep.subr.bf16.mxu0 0
      %825 = vmatpush1.bf16.msra.mxu0 0
      %826 = vmatprep.subr.bf16.mxu0 0
      %827 = vmatpush1.bf16.msra.mxu0 0
      %828 = vmatprep.subr.bf16.mxu0 0
      %829 = vmatpush1.bf16.msra.mxu0 0
      %830 = vmatprep.subr.bf16.mxu0 0
      %831 = vmatpush1.bf16.msra.mxu0 0
      %832 = vmatprep.subr.bf16.mxu0 0
      %833 = vmatpush1.bf16.msra.mxu0 0
      %834 = vmatprep.subr.bf16.mxu0 0
      %835 = vmatpush1.bf16.msra.mxu0 0
      %836 = vmatprep.subr.bf16.mxu0 0
      %837 = vmatpush1.bf16.msra.mxu0 0
      %838 = vmatprep.subr.bf16.mxu0 0
      %839 = vmatpush1.bf16.msra.mxu0 0
      %840 = vmatprep.subr.bf16.mxu0 0
      %841 = vmatpush1.bf16.msra.mxu0 0
      %842 = vmatprep.subr.bf16.mxu0 0
      %843 = vmatpush1.bf16.msra.mxu0 0
      %844 = vmatprep.subr.bf16.mxu0 0
      %845 = vmatpush1.bf16.msra.mxu0 0
      %846 = vmatprep.subr.bf16.mxu0 0
      %847 = vmatpush1.bf16.msra.mxu0 0
      %848 = vmatprep.subr.bf16.mxu0 0
      %849 = vmatpush1.bf16.msra.mxu0 0
      %850 = vmatprep.mubr.bf16.mxu0 0
      %851 = vmatmul.mubr.bf16.gmra.mrb[0].mxu0 %v768
      %v852 = vpop.f32.mrb[0].mxu0
      %v853 = vadd.f32 %v762, %v852
      %v854 = vpop.f32.mrb[0].mxu0
      %v855 = vpop.f32.mrb[0].mxu0
      %v856 = vpop.f32.mrb[0].mxu0
      %857 = vdwg.mxu0
      %s858 = scalar_lea.vmem %s3, 4
      %v859 = vld [vmem:[%s858] sm:$0x3]
      %860 = vrot.lane.b32.xlu0 %v556, 126
      %v861 = vpop.permute.xlu0 %860
      %862 = vrot.lane.b32.xlu0 %v551, 126
      %v863 = vpop.permute.xlu0 %862
      %864 = vrot.lane.b32.xlu0 %v559, 126
      %v865 = vpop.permute.xlu0 %864
      %vm866 = vcmask 1031168
      %v867 = vsel %vm866, %v861, %v863
      %v868 = vsel %vm866, %v863, %v865
      %v870 = vsel %vm672, %v859, 0
      %v873 = vsel %vm676, %v867, 0
      %v876 = vsel %vm676, %v868, 0
      %v879 = vsel %vm676, %v865, 0
      %881 = vmatprep.subr.bf16.mxu0 %v876
      %882 = vmatpush1.bf16.msra.mxu0 %v873
      %883 = vmatprep.subr.bf16.mxu0 0
      %884 = vmatpush1.bf16.msra.mxu0 0
      %885 = vmatprep.subr.bf16.mxu0 0
      %886 = vmatpush1.bf16.msra.mxu0 0
      %887 = vmatprep.subr.bf16.mxu0 0
      %888 = vmatpush1.bf16.msra.mxu0 0
      %889 = vmatprep.subr.bf16.mxu0 0
      %890 = vmatpush1.bf16.msra.mxu0 0
      %891 = vmatprep.subr.bf16.mxu0 0
      %892 = vmatpush1.bf16.msra.mxu0 0
      %893 = vmatprep.subr.bf16.mxu0 0
      %894 = vmatpush1.bf16.msra.mxu0 0
      %895 = vmatprep.subr.bf16.mxu0 0
      %896 = vmatpush1.bf16.msra.mxu0 0
      %897 = vmatprep.subr.bf16.mxu0 0
      %898 = vmatpush1.bf16.msra.mxu0 0
      %899 = vmatprep.subr.bf16.mxu0 0
      %900 = vmatpush1.bf16.msra.mxu0 0
      %901 = vmatprep.subr.bf16.mxu0 0
      %902 = vmatpush1.bf16.msra.mxu0 0
      %903 = vmatprep.subr.bf16.mxu0 0
      %904 = vmatpush1.bf16.msra.mxu0 0
      %905 = vmatprep.subr.bf16.mxu0 0
      %906 = vmatpush1.bf16.msra.mxu0 0
      %907 = vmatprep.subr.bf16.mxu0 0
      %908 = vmatpush1.bf16.msra.mxu0 0
      %909 = vmatprep.subr.bf16.mxu0 0
      %910 = vmatpush1.bf16.msra.mxu0 0
      %911 = vmatprep.subr.bf16.mxu0 0
      %912 = vmatpush1.bf16.msra.mxu0 0
      %913 = vmatprep.mubr.bf16.mxu0 0
      %914 = vmatmul.mubr.bf16.gmra.mrb[0].mxu0 %v870
      %v915 = vpop.f32.mrb[0].mxu0
      %v916 = vadd.f32 0.0, %v915
      %v917 = vpop.f32.mrb[0].mxu0
      %v918 = vadd.f32 0.0, %v917
      %v919 = vpop.f32.mrb[0].mxu0
      %v920 = vpop.f32.mrb[0].mxu0
      %921 = vdwg.mxu0
      %922 = vmatprep.subr.bf16.mxu0 0
      %923 = vmatpush1.bf16.msra.mxu0 %v879
      %924 = vmatprep.subr.bf16.mxu0 0
      %925 = vmatpush1.bf16.msra.mxu0 0
      %926 = vmatprep.subr.bf16.mxu0 0
      %927 = vmatpush1.bf16.msra.mxu0 0
      %928 = vmatprep.subr.bf16.mxu0 0
      %929 = vmatpush1.bf16.msra.mxu0 0
      %930 = vmatprep.subr.bf16.mxu0 0
      %931 = vmatpush1.bf16.msra.mxu0 0
      %932 = vmatprep.subr.bf16.mxu0 0
      %933 = vmatpush1.bf16.msra.mxu0 0
      %934 = vmatprep.subr.bf16.mxu0 0
      %935 = vmatpush1.bf16.msra.mxu0 0
      %936 = vmatprep.subr.bf16.mxu0 0
      %937 = vmatpush1.bf16.msra.mxu0 0
      %938 = vmatprep.subr.bf16.mxu0 0
      %939 = vmatpush1.bf16.msra.mxu0 0
      %940 = vmatprep.subr.bf16.mxu0 0
      %941 = vmatpush1.bf16.msra.mxu0 0
      %942 = vmatprep.subr.bf16.mxu0 0
      %943 = vmatpush1.bf16.msra.mxu0 0
      %944 = vmatprep.subr.bf16.mxu0 0
      %945 = vmatpush1.bf16.msra.mxu0 0
      %946 = vmatprep.subr.bf16.mxu0 0
      %947 = vmatpush1.bf16.msra.mxu0 0
      %948 = vmatprep.subr.bf16.mxu0 0
      %949 = vmatpush1.bf16.msra.mxu0 0
      %950 = vmatprep.subr.bf16.mxu0 0
      %951 = vmatpush1.bf16.msra.mxu0 0
      %952 = vmatprep.subr.bf16.mxu0 0
      %953 = vmatpush1.bf16.msra.mxu0 0
      %954 = vmatprep.mubr.bf16.mxu0 0
      %955 = vmatmul.mubr.bf16.gmra.mrb[0].mxu0 %v870
      %v956 = vpop.f32.mrb[0].mxu0
      %v957 = vadd.f32 0.0, %v956
      %v958 = vpop.f32.mrb[0].mxu0
      %v959 = vpop.f32.mrb[0].mxu0
      %v960 = vpop.f32.mrb[0].mxu0
      %961 = vdwg.mxu0
      %v962 = vadd.f32 %v812, %v916
      %v963 = vadd.f32 %v814, %v918
      %v964 = vadd.f32 %v853, %v957
      %s965 = scalar_lea.vmem %s3, 6
      %v966 = vld [vmem:[%s965] sm:$0x3]
      %967 = vrot.lane.b32.xlu0 %v556, 110
      %v968 = vpop.permute.xlu0 %967
      %969 = vrot.lane.b32.xlu0 %v551, 110
      %v970 = vpop.permute.xlu0 %969
      %971 = vrot.lane.b32.xlu0 %v559, 110
      %v972 = vpop.permute.xlu0 %971
      %vm973 = vcmask 900096
      %v974 = vsel %vm973, %v968, %v970
      %v975 = vsel %vm973, %v970, %v972
      %v977 = vsel %vm672, %v966, 0
      %v980 = vsel %vm676, %v974, 0
      %v983 = vsel %vm676, %v975, 0
      %v986 = vsel %vm676, %v972, 0
      %988 = vmatprep.subr.bf16.mxu0 %v983
      %989 = vmatpush1.bf16.msra.mxu0 %v980
      %990 = vmatprep.subr.bf16.mxu0 0
      %991 = vmatpush1.bf16.msra.mxu0 0
      %992 = vmatprep.subr.bf16.mxu0 0
      %993 = vmatpush1.bf16.msra.mxu0 0
      %994 = vmatprep.subr.bf16.mxu0 0
      %995 = vmatpush1.bf16.msra.mxu0 0
      %996 = vmatprep.subr.bf16.mxu0 0
      %997 = vmatpush1.bf16.msra.mxu0 0
      %998 = vmatprep.subr.bf16.mxu0 0
      %999 = vmatpush1.bf16.msra.mxu0 0
      %1000 = vmatprep.subr.bf16.mxu0 0
      %1001 = vmatpush1.bf16.msra.mxu0 0
      %1002 = vmatprep.subr.bf16.mxu0 0
      %1003 = vmatpush1.bf16.msra.mxu0 0
      %1004 = vmatprep.subr.bf16.mxu0 0
      %1005 = vmatpush1.bf16.msra.mxu0 0
      %1006 = vmatprep.subr.bf16.mxu0 0
      %1007 = vmatpush1.bf16.msra.mxu0 0
      %1008 = vmatprep.subr.bf16.mxu0 0
      %1009 = vmatpush1.bf16.msra.mxu0 0
      %1010 = vmatprep.subr.bf16.mxu0 0
      %1011 = vmatpush1.bf16.msra.mxu0 0
      %1012 = vmatprep.subr.bf16.mxu0 0
      %1013 = vmatpush1.bf16.msra.mxu0 0
      %1014 = vmatprep.subr.bf16.mxu0 0
      %1015 = vmatpush1.bf16.msra.mxu0 0
      %1016 = vmatprep.subr.bf16.mxu0 0
      %1017 = vmatpush1.bf16.msra.mxu0 0
      %1018 = vmatprep.subr.bf16.mxu0 0
      %1019 = vmatpush1.bf16.msra.mxu0 0
      %1020 = vmatprep.mubr.bf16.mxu0 0
      %1021 = vmatmul.mubr.bf16.gmra.mrb[0].mxu0 %v977
      %v1022 = vpop.f32.mrb[0].mxu0
      %v1023 = vadd.f32 0.0, %v1022
      %v1024 = vpop.f32.mrb[0].mxu0
      %v1025 = vadd.f32 0.0, %v1024
      %v1026 = vpop.f32.mrb[0].mxu0
      %v1027 = vpop.f32.mrb[0].mxu0
      %1028 = vdwg.mxu0
      %1029 = vmatprep.subr.bf16.mxu0 0
      %1030 = vmatpush1.bf16.msra.mxu0 %v986
      %1031 = vmatprep.subr.bf16.mxu0 0
      %1032 = vmatpush1.bf16.msra.mxu0 0
      %1033 = vmatprep.subr.bf16.mxu0 0
      %1034 = vmatpush1.bf16.msra.mxu0 0
      %1035 = vmatprep.subr.bf16.mxu0 0
      %1036 = vmatpush1.bf16.msra.mxu0 0
      %1037 = vmatprep.subr.bf16.mxu0 0
      %1038 = vmatpush1.bf16.msra.mxu0 0
      %1039 = vmatprep.subr.bf16.mxu0 0
      %1040 = vmatpush1.bf16.msra.mxu0 0
      %1041 = vmatprep.subr.bf16.mxu0 0
      %1042 = vmatpush1.bf16.msra.mxu0 0
      %1043 = vmatprep.subr.bf16.mxu0 0
      %1044 = vmatpush1.bf16.msra.mxu0 0
      %1045 = vmatprep.subr.bf16.mxu0 0
      %1046 = vmatpush1.bf16.msra.mxu0 0
      %1047 = vmatprep.subr.bf16.mxu0 0
      %1048 = vmatpush1.bf16.msra.mxu0 0
      %1049 = vmatprep.subr.bf16.mxu0 0
      %1050 = vmatpush1.bf16.msra.mxu0 0
      %1051 = vmatprep.subr.bf16.mxu0 0
      %1052 = vmatpush1.bf16.msra.mxu0 0
      %1053 = vmatprep.subr.bf16.mxu0 0
      %1054 = vmatpush1.bf16.msra.mxu0 0
      %1055 = vmatprep.subr.bf16.mxu0 0
      %1056 = vmatpush1.bf16.msra.mxu0 0
      %1057 = vmatprep.subr.bf16.mxu0 0
      %1058 = vmatpush1.bf16.msra.mxu0 0
      %1059 = vmatprep.subr.bf16.mxu0 0
      %1060 = vmatpush1.bf16.msra.mxu0 0
      %1061 = vmatprep.mubr.bf16.mxu0 0
      %1062 = vmatmul.mubr.bf16.gmra.mrb[0].mxu0 %v977
      %v1063 = vpop.f32.mrb[0].mxu0
      %v1064 = vadd.f32 0.0, %v1063
      %v1065 = vpop.f32.mrb[0].mxu0
      %v1066 = vpop.f32.mrb[0].mxu0
      %v1067 = vpop.f32.mrb[0].mxu0
      %1068 = vdwg.mxu0
      %v1069 = vadd.f32 %v962, %v1023
      %v1070 = vadd.f32 %v963, %v1025
      %v1071 = vadd.f32 %v964, %v1064
      %s1072 = scalar_lea.vmem %s3, 8
      %v1073 = vld [vmem:[%s1072] sm:$0x3]
      %1074 = vrot.lane.b32.xlu0 %v556, 109
      %v1075 = vpop.permute.xlu0 %1074
      %1076 = vrot.lane.b32.xlu0 %v551, 109
      %v1077 = vpop.permute.xlu0 %1076
      %1078 = vrot.lane.b32.xlu0 %v559, 109
      %v1079 = vpop.permute.xlu0 %1078
      %vm1080 = vcmask 891904
      %v1081 = vsel %vm1080, %v1075, %v1077
      %v1082 = vsel %vm1080, %v1077, %v1079
      %v1084 = vsel %vm672, %v1073, 0
      %v1087 = vsel %vm676, %v1081, 0
      %v1090 = vsel %vm676, %v1082, 0
      %v1093 = vsel %vm676, %v1079, 0
      %1095 = vmatprep.subr.bf16.mxu0 %v1090
      %1096 = vmatpush1.bf16.msra.mxu0 %v1087
      %1097 = vmatprep.subr.bf16.mxu0 0
      %1098 = vmatpush1.bf16.msra.mxu0 0
      %1099 = vmatprep.subr.bf16.mxu0 0
      %1100 = vmatpush1.bf16.msra.mxu0 0
      %1101 = vmatprep.subr.bf16.mxu0 0
      %1102 = vmatpush1.bf16.msra.mxu0 0
      %1103 = vmatprep.subr.bf16.mxu0 0
      %1104 = vmatpush1.bf16.msra.mxu0 0
      %1105 = vmatprep.subr.bf16.mxu0 0
      %1106 = vmatpush1.bf16.msra.mxu0 0
      %1107 = vmatprep.subr.bf16.mxu0 0
      %1108 = vmatpush1.bf16.msra.mxu0 0
      %1109 = vmatprep.subr.bf16.mxu0 0
      %1110 = vmatpush1.bf16.msra.mxu0 0
      %1111 = vmatprep.subr.bf16.mxu0 0
      %1112 = vmatpush1.bf16.msra.mxu0 0
      %1113 = vmatprep.subr.bf16.mxu0 0
      %1114 = vmatpush1.bf16.msra.mxu0 0
      %1115 = vmatprep.subr.bf16.mxu0 0
      %1116 = vmatpush1.bf16.msra.mxu0 0
      %1117 = vmatprep.subr.bf16.mxu0 0
      %1118 = vmatpush1.bf16.msra.mxu0 0
      %1119 = vmatprep.subr.bf16.mxu0 0
      %1120 = vmatpush1.bf16.msra.mxu0 0
      %1121 = vmatprep.subr.bf16.mxu0 0
      %1122 = vmatpush1.bf16.msra.mxu0 0
      %1123 = vmatprep.subr.bf16.mxu0 0
      %1124 = vmatpush1.bf16.msra.mxu0 0
      %1125 = vmatprep.subr.bf16.mxu0 0
      %1126 = vmatpush1.bf16.msra.mxu0 0
      %1127 = vmatprep.mubr.bf16.mxu0 0
      %1128 = vmatmul.mubr.bf16.gmra.mrb[0].mxu0 %v1084
      %v1129 = vpop.f32.mrb[0].mxu0
      %v1130 = vadd.f32 0.0, %v1129
      %v1131 = vpop.f32.mrb[0].mxu0
      %v1132 = vadd.f32 0.0, %v1131
      %v1133 = vpop.f32.mrb[0].mxu0
      %v1134 = vpop.f32.mrb[0].mxu0
      %1135 = vdwg.mxu0
      %1136 = vmatprep.subr.bf16.mxu0 0
      %1137 = vmatpush1.bf16.msra.mxu0 %v1093
      %1138 = vmatprep.subr.bf16.mxu0 0
      %1139 = vmatpush1.bf16.msra.mxu0 0
      %1140 = vmatprep.subr.bf16.mxu0 0
      %1141 = vmatpush1.bf16.msra.mxu0 0
      %1142 = vmatprep.subr.bf16.mxu0 0
      %1143 = vmatpush1.bf16.msra.mxu0 0
      %1144 = vmatprep.subr.bf16.mxu0 0
      %1145 = vmatpush1.bf16.msra.mxu0 0
      %1146 = vmatprep.subr.bf16.mxu0 0
      %1147 = vmatpush1.bf16.msra.mxu0 0
      %1148 = vmatprep.subr.bf16.mxu0 0
      %1149 = vmatpush1.bf16.msra.mxu0 0
      %1150 = vmatprep.subr.bf16.mxu0 0
      %1151 = vmatpush1.bf16.msra.mxu0 0
      %1152 = vmatprep.subr.bf16.mxu0 0
      %1153 = vmatpush1.bf16.msra.mxu0 0
      %1154 = vmatprep.subr.bf16.mxu0 0
      %1155 = vmatpush1.bf16.msra.mxu0 0
      %1156 = vmatprep.subr.bf16.mxu0 0
      %1157 = vmatpush1.bf16.msra.mxu0 0
      %1158 = vmatprep.subr.bf16.mxu0 0
      %1159 = vmatpush1.bf16.msra.mxu0 0
      %1160 = vmatprep.subr.bf16.mxu0 0
      %1161 = vmatpush1.bf16.msra.mxu0 0
      %1162 = vmatprep.subr.bf16.mxu0 0
      %1163 = vmatpush1.bf16.msra.mxu0 0
      %1164 = vmatprep.subr.bf16.mxu0 0
      %1165 = vmatpush1.bf16.msra.mxu0 0
      %1166 = vmatprep.subr.bf16.mxu0 0
      %1167 = vmatpush1.bf16.msra.mxu0 0
      %1168 = vmatprep.mubr.bf16.mxu0 0
      %1169 = vmatmul.mubr.bf16.gmra.mrb[0].mxu0 %v1084
      %v1170 = vpop.f32.mrb[0].mxu0
      %v1171 = vadd.f32 0.0, %v1170
      %v1172 = vpop.f32.mrb[0].mxu0
      %v1173 = vpop.f32.mrb[0].mxu0
      %v1174 = vpop.f32.mrb[0].mxu0
      %1175 = vdwg.mxu0
      %v1176 = vadd.f32 %v1069, %v1130
      %v1177 = vadd.f32 %v1070, %v1132
      %v1178 = vadd.f32 %v1071, %v1171
      %s1179 = scalar_lea.vmem %s3, 10
      %v1180 = vld [vmem:[%s1179] sm:$0x3]
      %1181 = vrot.lane.b32.xlu0 %v556, 108
      %v1182 = vpop.permute.xlu0 %1181
      %1183 = vrot.lane.b32.xlu0 %v551, 108
      %v1184 = vpop.permute.xlu0 %1183
      %1185 = vrot.lane.b32.xlu0 %v559, 108
      %v1186 = vpop.permute.xlu0 %1185
      %vm1187 = vcmask 883712
      %v1188 = vsel %vm1187, %v1182, %v1184
      %v1189 = vsel %vm1187, %v1184, %v1186
      %v1191 = vsel %vm672, %v1180, 0
      %v1194 = vsel %vm676, %v1188, 0
      %v1197 = vsel %vm676, %v1189, 0
      %v1200 = vsel %vm676, %v1186, 0
      %1202 = vmatprep.subr.bf16.mxu0 %v1197
      %1203 = vmatpush1.bf16.msra.mxu0 %v1194
      %1204 = vmatprep.subr.bf16.mxu0 0
      %1205 = vmatpush1.bf16.msra.mxu0 0
      %1206 = vmatprep.subr.bf16.mxu0 0
      %1207 = vmatpush1.bf16.msra.mxu0 0
      %1208 = vmatprep.subr.bf16.mxu0 0
      %1209 = vmatpush1.bf16.msra.mxu0 0
      %1210 = vmatprep.subr.bf16.mxu0 0
      %1211 = vmatpush1.bf16.msra.mxu0 0
      %1212 = vmatprep.subr.bf16.mxu0 0
      %1213 = vmatpush1.bf16.msra.mxu0 0
      %1214 = vmatprep.subr.bf16.mxu0 0
      %1215 = vmatpush1.bf16.msra.mxu0 0
      %1216 = vmatprep.subr.bf16.mxu0 0
      %1217 = vmatpush1.bf16.msra.mxu0 0
      %1218 = vmatprep.subr.bf16.mxu0 0
      %1219 = vmatpush1.bf16.msra.mxu0 0
      %1220 = vmatprep.subr.bf16.mxu0 0
      %1221 = vmatpush1.bf16.msra.mxu0 0
      %1222 = vmatprep.subr.bf16.mxu0 0
      %1223 = vmatpush1.bf16.msra.mxu0 0
      %1224 = vmatprep.subr.bf16.mxu0 0
      %1225 = vmatpush1.bf16.msra.mxu0 0
      %1226 = vmatprep.subr.bf16.mxu0 0
      %1227 = vmatpush1.bf16.msra.mxu0 0
      %1228 = vmatprep.subr.bf16.mxu0 0
      %1229 = vmatpush1.bf16.msra.mxu0 0
      %1230 = vmatprep.subr.bf16.mxu0 0
      %1231 = vmatpush1.bf16.msra.mxu0 0
      %1232 = vmatprep.subr.bf16.mxu0 0
      %1233 = vmatpush1.bf16.msra.mxu0 0
      %1234 = vmatprep.mubr.bf16.mxu0 0
      %1235 = vmatmul.mubr.bf16.gmra.mrb[0].mxu0 %v1191
      %v1236 = vpop.f32.mrb[0].mxu0
      %v1237 = vadd.f32 0.0, %v1236
      %v1238 = vpop.f32.mrb[0].mxu0
      %v1239 = vadd.f32 0.0, %v1238
      %v1240 = vpop.f32.mrb[0].mxu0
      %v1241 = vpop.f32.mrb[0].mxu0
      %1242 = vdwg.mxu0
      %1243 = vmatprep.subr.bf16.mxu0 0
      %1244 = vmatpush1.bf16.msra.mxu0 %v1200
      %1245 = vmatprep.subr.bf16.mxu0 0
      %1246 = vmatpush1.bf16.msra.mxu0 0
      %1247 = vmatprep.subr.bf16.mxu0 0
      %1248 = vmatpush1.bf16.msra.mxu0 0
      %1249 = vmatprep.subr.bf16.mxu0 0
      %1250 = vmatpush1.bf16.msra.mxu0 0
      %1251 = vmatprep.subr.bf16.mxu0 0
      %1252 = vmatpush1.bf16.msra.mxu0 0
      %1253 = vmatprep.subr.bf16.mxu0 0
      %1254 = vmatpush1.bf16.msra.mxu0 0
      %1255 = vmatprep.subr.bf16.mxu0 0
      %1256 = vmatpush1.bf16.msra.mxu0 0
      %1257 = vmatprep.subr.bf16.mxu0 0
      %1258 = vmatpush1.bf16.msra.mxu0 0
      %1259 = vmatprep.subr.bf16.mxu0 0
      %1260 = vmatpush1.bf16.msra.mxu0 0
      %1261 = vmatprep.subr.bf16.mxu0 0
      %1262 = vmatpush1.bf16.msra.mxu0 0
      %1263 = vmatprep.subr.bf16.mxu0 0
      %1264 = vmatpush1.bf16.msra.mxu0 0
      %1265 = vmatprep.subr.bf16.mxu0 0
      %1266 = vmatpush1.bf16.msra.mxu0 0
      %1267 = vmatprep.subr.bf16.mxu0 0
      %1268 = vmatpush1.bf16.msra.mxu0 0
      %1269 = vmatprep.subr.bf16.mxu0 0
      %1270 = vmatpush1.bf16.msra.mxu0 0
      %1271 = vmatprep.subr.bf16.mxu0 0
      %1272 = vmatpush1.bf16.msra.mxu0 0
      %1273 = vmatprep.subr.bf16.mxu0 0
      %1274 = vmatpush1.bf16.msra.mxu0 0
      %1275 = vmatprep.mubr.bf16.mxu0 0
      %1276 = vmatmul.mubr.bf16.gmra.mrb[0].mxu0 %v1191
      %v1277 = vpop.f32.mrb[0].mxu0
      %v1278 = vadd.f32 0.0, %v1277
      %v1279 = vpop.f32.mrb[0].mxu0
      %v1280 = vpop.f32.mrb[0].mxu0
      %v1281 = vpop.f32.mrb[0].mxu0
      %1282 = vdwg.mxu0
      %v1283 = vadd.f32 %v1176, %v1237
      %v1284 = vadd.f32 %v1177, %v1239
      %v1285 = vadd.f32 %v1178, %v1278
      %s1286 = scalar_lea.vmem %s3, 12
      %v1287 = vld [vmem:[%s1286] sm:$0x3]
      %1288 = vrot.lane.b32.xlu0 %v556, 92
      %v1289 = vpop.permute.xlu0 %1288
      %1290 = vrot.lane.b32.xlu0 %v551, 92
      %v1291 = vpop.permute.xlu0 %1290
      %1292 = vrot.lane.b32.xlu0 %v559, 92
      %v1293 = vpop.permute.xlu0 %1292
      %vm1294 = vcmask 752640
      %v1295 = vsel %vm1294, %v1289, %v1291
      %v1296 = vsel %vm1294, %v1291, %v1293
      %v1298 = vsel %vm672, %v1287, 0
      %v1301 = vsel %vm676, %v1295, 0
      %v1304 = vsel %vm676, %v1296, 0
      %v1307 = vsel %vm676, %v1293, 0
      %1309 = vmatprep.subr.bf16.mxu0 %v1304
      %1310 = vmatpush1.bf16.msra.mxu0 %v1301
      %1311 = vmatprep.subr.bf16.mxu0 0
      %1312 = vmatpush1.bf16.msra.mxu0 0
      %1313 = vmatprep.subr.bf16.mxu0 0
      %1314 = vmatpush1.bf16.msra.mxu0 0
      %1315 = vmatprep.subr.bf16.mxu0 0
      %1316 = vmatpush1.bf16.msra.mxu0 0
      %1317 = vmatprep.subr.bf16.mxu0 0
      %1318 = vmatpush1.bf16.msra.mxu0 0
      %1319 = vmatprep.subr.bf16.mxu0 0
      %1320 = vmatpush1.bf16.msra.mxu0 0
      %1321 = vmatprep.subr.bf16.mxu0 0
      %1322 = vmatpush1.bf16.msra.mxu0 0
      %1323 = vmatprep.subr.bf16.mxu0 0
      %1324 = vmatpush1.bf16.msra.mxu0 0
      %1325 = vmatprep.subr.bf16.mxu0 0
      %1326 = vmatpush1.bf16.msra.mxu0 0
      %1327 = vmatprep.subr.bf16.mxu0 0
      %1328 = vmatpush1.bf16.msra.mxu0 0
      %1329 = vmatprep.subr.bf16.mxu0 0
      %1330 = vmatpush1.bf16.msra.mxu0 0
      %1331 = vmatprep.subr.bf16.mxu0 0
      %1332 = vmatpush1.bf16.msra.mxu0 0
      %1333 = vmatprep.subr.bf16.mxu0 0
      %1334 = vmatpush1.bf16.msra.mxu0 0
      %1335 = vmatprep.subr.bf16.mxu0 0
      %1336 = vmatpush1.bf16.msra.mxu0 0
      %1337 = vmatprep.subr.bf16.mxu0 0
      %1338 = vmatpush1.bf16.msra.mxu0 0
      %1339 = vmatprep.subr.bf16.mxu0 0
      %1340 = vmatpush1.bf16.msra.mxu0 0
      %1341 = vmatprep.mubr.bf16.mxu0 0
      %1342 = vmatmul.mubr.bf16.gmra.mrb[0].mxu0 %v1298
      %v1343 = vpop.f32.mrb[0].mxu0
      %v1344 = vadd.f32 0.0, %v1343
      %v1345 = vpop.f32.mrb[0].mxu0
      %v1346 = vadd.f32 0.0, %v1345
      %v1347 = vpop.f32.mrb[0].mxu0
      %v1348 = vpop.f32.mrb[0].mxu0
      %1349 = vdwg.mxu0
      %1350 = vmatprep.subr.bf16.mxu0 0
      %1351 = vmatpush1.bf16.msra.mxu0 %v1307
      %1352 = vmatprep.subr.bf16.mxu0 0
      %1353 = vmatpush1.bf16.msra.mxu0 0
      %1354 = vmatprep.subr.bf16.mxu0 0
      %1355 = vmatpush1.bf16.msra.mxu0 0
      %1356 = vmatprep.subr.bf16.mxu0 0
      %1357 = vmatpush1.bf16.msra.mxu0 0
      %1358 = vmatprep.subr.bf16.mxu0 0
      %1359 = vmatpush1.bf16.msra.mxu0 0
      %1360 = vmatprep.subr.bf16.mxu0 0
      %1361 = vmatpush1.bf16.msra.mxu0 0
      %1362 = vmatprep.subr.bf16.mxu0 0
      %1363 = vmatpush1.bf16.msra.mxu0 0
      %1364 = vmatprep.subr.bf16.mxu0 0
      %1365 = vmatpush1.bf16.msra.mxu0 0
      %1366 = vmatprep.subr.bf16.mxu0 0
      %1367 = vmatpush1.bf16.msra.mxu0 0
      %1368 = vmatprep.subr.bf16.mxu0 0
      %1369 = vmatpush1.bf16.msra.mxu0 0
      %1370 = vmatprep.subr.bf16.mxu0 0
      %1371 = vmatpush1.bf16.msra.mxu0 0
      %1372 = vmatprep.subr.bf16.mxu0 0
      %1373 = vmatpush1.bf16.msra.mxu0 0
      %1374 = vmatprep.subr.bf16.mxu0 0
      %1375 = vmatpush1.bf16.msra.mxu0 0
      %1376 = vmatprep.subr.bf16.mxu0 0
      %1377 = vmatpush1.bf16.msra.mxu0 0
      %1378 = vmatprep.subr.bf16.mxu0 0
      %1379 = vmatpush1.bf16.msra.mxu0 0
      %1380 = vmatprep.subr.bf16.mxu0 0
      %1381 = vmatpush1.bf16.msra.mxu0 0
      %1382 = vmatprep.mubr.bf16.mxu0 0
      %1383 = vmatmul.mubr.bf16.gmra.mrb[0].mxu0 %v1298
      %v1384 = vpop.f32.mrb[0].mxu0
      %v1385 = vadd.f32 0.0, %v1384
      %v1386 = vpop.f32.mrb[0].mxu0
      %v1387 = vpop.f32.mrb[0].mxu0
      %v1388 = vpop.f32.mrb[0].mxu0
      %1389 = vdwg.mxu0
      %v1390 = vadd.f32 %v1283, %v1344
      %v1391 = vadd.f32 %v1284, %v1346
      %v1392 = vadd.f32 %v1285, %v1385
      %s1393 = scalar_lea.vmem %s3, 14
      %v1394 = vld [vmem:[%s1393] sm:$0x3]
      %1395 = vrot.lane.b32.xlu0 %v556, 91
      %v1396 = vpop.permute.xlu0 %1395
      %1397 = vrot.lane.b32.xlu0 %v551, 91
      %v1398 = vpop.permute.xlu0 %1397
      %1399 = vrot.lane.b32.xlu0 %v559, 91
      %v1400 = vpop.permute.xlu0 %1399
      %vm1401 = vcmask 744448
      %v1402 = vsel %vm1401, %v1396, %v1398
      %v1403 = vsel %vm1401, %v1398, %v1400
      %v1405 = vsel %vm672, %v1394, 0
      %v1408 = vsel %vm676, %v1402, 0
      %v1411 = vsel %vm676, %v1403, 0
      %v1414 = vsel %vm676, %v1400, 0
      %1416 = vmatprep.subr.bf16.mxu0 %v1411
      %1417 = vmatpush1.bf16.msra.mxu0 %v1408
      %1418 = vmatprep.subr.bf16.mxu0 0
      %1419 = vmatpush1.bf16.msra.mxu0 0
      %1420 = vmatprep.subr.bf16.mxu0 0
      %1421 = vmatpush1.bf16.msra.mxu0 0
      %1422 = vmatprep.subr.bf16.mxu0 0
      %1423 = vmatpush1.bf16.msra.mxu0 0
      %1424 = vmatprep.subr.bf16.mxu0 0
      %1425 = vmatpush1.bf16.msra.mxu0 0
      %1426 = vmatprep.subr.bf16.mxu0 0
      %1427 = vmatpush1.bf16.msra.mxu0 0
      %1428 = vmatprep.subr.bf16.mxu0 0
      %1429 = vmatpush1.bf16.msra.mxu0 0
      %1430 = vmatprep.subr.bf16.mxu0 0
      %1431 = vmatpush1.bf16.msra.mxu0 0
      %1432 = vmatprep.subr.bf16.mxu0 0
      %1433 = vmatpush1.bf16.msra.mxu0 0
      %1434 = vmatprep.subr.bf16.mxu0 0
      %1435 = vmatpush1.bf16.msra.mxu0 0
      %1436 = vmatprep.subr.bf16.mxu0 0
      %1437 = vmatpush1.bf16.msra.mxu0 0
      %1438 = vmatprep.subr.bf16.mxu0 0
      %1439 = vmatpush1.bf16.msra.mxu0 0
      %1440 = vmatprep.subr.bf16.mxu0 0
      %1441 = vmatpush1.bf16.msra.mxu0 0
      %1442 = vmatprep.subr.bf16.mxu0 0
      %1443 = vmatpush1.bf16.msra.mxu0 0
      %1444 = vmatprep.subr.bf16.mxu0 0
      %1445 = vmatpush1.bf16.msra.mxu0 0
      %1446 = vmatprep.subr.bf16.mxu0 0
      %1447 = vmatpush1.bf16.msra.mxu0 0
      %1448 = vmatprep.mubr.bf16.mxu0 0
      %1449 = vmatmul.mubr.bf16.gmra.mrb[0].mxu0 %v1405
      %v1450 = vpop.f32.mrb[0].mxu0
      %v1451 = vadd.f32 0.0, %v1450
      %v1452 = vpop.f32.mrb[0].mxu0
      %v1453 = vadd.f32 0.0, %v1452
      %v1454 = vpop.f32.mrb[0].mxu0
      %v1455 = vpop.f32.mrb[0].mxu0
      %1456 = vdwg.mxu0
      %1457 = vmatprep.subr.bf16.mxu0 0
      %1458 = vmatpush1.bf16.msra.mxu0 %v1414
      %1459 = vmatprep.subr.bf16.mxu0 0
      %1460 = vmatpush1.bf16.msra.mxu0 0
      %1461 = vmatprep.subr.bf16.mxu0 0
      %1462 = vmatpush1.bf16.msra.mxu0 0
      %1463 = vmatprep.subr.bf16.mxu0 0
      %1464 = vmatpush1.bf16.msra.mxu0 0
      %1465 = vmatprep.subr.bf16.mxu0 0
      %1466 = vmatpush1.bf16.msra.mxu0 0
      %1467 = vmatprep.subr.bf16.mxu0 0
      %1468 = vmatpush1.bf16.msra.mxu0 0
      %1469 = vmatprep.subr.bf16.mxu0 0
      %1470 = vmatpush1.bf16.msra.mxu0 0
      %1471 = vmatprep.subr.bf16.mxu0 0
      %1472 = vmatpush1.bf16.msra.mxu0 0
      %1473 = vmatprep.subr.bf16.mxu0 0
      %1474 = vmatpush1.bf16.msra.mxu0 0
      %1475 = vmatprep.subr.bf16.mxu0 0
      %1476 = vmatpush1.bf16.msra.mxu0 0
      %1477 = vmatprep.subr.bf16.mxu0 0
      %1478 = vmatpush1.bf16.msra.mxu0 0
      %1479 = vmatprep.subr.bf16.mxu0 0
      %1480 = vmatpush1.bf16.msra.mxu0 0
      %1481 = vmatprep.subr.bf16.mxu0 0
      %1482 = vmatpush1.bf16.msra.mxu0 0
      %1483 = vmatprep.subr.bf16.mxu0 0
      %1484 = vmatpush1.bf16.msra.mxu0 0
      %1485 = vmatprep.subr.bf16.mxu0 0
      %1486 = vmatpush1.bf16.msra.mxu0 0
      %1487 = vmatprep.subr.bf16.mxu0 0
      %1488 = vmatpush1.bf16.msra.mxu0 0
      %1489 = vmatprep.mubr.bf16.mxu0 0
      %1490 = vmatmul.mubr.bf16.gmra.mrb[0].mxu0 %v1405
      %v1491 = vpop.f32.mrb[0].mxu0
      %v1492 = vadd.f32 0.0, %v1491
      %v1493 = vpop.f32.mrb[0].mxu0
      %v1494 = vpop.f32.mrb[0].mxu0
      %v1495 = vpop.f32.mrb[0].mxu0
      %1496 = vdwg.mxu0
      %v1497 = vadd.f32 %v1390, %v1451
      %v1498 = vadd.f32 %v1391, %v1453
      %v1499 = vadd.f32 %v1392, %v1492
      %s1500 = scalar_lea.vmem %s3, 16
      %v1501 = vld [vmem:[%s1500] sm:$0x3]
      %1502 = vrot.lane.b32.xlu0 %v556, 90
      %v1503 = vpop.permute.xlu0 %1502
      %1504 = vrot.lane.b32.xlu0 %v551, 90
      %v1505 = vpop.permute.xlu0 %1504
      %1506 = vrot.lane.b32.xlu0 %v559, 90
      %v1507 = vpop.permute.xlu0 %1506
      %vm1508 = vcmask 736256
      %v1509 = vsel %vm1508, %v1503, %v1505
      %v1510 = vsel %vm1508, %v1505, %v1507
      %v1512 = vsel %vm672, %v1501, 0
      %v1515 = vsel %vm676, %v1509, 0
      %v1518 = vsel %vm676, %v1510, 0
      %v1521 = vsel %vm676, %v1507, 0
      %1523 = vmatprep.subr.bf16.mxu0 %v1518
      %1524 = vmatpush1.bf16.msra.mxu0 %v1515
      %1525 = vmatprep.subr.bf16.mxu0 0
      %1526 = vmatpush1.bf16.msra.mxu0 0
      %1527 = vmatprep.subr.bf16.mxu0 0
      %1528 = vmatpush1.bf16.msra.mxu0 0
      %1529 = vmatprep.subr.bf16.mxu0 0
      %1530 = vmatpush1.bf16.msra.mxu0 0
      %1531 = vmatprep.subr.bf16.mxu0 0
      %1532 = vmatpush1.bf16.msra.mxu0 0
      %1533 = vmatprep.subr.bf16.mxu0 0
      %1534 = vmatpush1.bf16.msra.mxu0 0
      %1535 = vmatprep.subr.bf16.mxu0 0
      %1536 = vmatpush1.bf16.msra.mxu0 0
      %1537 = vmatprep.subr.bf16.mxu0 0
      %1538 = vmatpush1.bf16.msra.mxu0 0
      %1539 = vmatprep.subr.bf16.mxu0 0
      %1540 = vmatpush1.bf16.msra.mxu0 0
      %1541 = vmatprep.subr.bf16.mxu0 0
      %1542 = vmatpush1.bf16.msra.mxu0 0
      %1543 = vmatprep.subr.bf16.mxu0 0
      %1544 = vmatpush1.bf16.msra.mxu0 0
      %1545 = vmatprep.subr.bf16.mxu0 0
      %1546 = vmatpush1.bf16.msra.mxu0 0
      %1547 = vmatprep.subr.bf16.mxu0 0
      %1548 = vmatpush1.bf16.msra.mxu0 0
      %1549 = vmatprep.subr.bf16.mxu0 0
      %1550 = vmatpush1.bf16.msra.mxu0 0
      %1551 = vmatprep.subr.bf16.mxu0 0
      %1552 = vmatpush1.bf16.msra.mxu0 0
      %1553 = vmatprep.subr.bf16.mxu0 0
      %1554 = vmatpush1.bf16.msra.mxu0 0
      %1555 = vmatprep.mubr.bf16.mxu0 0
      %1556 = vmatmul.mubr.bf16.gmra.mrb[0].mxu0 %v1512
      %v1557 = vpop.f32.mrb[0].mxu0
      %v1558 = vadd.f32 0.0, %v1557
      %v1559 = vpop.f32.mrb[0].mxu0
      %v1560 = vadd.f32 0.0, %v1559
      %v1561 = vpop.f32.mrb[0].mxu0
      %v1562 = vpop.f32.mrb[0].mxu0
      %1563 = vdwg.mxu0
      %1564 = vmatprep.subr.bf16.mxu0 0
      %1565 = vmatpush1.bf16.msra.mxu0 %v1521
      %1566 = vmatprep.subr.bf16.mxu0 0
      %1567 = vmatpush1.bf16.msra.mxu0 0
      %1568 = vmatprep.subr.bf16.mxu0 0
      %1569 = vmatpush1.bf16.msra.mxu0 0
      %1570 = vmatprep.subr.bf16.mxu0 0
      %1571 = vmatpush1.bf16.msra.mxu0 0
      %1572 = vmatprep.subr.bf16.mxu0 0
      %1573 = vmatpush1.bf16.msra.mxu0 0
      %1574 = vmatprep.subr.bf16.mxu0 0
      %1575 = vmatpush1.bf16.msra.mxu0 0
      %1576 = vmatprep.subr.bf16.mxu0 0
      %1577 = vmatpush1.bf16.msra.mxu0 0
      %1578 = vmatprep.subr.bf16.mxu0 0
      %1579 = vmatpush1.bf16.msra.mxu0 0
      %1580 = vmatprep.subr.bf16.mxu0 0
      %1581 = vmatpush1.bf16.msra.mxu0 0
      %1582 = vmatprep.subr.bf16.mxu0 0
      %1583 = vmatpush1.bf16.msra.mxu0 0
      %1584 = vmatprep.subr.bf16.mxu0 0
      %1585 = vmatpush1.bf16.msra.mxu0 0
      %1586 = vmatprep.subr.bf16.mxu0 0
      %1587 = vmatpush1.bf16.msra.mxu0 0
      %1588 = vmatprep.subr.bf16.mxu0 0
      %1589 = vmatpush1.bf16.msra.mxu0 0
      %1590 = vmatprep.subr.bf16.mxu0 0
      %1591 = vmatpush1.bf16.msra.mxu0 0
      %1592 = vmatprep.subr.bf16.mxu0 0
      %1593 = vmatpush1.bf16.msra.mxu0 0
      %1594 = vmatprep.subr.bf16.mxu0 0
      %1595 = vmatpush1.bf16.msra.mxu0 0
      %1596 = vmatprep.mubr.bf16.mxu0 0
      %1597 = vmatmul.mubr.bf16.gmra.mrb[0].mxu0 %v1512
      %v1598 = vpop.f32.mrb[0].mxu0
      %v1599 = vadd.f32 0.0, %v1598
      %v1600 = vpop.f32.mrb[0].mxu0
      %v1601 = vpop.f32.mrb[0].mxu0
      %v1602 = vpop.f32.mrb[0].mxu0
      %1603 = vdwg.mxu0
      %v1604 = vadd.f32 %v1497, %v1558
      %v1605 = vadd.f32 %v1498, %v1560
      %v1606 = vadd.f32 %v1499, %v1599
      %s1607 = scalar_lea.vmem %s3, 18
      %v1608 = vld [vmem:[%s1607] sm:$0x3]
      %v1610 = vsel %vm672, %v1608, 0
      %v1612 = vsel %vm676, %v606, 0
      %v1615 = vsel %vm676, %v603, 0
      %v1617 = vsel %vm676, %v608, 0
      %1619 = vmatprep.subr.bf16.mxu0 %v1615
      %1620 = vmatpush1.bf16.msra.mxu0 %v1612
      %1621 = vmatprep.subr.bf16.mxu0 0
      %1622 = vmatpush1.bf16.msra.mxu0 0
      %1623 = vmatprep.subr.bf16.mxu0 0
      %1624 = vmatpush1.bf16.msra.mxu0 0
      %1625 = vmatprep.subr.bf16.mxu0 0
      %1626 = vmatpush1.bf16.msra.mxu0 0
      %1627 = vmatprep.subr.bf16.mxu0 0
      %1628 = vmatpush1.bf16.msra.mxu0 0
      %1629 = vmatprep.subr.bf16.mxu0 0
      %1630 = vmatpush1.bf16.msra.mxu0 0
      %1631 = vmatprep.subr.bf16.mxu0 0
      %1632 = vmatpush1.bf16.msra.mxu0 0
      %1633 = vmatprep.subr.bf16.mxu0 0
      %1634 = vmatpush1.bf16.msra.mxu0 0
      %1635 = vmatprep.subr.bf16.mxu0 0
      %1636 = vmatpush1.bf16.msra.mxu0 0
      %1637 = vmatprep.subr.bf16.mxu0 0
      %1638 = vmatpush1.bf16.msra.mxu0 0
      %1639 = vmatprep.subr.bf16.mxu0 0
      %1640 = vmatpush1.bf16.msra.mxu0 0
      %1641 = vmatprep.subr.bf16.mxu0 0
      %1642 = vmatpush1.bf16.msra.mxu0 0
      %1643 = vmatprep.subr.bf16.mxu0 0
      %1644 = vmatpush1.bf16.msra.mxu0 0
      %1645 = vmatprep.subr.bf16.mxu0 0
      %1646 = vmatpush1.bf16.msra.mxu0 0
      %1647 = vmatprep.subr.bf16.mxu0 0
      %1648 = vmatpush1.bf16.msra.mxu0 0
      %1649 = vmatprep.subr.bf16.mxu0 0
      %1650 = vmatpush1.bf16.msra.mxu0 0
      %1651 = vmatprep.mubr.bf16.mxu0 0
      %1652 = vmatmul.mubr.bf16.gmra.mrb[0].mxu0 %v1610
      %v1653 = vpop.f32.mrb[0].mxu0
      %v1654 = vadd.f32 0.0, %v1653
      %v1655 = vpop.f32.mrb[0].mxu0
      %v1656 = vadd.f32 0.0, %v1655
      %v1657 = vpop.f32.mrb[0].mxu0
      %v1658 = vpop.f32.mrb[0].mxu0
      %1659 = vdwg.mxu0
      %1660 = vmatprep.subr.bf16.mxu0 0
      %1661 = vmatpush1.bf16.msra.mxu0 %v1617
      %1662 = vmatprep.subr.bf16.mxu0 0
      %1663 = vmatpush1.bf16.msra.mxu0 0
      %1664 = vmatprep.subr.bf16.mxu0 0
      %1665 = vmatpush1.bf16.msra.mxu0 0
      %1666 = vmatprep.subr.bf16.mxu0 0
      %1667 = vmatpush1.bf16.msra.mxu0 0
      %1668 = vmatprep.subr.bf16.mxu0 0
      %1669 = vmatpush1.bf16.msra.mxu0 0
      %1670 = vmatprep.subr.bf16.mxu0 0
      %1671 = vmatpush1.bf16.msra.mxu0 0
      %1672 = vmatprep.subr.bf16.mxu0 0
      %1673 = vmatpush1.bf16.msra.mxu0 0
      %1674 = vmatprep.subr.bf16.mxu0 0
      %1675 = vmatpush1.bf16.msra.mxu0 0
      %1676 = vmatprep.subr.bf16.mxu0 0
      %1677 = vmatpush1.bf16.msra.mxu0 0
      %1678 = vmatprep.subr.bf16.mxu0 0
      %1679 = vmatpush1.bf16.msra.mxu0 0
      %1680 = vmatprep.subr.bf16.mxu0 0
      %1681 = vmatpush1.bf16.msra.mxu0 0
      %1682 = vmatprep.subr.bf16.mxu0 0
      %1683 = vmatpush1.bf16.msra.mxu0 0
      %1684 = vmatprep.subr.bf16.mxu0 0
      %1685 = vmatpush1.bf16.msra.mxu0 0
      %1686 = vmatprep.subr.bf16.mxu0 0
      %1687 = vmatpush1.bf16.msra.mxu0 0
      %1688 = vmatprep.subr.bf16.mxu0 0
      %1689 = vmatpush1.bf16.msra.mxu0 0
      %1690 = vmatprep.subr.bf16.mxu0 0
      %1691 = vmatpush1.bf16.msra.mxu0 0
      %1692 = vmatprep.mubr.bf16.mxu0 0
      %1693 = vmatmul.mubr.bf16.gmra.mrb[0].mxu0 %v1610
      %v1694 = vpop.f32.mrb[0].mxu0
      %v1695 = vadd.f32 0.0, %v1694
      %v1696 = vpop.f32.mrb[0].mxu0
      %v1697 = vpop.f32.mrb[0].mxu0
      %v1698 = vpop.f32.mrb[0].mxu0
      %1699 = vdwg.mxu0
      %v1700 = vadd.f32 %v1604, %v1654
      %v1701 = vadd.f32 %v1605, %v1656
      %v1702 = vadd.f32 %v1606, %v1695
      %s1703 = scalar_lea.vmem %s3, 20
      %v1704 = vld [vmem:[%s1703] sm:$0x3]
      %1707 = vrot.lane.b32.xlu0 %v606, 127
      %v1708 = vpop.permute.xlu0 %1707
      %1709 = vrot.lane.b32.xlu0 %v603, 127
      %v1710 = vpop.permute.xlu0 %1709
      %1711 = vrot.lane.b32.xlu0 %v608, 127
      %v1712 = vpop.permute.xlu0 %1711
      %v1713 = vsel %vm669, %v1708, %v1710
      %v1714 = vsel %vm669, %v1710, %v1712
      %v1716 = vsel %vm672, %v1704, 0
      %v1719 = vsel %vm676, %v1713, 0
      %v1722 = vsel %vm676, %v1714, 0
      %v1725 = vsel %vm676, %v1712, 0
      %1727 = vmatprep.subr.bf16.mxu0 %v1722
      %1728 = vmatpush1.bf16.msra.mxu0 %v1719
      %1729 = vmatprep.subr.bf16.mxu0 0
      %1730 = vmatpush1.bf16.msra.mxu0 0
      %1731 = vmatprep.subr.bf16.mxu0 0
      %1732 = vmatpush1.bf16.msra.mxu0 0
      %1733 = vmatprep.subr.bf16.mxu0 0
      %1734 = vmatpush1.bf16.msra.mxu0 0
      %1735 = vmatprep.subr.bf16.mxu0 0
      %1736 = vmatpush1.bf16.msra.mxu0 0
      %1737 = vmatprep.subr.bf16.mxu0 0
      %1738 = vmatpush1.bf16.msra.mxu0 0
      %1739 = vmatprep.subr.bf16.mxu0 0
      %1740 = vmatpush1.bf16.msra.mxu0 0
      %1741 = vmatprep.subr.bf16.mxu0 0
      %1742 = vmatpush1.bf16.msra.mxu0 0
      %1743 = vmatprep.subr.bf16.mxu0 0
      %1744 = vmatpush1.bf16.msra.mxu0 0
      %1745 = vmatprep.subr.bf16.mxu0 0
      %1746 = vmatpush1.bf16.msra.mxu0 0
      %1747 = vmatprep.subr.bf16.mxu0 0
      %1748 = vmatpush1.bf16.msra.mxu0 0
      %1749 = vmatprep.subr.bf16.mxu0 0
      %1750 = vmatpush1.bf16.msra.mxu0 0
      %1751 = vmatprep.subr.bf16.mxu0 0
      %1752 = vmatpush1.bf16.msra.mxu0 0
      %1753 = vmatprep.subr.bf16.mxu0 0
      %1754 = vmatpush1.bf16.msra.mxu0 0
      %1755 = vmatprep.subr.bf16.mxu0 0
      %1756 = vmatpush1.bf16.msra.mxu0 0
      %1757 = vmatprep.subr.bf16.mxu0 0
      %1758 = vmatpush1.bf16.msra.mxu0 0
      %1759 = vmatprep.mubr.bf16.mxu0 0
      %1760 = vmatmul.mubr.bf16.gmra.mrb[0].mxu0 %v1716
      %v1761 = vpop.f32.mrb[0].mxu0
      %v1762 = vadd.f32 0.0, %v1761
      %v1763 = vpop.f32.mrb[0].mxu0
      %v1764 = vadd.f32 0.0, %v1763
      %v1765 = vpop.f32.mrb[0].mxu0
      %v1766 = vpop.f32.mrb[0].mxu0
      %1767 = vdwg.mxu0
      %1768 = vmatprep.subr.bf16.mxu0 0
      %1769 = vmatpush1.bf16.msra.mxu0 %v1725
      %1770 = vmatprep.subr.bf16.mxu0 0
      %1771 = vmatpush1.bf16.msra.mxu0 0
      %1772 = vmatprep.subr.bf16.mxu0 0
      %1773 = vmatpush1.bf16.msra.mxu0 0
      %1774 = vmatprep.subr.bf16.mxu0 0
      %1775 = vmatpush1.bf16.msra.mxu0 0
      %1776 = vmatprep.subr.bf16.mxu0 0
      %1777 = vmatpush1.bf16.msra.mxu0 0
      %1778 = vmatprep.subr.bf16.mxu0 0
      %1779 = vmatpush1.bf16.msra.mxu0 0
      %1780 = vmatprep.subr.bf16.mxu0 0
      %1781 = vmatpush1.bf16.msra.mxu0 0
      %1782 = vmatprep.subr.bf16.mxu0 0
      %1783 = vmatpush1.bf16.msra.mxu0 0
      %1784 = vmatprep.subr.bf16.mxu0 0
      %1785 = vmatpush1.bf16.msra.mxu0 0
      %1786 = vmatprep.subr.bf16.mxu0 0
      %1787 = vmatpush1.bf16.msra.mxu0 0
      %1788 = vmatprep.subr.bf16.mxu0 0
      %1789 = vmatpush1.bf16.msra.mxu0 0
      %1790 = vmatprep.subr.bf16.mxu0 0
      %1791 = vmatpush1.bf16.msra.mxu0 0
      %1792 = vmatprep.subr.bf16.mxu0 0
      %1793 = vmatpush1.bf16.msra.mxu0 0
      %1794 = vmatprep.subr.bf16.mxu0 0
      %1795 = vmatpush1.bf16.msra.mxu0 0
      %1796 = vmatprep.subr.bf16.mxu0 0
      %1797 = vmatpush1.bf16.msra.mxu0 0
      %1798 = vmatprep.subr.bf16.mxu0 0
      %1799 = vmatpush1.bf16.msra.mxu0 0
      %1800 = vmatprep.mubr.bf16.mxu0 0
      %1801 = vmatmul.mubr.bf16.gmra.mrb[0].mxu0 %v1716
      %v1802 = vpop.f32.mrb[0].mxu0
      %v1803 = vadd.f32 0.0, %v1802
      %v1804 = vpop.f32.mrb[0].mxu0
      %v1805 = vpop.f32.mrb[0].mxu0
      %v1806 = vpop.f32.mrb[0].mxu0
      %1807 = vdwg.mxu0
      %v1808 = vadd.f32 %v1700, %v1762
      %v1809 = vadd.f32 %v1701, %v1764
      %v1810 = vadd.f32 %v1702, %v1803
      %s1811 = scalar_lea.vmem %s3, 22
      %v1812 = vld [vmem:[%s1811] sm:$0x3]
      %1813 = vrot.lane.b32.xlu0 %v606, 126
      %v1814 = vpop.permute.xlu0 %1813
      %1815 = vrot.lane.b32.xlu0 %v603, 126
      %v1816 = vpop.permute.xlu0 %1815
      %1817 = vrot.lane.b32.xlu0 %v608, 126
      %v1818 = vpop.permute.xlu0 %1817
      %v1819 = vsel %vm866, %v1814, %v1816
      %v1820 = vsel %vm866, %v1816, %v1818
      %v1822 = vsel %vm672, %v1812, 0
      %v1825 = vsel %vm676, %v1819, 0
      %v1828 = vsel %vm676, %v1820, 0
      %v1831 = vsel %vm676, %v1818, 0
      %1833 = vmatprep.subr.bf16.mxu0 %v1828
      %1834 = vmatpush1.bf16.msra.mxu0 %v1825
      %1835 = vmatprep.subr.bf16.mxu0 0
      %1836 = vmatpush1.bf16.msra.mxu0 0
      %1837 = vmatprep.subr.bf16.mxu0 0
      %1838 = vmatpush1.bf16.msra.mxu0 0
      %1839 = vmatprep.subr.bf16.mxu0 0
      %1840 = vmatpush1.bf16.msra.mxu0 0
      %1841 = vmatprep.subr.bf16.mxu0 0
      %1842 = vmatpush1.bf16.msra.mxu0 0
      %1843 = vmatprep.subr.bf16.mxu0 0
      %1844 = vmatpush1.bf16.msra.mxu0 0
      %1845 = vmatprep.subr.bf16.mxu0 0
      %1846 = vmatpush1.bf16.msra.mxu0 0
      %1847 = vmatprep.subr.bf16.mxu0 0
      %1848 = vmatpush1.bf16.msra.mxu0 0
      %1849 = vmatprep.subr.bf16.mxu0 0
      %1850 = vmatpush1.bf16.msra.mxu0 0
      %1851 = vmatprep.subr.bf16.mxu0 0
      %1852 = vmatpush1.bf16.msra.mxu0 0
      %1853 = vmatprep.subr.bf16.mxu0 0
      %1854 = vmatpush1.bf16.msra.mxu0 0
      %1855 = vmatprep.subr.bf16.mxu0 0
      %1856 = vmatpush1.bf16.msra.mxu0 0
      %1857 = vmatprep.subr.bf16.mxu0 0
      %1858 = vmatpush1.bf16.msra.mxu0 0
      %1859 = vmatprep.subr.bf16.mxu0 0
      %1860 = vmatpush1.bf16.msra.mxu0 0
      %1861 = vmatprep.subr.bf16.mxu0 0
      %1862 = vmatpush1.bf16.msra.mxu0 0
      %1863 = vmatprep.subr.bf16.mxu0 0
      %1864 = vmatpush1.bf16.msra.mxu0 0
      %1865 = vmatprep.mubr.bf16.mxu0 0
      %1866 = vmatmul.mubr.bf16.gmra.mrb[0].mxu0 %v1822
      %v1867 = vpop.f32.mrb[0].mxu0
      %v1868 = vadd.f32 0.0, %v1867
      %v1869 = vpop.f32.mrb[0].mxu0
      %v1870 = vadd.f32 0.0, %v1869
      %v1871 = vpop.f32.mrb[0].mxu0
      %v1872 = vpop.f32.mrb[0].mxu0
      %1873 = vdwg.mxu0
      %1874 = vmatprep.subr.bf16.mxu0 0
      %1875 = vmatpush1.bf16.msra.mxu0 %v1831
      %1876 = vmatprep.subr.bf16.mxu0 0
      %1877 = vmatpush1.bf16.msra.mxu0 0
      %1878 = vmatprep.subr.bf16.mxu0 0
      %1879 = vmatpush1.bf16.msra.mxu0 0
      %1880 = vmatprep.subr.bf16.mxu0 0
      %1881 = vmatpush1.bf16.msra.mxu0 0
      %1882 = vmatprep.subr.bf16.mxu0 0
      %1883 = vmatpush1.bf16.msra.mxu0 0
      %1884 = vmatprep.subr.bf16.mxu0 0
      %1885 = vmatpush1.bf16.msra.mxu0 0
      %1886 = vmatprep.subr.bf16.mxu0 0
      %1887 = vmatpush1.bf16.msra.mxu0 0
      %1888 = vmatprep.subr.bf16.mxu0 0
      %1889 = vmatpush1.bf16.msra.mxu0 0
      %1890 = vmatprep.subr.bf16.mxu0 0
      %1891 = vmatpush1.bf16.msra.mxu0 0
      %1892 = vmatprep.subr.bf16.mxu0 0
      %1893 = vmatpush1.bf16.msra.mxu0 0
      %1894 = vmatprep.subr.bf16.mxu0 0
      %1895 = vmatpush1.bf16.msra.mxu0 0
      %1896 = vmatprep.subr.bf16.mxu0 0
      %1897 = vmatpush1.bf16.msra.mxu0 0
      %1898 = vmatprep.subr.bf16.mxu0 0
      %1899 = vmatpush1.bf16.msra.mxu0 0
      %1900 = vmatprep.subr.bf16.mxu0 0
      %1901 = vmatpush1.bf16.msra.mxu0 0
      %1902 = vmatprep.subr.bf16.mxu0 0
      %1903 = vmatpush1.bf16.msra.mxu0 0
      %1904 = vmatprep.subr.bf16.mxu0 0
      %1905 = vmatpush1.bf16.msra.mxu0 0
      %1906 = vmatprep.mubr.bf16.mxu0 0
      %1907 = vmatmul.mubr.bf16.gmra.mrb[0].mxu0 %v1822
      %v1908 = vpop.f32.mrb[0].mxu0
      %v1909 = vadd.f32 0.0, %v1908
      %v1910 = vpop.f32.mrb[0].mxu0
      %v1911 = vpop.f32.mrb[0].mxu0
      %v1912 = vpop.f32.mrb[0].mxu0
      %1913 = vdwg.mxu0
      %v1914 = vadd.f32 %v1808, %v1868
      %v1915 = vadd.f32 %v1809, %v1870
      %v1916 = vadd.f32 %v1810, %v1909
      %s1917 = scalar_lea.vmem %s3, 24
      %v1918 = vld [vmem:[%s1917] sm:$0x3]
      %1919 = vrot.lane.b32.xlu0 %v606, 110
      %v1920 = vpop.permute.xlu0 %1919
      %1921 = vrot.lane.b32.xlu0 %v603, 110
      %v1922 = vpop.permute.xlu0 %1921
      %1923 = vrot.lane.b32.xlu0 %v608, 110
      %v1924 = vpop.permute.xlu0 %1923
      %v1925 = vsel %vm973, %v1920, %v1922
      %v1926 = vsel %vm973, %v1922, %v1924
      %v1928 = vsel %vm672, %v1918, 0
      %v1931 = vsel %vm676, %v1925, 0
      %v1934 = vsel %vm676, %v1926, 0
      %v1937 = vsel %vm676, %v1924, 0
      %1939 = vmatprep.subr.bf16.mxu0 %v1934
      %1940 = vmatpush1.bf16.msra.mxu0 %v1931
      %1941 = vmatprep.subr.bf16.mxu0 0
      %1942 = vmatpush1.bf16.msra.mxu0 0
      %1943 = vmatprep.subr.bf16.mxu0 0
      %1944 = vmatpush1.bf16.msra.mxu0 0
      %1945 = vmatprep.subr.bf16.mxu0 0
      %1946 = vmatpush1.bf16.msra.mxu0 0
      %1947 = vmatprep.subr.bf16.mxu0 0
      %1948 = vmatpush1.bf16.msra.mxu0 0
      %1949 = vmatprep.subr.bf16.mxu0 0
      %1950 = vmatpush1.bf16.msra.mxu0 0
      %1951 = vmatprep.subr.bf16.mxu0 0
      %1952 = vmatpush1.bf16.msra.mxu0 0
      %1953 = vmatprep.subr.bf16.mxu0 0
      %1954 = vmatpush1.bf16.msra.mxu0 0
      %1955 = vmatprep.subr.bf16.mxu0 0
      %1956 = vmatpush1.bf16.msra.mxu0 0
      %1957 = vmatprep.subr.bf16.mxu0 0
      %1958 = vmatpush1.bf16.msra.mxu0 0
      %1959 = vmatprep.subr.bf16.mxu0 0
      %1960 = vmatpush1.bf16.msra.mxu0 0
      %1961 = vmatprep.subr.bf16.mxu0 0
      %1962 = vmatpush1.bf16.msra.mxu0 0
      %1963 = vmatprep.subr.bf16.mxu0 0
      %1964 = vmatpush1.bf16.msra.mxu0 0
      %1965 = vmatprep.subr.bf16.mxu0 0
      %1966 = vmatpush1.bf16.msra.mxu0 0
      %1967 = vmatprep.subr.bf16.mxu0 0
      %1968 = vmatpush1.bf16.msra.mxu0 0
      %1969 = vmatprep.subr.bf16.mxu0 0
      %1970 = vmatpush1.bf16.msra.mxu0 0
      %1971 = vmatprep.mubr.bf16.mxu0 0
      %1972 = vmatmul.mubr.bf16.gmra.mrb[0].mxu0 %v1928
      %v1973 = vpop.f32.mrb[0].mxu0
      %v1974 = vadd.f32 0.0, %v1973
      %v1975 = vpop.f32.mrb[0].mxu0
      %v1976 = vadd.f32 0.0, %v1975
      %v1977 = vpop.f32.mrb[0].mxu0
      %v1978 = vpop.f32.mrb[0].mxu0
      %1979 = vdwg.mxu0
      %1980 = vmatprep.subr.bf16.mxu0 0
      %1981 = vmatpush1.bf16.msra.mxu0 %v1937
      %1982 = vmatprep.subr.bf16.mxu0 0
      %1983 = vmatpush1.bf16.msra.mxu0 0
      %1984 = vmatprep.subr.bf16.mxu0 0
      %1985 = vmatpush1.bf16.msra.mxu0 0
      %1986 = vmatprep.subr.bf16.mxu0 0
      %1987 = vmatpush1.bf16.msra.mxu0 0
      %1988 = vmatprep.subr.bf16.mxu0 0
      %1989 = vmatpush1.bf16.msra.mxu0 0
      %1990 = vmatprep.subr.bf16.mxu0 0
      %1991 = vmatpush1.bf16.msra.mxu0 0
      %1992 = vmatprep.subr.bf16.mxu0 0
      %1993 = vmatpush1.bf16.msra.mxu0 0
      %1994 = vmatprep.subr.bf16.mxu0 0
      %1995 = vmatpush1.bf16.msra.mxu0 0
      %1996 = vmatprep.subr.bf16.mxu0 0
      %1997 = vmatpush1.bf16.msra.mxu0 0
      %1998 = vmatprep.subr.bf16.mxu0 0
      %1999 = vmatpush1.bf16.msra.mxu0 0
      %2000 = vmatprep.subr.bf16.mxu0 0
      %2001 = vmatpush1.bf16.msra.mxu0 0
      %2002 = vmatprep.subr.bf16.mxu0 0
      %2003 = vmatpush1.bf16.msra.mxu0 0
      %2004 = vmatprep.subr.bf16.mxu0 0
      %2005 = vmatpush1.bf16.msra.mxu0 0
      %2006 = vmatprep.subr.bf16.mxu0 0
      %2007 = vmatpush1.bf16.msra.mxu0 0
      %2008 = vmatprep.subr.bf16.mxu0 0
      %2009 = vmatpush1.bf16.msra.mxu0 0
      %2010 = vmatprep.subr.bf16.mxu0 0
      %2011 = vmatpush1.bf16.msra.mxu0 0
      %2012 = vmatprep.mubr.bf16.mxu0 0
      %2013 = vmatmul.mubr.bf16.gmra.mrb[0].mxu0 %v1928
      %v2014 = vpop.f32.mrb[0].mxu0
      %v2015 = vadd.f32 0.0, %v2014
      %v2016 = vpop.f32.mrb[0].mxu0
      %v2017 = vpop.f32.mrb[0].mxu0
      %v2018 = vpop.f32.mrb[0].mxu0
      %2019 = vdwg.mxu0
      %v2020 = vadd.f32 %v1914, %v1974
      %v2021 = vadd.f32 %v1915, %v1976
      %v2022 = vadd.f32 %v1916, %v2015
      %s2023 = scalar_lea.vmem %s3, 26
      %v2024 = vld [vmem:[%s2023] sm:$0x3]
      %2025 = vrot.lane.b32.xlu0 %v606, 109
      %v2026 = vpop.permute.xlu0 %2025
      %2027 = vrot.lane.b32.xlu0 %v603, 109
      %v2028 = vpop.permute.xlu0 %2027
      %2029 = vrot.lane.b32.xlu0 %v608, 109
      %v2030 = vpop.permute.xlu0 %2029
      %v2031 = vsel %vm1080, %v2026, %v2028
      %v2032 = vsel %vm1080, %v2028, %v2030
      %v2034 = vsel %vm672, %v2024, 0
      %v2037 = vsel %vm676, %v2031, 0
      %v2040 = vsel %vm676, %v2032, 0
      %v2043 = vsel %vm676, %v2030, 0
      %2045 = vmatprep.subr.bf16.mxu0 %v2040
      %2046 = vmatpush1.bf16.msra.mxu0 %v2037
      %2047 = vmatprep.subr.bf16.mxu0 0
      %2048 = vmatpush1.bf16.msra.mxu0 0
      %2049 = vmatprep.subr.bf16.mxu0 0
      %2050 = vmatpush1.bf16.msra.mxu0 0
      %2051 = vmatprep.subr.bf16.mxu0 0
      %2052 = vmatpush1.bf16.msra.mxu0 0
      %2053 = vmatprep.subr.bf16.mxu0 0
      %2054 = vmatpush1.bf16.msra.mxu0 0
      %2055 = vmatprep.subr.bf16.mxu0 0
      %2056 = vmatpush1.bf16.msra.mxu0 0
      %2057 = vmatprep.subr.bf16.mxu0 0
      %2058 = vmatpush1.bf16.msra.mxu0 0
      %2059 = vmatprep.subr.bf16.mxu0 0
      %2060 = vmatpush1.bf16.msra.mxu0 0
      %2061 = vmatprep.subr.bf16.mxu0 0
      %2062 = vmatpush1.bf16.msra.mxu0 0
      %2063 = vmatprep.subr.bf16.mxu0 0
      %2064 = vmatpush1.bf16.msra.mxu0 0
      %2065 = vmatprep.subr.bf16.mxu0 0
      %2066 = vmatpush1.bf16.msra.mxu0 0
      %2067 = vmatprep.subr.bf16.mxu0 0
      %2068 = vmatpush1.bf16.msra.mxu0 0
      %2069 = vmatprep.subr.bf16.mxu0 0
      %2070 = vmatpush1.bf16.msra.mxu0 0
      %2071 = vmatprep.subr.bf16.mxu0 0
      %2072 = vmatpush1.bf16.msra.mxu0 0
      %2073 = vmatprep.subr.bf16.mxu0 0
      %2074 = vmatpush1.bf16.msra.mxu0 0
      %2075 = vmatprep.subr.bf16.mxu0 0
      %2076 = vmatpush1.bf16.msra.mxu0 0
      %2077 = vmatprep.mubr.bf16.mxu0 0
      %2078 = vmatmul.mubr.bf16.gmra.mrb[0].mxu0 %v2034
      %v2079 = vpop.f32.mrb[0].mxu0
      %v2080 = vadd.f32 0.0, %v2079
      %v2081 = vpop.f32.mrb[0].mxu0
      %v2082 = vadd.f32 0.0, %v2081
      %v2083 = vpop.f32.mrb[0].mxu0
      %v2084 = vpop.f32.mrb[0].mxu0
      %2085 = vdwg.mxu0
      %2086 = vmatprep.subr.bf16.mxu0 0
      %2087 = vmatpush1.bf16.msra.mxu0 %v2043
      %2088 = vmatprep.subr.bf16.mxu0 0
      %2089 = vmatpush1.bf16.msra.mxu0 0
      %2090 = vmatprep.subr.bf16.mxu0 0
      %2091 = vmatpush1.bf16.msra.mxu0 0
      %2092 = vmatprep.subr.bf16.mxu0 0
      %2093 = vmatpush1.bf16.msra.mxu0 0
      %2094 = vmatprep.subr.bf16.mxu0 0
      %2095 = vmatpush1.bf16.msra.mxu0 0
      %2096 = vmatprep.subr.bf16.mxu0 0
      %2097 = vmatpush1.bf16.msra.mxu0 0
      %2098 = vmatprep.subr.bf16.mxu0 0
      %2099 = vmatpush1.bf16.msra.mxu0 0
      %2100 = vmatprep.subr.bf16.mxu0 0
      %2101 = vmatpush1.bf16.msra.mxu0 0
      %2102 = vmatprep.subr.bf16.mxu0 0
      %2103 = vmatpush1.bf16.msra.mxu0 0
      %2104 = vmatprep.subr.bf16.mxu0 0
      %2105 = vmatpush1.bf16.msra.mxu0 0
      %2106 = vmatprep.subr.bf16.mxu0 0
      %2107 = vmatpush1.bf16.msra.mxu0 0
      %2108 = vmatprep.subr.bf16.mxu0 0
      %2109 = vmatpush1.bf16.msra.mxu0 0
      %2110 = vmatprep.subr.bf16.mxu0 0
      %2111 = vmatpush1.bf16.msra.mxu0 0
      %2112 = vmatprep.subr.bf16.mxu0 0
      %2113 = vmatpush1.bf16.msra.mxu0 0
      %2114 = vmatprep.subr.bf16.mxu0 0
      %2115 = vmatpush1.bf16.msra.mxu0 0
      %2116 = vmatprep.subr.bf16.mxu0 0
      %2117 = vmatpush1.bf16.msra.mxu0 0
      %2118 = vmatprep.mubr.bf16.mxu0 0
      %2119 = vmatmul.mubr.bf16.gmra.mrb[0].mxu0 %v2034
      %v2120 = vpop.f32.mrb[0].mxu0
      %v2121 = vadd.f32 0.0, %v2120
      %v2122 = vpop.f32.mrb[0].mxu0
      %v2123 = vpop.f32.mrb[0].mxu0
      %v2124 = vpop.f32.mrb[0].mxu0
      %2125 = vdwg.mxu0
      %v2126 = vadd.f32 %v2020, %v2080
      %v2127 = vadd.f32 %v2021, %v2082
      %v2128 = vadd.f32 %v2022, %v2121
      %s2129 = scalar_lea.vmem %s3, 28
      %v2130 = vld [vmem:[%s2129] sm:$0x3]
      %2131 = vrot.lane.b32.xlu0 %v606, 108
      %v2132 = vpop.permute.xlu0 %2131
      %2133 = vrot.lane.b32.xlu0 %v603, 108
      %v2134 = vpop.permute.xlu0 %2133
      %2135 = vrot.lane.b32.xlu0 %v608, 108
      %v2136 = vpop.permute.xlu0 %2135
      %v2137 = vsel %vm1187, %v2132, %v2134
      %v2138 = vsel %vm1187, %v2134, %v2136
      %v2140 = vsel %vm672, %v2130, 0
      %v2143 = vsel %vm676, %v2137, 0
      %v2146 = vsel %vm676, %v2138, 0
      %v2149 = vsel %vm676, %v2136, 0
      %2151 = vmatprep.subr.bf16.mxu0 %v2146
      %2152 = vmatpush1.bf16.msra.mxu0 %v2143
      %2153 = vmatprep.subr.bf16.mxu0 0
      %2154 = vmatpush1.bf16.msra.mxu0 0
      %2155 = vmatprep.subr.bf16.mxu0 0
      %2156 = vmatpush1.bf16.msra.mxu0 0
      %2157 = vmatprep.subr.bf16.mxu0 0
      %2158 = vmatpush1.bf16.msra.mxu0 0
      %2159 = vmatprep.subr.bf16.mxu0 0
      %2160 = vmatpush1.bf16.msra.mxu0 0
      %2161 = vmatprep.subr.bf16.mxu0 0
      %2162 = vmatpush1.bf16.msra.mxu0 0
      %2163 = vmatprep.subr.bf16.mxu0 0
      %2164 = vmatpush1.bf16.msra.mxu0 0
      %2165 = vmatprep.subr.bf16.mxu0 0
      %2166 = vmatpush1.bf16.msra.mxu0 0
      %2167 = vmatprep.subr.bf16.mxu0 0
      %2168 = vmatpush1.bf16.msra.mxu0 0
      %2169 = vmatprep.subr.bf16.mxu0 0
      %2170 = vmatpush1.bf16.msra.mxu0 0
      %2171 = vmatprep.subr.bf16.mxu0 0
      %2172 = vmatpush1.bf16.msra.mxu0 0
      %2173 = vmatprep.subr.bf16.mxu0 0
      %2174 = vmatpush1.bf16.msra.mxu0 0
      %2175 = vmatprep.subr.bf16.mxu0 0
      %2176 = vmatpush1.bf16.msra.mxu0 0
      %2177 = vmatprep.subr.bf16.mxu0 0
      %2178 = vmatpush1.bf16.msra.mxu0 0
      %2179 = vmatprep.subr.bf16.mxu0 0
      %2180 = vmatpush1.bf16.msra.mxu0 0
      %2181 = vmatprep.subr.bf16.mxu0 0
      %2182 = vmatpush1.bf16.msra.mxu0 0
      %2183 = vmatprep.mubr.bf16.mxu0 0
      %2184 = vmatmul.mubr.bf16.gmra.mrb[0].mxu0 %v2140
      %v2185 = vpop.f32.mrb[0].mxu0
      %v2186 = vadd.f32 0.0, %v2185
      %v2187 = vpop.f32.mrb[0].mxu0
      %v2188 = vadd.f32 0.0, %v2187
      %v2189 = vpop.f32.mrb[0].mxu0
      %v2190 = vpop.f32.mrb[0].mxu0
      %2191 = vdwg.mxu0
      %2192 = vmatprep.subr.bf16.mxu0 0
      %2193 = vmatpush1.bf16.msra.mxu0 %v2149
      %2194 = vmatprep.subr.bf16.mxu0 0
      %2195 = vmatpush1.bf16.msra.mxu0 0
      %2196 = vmatprep.subr.bf16.mxu0 0
      %2197 = vmatpush1.bf16.msra.mxu0 0
      %2198 = vmatprep.subr.bf16.mxu0 0
      %2199 = vmatpush1.bf16.msra.mxu0 0
      %2200 = vmatprep.subr.bf16.mxu0 0
      %2201 = vmatpush1.bf16.msra.mxu0 0
      %2202 = vmatprep.subr.bf16.mxu0 0
      %2203 = vmatpush1.bf16.msra.mxu0 0
      %2204 = vmatprep.subr.bf16.mxu0 0
      %2205 = vmatpush1.bf16.msra.mxu0 0
      %2206 = vmatprep.subr.bf16.mxu0 0
      %2207 = vmatpush1.bf16.msra.mxu0 0
      %2208 = vmatprep.subr.bf16.mxu0 0
      %2209 = vmatpush1.bf16.msra.mxu0 0
      %2210 = vmatprep.subr.bf16.mxu0 0
      %2211 = vmatpush1.bf16.msra.mxu0 0
      %2212 = vmatprep.subr.bf16.mxu0 0
      %2213 = vmatpush1.bf16.msra.mxu0 0
      %2214 = vmatprep.subr.bf16.mxu0 0
      %2215 = vmatpush1.bf16.msra.mxu0 0
      %2216 = vmatprep.subr.bf16.mxu0 0
      %2217 = vmatpush1.bf16.msra.mxu0 0
      %2218 = vmatprep.subr.bf16.mxu0 0
      %2219 = vmatpush1.bf16.msra.mxu0 0
      %2220 = vmatprep.subr.bf16.mxu0 0
      %2221 = vmatpush1.bf16.msra.mxu0 0
      %2222 = vmatprep.subr.bf16.mxu0 0
      %2223 = vmatpush1.bf16.msra.mxu0 0
      %2224 = vmatprep.mubr.bf16.mxu0 0
      %2225 = vmatmul.mubr.bf16.gmra.mrb[0].mxu0 %v2140
      %v2226 = vpop.f32.mrb[0].mxu0
      %v2227 = vadd.f32 0.0, %v2226
      %v2228 = vpop.f32.mrb[0].mxu0
      %v2229 = vpop.f32.mrb[0].mxu0
      %v2230 = vpop.f32.mrb[0].mxu0
      %2231 = vdwg.mxu0
      %v2232 = vadd.f32 %v2126, %v2186
      %v2233 = vadd.f32 %v2127, %v2188
      %v2234 = vadd.f32 %v2128, %v2227
      %s2235 = scalar_lea.vmem %s3, 30
      %v2236 = vld [vmem:[%s2235] sm:$0x3]
      %2237 = vrot.lane.b32.xlu0 %v606, 92
      %v2238 = vpop.permute.xlu0 %2237
      %2239 = vrot.lane.b32.xlu0 %v603, 92
      %v2240 = vpop.permute.xlu0 %2239
      %2241 = vrot.lane.b32.xlu0 %v608, 92
      %v2242 = vpop.permute.xlu0 %2241
      %v2243 = vsel %vm1294, %v2238, %v2240
      %v2244 = vsel %vm1294, %v2240, %v2242
      %v2246 = vsel %vm672, %v2236, 0
      %v2249 = vsel %vm676, %v2243, 0
      %v2252 = vsel %vm676, %v2244, 0
      %v2255 = vsel %vm676, %v2242, 0
      %2257 = vmatprep.subr.bf16.mxu0 %v2252
      %2258 = vmatpush1.bf16.msra.mxu0 %v2249
      %2259 = vmatprep.subr.bf16.mxu0 0
      %2260 = vmatpush1.bf16.msra.mxu0 0
      %2261 = vmatprep.subr.bf16.mxu0 0
      %2262 = vmatpush1.bf16.msra.mxu0 0
      %2263 = vmatprep.subr.bf16.mxu0 0
      %2264 = vmatpush1.bf16.msra.mxu0 0
      %2265 = vmatprep.subr.bf16.mxu0 0
      %2266 = vmatpush1.bf16.msra.mxu0 0
      %2267 = vmatprep.subr.bf16.mxu0 0
      %2268 = vmatpush1.bf16.msra.mxu0 0
      %2269 = vmatprep.subr.bf16.mxu0 0
      %2270 = vmatpush1.bf16.msra.mxu0 0
      %2271 = vmatprep.subr.bf16.mxu0 0
      %2272 = vmatpush1.bf16.msra.mxu0 0
      %2273 = vmatprep.subr.bf16.mxu0 0
      %2274 = vmatpush1.bf16.msra.mxu0 0
      %2275 = vmatprep.subr.bf16.mxu0 0
      %2276 = vmatpush1.bf16.msra.mxu0 0
      %2277 = vmatprep.subr.bf16.mxu0 0
      %2278 = vmatpush1.bf16.msra.mxu0 0
      %2279 = vmatprep.subr.bf16.mxu0 0
      %2280 = vmatpush1.bf16.msra.mxu0 0
      %2281 = vmatprep.subr.bf16.mxu0 0
      %2282 = vmatpush1.bf16.msra.mxu0 0
      %2283 = vmatprep.subr.bf16.mxu0 0
      %2284 = vmatpush1.bf16.msra.mxu0 0
      %2285 = vmatprep.subr.bf16.mxu0 0
      %2286 = vmatpush1.bf16.msra.mxu0 0
      %2287 = vmatprep.subr.bf16.mxu0 0
      %2288 = vmatpush1.bf16.msra.mxu0 0
      %2289 = vmatprep.mubr.bf16.mxu0 0
      %2290 = vmatmul.mubr.bf16.gmra.mrb[0].mxu0 %v2246
      %v2291 = vpop.f32.mrb[0].mxu0
      %v2292 = vadd.f32 0.0, %v2291
      %v2293 = vpop.f32.mrb[0].mxu0
      %v2294 = vadd.f32 0.0, %v2293
      %v2295 = vpop.f32.mrb[0].mxu0
      %v2296 = vpop.f32.mrb[0].mxu0
      %2297 = vdwg.mxu0
      %2298 = vmatprep.subr.bf16.mxu0 0
      %2299 = vmatpush1.bf16.msra.mxu0 %v2255
      %2300 = vmatprep.subr.bf16.mxu0 0
      %2301 = vmatpush1.bf16.msra.mxu0 0
      %2302 = vmatprep.subr.bf16.mxu0 0
      %2303 = vmatpush1.bf16.msra.mxu0 0
      %2304 = vmatprep.subr.bf16.mxu0 0
      %2305 = vmatpush1.bf16.msra.mxu0 0
      %2306 = vmatprep.subr.bf16.mxu0 0
      %2307 = vmatpush1.bf16.msra.mxu0 0
      %2308 = vmatprep.subr.bf16.mxu0 0
      %2309 = vmatpush1.bf16.msra.mxu0 0
      %2310 = vmatprep.subr.bf16.mxu0 0
      %2311 = vmatpush1.bf16.msra.mxu0 0
      %2312 = vmatprep.subr.bf16.mxu0 0
      %2313 = vmatpush1.bf16.msra.mxu0 0
      %2314 = vmatprep.subr.bf16.mxu0 0
      %2315 = vmatpush1.bf16.msra.mxu0 0
      %2316 = vmatprep.subr.bf16.mxu0 0
      %2317 = vmatpush1.bf16.msra.mxu0 0
      %2318 = vmatprep.subr.bf16.mxu0 0
      %2319 = vmatpush1.bf16.msra.mxu0 0
      %2320 = vmatprep.subr.bf16.mxu0 0
      %2321 = vmatpush1.bf16.msra.mxu0 0
      %2322 = vmatprep.subr.bf16.mxu0 0
      %2323 = vmatpush1.bf16.msra.mxu0 0
      %2324 = vmatprep.subr.bf16.mxu0 0
      %2325 = vmatpush1.bf16.msra.mxu0 0
      %2326 = vmatprep.subr.bf16.mxu0 0
      %2327 = vmatpush1.bf16.msra.mxu0 0
      %2328 = vmatprep.subr.bf16.mxu0 0
      %2329 = vmatpush1.bf16.msra.mxu0 0
      %2330 = vmatprep.mubr.bf16.mxu0 0
      %2331 = vmatmul.mubr.bf16.gmra.mrb[0].mxu0 %v2246
      %v2332 = vpop.f32.mrb[0].mxu0
      %v2333 = vadd.f32 0.0, %v2332
      %v2334 = vpop.f32.mrb[0].mxu0
      %v2335 = vpop.f32.mrb[0].mxu0
      %v2336 = vpop.f32.mrb[0].mxu0
      %2337 = vdwg.mxu0
      %v2338 = vadd.f32 %v2232, %v2292
      %v2339 = vadd.f32 %v2233, %v2294
      %v2340 = vadd.f32 %v2234, %v2333
      %s2341 = scalar_lea.vmem %s3, 32
      %v2342 = vld [vmem:[%s2341] sm:$0x3]
      %2343 = vrot.lane.b32.xlu0 %v606, 91
      %v2344 = vpop.permute.xlu0 %2343
      %2345 = vrot.lane.b32.xlu0 %v603, 91
      %v2346 = vpop.permute.xlu0 %2345
      %2347 = vrot.lane.b32.xlu0 %v608, 91
      %v2348 = vpop.permute.xlu0 %2347
      %v2349 = vsel %vm1401, %v2344, %v2346
      %v2350 = vsel %vm1401, %v2346, %v2348
      %v2352 = vsel %vm672, %v2342, 0
      %v2355 = vsel %vm676, %v2349, 0
      %v2358 = vsel %vm676, %v2350, 0
      %v2361 = vsel %vm676, %v2348, 0
      %2363 = vmatprep.subr.bf16.mxu0 %v2358
      %2364 = vmatpush1.bf16.msra.mxu0 %v2355
      %2365 = vmatprep.subr.bf16.mxu0 0
      %2366 = vmatpush1.bf16.msra.mxu0 0
      %2367 = vmatprep.subr.bf16.mxu0 0
      %2368 = vmatpush1.bf16.msra.mxu0 0
      %2369 = vmatprep.subr.bf16.mxu0 0
      %2370 = vmatpush1.bf16.msra.mxu0 0
      %2371 = vmatprep.subr.bf16.mxu0 0
      %2372 = vmatpush1.bf16.msra.mxu0 0
      %2373 = vmatprep.subr.bf16.mxu0 0
      %2374 = vmatpush1.bf16.msra.mxu0 0
      %2375 = vmatprep.subr.bf16.mxu0 0
      %2376 = vmatpush1.bf16.msra.mxu0 0
      %2377 = vmatprep.subr.bf16.mxu0 0
      %2378 = vmatpush1.bf16.msra.mxu0 0
      %2379 = vmatprep.subr.bf16.mxu0 0
      %2380 = vmatpush1.bf16.msra.mxu0 0
      %2381 = vmatprep.subr.bf16.mxu0 0
      %2382 = vmatpush1.bf16.msra.mxu0 0
      %2383 = vmatprep.subr.bf16.mxu0 0
      %2384 = vmatpush1.bf16.msra.mxu0 0
      %2385 = vmatprep.subr.bf16.mxu0 0
      %2386 = vmatpush1.bf16.msra.mxu0 0
      %2387 = vmatprep.subr.bf16.mxu0 0
      %2388 = vmatpush1.bf16.msra.mxu0 0
      %2389 = vmatprep.subr.bf16.mxu0 0
      %2390 = vmatpush1.bf16.msra.mxu0 0
      %2391 = vmatprep.subr.bf16.mxu0 0
      %2392 = vmatpush1.bf16.msra.mxu0 0
      %2393 = vmatprep.subr.bf16.mxu0 0
      %2394 = vmatpush1.bf16.msra.mxu0 0
      %2395 = vmatprep.mubr.bf16.mxu0 0
      %2396 = vmatmul.mubr.bf16.gmra.mrb[0].mxu0 %v2352
      %v2397 = vpop.f32.mrb[0].mxu0
      %v2398 = vadd.f32 0.0, %v2397
      %v2399 = vpop.f32.mrb[0].mxu0
      %v2400 = vadd.f32 0.0, %v2399
      %v2401 = vpop.f32.mrb[0].mxu0
      %v2402 = vpop.f32.mrb[0].mxu0
      %2403 = vdwg.mxu0
      %2404 = vmatprep.subr.bf16.mxu0 0
      %2405 = vmatpush1.bf16.msra.mxu0 %v2361
      %2406 = vmatprep.subr.bf16.mxu0 0
      %2407 = vmatpush1.bf16.msra.mxu0 0
      %2408 = vmatprep.subr.bf16.mxu0 0
      %2409 = vmatpush1.bf16.msra.mxu0 0
      %2410 = vmatprep.subr.bf16.mxu0 0
      %2411 = vmatpush1.bf16.msra.mxu0 0
      %2412 = vmatprep.subr.bf16.mxu0 0
      %2413 = vmatpush1.bf16.msra.mxu0 0
      %2414 = vmatprep.subr.bf16.mxu0 0
      %2415 = vmatpush1.bf16.msra.mxu0 0
      %2416 = vmatprep.subr.bf16.mxu0 0
      %2417 = vmatpush1.bf16.msra.mxu0 0
      %2418 = vmatprep.subr.bf16.mxu0 0
      %2419 = vmatpush1.bf16.msra.mxu0 0
      %2420 = vmatprep.subr.bf16.mxu0 0
      %2421 = vmatpush1.bf16.msra.mxu0 0
      %2422 = vmatprep.subr.bf16.mxu0 0
      %2423 = vmatpush1.bf16.msra.mxu0 0
      %2424 = vmatprep.subr.bf16.mxu0 0
      %2425 = vmatpush1.bf16.msra.mxu0 0
      %2426 = vmatprep.subr.bf16.mxu0 0
      %2427 = vmatpush1.bf16.msra.mxu0 0
      %2428 = vmatprep.subr.bf16.mxu0 0
      %2429 = vmatpush1.bf16.msra.mxu0 0
      %2430 = vmatprep.subr.bf16.mxu0 0
      %2431 = vmatpush1.bf16.msra.mxu0 0
      %2432 = vmatprep.subr.bf16.mxu0 0
      %2433 = vmatpush1.bf16.msra.mxu0 0
      %2434 = vmatprep.subr.bf16.mxu0 0
      %2435 = vmatpush1.bf16.msra.mxu0 0
      %2436 = vmatprep.mubr.bf16.mxu0 0
      %2437 = vmatmul.mubr.bf16.gmra.mrb[0].mxu0 %v2352
      %v2438 = vpop.f32.mrb[0].mxu0
      %v2439 = vadd.f32 0.0, %v2438
      %v2440 = vpop.f32.mrb[0].mxu0
      %v2441 = vpop.f32.mrb[0].mxu0
      %v2442 = vpop.f32.mrb[0].mxu0
      %2443 = vdwg.mxu0
      %v2444 = vadd.f32 %v2338, %v2398
      %v2445 = vadd.f32 %v2339, %v2400
      %v2446 = vadd.f32 %v2340, %v2439
      %s2447 = scalar_lea.vmem %s3, 34
      %v2448 = vld [vmem:[%s2447] sm:$0x3]
      %2449 = vrot.lane.b32.xlu0 %v606, 90
      %v2450 = vpop.permute.xlu0 %2449
      %2451 = vrot.lane.b32.xlu0 %v603, 90
      %v2452 = vpop.permute.xlu0 %2451
      %2453 = vrot.lane.b32.xlu0 %v608, 90
      %v2454 = vpop.permute.xlu0 %2453
      %v2455 = vsel %vm1508, %v2450, %v2452
      %v2456 = vsel %vm1508, %v2452, %v2454
      %v2458 = vsel %vm672, %v2448, 0
      %v2461 = vsel %vm676, %v2455, 0
      %v2464 = vsel %vm676, %v2456, 0
      %v2467 = vsel %vm676, %v2454, 0
      %2469 = vmatprep.subr.bf16.mxu0 %v2464
      %2470 = vmatpush1.bf16.msra.mxu0 %v2461
      %2471 = vmatprep.subr.bf16.mxu0 0
      %2472 = vmatpush1.bf16.msra.mxu0 0
      %2473 = vmatprep.subr.bf16.mxu0 0
      %2474 = vmatpush1.bf16.msra.mxu0 0
      %2475 = vmatprep.subr.bf16.mxu0 0
      %2476 = vmatpush1.bf16.msra.mxu0 0
      %2477 = vmatprep.subr.bf16.mxu0 0
      %2478 = vmatpush1.bf16.msra.mxu0 0
      %2479 = vmatprep.subr.bf16.mxu0 0
      %2480 = vmatpush1.bf16.msra.mxu0 0
      %2481 = vmatprep.subr.bf16.mxu0 0
      %2482 = vmatpush1.bf16.msra.mxu0 0
      %2483 = vmatprep.subr.bf16.mxu0 0
      %2484 = vmatpush1.bf16.msra.mxu0 0
      %2485 = vmatprep.subr.bf16.mxu0 0
      %2486 = vmatpush1.bf16.msra.mxu0 0
      %2487 = vmatprep.subr.bf16.mxu0 0
      %2488 = vmatpush1.bf16.msra.mxu0 0
      %2489 = vmatprep.subr.bf16.mxu0 0
      %2490 = vmatpush1.bf16.msra.mxu0 0
      %2491 = vmatprep.subr.bf16.mxu0 0
      %2492 = vmatpush1.bf16.msra.mxu0 0
      %2493 = vmatprep.subr.bf16.mxu0 0
      %2494 = vmatpush1.bf16.msra.mxu0 0
      %2495 = vmatprep.subr.bf16.mxu0 0
      %2496 = vmatpush1.bf16.msra.mxu0 0
      %2497 = vmatprep.subr.bf16.mxu0 0
      %2498 = vmatpush1.bf16.msra.mxu0 0
      %2499 = vmatprep.subr.bf16.mxu0 0
      %2500 = vmatpush1.bf16.msra.mxu0 0
      %2501 = vmatprep.mubr.bf16.mxu0 0
      %2502 = vmatmul.mubr.bf16.gmra.mrb[0].mxu0 %v2458
      %v2503 = vpop.f32.mrb[0].mxu0
      %v2504 = vadd.f32 0.0, %v2503
      %v2505 = vpop.f32.mrb[0].mxu0
      %v2506 = vadd.f32 0.0, %v2505
      %v2507 = vpop.f32.mrb[0].mxu0
      %v2508 = vpop.f32.mrb[0].mxu0
      %2509 = vdwg.mxu0
      %2510 = vmatprep.subr.bf16.mxu0 0
      %2511 = vmatpush1.bf16.msra.mxu0 %v2467
      %2512 = vmatprep.subr.bf16.mxu0 0
      %2513 = vmatpush1.bf16.msra.mxu0 0
      %2514 = vmatprep.subr.bf16.mxu0 0
      %2515 = vmatpush1.bf16.msra.mxu0 0
      %2516 = vmatprep.subr.bf16.mxu0 0
      %2517 = vmatpush1.bf16.msra.mxu0 0
      %2518 = vmatprep.subr.bf16.mxu0 0
      %2519 = vmatpush1.bf16.msra.mxu0 0
      %2520 = vmatprep.subr.bf16.mxu0 0
      %2521 = vmatpush1.bf16.msra.mxu0 0
      %2522 = vmatprep.subr.bf16.mxu0 0
      %2523 = vmatpush1.bf16.msra.mxu0 0
      %2524 = vmatprep.subr.bf16.mxu0 0
      %2525 = vmatpush1.bf16.msra.mxu0 0
      %2526 = vmatprep.subr.bf16.mxu0 0
      %2527 = vmatpush1.bf16.msra.mxu0 0
      %2528 = vmatprep.subr.bf16.mxu0 0
      %2529 = vmatpush1.bf16.msra.mxu0 0
      %2530 = vmatprep.subr.bf16.mxu0 0
      %2531 = vmatpush1.bf16.msra.mxu0 0
      %2532 = vmatprep.subr.bf16.mxu0 0
      %2533 = vmatpush1.bf16.msra.mxu0 0
      %2534 = vmatprep.subr.bf16.mxu0 0
      %2535 = vmatpush1.bf16.msra.mxu0 0
      %2536 = vmatprep.subr.bf16.mxu0 0
      %2537 = vmatpush1.bf16.msra.mxu0 0
      %2538 = vmatprep.subr.bf16.mxu0 0
      %2539 = vmatpush1.bf16.msra.mxu0 0
      %2540 = vmatprep.subr.bf16.mxu0 0
      %2541 = vmatpush1.bf16.msra.mxu0 0
      %2542 = vmatprep.mubr.bf16.mxu0 0
      %2543 = vmatmul.mubr.bf16.gmra.mrb[0].mxu0 %v2458
      %v2544 = vpop.f32.mrb[0].mxu0
      %v2545 = vadd.f32 0.0, %v2544
      %v2546 = vpop.f32.mrb[0].mxu0
      %v2547 = vpop.f32.mrb[0].mxu0
      %v2548 = vpop.f32.mrb[0].mxu0
      %2549 = vdwg.mxu0
      %v2550 = vadd.f32 %v2444, %v2504
      %v2551 = vadd.f32 %v2445, %v2506
      %v2552 = vadd.f32 %v2446, %v2545
      %s2553 = scalar_lea.vmem %s3, 36
      %v2554 = vld [vmem:[%s2553] sm:$0x3]
      %v2556 = vsel %vm672, %v2554, 0
      %v2558 = vsel %vm676, %v655, 0
      %v2561 = vsel %vm676, %v652, 0
      %v2563 = vsel %vm676, %v657, 0
      %2565 = vmatprep.subr.bf16.mxu0 %v2561
      %2566 = vmatpush1.bf16.msra.mxu0 %v2558
      %2567 = vmatprep.subr.bf16.mxu0 0
      %2568 = vmatpush1.bf16.msra.mxu0 0
      %2569 = vmatprep.subr.bf16.mxu0 0
      %2570 = vmatpush1.bf16.msra.mxu0 0
      %2571 = vmatprep.subr.bf16.mxu0 0
      %2572 = vmatpush1.bf16.msra.mxu0 0
      %2573 = vmatprep.subr.bf16.mxu0 0
      %2574 = vmatpush1.bf16.msra.mxu0 0
      %2575 = vmatprep.subr.bf16.mxu0 0
      %2576 = vmatpush1.bf16.msra.mxu0 0
      %2577 = vmatprep.subr.bf16.mxu0 0
      %2578 = vmatpush1.bf16.msra.mxu0 0
      %2579 = vmatprep.subr.bf16.mxu0 0
      %2580 = vmatpush1.bf16.msra.mxu0 0
      %2581 = vmatprep.subr.bf16.mxu0 0
      %2582 = vmatpush1.bf16.msra.mxu0 0
      %2583 = vmatprep.subr.bf16.mxu0 0
      %2584 = vmatpush1.bf16.msra.mxu0 0
      %2585 = vmatprep.subr.bf16.mxu0 0
      %2586 = vmatpush1.bf16.msra.mxu0 0
      %2587 = vmatprep.subr.bf16.mxu0 0
      %2588 = vmatpush1.bf16.msra.mxu0 0
      %2589 = vmatprep.subr.bf16.mxu0 0
      %2590 = vmatpush1.bf16.msra.mxu0 0
      %2591 = vmatprep.subr.bf16.mxu0 0
      %2592 = vmatpush1.bf16.msra.mxu0 0
      %2593 = vmatprep.subr.bf16.mxu0 0
      %2594 = vmatpush1.bf16.msra.mxu0 0
      %2595 = vmatprep.subr.bf16.mxu0 0
      %2596 = vmatpush1.bf16.msra.mxu0 0
      %2597 = vmatprep.mubr.bf16.mxu0 0
      %2598 = vmatmul.mubr.bf16.gmra.mrb[0].mxu0 %v2556
      %v2599 = vpop.f32.mrb[0].mxu0
      %v2600 = vadd.f32 0.0, %v2599
      %v2601 = vpop.f32.mrb[0].mxu0
      %v2602 = vadd.f32 0.0, %v2601
      %v2603 = vpop.f32.mrb[0].mxu0
      %v2604 = vpop.f32.mrb[0].mxu0
      %2605 = vdwg.mxu0
      %2606 = vmatprep.subr.bf16.mxu0 0
      %2607 = vmatpush1.bf16.msra.mxu0 %v2563
      %2608 = vmatprep.subr.bf16.mxu0 0
      %2609 = vmatpush1.bf16.msra.mxu0 0
      %2610 = vmatprep.subr.bf16.mxu0 0
      %2611 = vmatpush1.bf16.msra.mxu0 0
      %2612 = vmatprep.subr.bf16.mxu0 0
      %2613 = vmatpush1.bf16.msra.mxu0 0
      %2614 = vmatprep.subr.bf16.mxu0 0
      %2615 = vmatpush1.bf16.msra.mxu0 0
      %2616 = vmatprep.subr.bf16.mxu0 0
      %2617 = vmatpush1.bf16.msra.mxu0 0
      %2618 = vmatprep.subr.bf16.mxu0 0
      %2619 = vmatpush1.bf16.msra.mxu0 0
      %2620 = vmatprep.subr.bf16.mxu0 0
      %2621 = vmatpush1.bf16.msra.mxu0 0
      %2622 = vmatprep.subr.bf16.mxu0 0
      %2623 = vmatpush1.bf16.msra.mxu0 0
      %2624 = vmatprep.subr.bf16.mxu0 0
      %2625 = vmatpush1.bf16.msra.mxu0 0
      %2626 = vmatprep.subr.bf16.mxu0 0
      %2627 = vmatpush1.bf16.msra.mxu0 0
      %2628 = vmatprep.subr.bf16.mxu0 0
      %2629 = vmatpush1.bf16.msra.mxu0 0
      %2630 = vmatprep.subr.bf16.mxu0 0
      %2631 = vmatpush1.bf16.msra.mxu0 0
      %2632 = vmatprep.subr.bf16.mxu0 0
      %2633 = vmatpush1.bf16.msra.mxu0 0
      %2634 = vmatprep.subr.bf16.mxu0 0
      %2635 = vmatpush1.bf16.msra.mxu0 0
      %2636 = vmatprep.subr.bf16.mxu0 0
      %2637 = vmatpush1.bf16.msra.mxu0 0
      %2638 = vmatprep.mubr.bf16.mxu0 0
      %2639 = vmatmul.mubr.bf16.gmra.mrb[0].mxu0 %v2556
      %v2640 = vpop.f32.mrb[0].mxu0
      %v2641 = vadd.f32 0.0, %v2640
      %v2642 = vpop.f32.mrb[0].mxu0
      %v2643 = vpop.f32.mrb[0].mxu0
      %v2644 = vpop.f32.mrb[0].mxu0
      %2645 = vdwg.mxu0
      %v2646 = vadd.f32 %v2550, %v2600
      %v2647 = vadd.f32 %v2551, %v2602
      %v2648 = vadd.f32 %v2552, %v2641
      %s2649 = scalar_lea.vmem %s3, 38
      %v2650 = vld [vmem:[%s2649] sm:$0x3]
      %2653 = vrot.lane.b32.xlu0 %v655, 127
      %v2654 = vpop.permute.xlu0 %2653
      %2655 = vrot.lane.b32.xlu0 %v652, 127
      %v2656 = vpop.permute.xlu0 %2655
      %2657 = vrot.lane.b32.xlu0 %v657, 127
      %v2658 = vpop.permute.xlu0 %2657
      %v2659 = vsel %vm669, %v2654, %v2656
      %v2660 = vsel %vm669, %v2656, %v2658
      %v2662 = vsel %vm672, %v2650, 0
      %v2665 = vsel %vm676, %v2659, 0
      %v2668 = vsel %vm676, %v2660, 0
      %v2671 = vsel %vm676, %v2658, 0
      %2673 = vmatprep.subr.bf16.mxu0 %v2668
      %2674 = vmatpush1.bf16.msra.mxu0 %v2665
      %2675 = vmatprep.subr.bf16.mxu0 0
      %2676 = vmatpush1.bf16.msra.mxu0 0
      %2677 = vmatprep.subr.bf16.mxu0 0
      %2678 = vmatpush1.bf16.msra.mxu0 0
      %2679 = vmatprep.subr.bf16.mxu0 0
      %2680 = vmatpush1.bf16.msra.mxu0 0
      %2681 = vmatprep.subr.bf16.mxu0 0
      %2682 = vmatpush1.bf16.msra.mxu0 0
      %2683 = vmatprep.subr.bf16.mxu0 0
      %2684 = vmatpush1.bf16.msra.mxu0 0
      %2685 = vmatprep.subr.bf16.mxu0 0
      %2686 = vmatpush1.bf16.msra.mxu0 0
      %2687 = vmatprep.subr.bf16.mxu0 0
      %2688 = vmatpush1.bf16.msra.mxu0 0
      %2689 = vmatprep.subr.bf16.mxu0 0
      %2690 = vmatpush1.bf16.msra.mxu0 0
      %2691 = vmatprep.subr.bf16.mxu0 0
      %2692 = vmatpush1.bf16.msra.mxu0 0
      %2693 = vmatprep.subr.bf16.mxu0 0
      %2694 = vmatpush1.bf16.msra.mxu0 0
      %2695 = vmatprep.subr.bf16.mxu0 0
      %2696 = vmatpush1.bf16.msra.mxu0 0
      %2697 = vmatprep.subr.bf16.mxu0 0
      %2698 = vmatpush1.bf16.msra.mxu0 0
      %2699 = vmatprep.subr.bf16.mxu0 0
      %2700 = vmatpush1.bf16.msra.mxu0 0
      %2701 = vmatprep.subr.bf16.mxu0 0
      %2702 = vmatpush1.bf16.msra.mxu0 0
      %2703 = vmatprep.subr.bf16.mxu0 0
      %2704 = vmatpush1.bf16.msra.mxu0 0
      %2705 = vmatprep.mubr.bf16.mxu0 0
      %2706 = vmatmul.mubr.bf16.gmra.mrb[0].mxu0 %v2662
      %v2707 = vpop.f32.mrb[0].mxu0
      %v2708 = vadd.f32 0.0, %v2707
      %v2709 = vpop.f32.mrb[0].mxu0
      %v2710 = vadd.f32 0.0, %v2709
      %v2711 = vpop.f32.mrb[0].mxu0
      %v2712 = vpop.f32.mrb[0].mxu0
      %2713 = vdwg.mxu0
      %2714 = vmatprep.subr.bf16.mxu0 0
      %2715 = vmatpush1.bf16.msra.mxu0 %v2671
      %2716 = vmatprep.subr.bf16.mxu0 0
      %2717 = vmatpush1.bf16.msra.mxu0 0
      %2718 = vmatprep.subr.bf16.mxu0 0
      %2719 = vmatpush1.bf16.msra.mxu0 0
      %2720 = vmatprep.subr.bf16.mxu0 0
      %2721 = vmatpush1.bf16.msra.mxu0 0
      %2722 = vmatprep.subr.bf16.mxu0 0
      %2723 = vmatpush1.bf16.msra.mxu0 0
      %2724 = vmatprep.subr.bf16.mxu0 0
      %2725 = vmatpush1.bf16.msra.mxu0 0
      %2726 = vmatprep.subr.bf16.mxu0 0
      %2727 = vmatpush1.bf16.msra.mxu0 0
      %2728 = vmatprep.subr.bf16.mxu0 0
      %2729 = vmatpush1.bf16.msra.mxu0 0
      %2730 = vmatprep.subr.bf16.mxu0 0
      %2731 = vmatpush1.bf16.msra.mxu0 0
      %2732 = vmatprep.subr.bf16.mxu0 0
      %2733 = vmatpush1.bf16.msra.mxu0 0
      %2734 = vmatprep.subr.bf16.mxu0 0
      %2735 = vmatpush1.bf16.msra.mxu0 0
      %2736 = vmatprep.subr.bf16.mxu0 0
      %2737 = vmatpush1.bf16.msra.mxu0 0
      %2738 = vmatprep.subr.bf16.mxu0 0
      %2739 = vmatpush1.bf16.msra.mxu0 0
      %2740 = vmatprep.subr.bf16.mxu0 0
      %2741 = vmatpush1.bf16.msra.mxu0 0
      %2742 = vmatprep.subr.bf16.mxu0 0
      %2743 = vmatpush1.bf16.msra.mxu0 0
      %2744 = vmatprep.subr.bf16.mxu0 0
      %2745 = vmatpush1.bf16.msra.mxu0 0
      %2746 = vmatprep.mubr.bf16.mxu0 0
      %2747 = vmatmul.mubr.bf16.gmra.mrb[0].mxu0 %v2662
      %v2748 = vpop.f32.mrb[0].mxu0
      %v2749 = vadd.f32 0.0, %v2748
      %v2750 = vpop.f32.mrb[0].mxu0
      %v2751 = vpop.f32.mrb[0].mxu0
      %v2752 = vpop.f32.mrb[0].mxu0
      %2753 = vdwg.mxu0
      %v2754 = vadd.f32 %v2646, %v2708
      %v2755 = vadd.f32 %v2647, %v2710
      %v2756 = vadd.f32 %v2648, %v2749
      %s2757 = scalar_lea.vmem %s3, 40
      %v2758 = vld [vmem:[%s2757] sm:$0x3]
      %2759 = vrot.lane.b32.xlu0 %v655, 126
      %v2760 = vpop.permute.xlu0 %2759
      %2761 = vrot.lane.b32.xlu0 %v652, 126
      %v2762 = vpop.permute.xlu0 %2761
      %2763 = vrot.lane.b32.xlu0 %v657, 126
      %v2764 = vpop.permute.xlu0 %2763
      %v2765 = vsel %vm866, %v2760, %v2762
      %v2766 = vsel %vm866, %v2762, %v2764
      %v2768 = vsel %vm672, %v2758, 0
      %v2771 = vsel %vm676, %v2765, 0
      %v2774 = vsel %vm676, %v2766, 0
      %v2777 = vsel %vm676, %v2764, 0
      %2779 = vmatprep.subr.bf16.mxu0 %v2774
      %2780 = vmatpush1.bf16.msra.mxu0 %v2771
      %2781 = vmatprep.subr.bf16.mxu0 0
      %2782 = vmatpush1.bf16.msra.mxu0 0
      %2783 = vmatprep.subr.bf16.mxu0 0
      %2784 = vmatpush1.bf16.msra.mxu0 0
      %2785 = vmatprep.subr.bf16.mxu0 0
      %2786 = vmatpush1.bf16.msra.mxu0 0
      %2787 = vmatprep.subr.bf16.mxu0 0
      %2788 = vmatpush1.bf16.msra.mxu0 0
      %2789 = vmatprep.subr.bf16.mxu0 0
      %2790 = vmatpush1.bf16.msra.mxu0 0
      %2791 = vmatprep.subr.bf16.mxu0 0
      %2792 = vmatpush1.bf16.msra.mxu0 0
      %2793 = vmatprep.subr.bf16.mxu0 0
      %2794 = vmatpush1.bf16.msra.mxu0 0
      %2795 = vmatprep.subr.bf16.mxu0 0
      %2796 = vmatpush1.bf16.msra.mxu0 0
      %2797 = vmatprep.subr.bf16.mxu0 0
      %2798 = vmatpush1.bf16.msra.mxu0 0
      %2799 = vmatprep.subr.bf16.mxu0 0
      %2800 = vmatpush1.bf16.msra.mxu0 0
      %2801 = vmatprep.subr.bf16.mxu0 0
      %2802 = vmatpush1.bf16.msra.mxu0 0
      %2803 = vmatprep.subr.bf16.mxu0 0
      %2804 = vmatpush1.bf16.msra.mxu0 0
      %2805 = vmatprep.subr.bf16.mxu0 0
      %2806 = vmatpush1.bf16.msra.mxu0 0
      %2807 = vmatprep.subr.bf16.mxu0 0
      %2808 = vmatpush1.bf16.msra.mxu0 0
      %2809 = vmatprep.subr.bf16.mxu0 0
      %2810 = vmatpush1.bf16.msra.mxu0 0
      %2811 = vmatprep.mubr.bf16.mxu0 0
      %2812 = vmatmul.mubr.bf16.gmra.mrb[0].mxu0 %v2768
      %v2813 = vpop.f32.mrb[0].mxu0
      %v2814 = vadd.f32 0.0, %v2813
      %v2815 = vpop.f32.mrb[0].mxu0
      %v2816 = vadd.f32 0.0, %v2815
      %v2817 = vpop.f32.mrb[0].mxu0
      %v2818 = vpop.f32.mrb[0].mxu0
      %2819 = vdwg.mxu0
      %2820 = vmatprep.subr.bf16.mxu0 0
      %2821 = vmatpush1.bf16.msra.mxu0 %v2777
      %2822 = vmatprep.subr.bf16.mxu0 0
      %2823 = vmatpush1.bf16.msra.mxu0 0
      %2824 = vmatprep.subr.bf16.mxu0 0
      %2825 = vmatpush1.bf16.msra.mxu0 0
      %2826 = vmatprep.subr.bf16.mxu0 0
      %2827 = vmatpush1.bf16.msra.mxu0 0
      %2828 = vmatprep.subr.bf16.mxu0 0
      %2829 = vmatpush1.bf16.msra.mxu0 0
      %2830 = vmatprep.subr.bf16.mxu0 0
      %2831 = vmatpush1.bf16.msra.mxu0 0
      %2832 = vmatprep.subr.bf16.mxu0 0
      %2833 = vmatpush1.bf16.msra.mxu0 0
      %2834 = vmatprep.subr.bf16.mxu0 0
      %2835 = vmatpush1.bf16.msra.mxu0 0
      %2836 = vmatprep.subr.bf16.mxu0 0
      %2837 = vmatpush1.bf16.msra.mxu0 0
      %2838 = vmatprep.subr.bf16.mxu0 0
      %2839 = vmatpush1.bf16.msra.mxu0 0
      %2840 = vmatprep.subr.bf16.mxu0 0
      %2841 = vmatpush1.bf16.msra.mxu0 0
      %2842 = vmatprep.subr.bf16.mxu0 0
      %2843 = vmatpush1.bf16.msra.mxu0 0
      %2844 = vmatprep.subr.bf16.mxu0 0
      %2845 = vmatpush1.bf16.msra.mxu0 0
      %2846 = vmatprep.subr.bf16.mxu0 0
      %2847 = vmatpush1.bf16.msra.mxu0 0
      %2848 = vmatprep.subr.bf16.mxu0 0
      %2849 = vmatpush1.bf16.msra.mxu0 0
      %2850 = vmatprep.subr.bf16.mxu0 0
      %2851 = vmatpush1.bf16.msra.mxu0 0
      %2852 = vmatprep.mubr.bf16.mxu0 0
      %2853 = vmatmul.mubr.bf16.gmra.mrb[0].mxu0 %v2768
      %v2854 = vpop.f32.mrb[0].mxu0
      %v2855 = vadd.f32 0.0, %v2854
      %v2856 = vpop.f32.mrb[0].mxu0
      %v2857 = vpop.f32.mrb[0].mxu0
      %v2858 = vpop.f32.mrb[0].mxu0
      %2859 = vdwg.mxu0
      %v2860 = vadd.f32 %v2754, %v2814
      %v2861 = vadd.f32 %v2755, %v2816
      %v2862 = vadd.f32 %v2756, %v2855
      %s2863 = scalar_lea.vmem %s3, 42
      %v2864 = vld [vmem:[%s2863] sm:$0x3]
      %2865 = vrot.lane.b32.xlu0 %v655, 110
      %v2866 = vpop.permute.xlu0 %2865
      %2867 = vrot.lane.b32.xlu0 %v652, 110
      %v2868 = vpop.permute.xlu0 %2867
      %2869 = vrot.lane.b32.xlu0 %v657, 110
      %v2870 = vpop.permute.xlu0 %2869
      %v2871 = vsel %vm973, %v2866, %v2868
      %v2872 = vsel %vm973, %v2868, %v2870
      %v2874 = vsel %vm672, %v2864, 0
      %v2877 = vsel %vm676, %v2871, 0
      %v2880 = vsel %vm676, %v2872, 0
      %v2883 = vsel %vm676, %v2870, 0
      %2885 = vmatprep.subr.bf16.mxu0 %v2880
      %2886 = vmatpush1.bf16.msra.mxu0 %v2877
      %2887 = vmatprep.subr.bf16.mxu0 0
      %2888 = vmatpush1.bf16.msra.mxu0 0
      %2889 = vmatprep.subr.bf16.mxu0 0
      %2890 = vmatpush1.bf16.msra.mxu0 0
      %2891 = vmatprep.subr.bf16.mxu0 0
      %2892 = vmatpush1.bf16.msra.mxu0 0
      %2893 = vmatprep.subr.bf16.mxu0 0
      %2894 = vmatpush1.bf16.msra.mxu0 0
      %2895 = vmatprep.subr.bf16.mxu0 0
      %2896 = vmatpush1.bf16.msra.mxu0 0
      %2897 = vmatprep.subr.bf16.mxu0 0
      %2898 = vmatpush1.bf16.msra.mxu0 0
      %2899 = vmatprep.subr.bf16.mxu0 0
      %2900 = vmatpush1.bf16.msra.mxu0 0
      %2901 = vmatprep.subr.bf16.mxu0 0
      %2902 = vmatpush1.bf16.msra.mxu0 0
      %2903 = vmatprep.subr.bf16.mxu0 0
      %2904 = vmatpush1.bf16.msra.mxu0 0
      %2905 = vmatprep.subr.bf16.mxu0 0
      %2906 = vmatpush1.bf16.msra.mxu0 0
      %2907 = vmatprep.subr.bf16.mxu0 0
      %2908 = vmatpush1.bf16.msra.mxu0 0
      %2909 = vmatprep.subr.bf16.mxu0 0
      %2910 = vmatpush1.bf16.msra.mxu0 0
      %2911 = vmatprep.subr.bf16.mxu0 0
      %2912 = vmatpush1.bf16.msra.mxu0 0
      %2913 = vmatprep.subr.bf16.mxu0 0
      %2914 = vmatpush1.bf16.msra.mxu0 0
      %2915 = vmatprep.subr.bf16.mxu0 0
      %2916 = vmatpush1.bf16.msra.mxu0 0
      %2917 = vmatprep.mubr.bf16.mxu0 0
      %2918 = vmatmul.mubr.bf16.gmra.mrb[0].mxu0 %v2874
      %v2919 = vpop.f32.mrb[0].mxu0
      %v2920 = vadd.f32 0.0, %v2919
      %v2921 = vpop.f32.mrb[0].mxu0
      %v2922 = vadd.f32 0.0, %v2921
      %v2923 = vpop.f32.mrb[0].mxu0
      %v2924 = vpop.f32.mrb[0].mxu0
      %2925 = vdwg.mxu0
      %2926 = vmatprep.subr.bf16.mxu0 0
      %2927 = vmatpush1.bf16.msra.mxu0 %v2883
      %2928 = vmatprep.subr.bf16.mxu0 0
      %2929 = vmatpush1.bf16.msra.mxu0 0
      %2930 = vmatprep.subr.bf16.mxu0 0
      %2931 = vmatpush1.bf16.msra.mxu0 0
      %2932 = vmatprep.subr.bf16.mxu0 0
      %2933 = vmatpush1.bf16.msra.mxu0 0
      %2934 = vmatprep.subr.bf16.mxu0 0
      %2935 = vmatpush1.bf16.msra.mxu0 0
      %2936 = vmatprep.subr.bf16.mxu0 0
      %2937 = vmatpush1.bf16.msra.mxu0 0
      %2938 = vmatprep.subr.bf16.mxu0 0
      %2939 = vmatpush1.bf16.msra.mxu0 0
      %2940 = vmatprep.subr.bf16.mxu0 0
      %2941 = vmatpush1.bf16.msra.mxu0 0
      %2942 = vmatprep.subr.bf16.mxu0 0
      %2943 = vmatpush1.bf16.msra.mxu0 0
      %2944 = vmatprep.subr.bf16.mxu0 0
      %2945 = vmatpush1.bf16.msra.mxu0 0
      %2946 = vmatprep.subr.bf16.mxu0 0
      %2947 = vmatpush1.bf16.msra.mxu0 0
      %2948 = vmatprep.subr.bf16.mxu0 0
      %2949 = vmatpush1.bf16.msra.mxu0 0
      %2950 = vmatprep.subr.bf16.mxu0 0
      %2951 = vmatpush1.bf16.msra.mxu0 0
      %2952 = vmatprep.subr.bf16.mxu0 0
      %2953 = vmatpush1.bf16.msra.mxu0 0
      %2954 = vmatprep.subr.bf16.mxu0 0
      %2955 = vmatpush1.bf16.msra.mxu0 0
      %2956 = vmatprep.subr.bf16.mxu0 0
      %2957 = vmatpush1.bf16.msra.mxu0 0
      %2958 = vmatprep.mubr.bf16.mxu0 0
      %2959 = vmatmul.mubr.bf16.gmra.mrb[0].mxu0 %v2874
      %v2960 = vpop.f32.mrb[0].mxu0
      %v2961 = vadd.f32 0.0, %v2960
      %v2962 = vpop.f32.mrb[0].mxu0
      %v2963 = vpop.f32.mrb[0].mxu0
      %v2964 = vpop.f32.mrb[0].mxu0
      %2965 = vdwg.mxu0
      %v2966 = vadd.f32 %v2860, %v2920
      %v2967 = vadd.f32 %v2861, %v2922
      %v2968 = vadd.f32 %v2862, %v2961
      %s2969 = scalar_lea.vmem %s3, 44
      %v2970 = vld [vmem:[%s2969] sm:$0x3]
      %2971 = vrot.lane.b32.xlu0 %v655, 109
      %v2972 = vpop.permute.xlu0 %2971
      %2973 = vrot.lane.b32.xlu0 %v652, 109
      %v2974 = vpop.permute.xlu0 %2973
      %2975 = vrot.lane.b32.xlu0 %v657, 109
      %v2976 = vpop.permute.xlu0 %2975
      %v2977 = vsel %vm1080, %v2972, %v2974
      %v2978 = vsel %vm1080, %v2974, %v2976
      %v2980 = vsel %vm672, %v2970, 0
      %v2983 = vsel %vm676, %v2977, 0
      %v2986 = vsel %vm676, %v2978, 0
      %v2989 = vsel %vm676, %v2976, 0
      %2991 = vmatprep.subr.bf16.mxu0 %v2986
      %2992 = vmatpush1.bf16.msra.mxu0 %v2983
      %2993 = vmatprep.subr.bf16.mxu0 0
      %2994 = vmatpush1.bf16.msra.mxu0 0
      %2995 = vmatprep.subr.bf16.mxu0 0
      %2996 = vmatpush1.bf16.msra.mxu0 0
      %2997 = vmatprep.subr.bf16.mxu0 0
      %2998 = vmatpush1.bf16.msra.mxu0 0
      %2999 = vmatprep.subr.bf16.mxu0 0
      %3000 = vmatpush1.bf16.msra.mxu0 0
      %3001 = vmatprep.subr.bf16.mxu0 0
      %3002 = vmatpush1.bf16.msra.mxu0 0
      %3003 = vmatprep.subr.bf16.mxu0 0
      %3004 = vmatpush1.bf16.msra.mxu0 0
      %3005 = vmatprep.subr.bf16.mxu0 0
      %3006 = vmatpush1.bf16.msra.mxu0 0
      %3007 = vmatprep.subr.bf16.mxu0 0
      %3008 = vmatpush1.bf16.msra.mxu0 0
      %3009 = vmatprep.subr.bf16.mxu0 0
      %3010 = vmatpush1.bf16.msra.mxu0 0
      %3011 = vmatprep.subr.bf16.mxu0 0
      %3012 = vmatpush1.bf16.msra.mxu0 0
      %3013 = vmatprep.subr.bf16.mxu0 0
      %3014 = vmatpush1.bf16.msra.mxu0 0
      %3015 = vmatprep.subr.bf16.mxu0 0
      %3016 = vmatpush1.bf16.msra.mxu0 0
      %3017 = vmatprep.subr.bf16.mxu0 0
      %3018 = vmatpush1.bf16.msra.mxu0 0
      %3019 = vmatprep.subr.bf16.mxu0 0
      %3020 = vmatpush1.bf16.msra.mxu0 0
      %3021 = vmatprep.subr.bf16.mxu0 0
      %3022 = vmatpush1.bf16.msra.mxu0 0
      %3023 = vmatprep.mubr.bf16.mxu0 0
      %3024 = vmatmul.mubr.bf16.gmra.mrb[0].mxu0 %v2980
      %v3025 = vpop.f32.mrb[0].mxu0
      %v3026 = vadd.f32 0.0, %v3025
      %v3027 = vpop.f32.mrb[0].mxu0
      %v3028 = vadd.f32 0.0, %v3027
      %v3029 = vpop.f32.mrb[0].mxu0
      %v3030 = vpop.f32.mrb[0].mxu0
      %3031 = vdwg.mxu0
      %3032 = vmatprep.subr.bf16.mxu0 0
      %3033 = vmatpush1.bf16.msra.mxu0 %v2989
      %3034 = vmatprep.subr.bf16.mxu0 0
      %3035 = vmatpush1.bf16.msra.mxu0 0
      %3036 = vmatprep.subr.bf16.mxu0 0
      %3037 = vmatpush1.bf16.msra.mxu0 0
      %3038 = vmatprep.subr.bf16.mxu0 0
      %3039 = vmatpush1.bf16.msra.mxu0 0
      %3040 = vmatprep.subr.bf16.mxu0 0
      %3041 = vmatpush1.bf16.msra.mxu0 0
      %3042 = vmatprep.subr.bf16.mxu0 0
      %3043 = vmatpush1.bf16.msra.mxu0 0
      %3044 = vmatprep.subr.bf16.mxu0 0
      %3045 = vmatpush1.bf16.msra.mxu0 0
      %3046 = vmatprep.subr.bf16.mxu0 0
      %3047 = vmatpush1.bf16.msra.mxu0 0
      %3048 = vmatprep.subr.bf16.mxu0 0
      %3049 = vmatpush1.bf16.msra.mxu0 0
      %3050 = vmatprep.subr.bf16.mxu0 0
      %3051 = vmatpush1.bf16.msra.mxu0 0
      %3052 = vmatprep.subr.bf16.mxu0 0
      %3053 = vmatpush1.bf16.msra.mxu0 0
      %3054 = vmatprep.subr.bf16.mxu0 0
      %3055 = vmatpush1.bf16.msra.mxu0 0
      %3056 = vmatprep.subr.bf16.mxu0 0
      %3057 = vmatpush1.bf16.msra.mxu0 0
      %3058 = vmatprep.subr.bf16.mxu0 0
      %3059 = vmatpush1.bf16.msra.mxu0 0
      %3060 = vmatprep.subr.bf16.mxu0 0
      %3061 = vmatpush1.bf16.msra.mxu0 0
      %3062 = vmatprep.subr.bf16.mxu0 0
      %3063 = vmatpush1.bf16.msra.mxu0 0
      %3064 = vmatprep.mubr.bf16.mxu0 0
      %3065 = vmatmul.mubr.bf16.gmra.mrb[0].mxu0 %v2980
      %v3066 = vpop.f32.mrb[0].mxu0
      %v3067 = vadd.f32 0.0, %v3066
      %v3068 = vpop.f32.mrb[0].mxu0
      %v3069 = vpop.f32.mrb[0].mxu0
      %v3070 = vpop.f32.mrb[0].mxu0
      %3071 = vdwg.mxu0
      %v3072 = vadd.f32 %v2966, %v3026
      %v3073 = vadd.f32 %v2967, %v3028
      %v3074 = vadd.f32 %v2968, %v3067
      %s3075 = scalar_lea.vmem %s3, 46
      %v3076 = vld [vmem:[%s3075] sm:$0x3]
      %3077 = vrot.lane.b32.xlu0 %v655, 108
      %v3078 = vpop.permute.xlu0 %3077
      %3079 = vrot.lane.b32.xlu0 %v652, 108
      %v3080 = vpop.permute.xlu0 %3079
      %3081 = vrot.lane.b32.xlu0 %v657, 108
      %v3082 = vpop.permute.xlu0 %3081
      %v3083 = vsel %vm1187, %v3078, %v3080
      %v3084 = vsel %vm1187, %v3080, %v3082
      %v3086 = vsel %vm672, %v3076, 0
      %v3089 = vsel %vm676, %v3083, 0
      %v3092 = vsel %vm676, %v3084, 0
      %v3095 = vsel %vm676, %v3082, 0
      %3097 = vmatprep.subr.bf16.mxu0 %v3092
      %3098 = vmatpush1.bf16.msra.mxu0 %v3089
      %3099 = vmatprep.subr.bf16.mxu0 0
      %3100 = vmatpush1.bf16.msra.mxu0 0
      %3101 = vmatprep.subr.bf16.mxu0 0
      %3102 = vmatpush1.bf16.msra.mxu0 0
      %3103 = vmatprep.subr.bf16.mxu0 0
      %3104 = vmatpush1.bf16.msra.mxu0 0
      %3105 = vmatprep.subr.bf16.mxu0 0
      %3106 = vmatpush1.bf16.msra.mxu0 0
      %3107 = vmatprep.subr.bf16.mxu0 0
      %3108 = vmatpush1.bf16.msra.mxu0 0
      %3109 = vmatprep.subr.bf16.mxu0 0
      %3110 = vmatpush1.bf16.msra.mxu0 0
      %3111 = vmatprep.subr.bf16.mxu0 0
      %3112 = vmatpush1.bf16.msra.mxu0 0
      %3113 = vmatprep.subr.bf16.mxu0 0
      %3114 = vmatpush1.bf16.msra.mxu0 0
      %3115 = vmatprep.subr.bf16.mxu0 0
      %3116 = vmatpush1.bf16.msra.mxu0 0
      %3117 = vmatprep.subr.bf16.mxu0 0
      %3118 = vmatpush1.bf16.msra.mxu0 0
      %3119 = vmatprep.subr.bf16.mxu0 0
      %3120 = vmatpush1.bf16.msra.mxu0 0
      %3121 = vmatprep.subr.bf16.mxu0 0
      %3122 = vmatpush1.bf16.msra.mxu0 0
      %3123 = vmatprep.subr.bf16.mxu0 0
      %3124 = vmatpush1.bf16.msra.mxu0 0
      %3125 = vmatprep.subr.bf16.mxu0 0
      %3126 = vmatpush1.bf16.msra.mxu0 0
      %3127 = vmatprep.subr.bf16.mxu0 0
      %3128 = vmatpush1.bf16.msra.mxu0 0
      %3129 = vmatprep.mubr.bf16.mxu0 0
      %3130 = vmatmul.mubr.bf16.gmra.mrb[0].mxu0 %v3086
      %v3131 = vpop.f32.mrb[0].mxu0
      %v3132 = vadd.f32 0.0, %v3131
      %v3133 = vpop.f32.mrb[0].mxu0
      %v3134 = vadd.f32 0.0, %v3133
      %v3135 = vpop.f32.mrb[0].mxu0
      %v3136 = vpop.f32.mrb[0].mxu0
      %3137 = vdwg.mxu0
      %3138 = vmatprep.subr.bf16.mxu0 0
      %3139 = vmatpush1.bf16.msra.mxu0 %v3095
      %3140 = vmatprep.subr.bf16.mxu0 0
      %3141 = vmatpush1.bf16.msra.mxu0 0
      %3142 = vmatprep.subr.bf16.mxu0 0
      %3143 = vmatpush1.bf16.msra.mxu0 0
      %3144 = vmatprep.subr.bf16.mxu0 0
      %3145 = vmatpush1.bf16.msra.mxu0 0
      %3146 = vmatprep.subr.bf16.mxu0 0
      %3147 = vmatpush1.bf16.msra.mxu0 0
      %3148 = vmatprep.subr.bf16.mxu0 0
      %3149 = vmatpush1.bf16.msra.mxu0 0
      %3150 = vmatprep.subr.bf16.mxu0 0
      %3151 = vmatpush1.bf16.msra.mxu0 0
      %3152 = vmatprep.subr.bf16.mxu0 0
      %3153 = vmatpush1.bf16.msra.mxu0 0
      %3154 = vmatprep.subr.bf16.mxu0 0
      %3155 = vmatpush1.bf16.msra.mxu0 0
      %3156 = vmatprep.subr.bf16.mxu0 0
      %3157 = vmatpush1.bf16.msra.mxu0 0
      %3158 = vmatprep.subr.bf16.mxu0 0
      %3159 = vmatpush1.bf16.msra.mxu0 0
      %3160 = vmatprep.subr.bf16.mxu0 0
      %3161 = vmatpush1.bf16.msra.mxu0 0
      %3162 = vmatprep.subr.bf16.mxu0 0
      %3163 = vmatpush1.bf16.msra.mxu0 0
      %3164 = vmatprep.subr.bf16.mxu0 0
      %3165 = vmatpush1.bf16.msra.mxu0 0
      %3166 = vmatprep.subr.bf16.mxu0 0
      %3167 = vmatpush1.bf16.msra.mxu0 0
      %3168 = vmatprep.subr.bf16.mxu0 0
      %3169 = vmatpush1.bf16.msra.mxu0 0
      %3170 = vmatprep.mubr.bf16.mxu0 0
      %3171 = vmatmul.mubr.bf16.gmra.mrb[0].mxu0 %v3086
      %v3172 = vpop.f32.mrb[0].mxu0
      %v3173 = vadd.f32 0.0, %v3172
      %v3174 = vpop.f32.mrb[0].mxu0
      %v3175 = vpop.f32.mrb[0].mxu0
      %v3176 = vpop.f32.mrb[0].mxu0
      %3177 = vdwg.mxu0
      %v3178 = vadd.f32 %v3072, %v3132
      %v3179 = vadd.f32 %v3073, %v3134
      %v3180 = vadd.f32 %v3074, %v3173
      %s3181 = scalar_lea.vmem %s3, 48
      %v3182 = vld [vmem:[%s3181] sm:$0x3]
      %3183 = vrot.lane.b32.xlu0 %v655, 92
      %v3184 = vpop.permute.xlu0 %3183
      %3185 = vrot.lane.b32.xlu0 %v652, 92
      %v3186 = vpop.permute.xlu0 %3185
      %3187 = vrot.lane.b32.xlu0 %v657, 92
      %v3188 = vpop.permute.xlu0 %3187
      %v3189 = vsel %vm1294, %v3184, %v3186
      %v3190 = vsel %vm1294, %v3186, %v3188
      %v3192 = vsel %vm672, %v3182, 0
      %v3195 = vsel %vm676, %v3189, 0
      %v3198 = vsel %vm676, %v3190, 0
      %v3201 = vsel %vm676, %v3188, 0
      %3203 = vmatprep.subr.bf16.mxu0 %v3198
      %3204 = vmatpush1.bf16.msra.mxu0 %v3195
      %3205 = vmatprep.subr.bf16.mxu0 0
      %3206 = vmatpush1.bf16.msra.mxu0 0
      %3207 = vmatprep.subr.bf16.mxu0 0
      %3208 = vmatpush1.bf16.msra.mxu0 0
      %3209 = vmatprep.subr.bf16.mxu0 0
      %3210 = vmatpush1.bf16.msra.mxu0 0
      %3211 = vmatprep.subr.bf16.mxu0 0
      %3212 = vmatpush1.bf16.msra.mxu0 0
      %3213 = vmatprep.subr.bf16.mxu0 0
      %3214 = vmatpush1.bf16.msra.mxu0 0
      %3215 = vmatprep.subr.bf16.mxu0 0
      %3216 = vmatpush1.bf16.msra.mxu0 0
      %3217 = vmatprep.subr.bf16.mxu0 0
      %3218 = vmatpush1.bf16.msra.mxu0 0
      %3219 = vmatprep.subr.bf16.mxu0 0
      %3220 = vmatpush1.bf16.msra.mxu0 0
      %3221 = vmatprep.subr.bf16.mxu0 0
      %3222 = vmatpush1.bf16.msra.mxu0 0
      %3223 = vmatprep.subr.bf16.mxu0 0
      %3224 = vmatpush1.bf16.msra.mxu0 0
      %3225 = vmatprep.subr.bf16.mxu0 0
      %3226 = vmatpush1.bf16.msra.mxu0 0
      %3227 = vmatprep.subr.bf16.mxu0 0
      %3228 = vmatpush1.bf16.msra.mxu0 0
      %3229 = vmatprep.subr.bf16.mxu0 0
      %3230 = vmatpush1.bf16.msra.mxu0 0
      %3231 = vmatprep.subr.bf16.mxu0 0
      %3232 = vmatpush1.bf16.msra.mxu0 0
      %3233 = vmatprep.subr.bf16.mxu0 0
      %3234 = vmatpush1.bf16.msra.mxu0 0
      %3235 = vmatprep.mubr.bf16.mxu0 0
      %3236 = vmatmul.mubr.bf16.gmra.mrb[0].mxu0 %v3192
      %v3237 = vpop.f32.mrb[0].mxu0
      %v3238 = vadd.f32 0.0, %v3237
      %v3239 = vpop.f32.mrb[0].mxu0
      %v3240 = vadd.f32 0.0, %v3239
      %v3241 = vpop.f32.mrb[0].mxu0
      %v3242 = vpop.f32.mrb[0].mxu0
      %3243 = vdwg.mxu0
      %3244 = vmatprep.subr.bf16.mxu0 0
      %3245 = vmatpush1.bf16.msra.mxu0 %v3201
      %3246 = vmatprep.subr.bf16.mxu0 0
      %3247 = vmatpush1.bf16.msra.mxu0 0
      %3248 = vmatprep.subr.bf16.mxu0 0
      %3249 = vmatpush1.bf16.msra.mxu0 0
      %3250 = vmatprep.subr.bf16.mxu0 0
      %3251 = vmatpush1.bf16.msra.mxu0 0
      %3252 = vmatprep.subr.bf16.mxu0 0
      %3253 = vmatpush1.bf16.msra.mxu0 0
      %3254 = vmatprep.subr.bf16.mxu0 0
      %3255 = vmatpush1.bf16.msra.mxu0 0
      %3256 = vmatprep.subr.bf16.mxu0 0
      %3257 = vmatpush1.bf16.msra.mxu0 0
      %3258 = vmatprep.subr.bf16.mxu0 0
      %3259 = vmatpush1.bf16.msra.mxu0 0
      %3260 = vmatprep.subr.bf16.mxu0 0
      %3261 = vmatpush1.bf16.msra.mxu0 0
      %3262 = vmatprep.subr.bf16.mxu0 0
      %3263 = vmatpush1.bf16.msra.mxu0 0
      %3264 = vmatprep.subr.bf16.mxu0 0
      %3265 = vmatpush1.bf16.msra.mxu0 0
      %3266 = vmatprep.subr.bf16.mxu0 0
      %3267 = vmatpush1.bf16.msra.mxu0 0
      %3268 = vmatprep.subr.bf16.mxu0 0
      %3269 = vmatpush1.bf16.msra.mxu0 0
      %3270 = vmatprep.subr.bf16.mxu0 0
      %3271 = vmatpush1.bf16.msra.mxu0 0
      %3272 = vmatprep.subr.bf16.mxu0 0
      %3273 = vmatpush1.bf16.msra.mxu0 0
      %3274 = vmatprep.subr.bf16.mxu0 0
      %3275 = vmatpush1.bf16.msra.mxu0 0
      %3276 = vmatprep.mubr.bf16.mxu0 0
      %3277 = vmatmul.mubr.bf16.gmra.mrb[0].mxu0 %v3192
      %v3278 = vpop.f32.mrb[0].mxu0
      %v3279 = vadd.f32 0.0, %v3278
      %v3280 = vpop.f32.mrb[0].mxu0
      %v3281 = vpop.f32.mrb[0].mxu0
      %v3282 = vpop.f32.mrb[0].mxu0
      %3283 = vdwg.mxu0
      %v3284 = vadd.f32 %v3178, %v3238
      %v3285 = vadd.f32 %v3179, %v3240
      %v3286 = vadd.f32 %v3180, %v3279
      %s3287 = scalar_lea.vmem %s3, 50
      %v3288 = vld [vmem:[%s3287] sm:$0x3]
      %3289 = vrot.lane.b32.xlu0 %v655, 91
      %v3290 = vpop.permute.xlu0 %3289
      %3291 = vrot.lane.b32.xlu0 %v652, 91
      %v3292 = vpop.permute.xlu0 %3291
      %3293 = vrot.lane.b32.xlu0 %v657, 91
      %v3294 = vpop.permute.xlu0 %3293
      %v3295 = vsel %vm1401, %v3290, %v3292
      %v3296 = vsel %vm1401, %v3292, %v3294
      %v3298 = vsel %vm672, %v3288, 0
      %v3301 = vsel %vm676, %v3295, 0
      %v3304 = vsel %vm676, %v3296, 0
      %v3307 = vsel %vm676, %v3294, 0
      %3309 = vmatprep.subr.bf16.mxu0 %v3304
      %3310 = vmatpush1.bf16.msra.mxu0 %v3301
      %3311 = vmatprep.subr.bf16.mxu0 0
      %3312 = vmatpush1.bf16.msra.mxu0 0
      %3313 = vmatprep.subr.bf16.mxu0 0
      %3314 = vmatpush1.bf16.msra.mxu0 0
      %3315 = vmatprep.subr.bf16.mxu0 0
      %3316 = vmatpush1.bf16.msra.mxu0 0
      %3317 = vmatprep.subr.bf16.mxu0 0
      %3318 = vmatpush1.bf16.msra.mxu0 0
      %3319 = vmatprep.subr.bf16.mxu0 0
      %3320 = vmatpush1.bf16.msra.mxu0 0
      %3321 = vmatprep.subr.bf16.mxu0 0
      %3322 = vmatpush1.bf16.msra.mxu0 0
      %3323 = vmatprep.subr.bf16.mxu0 0
      %3324 = vmatpush1.bf16.msra.mxu0 0
      %3325 = vmatprep.subr.bf16.mxu0 0
      %3326 = vmatpush1.bf16.msra.mxu0 0
      %3327 = vmatprep.subr.bf16.mxu0 0
      %3328 = vmatpush1.bf16.msra.mxu0 0
      %3329 = vmatprep.subr.bf16.mxu0 0
      %3330 = vmatpush1.bf16.msra.mxu0 0
      %3331 = vmatprep.subr.bf16.mxu0 0
      %3332 = vmatpush1.bf16.msra.mxu0 0
      %3333 = vmatprep.subr.bf16.mxu0 0
      %3334 = vmatpush1.bf16.msra.mxu0 0
      %3335 = vmatprep.subr.bf16.mxu0 0
      %3336 = vmatpush1.bf16.msra.mxu0 0
      %3337 = vmatprep.subr.bf16.mxu0 0
      %3338 = vmatpush1.bf16.msra.mxu0 0
      %3339 = vmatprep.subr.bf16.mxu0 0
      %3340 = vmatpush1.bf16.msra.mxu0 0
      %3341 = vmatprep.mubr.bf16.mxu0 0
      %3342 = vmatmul.mubr.bf16.gmra.mrb[0].mxu0 %v3298
      %v3343 = vpop.f32.mrb[0].mxu0
      %v3344 = vadd.f32 0.0, %v3343
      %v3345 = vpop.f32.mrb[0].mxu0
      %v3346 = vadd.f32 0.0, %v3345
      %v3347 = vpop.f32.mrb[0].mxu0
      %v3348 = vpop.f32.mrb[0].mxu0
      %3349 = vdwg.mxu0
      %3350 = vmatprep.subr.bf16.mxu0 0
      %3351 = vmatpush1.bf16.msra.mxu0 %v3307
      %3352 = vmatprep.subr.bf16.mxu0 0
      %3353 = vmatpush1.bf16.msra.mxu0 0
      %3354 = vmatprep.subr.bf16.mxu0 0
      %3355 = vmatpush1.bf16.msra.mxu0 0
      %3356 = vmatprep.subr.bf16.mxu0 0
      %3357 = vmatpush1.bf16.msra.mxu0 0
      %3358 = vmatprep.subr.bf16.mxu0 0
      %3359 = vmatpush1.bf16.msra.mxu0 0
      %3360 = vmatprep.subr.bf16.mxu0 0
      %3361 = vmatpush1.bf16.msra.mxu0 0
      %3362 = vmatprep.subr.bf16.mxu0 0
      %3363 = vmatpush1.bf16.msra.mxu0 0
      %3364 = vmatprep.subr.bf16.mxu0 0
      %3365 = vmatpush1.bf16.msra.mxu0 0
      %3366 = vmatprep.subr.bf16.mxu0 0
      %3367 = vmatpush1.bf16.msra.mxu0 0
      %3368 = vmatprep.subr.bf16.mxu0 0
      %3369 = vmatpush1.bf16.msra.mxu0 0
      %3370 = vmatprep.subr.bf16.mxu0 0
      %3371 = vmatpush1.bf16.msra.mxu0 0
      %3372 = vmatprep.subr.bf16.mxu0 0
      %3373 = vmatpush1.bf16.msra.mxu0 0
      %3374 = vmatprep.subr.bf16.mxu0 0
      %3375 = vmatpush1.bf16.msra.mxu0 0
      %3376 = vmatprep.subr.bf16.mxu0 0
      %3377 = vmatpush1.bf16.msra.mxu0 0
      %3378 = vmatprep.subr.bf16.mxu0 0
      %3379 = vmatpush1.bf16.msra.mxu0 0
      %3380 = vmatprep.subr.bf16.mxu0 0
      %3381 = vmatpush1.bf16.msra.mxu0 0
      %3382 = vmatprep.mubr.bf16.mxu0 0
      %3383 = vmatmul.mubr.bf16.gmra.mrb[0].mxu0 %v3298
      %v3384 = vpop.f32.mrb[0].mxu0
      %v3385 = vadd.f32 0.0, %v3384
      %v3386 = vpop.f32.mrb[0].mxu0
      %v3387 = vpop.f32.mrb[0].mxu0
      %v3388 = vpop.f32.mrb[0].mxu0
      %3389 = vdwg.mxu0
      %v3390 = vadd.f32 %v3284, %v3344
      %v3391 = vadd.f32 %v3285, %v3346
      %v3392 = vadd.f32 %v3286, %v3385
      %s3393 = scalar_lea.vmem %s3, 52
      %v3394 = vld [vmem:[%s3393] sm:$0x3]
      %3395 = vrot.lane.b32.xlu0 %v655, 90
      %v3396 = vpop.permute.xlu0 %3395
      %3397 = vrot.lane.b32.xlu0 %v652, 90
      %v3398 = vpop.permute.xlu0 %3397
      %3399 = vrot.lane.b32.xlu0 %v657, 90
      %v3400 = vpop.permute.xlu0 %3399
      %v3401 = vsel %vm1508, %v3396, %v3398
      %v3402 = vsel %vm1508, %v3398, %v3400
      %v3404 = vsel %vm672, %v3394, 0
      %v3407 = vsel %vm676, %v3401, 0
      %v3410 = vsel %vm676, %v3402, 0
      %v3413 = vsel %vm676, %v3400, 0
      %3415 = vmatprep.subr.bf16.mxu0 %v3410
      %3416 = vmatpush1.bf16.msra.mxu0 %v3407
      %3417 = vmatprep.subr.bf16.mxu0 0
      %3418 = vmatpush1.bf16.msra.mxu0 0
      %3419 = vmatprep.subr.bf16.mxu0 0
      %3420 = vmatpush1.bf16.msra.mxu0 0
      %3421 = vmatprep.subr.bf16.mxu0 0
      %3422 = vmatpush1.bf16.msra.mxu0 0
      %3423 = vmatprep.subr.bf16.mxu0 0
      %3424 = vmatpush1.bf16.msra.mxu0 0
      %3425 = vmatprep.subr.bf16.mxu0 0
      %3426 = vmatpush1.bf16.msra.mxu0 0
      %3427 = vmatprep.subr.bf16.mxu0 0
      %3428 = vmatpush1.bf16.msra.mxu0 0
      %3429 = vmatprep.subr.bf16.mxu0 0
      %3430 = vmatpush1.bf16.msra.mxu0 0
      %3431 = vmatprep.subr.bf16.mxu0 0
      %3432 = vmatpush1.bf16.msra.mxu0 0
      %3433 = vmatprep.subr.bf16.mxu0 0
      %3434 = vmatpush1.bf16.msra.mxu0 0
      %3435 = vmatprep.subr.bf16.mxu0 0
      %3436 = vmatpush1.bf16.msra.mxu0 0
      %3437 = vmatprep.subr.bf16.mxu0 0
      %3438 = vmatpush1.bf16.msra.mxu0 0
      %3439 = vmatprep.subr.bf16.mxu0 0
      %3440 = vmatpush1.bf16.msra.mxu0 0
      %3441 = vmatprep.subr.bf16.mxu0 0
      %3442 = vmatpush1.bf16.msra.mxu0 0
      %3443 = vmatprep.subr.bf16.mxu0 0
      %3444 = vmatpush1.bf16.msra.mxu0 0
      %3445 = vmatprep.subr.bf16.mxu0 0
      %3446 = vmatpush1.bf16.msra.mxu0 0
      %3447 = vmatprep.mubr.bf16.mxu0 0
      %3448 = vmatmul.mubr.bf16.gmra.mrb[0].mxu0 %v3404
      %v3449 = vpop.f32.mrb[0].mxu0
      %v3450 = vadd.f32 0.0, %v3449
      %v3451 = vpop.f32.mrb[0].mxu0
      %v3452 = vadd.f32 0.0, %v3451
      %v3453 = vpop.f32.mrb[0].mxu0
      %v3454 = vpop.f32.mrb[0].mxu0
      %3455 = vdwg.mxu0
      %3456 = vmatprep.subr.bf16.mxu0 0
      %3457 = vmatpush1.bf16.msra.mxu0 %v3413
      %3458 = vmatprep.subr.bf16.mxu0 0
      %3459 = vmatpush1.bf16.msra.mxu0 0
      %3460 = vmatprep.subr.bf16.mxu0 0
      %3461 = vmatpush1.bf16.msra.mxu0 0
      %3462 = vmatprep.subr.bf16.mxu0 0
      %3463 = vmatpush1.bf16.msra.mxu0 0
      %3464 = vmatprep.subr.bf16.mxu0 0
      %3465 = vmatpush1.bf16.msra.mxu0 0
      %3466 = vmatprep.subr.bf16.mxu0 0
      %3467 = vmatpush1.bf16.msra.mxu0 0
      %3468 = vmatprep.subr.bf16.mxu0 0
      %3469 = vmatpush1.bf16.msra.mxu0 0
      %3470 = vmatprep.subr.bf16.mxu0 0
      %3471 = vmatpush1.bf16.msra.mxu0 0
      %3472 = vmatprep.subr.bf16.mxu0 0
      %3473 = vmatpush1.bf16.msra.mxu0 0
      %3474 = vmatprep.subr.bf16.mxu0 0
      %3475 = vmatpush1.bf16.msra.mxu0 0
      %3476 = vmatprep.subr.bf16.mxu0 0
      %3477 = vmatpush1.bf16.msra.mxu0 0
      %3478 = vmatprep.subr.bf16.mxu0 0
      %3479 = vmatpush1.bf16.msra.mxu0 0
      %3480 = vmatprep.subr.bf16.mxu0 0
      %3481 = vmatpush1.bf16.msra.mxu0 0
      %3482 = vmatprep.subr.bf16.mxu0 0
      %3483 = vmatpush1.bf16.msra.mxu0 0
      %3484 = vmatprep.subr.bf16.mxu0 0
      %3485 = vmatpush1.bf16.msra.mxu0 0
      %3486 = vmatprep.subr.bf16.mxu0 0
      %3487 = vmatpush1.bf16.msra.mxu0 0
      %3488 = vmatprep.mubr.bf16.mxu0 0
      %3489 = vmatmul.mubr.bf16.gmra.mrb[0].mxu0 %v3404
      %v3490 = vpop.f32.mrb[0].mxu0
      %v3491 = vadd.f32 0.0, %v3490
      %v3492 = vpop.f32.mrb[0].mxu0
      %v3493 = vpop.f32.mrb[0].mxu0
      %v3494 = vpop.f32.mrb[0].mxu0
      %3495 = vdwg.mxu0
      %v3496 = vadd.f32 %v3390, %v3450
      %v3497 = vadd.f32 %v3391, %v3452
      %v3498 = vadd.f32 %v3392, %v3491
      %v3501 = vcombine.low %v3496, %v3497
      %3503 = vst [vmem:[%s464] sm:$0xff] %v3501
      %vm3504 = vcmask 551936
      %3505 = vst.msk [vmem:[%s464 + $0x8] sm:$0xf] %vm3504, %v3498
      %v3506 = vmul.f32 %v3496, %v572
      %v3507 = vmul.f32 %v3497, %v576
      %v3508 = vmul.f32 %v3498, %v580
      %vm3509 = vcmask 1043456
      %v3510 = vsel %vm3509, %v3506, 0.0
      %v3511 = vsel %vm3509, %v3507, 0.0
      %v3512 = vadd.f32 %v3510, %v3511
      %v3513 = vsel %vm3504, %v3508, 0.0
      %v3514 = vadd.f32 %v3512, %v3513
      %3515 = vadd.xlane.f32.xlu0 %v3514
      %v3516 = vpop.xlane.xlu0 %3515
      %v3517 = vmul.f32 %v3506, %v3506
      %v3518 = vmul.f32 %v3507, %v3507
      %v3519 = vmul.f32 %v3508, %v3508
      %v3520 = vsel %vm3509, %v3517, 0.0
      %v3521 = vsel %vm3509, %v3518, 0.0
      %v3522 = vadd.f32 %v3520, %v3521
      %v3523 = vsel %vm3504, %v3519, 0.0
      %v3524 = vadd.f32 %v3522, %v3523
      %3525 = vadd.xlane.f32.xlu0 %v3524
      %v3526 = vpop.xlane.xlu0 %3525
      %vm3527 = vcmask 7168
      %v3528 = vsel %vm3527, %v3516, %v3526
      %vm3529 = vcmask 11264
      %3530 = vst.msk [vmem:[%s472] sm:$0xf] %vm3529, %v3528
      %p3531 = scmp.lt.s32.totalorder %s24, 1
      %s3532 = scalar_select %p3531, %s24, 1
      %p3533 = scmp.lt.s32.totalorder %s25, 7
      %s3534 = scalar_select %p3533, %s25, 7
      %s3535 = smul.addr %s3534, 3
      %s3536 = smul.addr %s3532, 24
      %s3537 = sadd.s32 %s3535, %s3536
      %s3538 = smul.addr %s3537, 4
      %s3539 = scalar_lea.vmem %s7, %s3538
      %p3540 = scmp.lt.s32.totalorder %s24, 1
      %s3541 = scalar_select %p3540, %s24, 1
      %p3542 = scmp.lt.s32.totalorder %s25, 7
      %s3543 = scalar_select %p3542, %s25, 7
      %s3544 = smul.addr %s3541, 8
      %s3545 = sadd.s32 %s3543, %s3544
      %s3546 = smul.addr %s3545, 4
      %s3547 = scalar_lea.vmem %s8, %s3546
      // Predicated region
      $region49: #{res_block3d_forward.4} parent=47 // pred_check
        %p3548 = pneg %p232
      $region50: #{res_block3d_forward.4} parent=47 // pred_check_branch
        %3550 = sbr.rel (%p3548) target = $region52
      $region51: #{res_block3d_forward.4} parent=47 // pred_region
        _
      $region52: #{res_block3d_forward.4} parent=47 // pred_fallthru
        _
      // Predicated region
      $region53: #{res_block3d_forward.4} parent=47 // pred_check
        %p3551 = pneg %p260
      $region54: #{res_block3d_forward.4} parent=47 // pred_check_branch
        %3553 = sbr.rel (%p3551) target = $region56
      $region55: #{res_block3d_forward.4} parent=47 // pred_region
        _
      $region56: #{res_block3d_forward.4} parent=47 // pred_fallthru
        _
    $region48: #{res_block3d_forward.4} parent=5 // pred_fallthru
      _
    %p3554 = scmp.le.s32.totalorder 2, %s15
    // Predicated region
    $region57: #{res_block3d_forward.4} parent=5 // pred_check
      %p3555 = pneg %p3554
    $region58: #{res_block3d_forward.4} parent=5 // pred_check_branch
      %3557 = sbr.rel (%p3555) target = $region60
    $region59: #{res_block3d_forward.4} parent=5 // pred_region
      %s3558 = ssub.s32 %s15, 2
      // Predicated region
      $region61: #{res_block3d_forward.4} parent=59 // pred_check
        %p3559 = pneg %p238
      $region62: #{res_block3d_forward.4} parent=59 // pred_check_branch
        %3561 = sbr.rel (%p3559) target = $region64
      $region63: #{res_block3d_forward.4} parent=59 // pred_region
        %p3562 = scmp.lt.s32.totalorder %s26, 1
        %s3563 = scalar_select %p3562, %s26, 1
        %p3564 = scmp.lt.s32.totalorder %s27, 7
        %s3565 = scalar_select %p3564, %s27, 7
        %s3566 = smul.addr %s3565, 3
        %s3567 = smul.addr %s3563, 24
        %s3568 = sadd.s32 %s3566, %s3567
        %s3569 = smul.addr %s3568, 4
        %s3570 = scalar_lea.vmem %s7, %s3569
      $region64: #{res_block3d_forward.4} parent=59 // pred_fallthru
        _
      // Predicated region
      $region65: #{res_block3d_forward.4} parent=59 // pred_check
        %p3571 = pneg %p266
      $region66: #{res_block3d_forward.4} parent=59 // pred_check_branch
        %3573 = sbr.rel (%p3571) target = $region68
      $region67: #{res_block3d_forward.4} parent=59 // pred_region
        %p3574 = scmp.lt.s32.totalorder %s26, 1
        %s3575 = scalar_select %p3574, %s26, 1
        %p3576 = scmp.lt.s32.totalorder %s27, 7
        %s3577 = scalar_select %p3576, %s27, 7
        %s3578 = smul.addr %s3575, 8
        %s3579 = sadd.s32 %s3577, %s3578
        %s3580 = smul.addr %s3579, 4
        %s3581 = scalar_lea.vmem %s8, %s3580
      $region68: #{res_block3d_forward.4} parent=59 // pred_fallthru
        _
    $region60: #{res_block3d_forward.4} parent=5 // pred_fallthru
      _
  $region6: #{res_block3d_forward.4} parent=0 // loop_footer
    %s19 = sadd.s32 1, %s15
  $region7: #{res_block3d_forward.4} parent=0 // loop_footer_branch
    %14 = sbr.rel target = $region3
  $region8: #{res_block3d_forward.4} parent=0 // loop_exit
    _

</llo_original>
